<compile_context>
chip_gen: v6e
topology: v6e:2x2x1
jax: 0.10.0
libtpu: 0.0.40
codegen_flags: <defaults>
</compile_context>

<pallas_src>
import functools

import jax
import jax.numpy as jnp
from jax.experimental import pallas as pl
from jax.experimental.pallas import tpu as pltpu


# --------------------------------------------------------------------------
# Fused kernel
# --------------------------------------------------------------------------

def _context_encoder_kernel(*refs, cfg):
    """cfg: per-bottleneck tuple (H, W, dilation, has_proj, subsample_after).

    Ref order: [cols, stem_w, stem_b] + per-block [w1,b1,w2,b2,w3,b3,
    (w4,b4 if proj), (S if subsample)] + [head_w, head_b] + [out].
    """
    refs = list(refs)
    out_ref = refs.pop()
    it = iter(refs)

    def matmul(w_ref, x, b_ref):
        # bf16 x bf16 -> f32 on the MXU, bias add in f32 on the VPU.
        return (jnp.dot(w_ref[...], x, preferred_element_type=jnp.float32)
                + b_ref[...])

    # ---- stem: 7x7 stride-2 conv as a single GEMM over the im2col matrix --
    cols_ref, w0_ref, b0_ref = next(it), next(it), next(it)
    x = jnp.maximum(matmul(w0_ref, cols_ref[...], b0_ref), 0.0)
    x = x.astype(jnp.bfloat16)                               # (32, N*H1*W1)

    for (H, W, dil, has_proj, subsample) in cfg:
        w1_ref, b1_ref = next(it), next(it)
        w2_ref, b2_ref = next(it), next(it)
        w3_ref, b3_ref = next(it), next(it)
        w4_ref = b4_ref = s_ref = None
        if has_proj:
            w4_ref, b4_ref = next(it), next(it)
        if subsample:
            s_ref = next(it)

        M = x.shape[1]

        # conv1 (1x1) + ReLU.  Kept in f32: the lane rolls below run on
        # 32-bit data; the single bf16 cast happens on the tap matrix.
        t1 = jnp.maximum(matmul(w1_ref, x, b1_ref), 0.0)     # (Cmid, M) f32

        # conv2 (3x3, pad=1) as ONE im2col dot.  `dil` re-expresses a
        # stride-2 predecessor: the true (subsampled) grid lives on the even
        # rows/cols, so neighbours are `dil` lanes*W apart and the same edge
        # rule (0 <= pos <= dim - dil) masks out-of-range reads.  Masked
        # positions also cover any roll wrap-around across rows/images.
        lane = jax.lax.broadcasted_iota(jnp.int32, (1, M), 1)
        wp = jnp.bitwise_and(lane, W - 1)                    # W, H: powers of 2
        hp = jnp.bitwise_and(jnp.right_shift(lane, W.bit_length() - 1), H - 1)
        taps = []
        for di in (-1, 0, 1):
            for dj in (-1, 0, 1):
                k = dil * (di * W + dj)
                if k == 0:
                    taps.append(t1)
                    continue
                tap = pltpu.roll(t1, shift=(-k) % M, axis=1)  # out[m] = t1[m+k]
                hv = hp + dil * di
                wv = wp + dil * dj
                valid = ((hv >= 0) & (hv <= H - dil) &
                         (wv >= 0) & (wv <= W - dil))
                taps.append(jnp.where(valid, tap, 0.0))
        tapmat = jnp.concatenate(taps, axis=0).astype(jnp.bfloat16)  # (9C, M)
        t2 = jnp.maximum(matmul(w2_ref, tapmat, b2_ref), 0.0)
        t2 = t2.astype(jnp.bfloat16)                          # (Cmid, M)

        # conv3 (1x1) + ReLU, residual branch, final ReLU.
        y = jnp.maximum(matmul(w3_ref, t2, b3_ref), 0.0)      # (Cout, M) f32
        if has_proj:
            z = matmul(w4_ref, x, b4_ref)
        else:
            z = x.astype(jnp.float32)
        x = jnp.maximum(y + z, 0.0).astype(jnp.bfloat16)      # (Cout, M)

        # In-kernel stride-2 spatial subsample via a 0/1 selection matmul.
        if subsample:
            x = jnp.dot(x, s_ref[...],
                        preferred_element_type=jnp.float32).astype(jnp.bfloat16)

    # ---- head: final 1x1 conv (no activation), f32 output ----
    wf_ref, bf_ref = next(it), next(it)
    out_ref[...] = matmul(wf_ref, x, bf_ref)


# --------------------------------------------------------------------------
# Wrapper-side preprocessing (im2col for the stem, subsample matrices)
# --------------------------------------------------------------------------

def _stem_kpad(cin):
    return ((49 * cin + 15) // 16) * 16


def _im2col_stem(x):
    # x: (N, C, H, W) f32; 7x7 conv, stride 2, pad 3 -> (KPAD, N*Ho*Wo) bf16.
    N, C, H, W = x.shape
    Ho, Wo = H // 2, W // 2
    xp = jnp.pad(x, ((0, 0), (0, 0), (3, 3), (3, 3)))
    patches = []
    for i in range(7):
        for j in range(7):
            patches.append(xp[:, :, i:i + 2 * Ho - 1:2, j:j + 2 * Wo - 1:2])
    cols = jnp.stack(patches, 0)                       # (49, N, C, Ho, Wo)
    cols = cols.transpose(0, 2, 1, 3, 4).reshape(49 * C, N * Ho * Wo)
    cols = jnp.pad(cols, ((0, _stem_kpad(C) - 49 * C), (0, 0)))
    return cols.astype(jnp.bfloat16)


def _subsample_matrix(n, H, W):
    # 0/1 matrix selecting even (h, w) columns: (n*H*W, n*(H//2)*(W//2)).
    Ho, Wo = H // 2, W // 2
    M, Mo = n * H * W, n * Ho * Wo
    dst = jnp.arange(Mo)
    ni, r = dst // (Ho * Wo), dst % (Ho * Wo)
    ho, wo = r // Wo, r % Wo
    src = ni * H * W + 2 * ho * W + 2 * wo
    s = jnp.zeros((M, Mo), jnp.float32).at[src, dst].set(1.0)
    return s.astype(jnp.bfloat16)


# --------------------------------------------------------------------------
# Forward pass
# --------------------------------------------------------------------------

@jax.jit
def context_encoder_forward(image_nchw, prep):
    N, _, H, W = image_nchw.shape
    H1, W1 = H // 2, W // 2          # after the stride-2 stem
    H2, W2 = H1 // 2, W1 // 2        # after the res2 downsample
    Hf, Wf = H2 // 2, W2 // 2        # after the res3 downsample
    for v in (H1, W1, H2, W2):
        assert v > 2 and (v & (v - 1)) == 0, "spatial dims must be powers of 2"
    assert (N * H1 * W1) % 128 == 0 and (N * H2 * W2) % 128 == 0

    cols = _im2col_stem(image_nchw)             # (KPAD, N*H1*W1) bf16
    s1 = _subsample_matrix(N, H1, W1)           # (N*H1*W1, N*H2*W2)
    s2 = _subsample_matrix(N, H2, W2)           # (N*H2*W2, N*Hf*Wf)

    # (H, W, dilation, has_proj, subsample_after) per bottleneck.  Stride-2
    # blocks (idx 2 and 4) are computed at full resolution; block 2's output
    # is subsampled immediately, block 4's subsample is deferred by running
    # block 5 as a dilation-2 conv so the lane dimension stays >= 128, and
    # the final subsample happens just before the head GEMM.
    cfg = ((H1, W1, 1, False, False),
           (H1, W1, 1, False, False),
           (H1, W1, 1, True,  True),
           (H2, W2, 1, False, False),
           (H2, W2, 1, True,  False),
           (H2, W2, 2, False, True))
    s_for_block = {2: s1, 5: s2}

    args = [cols, *prep['stem']]
    for i, (bq, (_, _, _, has_proj, subsample)) in enumerate(
            zip(prep['blocks'], cfg)):
        assert ('c4' in bq) == has_proj
        args += [*bq['c1'], *bq['c2'], *bq['c3']]
        if has_proj:
            args += [*bq['c4']]
        if subsample:
            args.append(s_for_block[i])
    args += [*prep['head']]

    out_dim = prep['head'][0].shape[0]
    out = pl.pallas_call(
        functools.partial(_context_encoder_kernel, cfg=cfg),
        out_shape=jax.ShapeDtypeStruct((out_dim, N * Hf * Wf), jnp.float32),
    )(*args)
    return out.reshape(out_dim, N, Hf, Wf).transpose(1, 0, 2, 3)   # NCHW


# --------------------------------------------------------------------------
# Parameter init (torch layout) and one-time GEMM-form preparation
# --------------------------------------------------------------------------

def init_conv(key, cout, cin, kh, kw):
    kw_, kb = jax.random.split(key)
    fan_in = cin * kh * kw
    w = jax.random.normal(kw_, (cout, cin, kh, kw), jnp.float32) / jnp.sqrt(fan_in)
    b = 0.01 * jax.random.normal(kb, (cout,), jnp.float32)
    return (w, b)


def init_bottleneck(key, cin, cout, stride):
    ks = jax.random.split(key, 4)
    p = {'stride': stride,
         'c1': init_conv(ks[0], cout // 4, cin, 1, 1),
         'c2': init_conv(ks[1], cout // 4, cout // 4, 3, 3),
         'c3': init_conv(ks[2], cout, cout // 4, 1, 1)}
    if stride != 1:
        p['c4'] = init_conv(ks[3], cout, cin, 1, 1)
    return p


def init_context_encoder(key, input_dim=3, output_dim=128):
    ks = jax.random.split(key, 8)
    return {
        'conv1': init_conv(ks[0], 32, input_dim, 7, 7),
        'res1': [init_bottleneck(ks[1], 32, 32, 1),
                 init_bottleneck(ks[2], 32, 32, 1)],
        'res2': [init_bottleneck(ks[3], 32, 64, 2),
                 init_bottleneck(ks[4], 64, 64, 1)],
        'res3': [init_bottleneck(ks[5], 64, 96, 2),
                 init_bottleneck(ks[6], 96, 96, 1)],
        'conv2': init_conv(ks[7], output_dim, 96, 1, 1),
    }


def _prep_1x1(wb):
    w, b = wb
    cout, cin = w.shape[:2]
    return (w.reshape(cout, cin).astype(jnp.bfloat16),
            b.reshape(cout, 1).astype(jnp.float32))


def _prep_3x3(wb):
    w, b = wb
    cmid = w.shape[0]
    # (co, ci, kh, kw) -> (co, 9*ci); column (kh*3 + kw)*cmid + ci matches the
    # kernel's tap stacking order ((di, dj) row-major, channel minor).
    wm = jnp.transpose(w, (2, 3, 1, 0)).reshape(9 * cmid, cmid).T
    return wm.astype(jnp.bfloat16), b.reshape(cmid, 1).astype(jnp.float32)


def _prep_stem(wb):
    w, b = wb
    cout, cin, kh, kw = w.shape
    wm = jnp.transpose(w, (2, 3, 1, 0)).reshape(kh * kw * cin, cout).T
    wm = jnp.pad(wm, ((0, 0), (0, _stem_kpad(cin) - kh * kw * cin)))
    return wm.astype(jnp.bfloat16), b.reshape(cout, 1).astype(jnp.float32)


def prepare_params(params):
    """One-time conversion of torch-layout params into (Cout, Cin) bf16 GEMM form."""
    prep = {'stem': _prep_stem(params['conv1']),
            'head': _prep_1x1(params['conv2']),
            'blocks': []}
    for p in params['res1'] + params['res2'] + params['res3']:
        q = {'c1': _prep_1x1(p['c1']),
             'c2': _prep_3x3(p['c2']),
             'c3': _prep_1x1(p['c3'])}
        if p['stride'] != 1:
            q['c4'] = _prep_1x1(p['c4'])
        prep['blocks'].append(q)
    return prep


# --------------------------------------------------------------------------
# Pure-JAX reference (mirrors the kernel's bf16 weight/activation precision,
# f32 accumulation), used to validate structural correctness of the kernel.
# --------------------------------------------------------------------------

def _q(a):
    return a.astype(jnp.bfloat16).astype(jnp.float32)


def _ref_conv(x, wb, stride, pad):
    w, b = wb
    out = jax.lax.conv_general_dilated(
        _q(x), _q(w), (stride, stride), [(pad, pad), (pad, pad)],
        dimension_numbers=('NCHW', 'OIHW', 'NCHW'))
    return out + b[None, :, None, None]


def _ref_bottleneck(x, p):
    s = p['stride']
    y = jax.nn.relu(_ref_conv(x, p['c1'], 1, 0))
    y = jax.nn.relu(_ref_conv(y, p['c2'], s, 1))
    y = jax.nn.relu(_ref_conv(y, p['c3'], 1, 0))
    z = _ref_conv(x, p['c4'], s, 0) if s != 1 else x
    return _q(jax.nn.relu(z + y))


def _ref_forward(x, params):
    y = _q(jax.nn.relu(_ref_conv(x, params['conv1'], 2, 3)))
    for p in params['res1'] + params['res2'] + params['res3']:
        y = _ref_bottleneck(y, p)
    return _ref_conv(y, params['conv2'], 1, 0)


# --------------------------------------------------------------------------
# Main
# --------------------------------------------------------------------------

if __name__ == "__main__":
    key = jax.random.PRNGKey(0)
    k_img, k_par = jax.random.split(key)

    # Small NCHW image, like the PyTorch module: (batch=2, channels=3, 32x32).
    image1 = jax.random.normal(k_img, (2, 3, 32, 32), jnp.float32)
    params = init_context_encoder(k_par, input_dim=3, output_dim=128)
    prep = prepare_params(params)

    out = jax.block_until_ready(context_encoder_forward(image1, prep))
    assert out.shape == (2, 128, 4, 4), out.shape

    ref = jax.block_until_ready(_ref_forward(image1, params))
    max_err = float(jnp.max(jnp.abs(out - ref)))
    assert jnp.allclose(out, ref, rtol=2e-2, atol=2e-2), max_err

    print("KERNEL_OK")
</pallas_src>

<mosaic_0001>
module attributes {stable_mosaic.version = 11 : i64} {
  func.func @_context_encoder_kernel(%arg0: memref<160x512xbf16, #tpu.memory_space<vmem>>, %arg1: memref<32x160xbf16, #tpu.memory_space<vmem>>, %arg2: memref<32x1xf32, #tpu.memory_space<vmem>>, %arg3: memref<8x32xbf16, #tpu.memory_space<vmem>>, %arg4: memref<8x1xf32, #tpu.memory_space<vmem>>, %arg5: memref<8x72xbf16, #tpu.memory_space<vmem>>, %arg6: memref<8x1xf32, #tpu.memory_space<vmem>>, %arg7: memref<32x8xbf16, #tpu.memory_space<vmem>>, %arg8: memref<32x1xf32, #tpu.memory_space<vmem>>, %arg9: memref<8x32xbf16, #tpu.memory_space<vmem>>, %arg10: memref<8x1xf32, #tpu.memory_space<vmem>>, %arg11: memref<8x72xbf16, #tpu.memory_space<vmem>>, %arg12: memref<8x1xf32, #tpu.memory_space<vmem>>, %arg13: memref<32x8xbf16, #tpu.memory_space<vmem>>, %arg14: memref<32x1xf32, #tpu.memory_space<vmem>>, %arg15: memref<16x32xbf16, #tpu.memory_space<vmem>>, %arg16: memref<16x1xf32, #tpu.memory_space<vmem>>, %arg17: memref<16x144xbf16, #tpu.memory_space<vmem>>, %arg18: memref<16x1xf32, #tpu.memory_space<vmem>>, %arg19: memref<64x16xbf16, #tpu.memory_space<vmem>>, %arg20: memref<64x1xf32, #tpu.memory_space<vmem>>, %arg21: memref<64x32xbf16, #tpu.memory_space<vmem>>, %arg22: memref<64x1xf32, #tpu.memory_space<vmem>>, %arg23: memref<512x128xbf16, #tpu.memory_space<vmem>>, %arg24: memref<16x64xbf16, #tpu.memory_space<vmem>>, %arg25: memref<16x1xf32, #tpu.memory_space<vmem>>, %arg26: memref<16x144xbf16, #tpu.memory_space<vmem>>, %arg27: memref<16x1xf32, #tpu.memory_space<vmem>>, %arg28: memref<64x16xbf16, #tpu.memory_space<vmem>>, %arg29: memref<64x1xf32, #tpu.memory_space<vmem>>, %arg30: memref<24x64xbf16, #tpu.memory_space<vmem>>, %arg31: memref<24x1xf32, #tpu.memory_space<vmem>>, %arg32: memref<24x216xbf16, #tpu.memory_space<vmem>>, %arg33: memref<24x1xf32, #tpu.memory_space<vmem>>, %arg34: memref<96x24xbf16, #tpu.memory_space<vmem>>, %arg35: memref<96x1xf32, #tpu.memory_space<vmem>>, %arg36: memref<96x64xbf16, #tpu.memory_space<vmem>>, %arg37: memref<96x1xf32, #tpu.memory_space<vmem>>, %arg38: memref<24x96xbf16, #tpu.memory_space<vmem>>, %arg39: memref<24x1xf32, #tpu.memory_space<vmem>>, %arg40: memref<24x216xbf16, #tpu.memory_space<vmem>>, %arg41: memref<24x1xf32, #tpu.memory_space<vmem>>, %arg42: memref<96x24xbf16, #tpu.memory_space<vmem>>, %arg43: memref<96x1xf32, #tpu.memory_space<vmem>>, %arg44: memref<128x32xbf16, #tpu.memory_space<vmem>>, %arg45: memref<128x96xbf16, #tpu.memory_space<vmem>>, %arg46: memref<128x1xf32, #tpu.memory_space<vmem>>, %arg47: memref<128x32xf32, #tpu.memory_space<vmem>>) attributes {dimension_semantics = [], scalar_prefetch = 0 : i64, scratch_operands = 0 : i64, tpu.core_type = #tpu.core_type<tc>} {
    %c0 = arith.constant 0 : index
    %c0_0 = arith.constant 0 : index
    %0 = vector.load %arg0[%c0, %c0_0] : memref<160x512xbf16, #tpu.memory_space<vmem>>, vector<160x512xbf16>
    %c0_1 = arith.constant 0 : index
    %c0_2 = arith.constant 0 : index
    %1 = vector.load %arg1[%c0_1, %c0_2] : memref<32x160xbf16, #tpu.memory_space<vmem>>, vector<32x160xbf16>
    %cst = arith.constant dense<0.000000e+00> : vector<32x512xf32>
    %2 = tpu.matmul %1, %0, %cst {dimension_numbers = #tpu.dot_dimension_numbers<[1], [0], [0], [1], [0, 0, 1, 1], [], []>} : vector<32x160xbf16>, vector<160x512xbf16>, vector<32x512xf32> -> vector<32x512xf32>
    %c0_3 = arith.constant 0 : index
    %c0_4 = arith.constant 0 : index
    %3 = vector.load %arg2[%c0_3, %c0_4] : memref<32x1xf32, #tpu.memory_space<vmem>>, vector<32x1xf32>
    %4 = vector.broadcast %3 : vector<32x1xf32> to vector<32x512xf32>
    %5 = arith.addf %2, %4 : vector<32x512xf32>
    %cst_5 = arith.constant 0.000000e+00 : f32
    %6 = vector.broadcast %cst_5 : f32 to vector<32x512xf32>
    %7 = arith.maximumf %5, %6 : vector<32x512xf32>
    %8 = arith.truncf %7 : vector<32x512xf32> to vector<32x512xbf16>
    %c0_6 = arith.constant 0 : index
    %c0_7 = arith.constant 0 : index
    %9 = vector.load %arg3[%c0_6, %c0_7] : memref<8x32xbf16, #tpu.memory_space<vmem>>, vector<8x32xbf16>
    %cst_8 = arith.constant dense<0.000000e+00> : vector<8x512xf32>
    %10 = tpu.matmul %9, %8, %cst_8 {dimension_numbers = #tpu.dot_dimension_numbers<[1], [0], [0], [1], [0, 0, 1, 1], [], []>} : vector<8x32xbf16>, vector<32x512xbf16>, vector<8x512xf32> -> vector<8x512xf32>
    %c0_9 = arith.constant 0 : index
    %c0_10 = arith.constant 0 : index
    %11 = vector.load %arg4[%c0_9, %c0_10] : memref<8x1xf32, #tpu.memory_space<vmem>>, vector<8x1xf32>
    %12 = vector.broadcast %11 : vector<8x1xf32> to vector<8x512xf32>
    %13 = arith.addf %10, %12 : vector<8x512xf32>
    %cst_11 = arith.constant 0.000000e+00 : f32
    %14 = vector.broadcast %cst_11 : f32 to vector<8x512xf32>
    %15 = arith.maximumf %13, %14 : vector<8x512xf32>
    %16 = tpu.iota {dimensions = array<i32: 1>} : vector<1x512xi32>
    %c15_i32 = arith.constant 15 : i32
    %17 = vector.broadcast %c15_i32 : i32 to vector<1x512xi32>
    %18 = arith.andi %16, %17 : vector<1x512xi32>
    %c4_i32 = arith.constant 4 : i32
    %19 = vector.broadcast %c4_i32 : i32 to vector<1x512xi32>
    %20 = arith.shrsi %16, %19 : vector<1x512xi32>
    %c15_i32_12 = arith.constant 15 : i32
    %21 = vector.broadcast %c15_i32_12 : i32 to vector<1x512xi32>
    %22 = arith.andi %20, %21 : vector<1x512xi32>
    %c17_i32 = arith.constant 17 : i32
    %23 = tpu.dynamic_rotate %15 by %c17_i32 dim 1 : vector<8x512xf32>, i32 -> vector<8x512xf32>
    %c-1_i32 = arith.constant -1 : i32
    %24 = vector.broadcast %c-1_i32 : i32 to vector<1x512xi32>
    %25 = arith.addi %22, %24 : vector<1x512xi32>
    %c-1_i32_13 = arith.constant -1 : i32
    %26 = vector.broadcast %c-1_i32_13 : i32 to vector<1x512xi32>
    %27 = arith.addi %18, %26 : vector<1x512xi32>
    %c0_i32 = arith.constant 0 : i32
    %28 = vector.broadcast %c0_i32 : i32 to vector<1x512xi32>
    %29 = arith.cmpi sge, %25, %28 : vector<1x512xi32>
    %c15_i32_14 = arith.constant 15 : i32
    %30 = vector.broadcast %c15_i32_14 : i32 to vector<1x512xi32>
    %31 = arith.cmpi sle, %25, %30 : vector<1x512xi32>
    %32 = arith.andi %29, %31 : vector<1x512xi1>
    %c0_i32_15 = arith.constant 0 : i32
    %33 = vector.broadcast %c0_i32_15 : i32 to vector<1x512xi32>
    %34 = arith.cmpi sge, %27, %33 : vector<1x512xi32>
    %35 = arith.andi %32, %34 : vector<1x512xi1>
    %c15_i32_16 = arith.constant 15 : i32
    %36 = vector.broadcast %c15_i32_16 : i32 to vector<1x512xi32>
    %37 = arith.cmpi sle, %27, %36 : vector<1x512xi32>
    %38 = arith.andi %35, %37 : vector<1x512xi1>
    %cst_17 = arith.constant 0.000000e+00 : f32
    %39 = vector.shape_cast %38 : vector<1x512xi1> to vector<1x512xi1>
    %40 = vector.broadcast %39 : vector<1x512xi1> to vector<8x512xi1>
    %41 = vector.broadcast %cst_17 : f32 to vector<8x512xf32>
    %42 = arith.select %40, %23, %41 : vector<8x512xi1>, vector<8x512xf32>
    %c16_i32 = arith.constant 16 : i32
    %43 = tpu.dynamic_rotate %15 by %c16_i32 dim 1 : vector<8x512xf32>, i32 -> vector<8x512xf32>
    %c-1_i32_18 = arith.constant -1 : i32
    %44 = vector.broadcast %c-1_i32_18 : i32 to vector<1x512xi32>
    %45 = arith.addi %22, %44 : vector<1x512xi32>
    %c0_i32_19 = arith.constant 0 : i32
    %46 = vector.broadcast %c0_i32_19 : i32 to vector<1x512xi32>
    %47 = arith.addi %18, %46 : vector<1x512xi32>
    %c0_i32_20 = arith.constant 0 : i32
    %48 = vector.broadcast %c0_i32_20 : i32 to vector<1x512xi32>
    %49 = arith.cmpi sge, %45, %48 : vector<1x512xi32>
    %c15_i32_21 = arith.constant 15 : i32
    %50 = vector.broadcast %c15_i32_21 : i32 to vector<1x512xi32>
    %51 = arith.cmpi sle, %45, %50 : vector<1x512xi32>
    %52 = arith.andi %49, %51 : vector<1x512xi1>
    %c0_i32_22 = arith.constant 0 : i32
    %53 = vector.broadcast %c0_i32_22 : i32 to vector<1x512xi32>
    %54 = arith.cmpi sge, %47, %53 : vector<1x512xi32>
    %55 = arith.andi %52, %54 : vector<1x512xi1>
    %c15_i32_23 = arith.constant 15 : i32
    %56 = vector.broadcast %c15_i32_23 : i32 to vector<1x512xi32>
    %57 = arith.cmpi sle, %47, %56 : vector<1x512xi32>
    %58 = arith.andi %55, %57 : vector<1x512xi1>
    %cst_24 = arith.constant 0.000000e+00 : f32
    %59 = vector.shape_cast %58 : vector<1x512xi1> to vector<1x512xi1>
    %60 = vector.broadcast %59 : vector<1x512xi1> to vector<8x512xi1>
    %61 = vector.broadcast %cst_24 : f32 to vector<8x512xf32>
    %62 = arith.select %60, %43, %61 : vector<8x512xi1>, vector<8x512xf32>
    %c15_i32_25 = arith.constant 15 : i32
    %63 = tpu.dynamic_rotate %15 by %c15_i32_25 dim 1 : vector<8x512xf32>, i32 -> vector<8x512xf32>
    %c-1_i32_26 = arith.constant -1 : i32
    %64 = vector.broadcast %c-1_i32_26 : i32 to vector<1x512xi32>
    %65 = arith.addi %22, %64 : vector<1x512xi32>
    %c1_i32 = arith.constant 1 : i32
    %66 = vector.broadcast %c1_i32 : i32 to vector<1x512xi32>
    %67 = arith.addi %18, %66 : vector<1x512xi32>
    %c0_i32_27 = arith.constant 0 : i32
    %68 = vector.broadcast %c0_i32_27 : i32 to vector<1x512xi32>
    %69 = arith.cmpi sge, %65, %68 : vector<1x512xi32>
    %c15_i32_28 = arith.constant 15 : i32
    %70 = vector.broadcast %c15_i32_28 : i32 to vector<1x512xi32>
    %71 = arith.cmpi sle, %65, %70 : vector<1x512xi32>
    %72 = arith.andi %69, %71 : vector<1x512xi1>
    %c0_i32_29 = arith.constant 0 : i32
    %73 = vector.broadcast %c0_i32_29 : i32 to vector<1x512xi32>
    %74 = arith.cmpi sge, %67, %73 : vector<1x512xi32>
    %75 = arith.andi %72, %74 : vector<1x512xi1>
    %c15_i32_30 = arith.constant 15 : i32
    %76 = vector.broadcast %c15_i32_30 : i32 to vector<1x512xi32>
    %77 = arith.cmpi sle, %67, %76 : vector<1x512xi32>
    %78 = arith.andi %75, %77 : vector<1x512xi1>
    %cst_31 = arith.constant 0.000000e+00 : f32
    %79 = vector.shape_cast %78 : vector<1x512xi1> to vector<1x512xi1>
    %80 = vector.broadcast %79 : vector<1x512xi1> to vector<8x512xi1>
    %81 = vector.broadcast %cst_31 : f32 to vector<8x512xf32>
    %82 = arith.select %80, %63, %81 : vector<8x512xi1>, vector<8x512xf32>
    %c1_i32_32 = arith.constant 1 : i32
    %83 = tpu.dynamic_rotate %15 by %c1_i32_32 dim 1 : vector<8x512xf32>, i32 -> vector<8x512xf32>
    %c0_i32_33 = arith.constant 0 : i32
    %84 = vector.broadcast %c0_i32_33 : i32 to vector<1x512xi32>
    %85 = arith.addi %22, %84 : vector<1x512xi32>
    %c-1_i32_34 = arith.constant -1 : i32
    %86 = vector.broadcast %c-1_i32_34 : i32 to vector<1x512xi32>
    %87 = arith.addi %18, %86 : vector<1x512xi32>
    %c0_i32_35 = arith.constant 0 : i32
    %88 = vector.broadcast %c0_i32_35 : i32 to vector<1x512xi32>
    %89 = arith.cmpi sge, %85, %88 : vector<1x512xi32>
    %c15_i32_36 = arith.constant 15 : i32
    %90 = vector.broadcast %c15_i32_36 : i32 to vector<1x512xi32>
    %91 = arith.cmpi sle, %85, %90 : vector<1x512xi32>
    %92 = arith.andi %89, %91 : vector<1x512xi1>
    %c0_i32_37 = arith.constant 0 : i32
    %93 = vector.broadcast %c0_i32_37 : i32 to vector<1x512xi32>
    %94 = arith.cmpi sge, %87, %93 : vector<1x512xi32>
    %95 = arith.andi %92, %94 : vector<1x512xi1>
    %c15_i32_38 = arith.constant 15 : i32
    %96 = vector.broadcast %c15_i32_38 : i32 to vector<1x512xi32>
    %97 = arith.cmpi sle, %87, %96 : vector<1x512xi32>
    %98 = arith.andi %95, %97 : vector<1x512xi1>
    %cst_39 = arith.constant 0.000000e+00 : f32
    %99 = vector.shape_cast %98 : vector<1x512xi1> to vector<1x512xi1>
    %100 = vector.broadcast %99 : vector<1x512xi1> to vector<8x512xi1>
    %101 = vector.broadcast %cst_39 : f32 to vector<8x512xf32>
    %102 = arith.select %100, %83, %101 : vector<8x512xi1>, vector<8x512xf32>
    %c511_i32 = arith.constant 511 : i32
    %103 = tpu.dynamic_rotate %15 by %c511_i32 dim 1 : vector<8x512xf32>, i32 -> vector<8x512xf32>
    %c0_i32_40 = arith.constant 0 : i32
    %104 = vector.broadcast %c0_i32_40 : i32 to vector<1x512xi32>
    %105 = arith.addi %22, %104 : vector<1x512xi32>
    %c1_i32_41 = arith.constant 1 : i32
    %106 = vector.broadcast %c1_i32_41 : i32 to vector<1x512xi32>
    %107 = arith.addi %18, %106 : vector<1x512xi32>
    %c0_i32_42 = arith.constant 0 : i32
    %108 = vector.broadcast %c0_i32_42 : i32 to vector<1x512xi32>
    %109 = arith.cmpi sge, %105, %108 : vector<1x512xi32>
    %c15_i32_43 = arith.constant 15 : i32
    %110 = vector.broadcast %c15_i32_43 : i32 to vector<1x512xi32>
    %111 = arith.cmpi sle, %105, %110 : vector<1x512xi32>
    %112 = arith.andi %109, %111 : vector<1x512xi1>
    %c0_i32_44 = arith.constant 0 : i32
    %113 = vector.broadcast %c0_i32_44 : i32 to vector<1x512xi32>
    %114 = arith.cmpi sge, %107, %113 : vector<1x512xi32>
    %115 = arith.andi %112, %114 : vector<1x512xi1>
    %c15_i32_45 = arith.constant 15 : i32
    %116 = vector.broadcast %c15_i32_45 : i32 to vector<1x512xi32>
    %117 = arith.cmpi sle, %107, %116 : vector<1x512xi32>
    %118 = arith.andi %115, %117 : vector<1x512xi1>
    %cst_46 = arith.constant 0.000000e+00 : f32
    %119 = vector.shape_cast %118 : vector<1x512xi1> to vector<1x512xi1>
    %120 = vector.broadcast %119 : vector<1x512xi1> to vector<8x512xi1>
    %121 = vector.broadcast %cst_46 : f32 to vector<8x512xf32>
    %122 = arith.select %120, %103, %121 : vector<8x512xi1>, vector<8x512xf32>
    %c497_i32 = arith.constant 497 : i32
    %123 = tpu.dynamic_rotate %15 by %c497_i32 dim 1 : vector<8x512xf32>, i32 -> vector<8x512xf32>
    %c1_i32_47 = arith.constant 1 : i32
    %124 = vector.broadcast %c1_i32_47 : i32 to vector<1x512xi32>
    %125 = arith.addi %22, %124 : vector<1x512xi32>
    %c-1_i32_48 = arith.constant -1 : i32
    %126 = vector.broadcast %c-1_i32_48 : i32 to vector<1x512xi32>
    %127 = arith.addi %18, %126 : vector<1x512xi32>
    %c0_i32_49 = arith.constant 0 : i32
    %128 = vector.broadcast %c0_i32_49 : i32 to vector<1x512xi32>
    %129 = arith.cmpi sge, %125, %128 : vector<1x512xi32>
    %c15_i32_50 = arith.constant 15 : i32
    %130 = vector.broadcast %c15_i32_50 : i32 to vector<1x512xi32>
    %131 = arith.cmpi sle, %125, %130 : vector<1x512xi32>
    %132 = arith.andi %129, %131 : vector<1x512xi1>
    %c0_i32_51 = arith.constant 0 : i32
    %133 = vector.broadcast %c0_i32_51 : i32 to vector<1x512xi32>
    %134 = arith.cmpi sge, %127, %133 : vector<1x512xi32>
    %135 = arith.andi %132, %134 : vector<1x512xi1>
    %c15_i32_52 = arith.constant 15 : i32
    %136 = vector.broadcast %c15_i32_52 : i32 to vector<1x512xi32>
    %137 = arith.cmpi sle, %127, %136 : vector<1x512xi32>
    %138 = arith.andi %135, %137 : vector<1x512xi1>
    %cst_53 = arith.constant 0.000000e+00 : f32
    %139 = vector.shape_cast %138 : vector<1x512xi1> to vector<1x512xi1>
    %140 = vector.broadcast %139 : vector<1x512xi1> to vector<8x512xi1>
    %141 = vector.broadcast %cst_53 : f32 to vector<8x512xf32>
    %142 = arith.select %140, %123, %141 : vector<8x512xi1>, vector<8x512xf32>
    %c496_i32 = arith.constant 496 : i32
    %143 = tpu.dynamic_rotate %15 by %c496_i32 dim 1 : vector<8x512xf32>, i32 -> vector<8x512xf32>
    %c1_i32_54 = arith.constant 1 : i32
    %144 = vector.broadcast %c1_i32_54 : i32 to vector<1x512xi32>
    %145 = arith.addi %22, %144 : vector<1x512xi32>
    %c0_i32_55 = arith.constant 0 : i32
    %146 = vector.broadcast %c0_i32_55 : i32 to vector<1x512xi32>
    %147 = arith.addi %18, %146 : vector<1x512xi32>
    %c0_i32_56 = arith.constant 0 : i32
    %148 = vector.broadcast %c0_i32_56 : i32 to vector<1x512xi32>
    %149 = arith.cmpi sge, %145, %148 : vector<1x512xi32>
    %c15_i32_57 = arith.constant 15 : i32
    %150 = vector.broadcast %c15_i32_57 : i32 to vector<1x512xi32>
    %151 = arith.cmpi sle, %145, %150 : vector<1x512xi32>
    %152 = arith.andi %149, %151 : vector<1x512xi1>
    %c0_i32_58 = arith.constant 0 : i32
    %153 = vector.broadcast %c0_i32_58 : i32 to vector<1x512xi32>
    %154 = arith.cmpi sge, %147, %153 : vector<1x512xi32>
    %155 = arith.andi %152, %154 : vector<1x512xi1>
    %c15_i32_59 = arith.constant 15 : i32
    %156 = vector.broadcast %c15_i32_59 : i32 to vector<1x512xi32>
    %157 = arith.cmpi sle, %147, %156 : vector<1x512xi32>
    %158 = arith.andi %155, %157 : vector<1x512xi1>
    %cst_60 = arith.constant 0.000000e+00 : f32
    %159 = vector.shape_cast %158 : vector<1x512xi1> to vector<1x512xi1>
    %160 = vector.broadcast %159 : vector<1x512xi1> to vector<8x512xi1>
    %161 = vector.broadcast %cst_60 : f32 to vector<8x512xf32>
    %162 = arith.select %160, %143, %161 : vector<8x512xi1>, vector<8x512xf32>
    %c495_i32 = arith.constant 495 : i32
    %163 = tpu.dynamic_rotate %15 by %c495_i32 dim 1 : vector<8x512xf32>, i32 -> vector<8x512xf32>
    %c1_i32_61 = arith.constant 1 : i32
    %164 = vector.broadcast %c1_i32_61 : i32 to vector<1x512xi32>
    %165 = arith.addi %22, %164 : vector<1x512xi32>
    %c1_i32_62 = arith.constant 1 : i32
    %166 = vector.broadcast %c1_i32_62 : i32 to vector<1x512xi32>
    %167 = arith.addi %18, %166 : vector<1x512xi32>
    %c0_i32_63 = arith.constant 0 : i32
    %168 = vector.broadcast %c0_i32_63 : i32 to vector<1x512xi32>
    %169 = arith.cmpi sge, %165, %168 : vector<1x512xi32>
    %c15_i32_64 = arith.constant 15 : i32
    %170 = vector.broadcast %c15_i32_64 : i32 to vector<1x512xi32>
    %171 = arith.cmpi sle, %165, %170 : vector<1x512xi32>
    %172 = arith.andi %169, %171 : vector<1x512xi1>
    %c0_i32_65 = arith.constant 0 : i32
    %173 = vector.broadcast %c0_i32_65 : i32 to vector<1x512xi32>
    %174 = arith.cmpi sge, %167, %173 : vector<1x512xi32>
    %175 = arith.andi %172, %174 : vector<1x512xi1>
    %c15_i32_66 = arith.constant 15 : i32
    %176 = vector.broadcast %c15_i32_66 : i32 to vector<1x512xi32>
    %177 = arith.cmpi sle, %167, %176 : vector<1x512xi32>
    %178 = arith.andi %175, %177 : vector<1x512xi1>
    %cst_67 = arith.constant 0.000000e+00 : f32
    %179 = vector.shape_cast %178 : vector<1x512xi1> to vector<1x512xi1>
    %180 = vector.broadcast %179 : vector<1x512xi1> to vector<8x512xi1>
    %181 = vector.broadcast %cst_67 : f32 to vector<8x512xf32>
    %182 = arith.select %180, %163, %181 : vector<8x512xi1>, vector<8x512xf32>
    %183 = tpu.concatenate %42, %62, %82, %102, %15, %122, %142, %162, %182 in 0 : vector<8x512xf32>, vector<8x512xf32>, vector<8x512xf32>, vector<8x512xf32>, vector<8x512xf32>, vector<8x512xf32>, vector<8x512xf32>, vector<8x512xf32>, vector<8x512xf32> -> vector<72x512xf32>
    %184 = arith.truncf %183 : vector<72x512xf32> to vector<72x512xbf16>
    %c0_68 = arith.constant 0 : index
    %c0_69 = arith.constant 0 : index
    %185 = vector.load %arg5[%c0_68, %c0_69] : memref<8x72xbf16, #tpu.memory_space<vmem>>, vector<8x72xbf16>
    %cst_70 = arith.constant dense<0.000000e+00> : vector<8x512xf32>
    %186 = tpu.matmul %185, %184, %cst_70 {dimension_numbers = #tpu.dot_dimension_numbers<[1], [0], [0], [1], [0, 0, 1, 1], [], []>} : vector<8x72xbf16>, vector<72x512xbf16>, vector<8x512xf32> -> vector<8x512xf32>
    %c0_71 = arith.constant 0 : index
    %c0_72 = arith.constant 0 : index
    %187 = vector.load %arg6[%c0_71, %c0_72] : memref<8x1xf32, #tpu.memory_space<vmem>>, vector<8x1xf32>
    %188 = vector.broadcast %187 : vector<8x1xf32> to vector<8x512xf32>
    %189 = arith.addf %186, %188 : vector<8x512xf32>
    %cst_73 = arith.constant 0.000000e+00 : f32
    %190 = vector.broadcast %cst_73 : f32 to vector<8x512xf32>
    %191 = arith.maximumf %189, %190 : vector<8x512xf32>
    %192 = arith.truncf %191 : vector<8x512xf32> to vector<8x512xbf16>
    %c0_74 = arith.constant 0 : index
    %c0_75 = arith.constant 0 : index
    %193 = vector.load %arg7[%c0_74, %c0_75] : memref<32x8xbf16, #tpu.memory_space<vmem>>, vector<32x8xbf16>
    %cst_76 = arith.constant dense<0.000000e+00> : vector<32x512xf32>
    %194 = tpu.matmul %193, %192, %cst_76 {dimension_numbers = #tpu.dot_dimension_numbers<[1], [0], [0], [1], [0, 0, 1, 1], [], []>} : vector<32x8xbf16>, vector<8x512xbf16>, vector<32x512xf32> -> vector<32x512xf32>
    %c0_77 = arith.constant 0 : index
    %c0_78 = arith.constant 0 : index
    %195 = vector.load %arg8[%c0_77, %c0_78] : memref<32x1xf32, #tpu.memory_space<vmem>>, vector<32x1xf32>
    %196 = vector.broadcast %195 : vector<32x1xf32> to vector<32x512xf32>
    %197 = arith.addf %194, %196 : vector<32x512xf32>
    %cst_79 = arith.constant 0.000000e+00 : f32
    %198 = vector.broadcast %cst_79 : f32 to vector<32x512xf32>
    %199 = arith.maximumf %197, %198 : vector<32x512xf32>
    %200 = arith.extf %8 : vector<32x512xbf16> to vector<32x512xf32>
    %201 = arith.addf %199, %200 : vector<32x512xf32>
    %cst_80 = arith.constant 0.000000e+00 : f32
    %202 = vector.broadcast %cst_80 : f32 to vector<32x512xf32>
    %203 = arith.maximumf %201, %202 : vector<32x512xf32>
    %204 = arith.truncf %203 : vector<32x512xf32> to vector<32x512xbf16>
    %c0_81 = arith.constant 0 : index
    %c0_82 = arith.constant 0 : index
    %205 = vector.load %arg9[%c0_81, %c0_82] : memref<8x32xbf16, #tpu.memory_space<vmem>>, vector<8x32xbf16>
    %cst_83 = arith.constant dense<0.000000e+00> : vector<8x512xf32>
    %206 = tpu.matmul %205, %204, %cst_83 {dimension_numbers = #tpu.dot_dimension_numbers<[1], [0], [0], [1], [0, 0, 1, 1], [], []>} : vector<8x32xbf16>, vector<32x512xbf16>, vector<8x512xf32> -> vector<8x512xf32>
    %c0_84 = arith.constant 0 : index
    %c0_85 = arith.constant 0 : index
    %207 = vector.load %arg10[%c0_84, %c0_85] : memref<8x1xf32, #tpu.memory_space<vmem>>, vector<8x1xf32>
    %208 = vector.broadcast %207 : vector<8x1xf32> to vector<8x512xf32>
    %209 = arith.addf %206, %208 : vector<8x512xf32>
    %cst_86 = arith.constant 0.000000e+00 : f32
    %210 = vector.broadcast %cst_86 : f32 to vector<8x512xf32>
    %211 = arith.maximumf %209, %210 : vector<8x512xf32>
    %212 = tpu.iota {dimensions = array<i32: 1>} : vector<1x512xi32>
    %c15_i32_87 = arith.constant 15 : i32
    %213 = vector.broadcast %c15_i32_87 : i32 to vector<1x512xi32>
    %214 = arith.andi %212, %213 : vector<1x512xi32>
    %c4_i32_88 = arith.constant 4 : i32
    %215 = vector.broadcast %c4_i32_88 : i32 to vector<1x512xi32>
    %216 = arith.shrsi %212, %215 : vector<1x512xi32>
    %c15_i32_89 = arith.constant 15 : i32
    %217 = vector.broadcast %c15_i32_89 : i32 to vector<1x512xi32>
    %218 = arith.andi %216, %217 : vector<1x512xi32>
    %c17_i32_90 = arith.constant 17 : i32
    %219 = tpu.dynamic_rotate %211 by %c17_i32_90 dim 1 : vector<8x512xf32>, i32 -> vector<8x512xf32>
    %c-1_i32_91 = arith.constant -1 : i32
    %220 = vector.broadcast %c-1_i32_91 : i32 to vector<1x512xi32>
    %221 = arith.addi %218, %220 : vector<1x512xi32>
    %c-1_i32_92 = arith.constant -1 : i32
    %222 = vector.broadcast %c-1_i32_92 : i32 to vector<1x512xi32>
    %223 = arith.addi %214, %222 : vector<1x512xi32>
    %c0_i32_93 = arith.constant 0 : i32
    %224 = vector.broadcast %c0_i32_93 : i32 to vector<1x512xi32>
    %225 = arith.cmpi sge, %221, %224 : vector<1x512xi32>
    %c15_i32_94 = arith.constant 15 : i32
    %226 = vector.broadcast %c15_i32_94 : i32 to vector<1x512xi32>
    %227 = arith.cmpi sle, %221, %226 : vector<1x512xi32>
    %228 = arith.andi %225, %227 : vector<1x512xi1>
    %c0_i32_95 = arith.constant 0 : i32
    %229 = vector.broadcast %c0_i32_95 : i32 to vector<1x512xi32>
    %230 = arith.cmpi sge, %223, %229 : vector<1x512xi32>
    %231 = arith.andi %228, %230 : vector<1x512xi1>
    %c15_i32_96 = arith.constant 15 : i32
    %232 = vector.broadcast %c15_i32_96 : i32 to vector<1x512xi32>
    %233 = arith.cmpi sle, %223, %232 : vector<1x512xi32>
    %234 = arith.andi %231, %233 : vector<1x512xi1>
    %cst_97 = arith.constant 0.000000e+00 : f32
    %235 = vector.shape_cast %234 : vector<1x512xi1> to vector<1x512xi1>
    %236 = vector.broadcast %235 : vector<1x512xi1> to vector<8x512xi1>
    %237 = vector.broadcast %cst_97 : f32 to vector<8x512xf32>
    %238 = arith.select %236, %219, %237 : vector<8x512xi1>, vector<8x512xf32>
    %c16_i32_98 = arith.constant 16 : i32
    %239 = tpu.dynamic_rotate %211 by %c16_i32_98 dim 1 : vector<8x512xf32>, i32 -> vector<8x512xf32>
    %c-1_i32_99 = arith.constant -1 : i32
    %240 = vector.broadcast %c-1_i32_99 : i32 to vector<1x512xi32>
    %241 = arith.addi %218, %240 : vector<1x512xi32>
    %c0_i32_100 = arith.constant 0 : i32
    %242 = vector.broadcast %c0_i32_100 : i32 to vector<1x512xi32>
    %243 = arith.addi %214, %242 : vector<1x512xi32>
    %c0_i32_101 = arith.constant 0 : i32
    %244 = vector.broadcast %c0_i32_101 : i32 to vector<1x512xi32>
    %245 = arith.cmpi sge, %241, %244 : vector<1x512xi32>
    %c15_i32_102 = arith.constant 15 : i32
    %246 = vector.broadcast %c15_i32_102 : i32 to vector<1x512xi32>
    %247 = arith.cmpi sle, %241, %246 : vector<1x512xi32>
    %248 = arith.andi %245, %247 : vector<1x512xi1>
    %c0_i32_103 = arith.constant 0 : i32
    %249 = vector.broadcast %c0_i32_103 : i32 to vector<1x512xi32>
    %250 = arith.cmpi sge, %243, %249 : vector<1x512xi32>
    %251 = arith.andi %248, %250 : vector<1x512xi1>
    %c15_i32_104 = arith.constant 15 : i32
    %252 = vector.broadcast %c15_i32_104 : i32 to vector<1x512xi32>
    %253 = arith.cmpi sle, %243, %252 : vector<1x512xi32>
    %254 = arith.andi %251, %253 : vector<1x512xi1>
    %cst_105 = arith.constant 0.000000e+00 : f32
    %255 = vector.shape_cast %254 : vector<1x512xi1> to vector<1x512xi1>
    %256 = vector.broadcast %255 : vector<1x512xi1> to vector<8x512xi1>
    %257 = vector.broadcast %cst_105 : f32 to vector<8x512xf32>
    %258 = arith.select %256, %239, %257 : vector<8x512xi1>, vector<8x512xf32>
    %c15_i32_106 = arith.constant 15 : i32
    %259 = tpu.dynamic_rotate %211 by %c15_i32_106 dim 1 : vector<8x512xf32>, i32 -> vector<8x512xf32>
    %c-1_i32_107 = arith.constant -1 : i32
    %260 = vector.broadcast %c-1_i32_107 : i32 to vector<1x512xi32>
    %261 = arith.addi %218, %260 : vector<1x512xi32>
    %c1_i32_108 = arith.constant 1 : i32
    %262 = vector.broadcast %c1_i32_108 : i32 to vector<1x512xi32>
    %263 = arith.addi %214, %262 : vector<1x512xi32>
    %c0_i32_109 = arith.constant 0 : i32
    %264 = vector.broadcast %c0_i32_109 : i32 to vector<1x512xi32>
    %265 = arith.cmpi sge, %261, %264 : vector<1x512xi32>
    %c15_i32_110 = arith.constant 15 : i32
    %266 = vector.broadcast %c15_i32_110 : i32 to vector<1x512xi32>
    %267 = arith.cmpi sle, %261, %266 : vector<1x512xi32>
    %268 = arith.andi %265, %267 : vector<1x512xi1>
    %c0_i32_111 = arith.constant 0 : i32
    %269 = vector.broadcast %c0_i32_111 : i32 to vector<1x512xi32>
    %270 = arith.cmpi sge, %263, %269 : vector<1x512xi32>
    %271 = arith.andi %268, %270 : vector<1x512xi1>
    %c15_i32_112 = arith.constant 15 : i32
    %272 = vector.broadcast %c15_i32_112 : i32 to vector<1x512xi32>
    %273 = arith.cmpi sle, %263, %272 : vector<1x512xi32>
    %274 = arith.andi %271, %273 : vector<1x512xi1>
    %cst_113 = arith.constant 0.000000e+00 : f32
    %275 = vector.shape_cast %274 : vector<1x512xi1> to vector<1x512xi1>
    %276 = vector.broadcast %275 : vector<1x512xi1> to vector<8x512xi1>
    %277 = vector.broadcast %cst_113 : f32 to vector<8x512xf32>
    %278 = arith.select %276, %259, %277 : vector<8x512xi1>, vector<8x512xf32>
    %c1_i32_114 = arith.constant 1 : i32
    %279 = tpu.dynamic_rotate %211 by %c1_i32_114 dim 1 : vector<8x512xf32>, i32 -> vector<8x512xf32>
    %c0_i32_115 = arith.constant 0 : i32
    %280 = vector.broadcast %c0_i32_115 : i32 to vector<1x512xi32>
    %281 = arith.addi %218, %280 : vector<1x512xi32>
    %c-1_i32_116 = arith.constant -1 : i32
    %282 = vector.broadcast %c-1_i32_116 : i32 to vector<1x512xi32>
    %283 = arith.addi %214, %282 : vector<1x512xi32>
    %c0_i32_117 = arith.constant 0 : i32
    %284 = vector.broadcast %c0_i32_117 : i32 to vector<1x512xi32>
    %285 = arith.cmpi sge, %281, %284 : vector<1x512xi32>
    %c15_i32_118 = arith.constant 15 : i32
    %286 = vector.broadcast %c15_i32_118 : i32 to vector<1x512xi32>
    %287 = arith.cmpi sle, %281, %286 : vector<1x512xi32>
    %288 = arith.andi %285, %287 : vector<1x512xi1>
    %c0_i32_119 = arith.constant 0 : i32
    %289 = vector.broadcast %c0_i32_119 : i32 to vector<1x512xi32>
    %290 = arith.cmpi sge, %283, %289 : vector<1x512xi32>
    %291 = arith.andi %288, %290 : vector<1x512xi1>
    %c15_i32_120 = arith.constant 15 : i32
    %292 = vector.broadcast %c15_i32_120 : i32 to vector<1x512xi32>
    %293 = arith.cmpi sle, %283, %292 : vector<1x512xi32>
    %294 = arith.andi %291, %293 : vector<1x512xi1>
    %cst_121 = arith.constant 0.000000e+00 : f32
    %295 = vector.shape_cast %294 : vector<1x512xi1> to vector<1x512xi1>
    %296 = vector.broadcast %295 : vector<1x512xi1> to vector<8x512xi1>
    %297 = vector.broadcast %cst_121 : f32 to vector<8x512xf32>
    %298 = arith.select %296, %279, %297 : vector<8x512xi1>, vector<8x512xf32>
    %c511_i32_122 = arith.constant 511 : i32
    %299 = tpu.dynamic_rotate %211 by %c511_i32_122 dim 1 : vector<8x512xf32>, i32 -> vector<8x512xf32>
    %c0_i32_123 = arith.constant 0 : i32
    %300 = vector.broadcast %c0_i32_123 : i32 to vector<1x512xi32>
    %301 = arith.addi %218, %300 : vector<1x512xi32>
    %c1_i32_124 = arith.constant 1 : i32
    %302 = vector.broadcast %c1_i32_124 : i32 to vector<1x512xi32>
    %303 = arith.addi %214, %302 : vector<1x512xi32>
    %c0_i32_125 = arith.constant 0 : i32
    %304 = vector.broadcast %c0_i32_125 : i32 to vector<1x512xi32>
    %305 = arith.cmpi sge, %301, %304 : vector<1x512xi32>
    %c15_i32_126 = arith.constant 15 : i32
    %306 = vector.broadcast %c15_i32_126 : i32 to vector<1x512xi32>
    %307 = arith.cmpi sle, %301, %306 : vector<1x512xi32>
    %308 = arith.andi %305, %307 : vector<1x512xi1>
    %c0_i32_127 = arith.constant 0 : i32
    %309 = vector.broadcast %c0_i32_127 : i32 to vector<1x512xi32>
    %310 = arith.cmpi sge, %303, %309 : vector<1x512xi32>
    %311 = arith.andi %308, %310 : vector<1x512xi1>
    %c15_i32_128 = arith.constant 15 : i32
    %312 = vector.broadcast %c15_i32_128 : i32 to vector<1x512xi32>
    %313 = arith.cmpi sle, %303, %312 : vector<1x512xi32>
    %314 = arith.andi %311, %313 : vector<1x512xi1>
    %cst_129 = arith.constant 0.000000e+00 : f32
    %315 = vector.shape_cast %314 : vector<1x512xi1> to vector<1x512xi1>
    %316 = vector.broadcast %315 : vector<1x512xi1> to vector<8x512xi1>
    %317 = vector.broadcast %cst_129 : f32 to vector<8x512xf32>
    %318 = arith.select %316, %299, %317 : vector<8x512xi1>, vector<8x512xf32>
    %c497_i32_130 = arith.constant 497 : i32
    %319 = tpu.dynamic_rotate %211 by %c497_i32_130 dim 1 : vector<8x512xf32>, i32 -> vector<8x512xf32>
    %c1_i32_131 = arith.constant 1 : i32
    %320 = vector.broadcast %c1_i32_131 : i32 to vector<1x512xi32>
    %321 = arith.addi %218, %320 : vector<1x512xi32>
    %c-1_i32_132 = arith.constant -1 : i32
    %322 = vector.broadcast %c-1_i32_132 : i32 to vector<1x512xi32>
    %323 = arith.addi %214, %322 : vector<1x512xi32>
    %c0_i32_133 = arith.constant 0 : i32
    %324 = vector.broadcast %c0_i32_133 : i32 to vector<1x512xi32>
    %325 = arith.cmpi sge, %321, %324 : vector<1x512xi32>
    %c15_i32_134 = arith.constant 15 : i32
    %326 = vector.broadcast %c15_i32_134 : i32 to vector<1x512xi32>
    %327 = arith.cmpi sle, %321, %326 : vector<1x512xi32>
    %328 = arith.andi %325, %327 : vector<1x512xi1>
    %c0_i32_135 = arith.constant 0 : i32
    %329 = vector.broadcast %c0_i32_135 : i32 to vector<1x512xi32>
    %330 = arith.cmpi sge, %323, %329 : vector<1x512xi32>
    %331 = arith.andi %328, %330 : vector<1x512xi1>
    %c15_i32_136 = arith.constant 15 : i32
    %332 = vector.broadcast %c15_i32_136 : i32 to vector<1x512xi32>
    %333 = arith.cmpi sle, %323, %332 : vector<1x512xi32>
    %334 = arith.andi %331, %333 : vector<1x512xi1>
    %cst_137 = arith.constant 0.000000e+00 : f32
    %335 = vector.shape_cast %334 : vector<1x512xi1> to vector<1x512xi1>
    %336 = vector.broadcast %335 : vector<1x512xi1> to vector<8x512xi1>
    %337 = vector.broadcast %cst_137 : f32 to vector<8x512xf32>
    %338 = arith.select %336, %319, %337 : vector<8x512xi1>, vector<8x512xf32>
    %c496_i32_138 = arith.constant 496 : i32
    %339 = tpu.dynamic_rotate %211 by %c496_i32_138 dim 1 : vector<8x512xf32>, i32 -> vector<8x512xf32>
    %c1_i32_139 = arith.constant 1 : i32
    %340 = vector.broadcast %c1_i32_139 : i32 to vector<1x512xi32>
    %341 = arith.addi %218, %340 : vector<1x512xi32>
    %c0_i32_140 = arith.constant 0 : i32
    %342 = vector.broadcast %c0_i32_140 : i32 to vector<1x512xi32>
    %343 = arith.addi %214, %342 : vector<1x512xi32>
    %c0_i32_141 = arith.constant 0 : i32
    %344 = vector.broadcast %c0_i32_141 : i32 to vector<1x512xi32>
    %345 = arith.cmpi sge, %341, %344 : vector<1x512xi32>
    %c15_i32_142 = arith.constant 15 : i32
    %346 = vector.broadcast %c15_i32_142 : i32 to vector<1x512xi32>
    %347 = arith.cmpi sle, %341, %346 : vector<1x512xi32>
    %348 = arith.andi %345, %347 : vector<1x512xi1>
    %c0_i32_143 = arith.constant 0 : i32
    %349 = vector.broadcast %c0_i32_143 : i32 to vector<1x512xi32>
    %350 = arith.cmpi sge, %343, %349 : vector<1x512xi32>
    %351 = arith.andi %348, %350 : vector<1x512xi1>
    %c15_i32_144 = arith.constant 15 : i32
    %352 = vector.broadcast %c15_i32_144 : i32 to vector<1x512xi32>
    %353 = arith.cmpi sle, %343, %352 : vector<1x512xi32>
    %354 = arith.andi %351, %353 : vector<1x512xi1>
    %cst_145 = arith.constant 0.000000e+00 : f32
    %355 = vector.shape_cast %354 : vector<1x512xi1> to vector<1x512xi1>
    %356 = vector.broadcast %355 : vector<1x512xi1> to vector<8x512xi1>
    %357 = vector.broadcast %cst_145 : f32 to vector<8x512xf32>
    %358 = arith.select %356, %339, %357 : vector<8x512xi1>, vector<8x512xf32>
    %c495_i32_146 = arith.constant 495 : i32
    %359 = tpu.dynamic_rotate %211 by %c495_i32_146 dim 1 : vector<8x512xf32>, i32 -> vector<8x512xf32>
    %c1_i32_147 = arith.constant 1 : i32
    %360 = vector.broadcast %c1_i32_147 : i32 to vector<1x512xi32>
    %361 = arith.addi %218, %360 : vector<1x512xi32>
    %c1_i32_148 = arith.constant 1 : i32
    %362 = vector.broadcast %c1_i32_148 : i32 to vector<1x512xi32>
    %363 = arith.addi %214, %362 : vector<1x512xi32>
    %c0_i32_149 = arith.constant 0 : i32
    %364 = vector.broadcast %c0_i32_149 : i32 to vector<1x512xi32>
    %365 = arith.cmpi sge, %361, %364 : vector<1x512xi32>
    %c15_i32_150 = arith.constant 15 : i32
    %366 = vector.broadcast %c15_i32_150 : i32 to vector<1x512xi32>
    %367 = arith.cmpi sle, %361, %366 : vector<1x512xi32>
    %368 = arith.andi %365, %367 : vector<1x512xi1>
    %c0_i32_151 = arith.constant 0 : i32
    %369 = vector.broadcast %c0_i32_151 : i32 to vector<1x512xi32>
    %370 = arith.cmpi sge, %363, %369 : vector<1x512xi32>
    %371 = arith.andi %368, %370 : vector<1x512xi1>
    %c15_i32_152 = arith.constant 15 : i32
    %372 = vector.broadcast %c15_i32_152 : i32 to vector<1x512xi32>
    %373 = arith.cmpi sle, %363, %372 : vector<1x512xi32>
    %374 = arith.andi %371, %373 : vector<1x512xi1>
    %cst_153 = arith.constant 0.000000e+00 : f32
    %375 = vector.shape_cast %374 : vector<1x512xi1> to vector<1x512xi1>
    %376 = vector.broadcast %375 : vector<1x512xi1> to vector<8x512xi1>
    %377 = vector.broadcast %cst_153 : f32 to vector<8x512xf32>
    %378 = arith.select %376, %359, %377 : vector<8x512xi1>, vector<8x512xf32>
    %379 = tpu.concatenate %238, %258, %278, %298, %211, %318, %338, %358, %378 in 0 : vector<8x512xf32>, vector<8x512xf32>, vector<8x512xf32>, vector<8x512xf32>, vector<8x512xf32>, vector<8x512xf32>, vector<8x512xf32>, vector<8x512xf32>, vector<8x512xf32> -> vector<72x512xf32>
    %380 = arith.truncf %379 : vector<72x512xf32> to vector<72x512xbf16>
    %c0_154 = arith.constant 0 : index
    %c0_155 = arith.constant 0 : index
    %381 = vector.load %arg11[%c0_154, %c0_155] : memref<8x72xbf16, #tpu.memory_space<vmem>>, vector<8x72xbf16>
    %cst_156 = arith.constant dense<0.000000e+00> : vector<8x512xf32>
    %382 = tpu.matmul %381, %380, %cst_156 {dimension_numbers = #tpu.dot_dimension_numbers<[1], [0], [0], [1], [0, 0, 1, 1], [], []>} : vector<8x72xbf16>, vector<72x512xbf16>, vector<8x512xf32> -> vector<8x512xf32>
    %c0_157 = arith.constant 0 : index
    %c0_158 = arith.constant 0 : index
    %383 = vector.load %arg12[%c0_157, %c0_158] : memref<8x1xf32, #tpu.memory_space<vmem>>, vector<8x1xf32>
    %384 = vector.broadcast %383 : vector<8x1xf32> to vector<8x512xf32>
    %385 = arith.addf %382, %384 : vector<8x512xf32>
    %cst_159 = arith.constant 0.000000e+00 : f32
    %386 = vector.broadcast %cst_159 : f32 to vector<8x512xf32>
    %387 = arith.maximumf %385, %386 : vector<8x512xf32>
    %388 = arith.truncf %387 : vector<8x512xf32> to vector<8x512xbf16>
    %c0_160 = arith.constant 0 : index
    %c0_161 = arith.constant 0 : index
    %389 = vector.load %arg13[%c0_160, %c0_161] : memref<32x8xbf16, #tpu.memory_space<vmem>>, vector<32x8xbf16>
    %cst_162 = arith.constant dense<0.000000e+00> : vector<32x512xf32>
    %390 = tpu.matmul %389, %388, %cst_162 {dimension_numbers = #tpu.dot_dimension_numbers<[1], [0], [0], [1], [0, 0, 1, 1], [], []>} : vector<32x8xbf16>, vector<8x512xbf16>, vector<32x512xf32> -> vector<32x512xf32>
    %c0_163 = arith.constant 0 : index
    %c0_164 = arith.constant 0 : index
    %391 = vector.load %arg14[%c0_163, %c0_164] : memref<32x1xf32, #tpu.memory_space<vmem>>, vector<32x1xf32>
    %392 = vector.broadcast %391 : vector<32x1xf32> to vector<32x512xf32>
    %393 = arith.addf %390, %392 : vector<32x512xf32>
    %cst_165 = arith.constant 0.000000e+00 : f32
    %394 = vector.broadcast %cst_165 : f32 to vector<32x512xf32>
    %395 = arith.maximumf %393, %394 : vector<32x512xf32>
    %396 = arith.extf %204 : vector<32x512xbf16> to vector<32x512xf32>
    %397 = arith.addf %395, %396 : vector<32x512xf32>
    %cst_166 = arith.constant 0.000000e+00 : f32
    %398 = vector.broadcast %cst_166 : f32 to vector<32x512xf32>
    %399 = arith.maximumf %397, %398 : vector<32x512xf32>
    %400 = arith.truncf %399 : vector<32x512xf32> to vector<32x512xbf16>
    %c0_167 = arith.constant 0 : index
    %c0_168 = arith.constant 0 : index
    %401 = vector.load %arg15[%c0_167, %c0_168] : memref<16x32xbf16, #tpu.memory_space<vmem>>, vector<16x32xbf16>
    %cst_169 = arith.constant dense<0.000000e+00> : vector<16x512xf32>
    %402 = tpu.matmul %401, %400, %cst_169 {dimension_numbers = #tpu.dot_dimension_numbers<[1], [0], [0], [1], [0, 0, 1, 1], [], []>} : vector<16x32xbf16>, vector<32x512xbf16>, vector<16x512xf32> -> vector<16x512xf32>
    %c0_170 = arith.constant 0 : index
    %c0_171 = arith.constant 0 : index
    %403 = vector.load %arg16[%c0_170, %c0_171] : memref<16x1xf32, #tpu.memory_space<vmem>>, vector<16x1xf32>
    %404 = vector.broadcast %403 : vector<16x1xf32> to vector<16x512xf32>
    %405 = arith.addf %402, %404 : vector<16x512xf32>
    %cst_172 = arith.constant 0.000000e+00 : f32
    %406 = vector.broadcast %cst_172 : f32 to vector<16x512xf32>
    %407 = arith.maximumf %405, %406 : vector<16x512xf32>
    %408 = tpu.iota {dimensions = array<i32: 1>} : vector<1x512xi32>
    %c15_i32_173 = arith.constant 15 : i32
    %409 = vector.broadcast %c15_i32_173 : i32 to vector<1x512xi32>
    %410 = arith.andi %408, %409 : vector<1x512xi32>
    %c4_i32_174 = arith.constant 4 : i32
    %411 = vector.broadcast %c4_i32_174 : i32 to vector<1x512xi32>
    %412 = arith.shrsi %408, %411 : vector<1x512xi32>
    %c15_i32_175 = arith.constant 15 : i32
    %413 = vector.broadcast %c15_i32_175 : i32 to vector<1x512xi32>
    %414 = arith.andi %412, %413 : vector<1x512xi32>
    %c17_i32_176 = arith.constant 17 : i32
    %415 = tpu.dynamic_rotate %407 by %c17_i32_176 dim 1 : vector<16x512xf32>, i32 -> vector<16x512xf32>
    %c-1_i32_177 = arith.constant -1 : i32
    %416 = vector.broadcast %c-1_i32_177 : i32 to vector<1x512xi32>
    %417 = arith.addi %414, %416 : vector<1x512xi32>
    %c-1_i32_178 = arith.constant -1 : i32
    %418 = vector.broadcast %c-1_i32_178 : i32 to vector<1x512xi32>
    %419 = arith.addi %410, %418 : vector<1x512xi32>
    %c0_i32_179 = arith.constant 0 : i32
    %420 = vector.broadcast %c0_i32_179 : i32 to vector<1x512xi32>
    %421 = arith.cmpi sge, %417, %420 : vector<1x512xi32>
    %c15_i32_180 = arith.constant 15 : i32
    %422 = vector.broadcast %c15_i32_180 : i32 to vector<1x512xi32>
    %423 = arith.cmpi sle, %417, %422 : vector<1x512xi32>
    %424 = arith.andi %421, %423 : vector<1x512xi1>
    %c0_i32_181 = arith.constant 0 : i32
    %425 = vector.broadcast %c0_i32_181 : i32 to vector<1x512xi32>
    %426 = arith.cmpi sge, %419, %425 : vector<1x512xi32>
    %427 = arith.andi %424, %426 : vector<1x512xi1>
    %c15_i32_182 = arith.constant 15 : i32
    %428 = vector.broadcast %c15_i32_182 : i32 to vector<1x512xi32>
    %429 = arith.cmpi sle, %419, %428 : vector<1x512xi32>
    %430 = arith.andi %427, %429 : vector<1x512xi1>
    %cst_183 = arith.constant 0.000000e+00 : f32
    %431 = vector.shape_cast %430 : vector<1x512xi1> to vector<1x512xi1>
    %432 = vector.broadcast %431 : vector<1x512xi1> to vector<16x512xi1>
    %433 = vector.broadcast %cst_183 : f32 to vector<16x512xf32>
    %434 = arith.select %432, %415, %433 : vector<16x512xi1>, vector<16x512xf32>
    %c16_i32_184 = arith.constant 16 : i32
    %435 = tpu.dynamic_rotate %407 by %c16_i32_184 dim 1 : vector<16x512xf32>, i32 -> vector<16x512xf32>
    %c-1_i32_185 = arith.constant -1 : i32
    %436 = vector.broadcast %c-1_i32_185 : i32 to vector<1x512xi32>
    %437 = arith.addi %414, %436 : vector<1x512xi32>
    %c0_i32_186 = arith.constant 0 : i32
    %438 = vector.broadcast %c0_i32_186 : i32 to vector<1x512xi32>
    %439 = arith.addi %410, %438 : vector<1x512xi32>
    %c0_i32_187 = arith.constant 0 : i32
    %440 = vector.broadcast %c0_i32_187 : i32 to vector<1x512xi32>
    %441 = arith.cmpi sge, %437, %440 : vector<1x512xi32>
    %c15_i32_188 = arith.constant 15 : i32
    %442 = vector.broadcast %c15_i32_188 : i32 to vector<1x512xi32>
    %443 = arith.cmpi sle, %437, %442 : vector<1x512xi32>
    %444 = arith.andi %441, %443 : vector<1x512xi1>
    %c0_i32_189 = arith.constant 0 : i32
    %445 = vector.broadcast %c0_i32_189 : i32 to vector<1x512xi32>
    %446 = arith.cmpi sge, %439, %445 : vector<1x512xi32>
    %447 = arith.andi %444, %446 : vector<1x512xi1>
    %c15_i32_190 = arith.constant 15 : i32
    %448 = vector.broadcast %c15_i32_190 : i32 to vector<1x512xi32>
    %449 = arith.cmpi sle, %439, %448 : vector<1x512xi32>
    %450 = arith.andi %447, %449 : vector<1x512xi1>
    %cst_191 = arith.constant 0.000000e+00 : f32
    %451 = vector.shape_cast %450 : vector<1x512xi1> to vector<1x512xi1>
    %452 = vector.broadcast %451 : vector<1x512xi1> to vector<16x512xi1>
    %453 = vector.broadcast %cst_191 : f32 to vector<16x512xf32>
    %454 = arith.select %452, %435, %453 : vector<16x512xi1>, vector<16x512xf32>
    %c15_i32_192 = arith.constant 15 : i32
    %455 = tpu.dynamic_rotate %407 by %c15_i32_192 dim 1 : vector<16x512xf32>, i32 -> vector<16x512xf32>
    %c-1_i32_193 = arith.constant -1 : i32
    %456 = vector.broadcast %c-1_i32_193 : i32 to vector<1x512xi32>
    %457 = arith.addi %414, %456 : vector<1x512xi32>
    %c1_i32_194 = arith.constant 1 : i32
    %458 = vector.broadcast %c1_i32_194 : i32 to vector<1x512xi32>
    %459 = arith.addi %410, %458 : vector<1x512xi32>
    %c0_i32_195 = arith.constant 0 : i32
    %460 = vector.broadcast %c0_i32_195 : i32 to vector<1x512xi32>
    %461 = arith.cmpi sge, %457, %460 : vector<1x512xi32>
    %c15_i32_196 = arith.constant 15 : i32
    %462 = vector.broadcast %c15_i32_196 : i32 to vector<1x512xi32>
    %463 = arith.cmpi sle, %457, %462 : vector<1x512xi32>
    %464 = arith.andi %461, %463 : vector<1x512xi1>
    %c0_i32_197 = arith.constant 0 : i32
    %465 = vector.broadcast %c0_i32_197 : i32 to vector<1x512xi32>
    %466 = arith.cmpi sge, %459, %465 : vector<1x512xi32>
    %467 = arith.andi %464, %466 : vector<1x512xi1>
    %c15_i32_198 = arith.constant 15 : i32
    %468 = vector.broadcast %c15_i32_198 : i32 to vector<1x512xi32>
    %469 = arith.cmpi sle, %459, %468 : vector<1x512xi32>
    %470 = arith.andi %467, %469 : vector<1x512xi1>
    %cst_199 = arith.constant 0.000000e+00 : f32
    %471 = vector.shape_cast %470 : vector<1x512xi1> to vector<1x512xi1>
    %472 = vector.broadcast %471 : vector<1x512xi1> to vector<16x512xi1>
    %473 = vector.broadcast %cst_199 : f32 to vector<16x512xf32>
    %474 = arith.select %472, %455, %473 : vector<16x512xi1>, vector<16x512xf32>
    %c1_i32_200 = arith.constant 1 : i32
    %475 = tpu.dynamic_rotate %407 by %c1_i32_200 dim 1 : vector<16x512xf32>, i32 -> vector<16x512xf32>
    %c0_i32_201 = arith.constant 0 : i32
    %476 = vector.broadcast %c0_i32_201 : i32 to vector<1x512xi32>
    %477 = arith.addi %414, %476 : vector<1x512xi32>
    %c-1_i32_202 = arith.constant -1 : i32
    %478 = vector.broadcast %c-1_i32_202 : i32 to vector<1x512xi32>
    %479 = arith.addi %410, %478 : vector<1x512xi32>
    %c0_i32_203 = arith.constant 0 : i32
    %480 = vector.broadcast %c0_i32_203 : i32 to vector<1x512xi32>
    %481 = arith.cmpi sge, %477, %480 : vector<1x512xi32>
    %c15_i32_204 = arith.constant 15 : i32
    %482 = vector.broadcast %c15_i32_204 : i32 to vector<1x512xi32>
    %483 = arith.cmpi sle, %477, %482 : vector<1x512xi32>
    %484 = arith.andi %481, %483 : vector<1x512xi1>
    %c0_i32_205 = arith.constant 0 : i32
    %485 = vector.broadcast %c0_i32_205 : i32 to vector<1x512xi32>
    %486 = arith.cmpi sge, %479, %485 : vector<1x512xi32>
    %487 = arith.andi %484, %486 : vector<1x512xi1>
    %c15_i32_206 = arith.constant 15 : i32
    %488 = vector.broadcast %c15_i32_206 : i32 to vector<1x512xi32>
    %489 = arith.cmpi sle, %479, %488 : vector<1x512xi32>
    %490 = arith.andi %487, %489 : vector<1x512xi1>
    %cst_207 = arith.constant 0.000000e+00 : f32
    %491 = vector.shape_cast %490 : vector<1x512xi1> to vector<1x512xi1>
    %492 = vector.broadcast %491 : vector<1x512xi1> to vector<16x512xi1>
    %493 = vector.broadcast %cst_207 : f32 to vector<16x512xf32>
    %494 = arith.select %492, %475, %493 : vector<16x512xi1>, vector<16x512xf32>
    %c511_i32_208 = arith.constant 511 : i32
    %495 = tpu.dynamic_rotate %407 by %c511_i32_208 dim 1 : vector<16x512xf32>, i32 -> vector<16x512xf32>
    %c0_i32_209 = arith.constant 0 : i32
    %496 = vector.broadcast %c0_i32_209 : i32 to vector<1x512xi32>
    %497 = arith.addi %414, %496 : vector<1x512xi32>
    %c1_i32_210 = arith.constant 1 : i32
    %498 = vector.broadcast %c1_i32_210 : i32 to vector<1x512xi32>
    %499 = arith.addi %410, %498 : vector<1x512xi32>
    %c0_i32_211 = arith.constant 0 : i32
    %500 = vector.broadcast %c0_i32_211 : i32 to vector<1x512xi32>
    %501 = arith.cmpi sge, %497, %500 : vector<1x512xi32>
    %c15_i32_212 = arith.constant 15 : i32
    %502 = vector.broadcast %c15_i32_212 : i32 to vector<1x512xi32>
    %503 = arith.cmpi sle, %497, %502 : vector<1x512xi32>
    %504 = arith.andi %501, %503 : vector<1x512xi1>
    %c0_i32_213 = arith.constant 0 : i32
    %505 = vector.broadcast %c0_i32_213 : i32 to vector<1x512xi32>
    %506 = arith.cmpi sge, %499, %505 : vector<1x512xi32>
    %507 = arith.andi %504, %506 : vector<1x512xi1>
    %c15_i32_214 = arith.constant 15 : i32
    %508 = vector.broadcast %c15_i32_214 : i32 to vector<1x512xi32>
    %509 = arith.cmpi sle, %499, %508 : vector<1x512xi32>
    %510 = arith.andi %507, %509 : vector<1x512xi1>
    %cst_215 = arith.constant 0.000000e+00 : f32
    %511 = vector.shape_cast %510 : vector<1x512xi1> to vector<1x512xi1>
    %512 = vector.broadcast %511 : vector<1x512xi1> to vector<16x512xi1>
    %513 = vector.broadcast %cst_215 : f32 to vector<16x512xf32>
    %514 = arith.select %512, %495, %513 : vector<16x512xi1>, vector<16x512xf32>
    %c497_i32_216 = arith.constant 497 : i32
    %515 = tpu.dynamic_rotate %407 by %c497_i32_216 dim 1 : vector<16x512xf32>, i32 -> vector<16x512xf32>
    %c1_i32_217 = arith.constant 1 : i32
    %516 = vector.broadcast %c1_i32_217 : i32 to vector<1x512xi32>
    %517 = arith.addi %414, %516 : vector<1x512xi32>
    %c-1_i32_218 = arith.constant -1 : i32
    %518 = vector.broadcast %c-1_i32_218 : i32 to vector<1x512xi32>
    %519 = arith.addi %410, %518 : vector<1x512xi32>
    %c0_i32_219 = arith.constant 0 : i32
    %520 = vector.broadcast %c0_i32_219 : i32 to vector<1x512xi32>
    %521 = arith.cmpi sge, %517, %520 : vector<1x512xi32>
    %c15_i32_220 = arith.constant 15 : i32
    %522 = vector.broadcast %c15_i32_220 : i32 to vector<1x512xi32>
    %523 = arith.cmpi sle, %517, %522 : vector<1x512xi32>
    %524 = arith.andi %521, %523 : vector<1x512xi1>
    %c0_i32_221 = arith.constant 0 : i32
    %525 = vector.broadcast %c0_i32_221 : i32 to vector<1x512xi32>
    %526 = arith.cmpi sge, %519, %525 : vector<1x512xi32>
    %527 = arith.andi %524, %526 : vector<1x512xi1>
    %c15_i32_222 = arith.constant 15 : i32
    %528 = vector.broadcast %c15_i32_222 : i32 to vector<1x512xi32>
    %529 = arith.cmpi sle, %519, %528 : vector<1x512xi32>
    %530 = arith.andi %527, %529 : vector<1x512xi1>
    %cst_223 = arith.constant 0.000000e+00 : f32
    %531 = vector.shape_cast %530 : vector<1x512xi1> to vector<1x512xi1>
    %532 = vector.broadcast %531 : vector<1x512xi1> to vector<16x512xi1>
    %533 = vector.broadcast %cst_223 : f32 to vector<16x512xf32>
    %534 = arith.select %532, %515, %533 : vector<16x512xi1>, vector<16x512xf32>
    %c496_i32_224 = arith.constant 496 : i32
    %535 = tpu.dynamic_rotate %407 by %c496_i32_224 dim 1 : vector<16x512xf32>, i32 -> vector<16x512xf32>
    %c1_i32_225 = arith.constant 1 : i32
    %536 = vector.broadcast %c1_i32_225 : i32 to vector<1x512xi32>
    %537 = arith.addi %414, %536 : vector<1x512xi32>
    %c0_i32_226 = arith.constant 0 : i32
    %538 = vector.broadcast %c0_i32_226 : i32 to vector<1x512xi32>
    %539 = arith.addi %410, %538 : vector<1x512xi32>
    %c0_i32_227 = arith.constant 0 : i32
    %540 = vector.broadcast %c0_i32_227 : i32 to vector<1x512xi32>
    %541 = arith.cmpi sge, %537, %540 : vector<1x512xi32>
    %c15_i32_228 = arith.constant 15 : i32
    %542 = vector.broadcast %c15_i32_228 : i32 to vector<1x512xi32>
    %543 = arith.cmpi sle, %537, %542 : vector<1x512xi32>
    %544 = arith.andi %541, %543 : vector<1x512xi1>
    %c0_i32_229 = arith.constant 0 : i32
    %545 = vector.broadcast %c0_i32_229 : i32 to vector<1x512xi32>
    %546 = arith.cmpi sge, %539, %545 : vector<1x512xi32>
    %547 = arith.andi %544, %546 : vector<1x512xi1>
    %c15_i32_230 = arith.constant 15 : i32
    %548 = vector.broadcast %c15_i32_230 : i32 to vector<1x512xi32>
    %549 = arith.cmpi sle, %539, %548 : vector<1x512xi32>
    %550 = arith.andi %547, %549 : vector<1x512xi1>
    %cst_231 = arith.constant 0.000000e+00 : f32
    %551 = vector.shape_cast %550 : vector<1x512xi1> to vector<1x512xi1>
    %552 = vector.broadcast %551 : vector<1x512xi1> to vector<16x512xi1>
    %553 = vector.broadcast %cst_231 : f32 to vector<16x512xf32>
    %554 = arith.select %552, %535, %553 : vector<16x512xi1>, vector<16x512xf32>
    %c495_i32_232 = arith.constant 495 : i32
    %555 = tpu.dynamic_rotate %407 by %c495_i32_232 dim 1 : vector<16x512xf32>, i32 -> vector<16x512xf32>
    %c1_i32_233 = arith.constant 1 : i32
    %556 = vector.broadcast %c1_i32_233 : i32 to vector<1x512xi32>
    %557 = arith.addi %414, %556 : vector<1x512xi32>
    %c1_i32_234 = arith.constant 1 : i32
    %558 = vector.broadcast %c1_i32_234 : i32 to vector<1x512xi32>
    %559 = arith.addi %410, %558 : vector<1x512xi32>
    %c0_i32_235 = arith.constant 0 : i32
    %560 = vector.broadcast %c0_i32_235 : i32 to vector<1x512xi32>
    %561 = arith.cmpi sge, %557, %560 : vector<1x512xi32>
    %c15_i32_236 = arith.constant 15 : i32
    %562 = vector.broadcast %c15_i32_236 : i32 to vector<1x512xi32>
    %563 = arith.cmpi sle, %557, %562 : vector<1x512xi32>
    %564 = arith.andi %561, %563 : vector<1x512xi1>
    %c0_i32_237 = arith.constant 0 : i32
    %565 = vector.broadcast %c0_i32_237 : i32 to vector<1x512xi32>
    %566 = arith.cmpi sge, %559, %565 : vector<1x512xi32>
    %567 = arith.andi %564, %566 : vector<1x512xi1>
    %c15_i32_238 = arith.constant 15 : i32
    %568 = vector.broadcast %c15_i32_238 : i32 to vector<1x512xi32>
    %569 = arith.cmpi sle, %559, %568 : vector<1x512xi32>
    %570 = arith.andi %567, %569 : vector<1x512xi1>
    %cst_239 = arith.constant 0.000000e+00 : f32
    %571 = vector.shape_cast %570 : vector<1x512xi1> to vector<1x512xi1>
    %572 = vector.broadcast %571 : vector<1x512xi1> to vector<16x512xi1>
    %573 = vector.broadcast %cst_239 : f32 to vector<16x512xf32>
    %574 = arith.select %572, %555, %573 : vector<16x512xi1>, vector<16x512xf32>
    %575 = tpu.concatenate %434, %454, %474, %494, %407, %514, %534, %554, %574 in 0 : vector<16x512xf32>, vector<16x512xf32>, vector<16x512xf32>, vector<16x512xf32>, vector<16x512xf32>, vector<16x512xf32>, vector<16x512xf32>, vector<16x512xf32>, vector<16x512xf32> -> vector<144x512xf32>
    %576 = arith.truncf %575 : vector<144x512xf32> to vector<144x512xbf16>
    %c0_240 = arith.constant 0 : index
    %c0_241 = arith.constant 0 : index
    %577 = vector.load %arg17[%c0_240, %c0_241] : memref<16x144xbf16, #tpu.memory_space<vmem>>, vector<16x144xbf16>
    %cst_242 = arith.constant dense<0.000000e+00> : vector<16x512xf32>
    %578 = tpu.matmul %577, %576, %cst_242 {dimension_numbers = #tpu.dot_dimension_numbers<[1], [0], [0], [1], [0, 0, 1, 1], [], []>} : vector<16x144xbf16>, vector<144x512xbf16>, vector<16x512xf32> -> vector<16x512xf32>
    %c0_243 = arith.constant 0 : index
    %c0_244 = arith.constant 0 : index
    %579 = vector.load %arg18[%c0_243, %c0_244] : memref<16x1xf32, #tpu.memory_space<vmem>>, vector<16x1xf32>
    %580 = vector.broadcast %579 : vector<16x1xf32> to vector<16x512xf32>
    %581 = arith.addf %578, %580 : vector<16x512xf32>
    %cst_245 = arith.constant 0.000000e+00 : f32
    %582 = vector.broadcast %cst_245 : f32 to vector<16x512xf32>
    %583 = arith.maximumf %581, %582 : vector<16x512xf32>
    %584 = arith.truncf %583 : vector<16x512xf32> to vector<16x512xbf16>
    %c0_246 = arith.constant 0 : index
    %c0_247 = arith.constant 0 : index
    %585 = vector.load %arg19[%c0_246, %c0_247] : memref<64x16xbf16, #tpu.memory_space<vmem>>, vector<64x16xbf16>
    %cst_248 = arith.constant dense<0.000000e+00> : vector<64x512xf32>
    %586 = tpu.matmul %585, %584, %cst_248 {dimension_numbers = #tpu.dot_dimension_numbers<[1], [0], [0], [1], [0, 0, 1, 1], [], []>} : vector<64x16xbf16>, vector<16x512xbf16>, vector<64x512xf32> -> vector<64x512xf32>
    %c0_249 = arith.constant 0 : index
    %c0_250 = arith.constant 0 : index
    %587 = vector.load %arg20[%c0_249, %c0_250] : memref<64x1xf32, #tpu.memory_space<vmem>>, vector<64x1xf32>
    %588 = vector.broadcast %587 : vector<64x1xf32> to vector<64x512xf32>
    %589 = arith.addf %586, %588 : vector<64x512xf32>
    %cst_251 = arith.constant 0.000000e+00 : f32
    %590 = vector.broadcast %cst_251 : f32 to vector<64x512xf32>
    %591 = arith.maximumf %589, %590 : vector<64x512xf32>
    %c0_252 = arith.constant 0 : index
    %c0_253 = arith.constant 0 : index
    %592 = vector.load %arg21[%c0_252, %c0_253] : memref<64x32xbf16, #tpu.memory_space<vmem>>, vector<64x32xbf16>
    %cst_254 = arith.constant dense<0.000000e+00> : vector<64x512xf32>
    %593 = tpu.matmul %592, %400, %cst_254 {dimension_numbers = #tpu.dot_dimension_numbers<[1], [0], [0], [1], [0, 0, 1, 1], [], []>} : vector<64x32xbf16>, vector<32x512xbf16>, vector<64x512xf32> -> vector<64x512xf32>
    %c0_255 = arith.constant 0 : index
    %c0_256 = arith.constant 0 : index
    %594 = vector.load %arg22[%c0_255, %c0_256] : memref<64x1xf32, #tpu.memory_space<vmem>>, vector<64x1xf32>
    %595 = vector.broadcast %594 : vector<64x1xf32> to vector<64x512xf32>
    %596 = arith.addf %593, %595 : vector<64x512xf32>
    %597 = arith.addf %591, %596 : vector<64x512xf32>
    %cst_257 = arith.constant 0.000000e+00 : f32
    %598 = vector.broadcast %cst_257 : f32 to vector<64x512xf32>
    %599 = arith.maximumf %597, %598 : vector<64x512xf32>
    %600 = arith.truncf %599 : vector<64x512xf32> to vector<64x512xbf16>
    %c0_258 = arith.constant 0 : index
    %c0_259 = arith.constant 0 : index
    %601 = vector.load %arg23[%c0_258, %c0_259] : memref<512x128xbf16, #tpu.memory_space<vmem>>, vector<512x128xbf16>
    %cst_260 = arith.constant dense<0.000000e+00> : vector<64x128xf32>
    %602 = tpu.matmul %600, %601, %cst_260 {dimension_numbers = #tpu.dot_dimension_numbers<[1], [0], [0], [1], [0, 0, 1, 1], [], []>} : vector<64x512xbf16>, vector<512x128xbf16>, vector<64x128xf32> -> vector<64x128xf32>
    %603 = arith.truncf %602 : vector<64x128xf32> to vector<64x128xbf16>
    %c0_261 = arith.constant 0 : index
    %c0_262 = arith.constant 0 : index
    %604 = vector.load %arg24[%c0_261, %c0_262] : memref<16x64xbf16, #tpu.memory_space<vmem>>, vector<16x64xbf16>
    %cst_263 = arith.constant dense<0.000000e+00> : vector<16x128xf32>
    %605 = tpu.matmul %604, %603, %cst_263 {dimension_numbers = #tpu.dot_dimension_numbers<[1], [0], [0], [1], [0, 0, 1, 1], [], []>} : vector<16x64xbf16>, vector<64x128xbf16>, vector<16x128xf32> -> vector<16x128xf32>
    %c0_264 = arith.constant 0 : index
    %c0_265 = arith.constant 0 : index
    %606 = vector.load %arg25[%c0_264, %c0_265] : memref<16x1xf32, #tpu.memory_space<vmem>>, vector<16x1xf32>
    %607 = vector.broadcast %606 : vector<16x1xf32> to vector<16x128xf32>
    %608 = arith.addf %605, %607 : vector<16x128xf32>
    %cst_266 = arith.constant 0.000000e+00 : f32
    %609 = vector.broadcast %cst_266 : f32 to vector<16x128xf32>
    %610 = arith.maximumf %608, %609 : vector<16x128xf32>
    %611 = tpu.iota {dimensions = array<i32: 1>} : vector<1x128xi32>
    %c7_i32 = arith.constant 7 : i32
    %612 = vector.broadcast %c7_i32 : i32 to vector<1x128xi32>
    %613 = arith.andi %611, %612 : vector<1x128xi32>
    %c3_i32 = arith.constant 3 : i32
    %614 = vector.broadcast %c3_i32 : i32 to vector<1x128xi32>
    %615 = arith.shrsi %611, %614 : vector<1x128xi32>
    %c7_i32_267 = arith.constant 7 : i32
    %616 = vector.broadcast %c7_i32_267 : i32 to vector<1x128xi32>
    %617 = arith.andi %615, %616 : vector<1x128xi32>
    %c9_i32 = arith.constant 9 : i32
    %618 = tpu.dynamic_rotate %610 by %c9_i32 dim 1 : vector<16x128xf32>, i32 -> vector<16x128xf32>
    %c-1_i32_268 = arith.constant -1 : i32
    %619 = vector.broadcast %c-1_i32_268 : i32 to vector<1x128xi32>
    %620 = arith.addi %617, %619 : vector<1x128xi32>
    %c-1_i32_269 = arith.constant -1 : i32
    %621 = vector.broadcast %c-1_i32_269 : i32 to vector<1x128xi32>
    %622 = arith.addi %613, %621 : vector<1x128xi32>
    %c0_i32_270 = arith.constant 0 : i32
    %623 = vector.broadcast %c0_i32_270 : i32 to vector<1x128xi32>
    %624 = arith.cmpi sge, %620, %623 : vector<1x128xi32>
    %c7_i32_271 = arith.constant 7 : i32
    %625 = vector.broadcast %c7_i32_271 : i32 to vector<1x128xi32>
    %626 = arith.cmpi sle, %620, %625 : vector<1x128xi32>
    %627 = arith.andi %624, %626 : vector<1x128xi1>
    %c0_i32_272 = arith.constant 0 : i32
    %628 = vector.broadcast %c0_i32_272 : i32 to vector<1x128xi32>
    %629 = arith.cmpi sge, %622, %628 : vector<1x128xi32>
    %630 = arith.andi %627, %629 : vector<1x128xi1>
    %c7_i32_273 = arith.constant 7 : i32
    %631 = vector.broadcast %c7_i32_273 : i32 to vector<1x128xi32>
    %632 = arith.cmpi sle, %622, %631 : vector<1x128xi32>
    %633 = arith.andi %630, %632 : vector<1x128xi1>
    %cst_274 = arith.constant 0.000000e+00 : f32
    %634 = vector.shape_cast %633 : vector<1x128xi1> to vector<1x128xi1>
    %635 = vector.broadcast %634 : vector<1x128xi1> to vector<16x128xi1>
    %636 = vector.broadcast %cst_274 : f32 to vector<16x128xf32>
    %637 = arith.select %635, %618, %636 : vector<16x128xi1>, vector<16x128xf32>
    %c8_i32 = arith.constant 8 : i32
    %638 = tpu.dynamic_rotate %610 by %c8_i32 dim 1 : vector<16x128xf32>, i32 -> vector<16x128xf32>
    %c-1_i32_275 = arith.constant -1 : i32
    %639 = vector.broadcast %c-1_i32_275 : i32 to vector<1x128xi32>
    %640 = arith.addi %617, %639 : vector<1x128xi32>
    %c0_i32_276 = arith.constant 0 : i32
    %641 = vector.broadcast %c0_i32_276 : i32 to vector<1x128xi32>
    %642 = arith.addi %613, %641 : vector<1x128xi32>
    %c0_i32_277 = arith.constant 0 : i32
    %643 = vector.broadcast %c0_i32_277 : i32 to vector<1x128xi32>
    %644 = arith.cmpi sge, %640, %643 : vector<1x128xi32>
    %c7_i32_278 = arith.constant 7 : i32
    %645 = vector.broadcast %c7_i32_278 : i32 to vector<1x128xi32>
    %646 = arith.cmpi sle, %640, %645 : vector<1x128xi32>
    %647 = arith.andi %644, %646 : vector<1x128xi1>
    %c0_i32_279 = arith.constant 0 : i32
    %648 = vector.broadcast %c0_i32_279 : i32 to vector<1x128xi32>
    %649 = arith.cmpi sge, %642, %648 : vector<1x128xi32>
    %650 = arith.andi %647, %649 : vector<1x128xi1>
    %c7_i32_280 = arith.constant 7 : i32
    %651 = vector.broadcast %c7_i32_280 : i32 to vector<1x128xi32>
    %652 = arith.cmpi sle, %642, %651 : vector<1x128xi32>
    %653 = arith.andi %650, %652 : vector<1x128xi1>
    %cst_281 = arith.constant 0.000000e+00 : f32
    %654 = vector.shape_cast %653 : vector<1x128xi1> to vector<1x128xi1>
    %655 = vector.broadcast %654 : vector<1x128xi1> to vector<16x128xi1>
    %656 = vector.broadcast %cst_281 : f32 to vector<16x128xf32>
    %657 = arith.select %655, %638, %656 : vector<16x128xi1>, vector<16x128xf32>
    %c7_i32_282 = arith.constant 7 : i32
    %658 = tpu.dynamic_rotate %610 by %c7_i32_282 dim 1 : vector<16x128xf32>, i32 -> vector<16x128xf32>
    %c-1_i32_283 = arith.constant -1 : i32
    %659 = vector.broadcast %c-1_i32_283 : i32 to vector<1x128xi32>
    %660 = arith.addi %617, %659 : vector<1x128xi32>
    %c1_i32_284 = arith.constant 1 : i32
    %661 = vector.broadcast %c1_i32_284 : i32 to vector<1x128xi32>
    %662 = arith.addi %613, %661 : vector<1x128xi32>
    %c0_i32_285 = arith.constant 0 : i32
    %663 = vector.broadcast %c0_i32_285 : i32 to vector<1x128xi32>
    %664 = arith.cmpi sge, %660, %663 : vector<1x128xi32>
    %c7_i32_286 = arith.constant 7 : i32
    %665 = vector.broadcast %c7_i32_286 : i32 to vector<1x128xi32>
    %666 = arith.cmpi sle, %660, %665 : vector<1x128xi32>
    %667 = arith.andi %664, %666 : vector<1x128xi1>
    %c0_i32_287 = arith.constant 0 : i32
    %668 = vector.broadcast %c0_i32_287 : i32 to vector<1x128xi32>
    %669 = arith.cmpi sge, %662, %668 : vector<1x128xi32>
    %670 = arith.andi %667, %669 : vector<1x128xi1>
    %c7_i32_288 = arith.constant 7 : i32
    %671 = vector.broadcast %c7_i32_288 : i32 to vector<1x128xi32>
    %672 = arith.cmpi sle, %662, %671 : vector<1x128xi32>
    %673 = arith.andi %670, %672 : vector<1x128xi1>
    %cst_289 = arith.constant 0.000000e+00 : f32
    %674 = vector.shape_cast %673 : vector<1x128xi1> to vector<1x128xi1>
    %675 = vector.broadcast %674 : vector<1x128xi1> to vector<16x128xi1>
    %676 = vector.broadcast %cst_289 : f32 to vector<16x128xf32>
    %677 = arith.select %675, %658, %676 : vector<16x128xi1>, vector<16x128xf32>
    %c1_i32_290 = arith.constant 1 : i32
    %678 = tpu.dynamic_rotate %610 by %c1_i32_290 dim 1 : vector<16x128xf32>, i32 -> vector<16x128xf32>
    %c0_i32_291 = arith.constant 0 : i32
    %679 = vector.broadcast %c0_i32_291 : i32 to vector<1x128xi32>
    %680 = arith.addi %617, %679 : vector<1x128xi32>
    %c-1_i32_292 = arith.constant -1 : i32
    %681 = vector.broadcast %c-1_i32_292 : i32 to vector<1x128xi32>
    %682 = arith.addi %613, %681 : vector<1x128xi32>
    %c0_i32_293 = arith.constant 0 : i32
    %683 = vector.broadcast %c0_i32_293 : i32 to vector<1x128xi32>
    %684 = arith.cmpi sge, %680, %683 : vector<1x128xi32>
    %c7_i32_294 = arith.constant 7 : i32
    %685 = vector.broadcast %c7_i32_294 : i32 to vector<1x128xi32>
    %686 = arith.cmpi sle, %680, %685 : vector<1x128xi32>
    %687 = arith.andi %684, %686 : vector<1x128xi1>
    %c0_i32_295 = arith.constant 0 : i32
    %688 = vector.broadcast %c0_i32_295 : i32 to vector<1x128xi32>
    %689 = arith.cmpi sge, %682, %688 : vector<1x128xi32>
    %690 = arith.andi %687, %689 : vector<1x128xi1>
    %c7_i32_296 = arith.constant 7 : i32
    %691 = vector.broadcast %c7_i32_296 : i32 to vector<1x128xi32>
    %692 = arith.cmpi sle, %682, %691 : vector<1x128xi32>
    %693 = arith.andi %690, %692 : vector<1x128xi1>
    %cst_297 = arith.constant 0.000000e+00 : f32
    %694 = vector.shape_cast %693 : vector<1x128xi1> to vector<1x128xi1>
    %695 = vector.broadcast %694 : vector<1x128xi1> to vector<16x128xi1>
    %696 = vector.broadcast %cst_297 : f32 to vector<16x128xf32>
    %697 = arith.select %695, %678, %696 : vector<16x128xi1>, vector<16x128xf32>
    %c127_i32 = arith.constant 127 : i32
    %698 = tpu.dynamic_rotate %610 by %c127_i32 dim 1 : vector<16x128xf32>, i32 -> vector<16x128xf32>
    %c0_i32_298 = arith.constant 0 : i32
    %699 = vector.broadcast %c0_i32_298 : i32 to vector<1x128xi32>
    %700 = arith.addi %617, %699 : vector<1x128xi32>
    %c1_i32_299 = arith.constant 1 : i32
    %701 = vector.broadcast %c1_i32_299 : i32 to vector<1x128xi32>
    %702 = arith.addi %613, %701 : vector<1x128xi32>
    %c0_i32_300 = arith.constant 0 : i32
    %703 = vector.broadcast %c0_i32_300 : i32 to vector<1x128xi32>
    %704 = arith.cmpi sge, %700, %703 : vector<1x128xi32>
    %c7_i32_301 = arith.constant 7 : i32
    %705 = vector.broadcast %c7_i32_301 : i32 to vector<1x128xi32>
    %706 = arith.cmpi sle, %700, %705 : vector<1x128xi32>
    %707 = arith.andi %704, %706 : vector<1x128xi1>
    %c0_i32_302 = arith.constant 0 : i32
    %708 = vector.broadcast %c0_i32_302 : i32 to vector<1x128xi32>
    %709 = arith.cmpi sge, %702, %708 : vector<1x128xi32>
    %710 = arith.andi %707, %709 : vector<1x128xi1>
    %c7_i32_303 = arith.constant 7 : i32
    %711 = vector.broadcast %c7_i32_303 : i32 to vector<1x128xi32>
    %712 = arith.cmpi sle, %702, %711 : vector<1x128xi32>
    %713 = arith.andi %710, %712 : vector<1x128xi1>
    %cst_304 = arith.constant 0.000000e+00 : f32
    %714 = vector.shape_cast %713 : vector<1x128xi1> to vector<1x128xi1>
    %715 = vector.broadcast %714 : vector<1x128xi1> to vector<16x128xi1>
    %716 = vector.broadcast %cst_304 : f32 to vector<16x128xf32>
    %717 = arith.select %715, %698, %716 : vector<16x128xi1>, vector<16x128xf32>
    %c121_i32 = arith.constant 121 : i32
    %718 = tpu.dynamic_rotate %610 by %c121_i32 dim 1 : vector<16x128xf32>, i32 -> vector<16x128xf32>
    %c1_i32_305 = arith.constant 1 : i32
    %719 = vector.broadcast %c1_i32_305 : i32 to vector<1x128xi32>
    %720 = arith.addi %617, %719 : vector<1x128xi32>
    %c-1_i32_306 = arith.constant -1 : i32
    %721 = vector.broadcast %c-1_i32_306 : i32 to vector<1x128xi32>
    %722 = arith.addi %613, %721 : vector<1x128xi32>
    %c0_i32_307 = arith.constant 0 : i32
    %723 = vector.broadcast %c0_i32_307 : i32 to vector<1x128xi32>
    %724 = arith.cmpi sge, %720, %723 : vector<1x128xi32>
    %c7_i32_308 = arith.constant 7 : i32
    %725 = vector.broadcast %c7_i32_308 : i32 to vector<1x128xi32>
    %726 = arith.cmpi sle, %720, %725 : vector<1x128xi32>
    %727 = arith.andi %724, %726 : vector<1x128xi1>
    %c0_i32_309 = arith.constant 0 : i32
    %728 = vector.broadcast %c0_i32_309 : i32 to vector<1x128xi32>
    %729 = arith.cmpi sge, %722, %728 : vector<1x128xi32>
    %730 = arith.andi %727, %729 : vector<1x128xi1>
    %c7_i32_310 = arith.constant 7 : i32
    %731 = vector.broadcast %c7_i32_310 : i32 to vector<1x128xi32>
    %732 = arith.cmpi sle, %722, %731 : vector<1x128xi32>
    %733 = arith.andi %730, %732 : vector<1x128xi1>
    %cst_311 = arith.constant 0.000000e+00 : f32
    %734 = vector.shape_cast %733 : vector<1x128xi1> to vector<1x128xi1>
    %735 = vector.broadcast %734 : vector<1x128xi1> to vector<16x128xi1>
    %736 = vector.broadcast %cst_311 : f32 to vector<16x128xf32>
    %737 = arith.select %735, %718, %736 : vector<16x128xi1>, vector<16x128xf32>
    %c120_i32 = arith.constant 120 : i32
    %738 = tpu.dynamic_rotate %610 by %c120_i32 dim 1 : vector<16x128xf32>, i32 -> vector<16x128xf32>
    %c1_i32_312 = arith.constant 1 : i32
    %739 = vector.broadcast %c1_i32_312 : i32 to vector<1x128xi32>
    %740 = arith.addi %617, %739 : vector<1x128xi32>
    %c0_i32_313 = arith.constant 0 : i32
    %741 = vector.broadcast %c0_i32_313 : i32 to vector<1x128xi32>
    %742 = arith.addi %613, %741 : vector<1x128xi32>
    %c0_i32_314 = arith.constant 0 : i32
    %743 = vector.broadcast %c0_i32_314 : i32 to vector<1x128xi32>
    %744 = arith.cmpi sge, %740, %743 : vector<1x128xi32>
    %c7_i32_315 = arith.constant 7 : i32
    %745 = vector.broadcast %c7_i32_315 : i32 to vector<1x128xi32>
    %746 = arith.cmpi sle, %740, %745 : vector<1x128xi32>
    %747 = arith.andi %744, %746 : vector<1x128xi1>
    %c0_i32_316 = arith.constant 0 : i32
    %748 = vector.broadcast %c0_i32_316 : i32 to vector<1x128xi32>
    %749 = arith.cmpi sge, %742, %748 : vector<1x128xi32>
    %750 = arith.andi %747, %749 : vector<1x128xi1>
    %c7_i32_317 = arith.constant 7 : i32
    %751 = vector.broadcast %c7_i32_317 : i32 to vector<1x128xi32>
    %752 = arith.cmpi sle, %742, %751 : vector<1x128xi32>
    %753 = arith.andi %750, %752 : vector<1x128xi1>
    %cst_318 = arith.constant 0.000000e+00 : f32
    %754 = vector.shape_cast %753 : vector<1x128xi1> to vector<1x128xi1>
    %755 = vector.broadcast %754 : vector<1x128xi1> to vector<16x128xi1>
    %756 = vector.broadcast %cst_318 : f32 to vector<16x128xf32>
    %757 = arith.select %755, %738, %756 : vector<16x128xi1>, vector<16x128xf32>
    %c119_i32 = arith.constant 119 : i32
    %758 = tpu.dynamic_rotate %610 by %c119_i32 dim 1 : vector<16x128xf32>, i32 -> vector<16x128xf32>
    %c1_i32_319 = arith.constant 1 : i32
    %759 = vector.broadcast %c1_i32_319 : i32 to vector<1x128xi32>
    %760 = arith.addi %617, %759 : vector<1x128xi32>
    %c1_i32_320 = arith.constant 1 : i32
    %761 = vector.broadcast %c1_i32_320 : i32 to vector<1x128xi32>
    %762 = arith.addi %613, %761 : vector<1x128xi32>
    %c0_i32_321 = arith.constant 0 : i32
    %763 = vector.broadcast %c0_i32_321 : i32 to vector<1x128xi32>
    %764 = arith.cmpi sge, %760, %763 : vector<1x128xi32>
    %c7_i32_322 = arith.constant 7 : i32
    %765 = vector.broadcast %c7_i32_322 : i32 to vector<1x128xi32>
    %766 = arith.cmpi sle, %760, %765 : vector<1x128xi32>
    %767 = arith.andi %764, %766 : vector<1x128xi1>
    %c0_i32_323 = arith.constant 0 : i32
    %768 = vector.broadcast %c0_i32_323 : i32 to vector<1x128xi32>
    %769 = arith.cmpi sge, %762, %768 : vector<1x128xi32>
    %770 = arith.andi %767, %769 : vector<1x128xi1>
    %c7_i32_324 = arith.constant 7 : i32
    %771 = vector.broadcast %c7_i32_324 : i32 to vector<1x128xi32>
    %772 = arith.cmpi sle, %762, %771 : vector<1x128xi32>
    %773 = arith.andi %770, %772 : vector<1x128xi1>
    %cst_325 = arith.constant 0.000000e+00 : f32
    %774 = vector.shape_cast %773 : vector<1x128xi1> to vector<1x128xi1>
    %775 = vector.broadcast %774 : vector<1x128xi1> to vector<16x128xi1>
    %776 = vector.broadcast %cst_325 : f32 to vector<16x128xf32>
    %777 = arith.select %775, %758, %776 : vector<16x128xi1>, vector<16x128xf32>
    %778 = tpu.concatenate %637, %657, %677, %697, %610, %717, %737, %757, %777 in 0 : vector<16x128xf32>, vector<16x128xf32>, vector<16x128xf32>, vector<16x128xf32>, vector<16x128xf32>, vector<16x128xf32>, vector<16x128xf32>, vector<16x128xf32>, vector<16x128xf32> -> vector<144x128xf32>
    %779 = arith.truncf %778 : vector<144x128xf32> to vector<144x128xbf16>
    %c0_326 = arith.constant 0 : index
    %c0_327 = arith.constant 0 : index
    %780 = vector.load %arg26[%c0_326, %c0_327] : memref<16x144xbf16, #tpu.memory_space<vmem>>, vector<16x144xbf16>
    %cst_328 = arith.constant dense<0.000000e+00> : vector<16x128xf32>
    %781 = tpu.matmul %780, %779, %cst_328 {dimension_numbers = #tpu.dot_dimension_numbers<[1], [0], [0], [1], [0, 0, 1, 1], [], []>} : vector<16x144xbf16>, vector<144x128xbf16>, vector<16x128xf32> -> vector<16x128xf32>
    %c0_329 = arith.constant 0 : index
    %c0_330 = arith.constant 0 : index
    %782 = vector.load %arg27[%c0_329, %c0_330] : memref<16x1xf32, #tpu.memory_space<vmem>>, vector<16x1xf32>
    %783 = vector.broadcast %782 : vector<16x1xf32> to vector<16x128xf32>
    %784 = arith.addf %781, %783 : vector<16x128xf32>
    %cst_331 = arith.constant 0.000000e+00 : f32
    %785 = vector.broadcast %cst_331 : f32 to vector<16x128xf32>
    %786 = arith.maximumf %784, %785 : vector<16x128xf32>
    %787 = arith.truncf %786 : vector<16x128xf32> to vector<16x128xbf16>
    %c0_332 = arith.constant 0 : index
    %c0_333 = arith.constant 0 : index
    %788 = vector.load %arg28[%c0_332, %c0_333] : memref<64x16xbf16, #tpu.memory_space<vmem>>, vector<64x16xbf16>
    %cst_334 = arith.constant dense<0.000000e+00> : vector<64x128xf32>
    %789 = tpu.matmul %788, %787, %cst_334 {dimension_numbers = #tpu.dot_dimension_numbers<[1], [0], [0], [1], [0, 0, 1, 1], [], []>} : vector<64x16xbf16>, vector<16x128xbf16>, vector<64x128xf32> -> vector<64x128xf32>
    %c0_335 = arith.constant 0 : index
    %c0_336 = arith.constant 0 : index
    %790 = vector.load %arg29[%c0_335, %c0_336] : memref<64x1xf32, #tpu.memory_space<vmem>>, vector<64x1xf32>
    %791 = vector.broadcast %790 : vector<64x1xf32> to vector<64x128xf32>
    %792 = arith.addf %789, %791 : vector<64x128xf32>
    %cst_337 = arith.constant 0.000000e+00 : f32
    %793 = vector.broadcast %cst_337 : f32 to vector<64x128xf32>
    %794 = arith.maximumf %792, %793 : vector<64x128xf32>
    %795 = arith.extf %603 : vector<64x128xbf16> to vector<64x128xf32>
    %796 = arith.addf %794, %795 : vector<64x128xf32>
    %cst_338 = arith.constant 0.000000e+00 : f32
    %797 = vector.broadcast %cst_338 : f32 to vector<64x128xf32>
    %798 = arith.maximumf %796, %797 : vector<64x128xf32>
    %799 = arith.truncf %798 : vector<64x128xf32> to vector<64x128xbf16>
    %c0_339 = arith.constant 0 : index
    %c0_340 = arith.constant 0 : index
    %800 = vector.load %arg30[%c0_339, %c0_340] : memref<24x64xbf16, #tpu.memory_space<vmem>>, vector<24x64xbf16>
    %cst_341 = arith.constant dense<0.000000e+00> : vector<24x128xf32>
    %801 = tpu.matmul %800, %799, %cst_341 {dimension_numbers = #tpu.dot_dimension_numbers<[1], [0], [0], [1], [0, 0, 1, 1], [], []>} : vector<24x64xbf16>, vector<64x128xbf16>, vector<24x128xf32> -> vector<24x128xf32>
    %c0_342 = arith.constant 0 : index
    %c0_343 = arith.constant 0 : index
    %802 = vector.load %arg31[%c0_342, %c0_343] : memref<24x1xf32, #tpu.memory_space<vmem>>, vector<24x1xf32>
    %803 = vector.broadcast %802 : vector<24x1xf32> to vector<24x128xf32>
    %804 = arith.addf %801, %803 : vector<24x128xf32>
    %cst_344 = arith.constant 0.000000e+00 : f32
    %805 = vector.broadcast %cst_344 : f32 to vector<24x128xf32>
    %806 = arith.maximumf %804, %805 : vector<24x128xf32>
    %807 = tpu.iota {dimensions = array<i32: 1>} : vector<1x128xi32>
    %c7_i32_345 = arith.constant 7 : i32
    %808 = vector.broadcast %c7_i32_345 : i32 to vector<1x128xi32>
    %809 = arith.andi %807, %808 : vector<1x128xi32>
    %c3_i32_346 = arith.constant 3 : i32
    %810 = vector.broadcast %c3_i32_346 : i32 to vector<1x128xi32>
    %811 = arith.shrsi %807, %810 : vector<1x128xi32>
    %c7_i32_347 = arith.constant 7 : i32
    %812 = vector.broadcast %c7_i32_347 : i32 to vector<1x128xi32>
    %813 = arith.andi %811, %812 : vector<1x128xi32>
    %c9_i32_348 = arith.constant 9 : i32
    %814 = tpu.dynamic_rotate %806 by %c9_i32_348 dim 1 : vector<24x128xf32>, i32 -> vector<24x128xf32>
    %c-1_i32_349 = arith.constant -1 : i32
    %815 = vector.broadcast %c-1_i32_349 : i32 to vector<1x128xi32>
    %816 = arith.addi %813, %815 : vector<1x128xi32>
    %c-1_i32_350 = arith.constant -1 : i32
    %817 = vector.broadcast %c-1_i32_350 : i32 to vector<1x128xi32>
    %818 = arith.addi %809, %817 : vector<1x128xi32>
    %c0_i32_351 = arith.constant 0 : i32
    %819 = vector.broadcast %c0_i32_351 : i32 to vector<1x128xi32>
    %820 = arith.cmpi sge, %816, %819 : vector<1x128xi32>
    %c7_i32_352 = arith.constant 7 : i32
    %821 = vector.broadcast %c7_i32_352 : i32 to vector<1x128xi32>
    %822 = arith.cmpi sle, %816, %821 : vector<1x128xi32>
    %823 = arith.andi %820, %822 : vector<1x128xi1>
    %c0_i32_353 = arith.constant 0 : i32
    %824 = vector.broadcast %c0_i32_353 : i32 to vector<1x128xi32>
    %825 = arith.cmpi sge, %818, %824 : vector<1x128xi32>
    %826 = arith.andi %823, %825 : vector<1x128xi1>
    %c7_i32_354 = arith.constant 7 : i32
    %827 = vector.broadcast %c7_i32_354 : i32 to vector<1x128xi32>
    %828 = arith.cmpi sle, %818, %827 : vector<1x128xi32>
    %829 = arith.andi %826, %828 : vector<1x128xi1>
    %cst_355 = arith.constant 0.000000e+00 : f32
    %830 = vector.shape_cast %829 : vector<1x128xi1> to vector<1x128xi1>
    %831 = vector.broadcast %830 : vector<1x128xi1> to vector<24x128xi1>
    %832 = vector.broadcast %cst_355 : f32 to vector<24x128xf32>
    %833 = arith.select %831, %814, %832 : vector<24x128xi1>, vector<24x128xf32>
    %c8_i32_356 = arith.constant 8 : i32
    %834 = tpu.dynamic_rotate %806 by %c8_i32_356 dim 1 : vector<24x128xf32>, i32 -> vector<24x128xf32>
    %c-1_i32_357 = arith.constant -1 : i32
    %835 = vector.broadcast %c-1_i32_357 : i32 to vector<1x128xi32>
    %836 = arith.addi %813, %835 : vector<1x128xi32>
    %c0_i32_358 = arith.constant 0 : i32
    %837 = vector.broadcast %c0_i32_358 : i32 to vector<1x128xi32>
    %838 = arith.addi %809, %837 : vector<1x128xi32>
    %c0_i32_359 = arith.constant 0 : i32
    %839 = vector.broadcast %c0_i32_359 : i32 to vector<1x128xi32>
    %840 = arith.cmpi sge, %836, %839 : vector<1x128xi32>
    %c7_i32_360 = arith.constant 7 : i32
    %841 = vector.broadcast %c7_i32_360 : i32 to vector<1x128xi32>
    %842 = arith.cmpi sle, %836, %841 : vector<1x128xi32>
    %843 = arith.andi %840, %842 : vector<1x128xi1>
    %c0_i32_361 = arith.constant 0 : i32
    %844 = vector.broadcast %c0_i32_361 : i32 to vector<1x128xi32>
    %845 = arith.cmpi sge, %838, %844 : vector<1x128xi32>
    %846 = arith.andi %843, %845 : vector<1x128xi1>
    %c7_i32_362 = arith.constant 7 : i32
    %847 = vector.broadcast %c7_i32_362 : i32 to vector<1x128xi32>
    %848 = arith.cmpi sle, %838, %847 : vector<1x128xi32>
    %849 = arith.andi %846, %848 : vector<1x128xi1>
    %cst_363 = arith.constant 0.000000e+00 : f32
    %850 = vector.shape_cast %849 : vector<1x128xi1> to vector<1x128xi1>
    %851 = vector.broadcast %850 : vector<1x128xi1> to vector<24x128xi1>
    %852 = vector.broadcast %cst_363 : f32 to vector<24x128xf32>
    %853 = arith.select %851, %834, %852 : vector<24x128xi1>, vector<24x128xf32>
    %c7_i32_364 = arith.constant 7 : i32
    %854 = tpu.dynamic_rotate %806 by %c7_i32_364 dim 1 : vector<24x128xf32>, i32 -> vector<24x128xf32>
    %c-1_i32_365 = arith.constant -1 : i32
    %855 = vector.broadcast %c-1_i32_365 : i32 to vector<1x128xi32>
    %856 = arith.addi %813, %855 : vector<1x128xi32>
    %c1_i32_366 = arith.constant 1 : i32
    %857 = vector.broadcast %c1_i32_366 : i32 to vector<1x128xi32>
    %858 = arith.addi %809, %857 : vector<1x128xi32>
    %c0_i32_367 = arith.constant 0 : i32
    %859 = vector.broadcast %c0_i32_367 : i32 to vector<1x128xi32>
    %860 = arith.cmpi sge, %856, %859 : vector<1x128xi32>
    %c7_i32_368 = arith.constant 7 : i32
    %861 = vector.broadcast %c7_i32_368 : i32 to vector<1x128xi32>
    %862 = arith.cmpi sle, %856, %861 : vector<1x128xi32>
    %863 = arith.andi %860, %862 : vector<1x128xi1>
    %c0_i32_369 = arith.constant 0 : i32
    %864 = vector.broadcast %c0_i32_369 : i32 to vector<1x128xi32>
    %865 = arith.cmpi sge, %858, %864 : vector<1x128xi32>
    %866 = arith.andi %863, %865 : vector<1x128xi1>
    %c7_i32_370 = arith.constant 7 : i32
    %867 = vector.broadcast %c7_i32_370 : i32 to vector<1x128xi32>
    %868 = arith.cmpi sle, %858, %867 : vector<1x128xi32>
    %869 = arith.andi %866, %868 : vector<1x128xi1>
    %cst_371 = arith.constant 0.000000e+00 : f32
    %870 = vector.shape_cast %869 : vector<1x128xi1> to vector<1x128xi1>
    %871 = vector.broadcast %870 : vector<1x128xi1> to vector<24x128xi1>
    %872 = vector.broadcast %cst_371 : f32 to vector<24x128xf32>
    %873 = arith.select %871, %854, %872 : vector<24x128xi1>, vector<24x128xf32>
    %c1_i32_372 = arith.constant 1 : i32
    %874 = tpu.dynamic_rotate %806 by %c1_i32_372 dim 1 : vector<24x128xf32>, i32 -> vector<24x128xf32>
    %c0_i32_373 = arith.constant 0 : i32
    %875 = vector.broadcast %c0_i32_373 : i32 to vector<1x128xi32>
    %876 = arith.addi %813, %875 : vector<1x128xi32>
    %c-1_i32_374 = arith.constant -1 : i32
    %877 = vector.broadcast %c-1_i32_374 : i32 to vector<1x128xi32>
    %878 = arith.addi %809, %877 : vector<1x128xi32>
    %c0_i32_375 = arith.constant 0 : i32
    %879 = vector.broadcast %c0_i32_375 : i32 to vector<1x128xi32>
    %880 = arith.cmpi sge, %876, %879 : vector<1x128xi32>
    %c7_i32_376 = arith.constant 7 : i32
    %881 = vector.broadcast %c7_i32_376 : i32 to vector<1x128xi32>
    %882 = arith.cmpi sle, %876, %881 : vector<1x128xi32>
    %883 = arith.andi %880, %882 : vector<1x128xi1>
    %c0_i32_377 = arith.constant 0 : i32
    %884 = vector.broadcast %c0_i32_377 : i32 to vector<1x128xi32>
    %885 = arith.cmpi sge, %878, %884 : vector<1x128xi32>
    %886 = arith.andi %883, %885 : vector<1x128xi1>
    %c7_i32_378 = arith.constant 7 : i32
    %887 = vector.broadcast %c7_i32_378 : i32 to vector<1x128xi32>
    %888 = arith.cmpi sle, %878, %887 : vector<1x128xi32>
    %889 = arith.andi %886, %888 : vector<1x128xi1>
    %cst_379 = arith.constant 0.000000e+00 : f32
    %890 = vector.shape_cast %889 : vector<1x128xi1> to vector<1x128xi1>
    %891 = vector.broadcast %890 : vector<1x128xi1> to vector<24x128xi1>
    %892 = vector.broadcast %cst_379 : f32 to vector<24x128xf32>
    %893 = arith.select %891, %874, %892 : vector<24x128xi1>, vector<24x128xf32>
    %c127_i32_380 = arith.constant 127 : i32
    %894 = tpu.dynamic_rotate %806 by %c127_i32_380 dim 1 : vector<24x128xf32>, i32 -> vector<24x128xf32>
    %c0_i32_381 = arith.constant 0 : i32
    %895 = vector.broadcast %c0_i32_381 : i32 to vector<1x128xi32>
    %896 = arith.addi %813, %895 : vector<1x128xi32>
    %c1_i32_382 = arith.constant 1 : i32
    %897 = vector.broadcast %c1_i32_382 : i32 to vector<1x128xi32>
    %898 = arith.addi %809, %897 : vector<1x128xi32>
    %c0_i32_383 = arith.constant 0 : i32
    %899 = vector.broadcast %c0_i32_383 : i32 to vector<1x128xi32>
    %900 = arith.cmpi sge, %896, %899 : vector<1x128xi32>
    %c7_i32_384 = arith.constant 7 : i32
    %901 = vector.broadcast %c7_i32_384 : i32 to vector<1x128xi32>
    %902 = arith.cmpi sle, %896, %901 : vector<1x128xi32>
    %903 = arith.andi %900, %902 : vector<1x128xi1>
    %c0_i32_385 = arith.constant 0 : i32
    %904 = vector.broadcast %c0_i32_385 : i32 to vector<1x128xi32>
    %905 = arith.cmpi sge, %898, %904 : vector<1x128xi32>
    %906 = arith.andi %903, %905 : vector<1x128xi1>
    %c7_i32_386 = arith.constant 7 : i32
    %907 = vector.broadcast %c7_i32_386 : i32 to vector<1x128xi32>
    %908 = arith.cmpi sle, %898, %907 : vector<1x128xi32>
    %909 = arith.andi %906, %908 : vector<1x128xi1>
    %cst_387 = arith.constant 0.000000e+00 : f32
    %910 = vector.shape_cast %909 : vector<1x128xi1> to vector<1x128xi1>
    %911 = vector.broadcast %910 : vector<1x128xi1> to vector<24x128xi1>
    %912 = vector.broadcast %cst_387 : f32 to vector<24x128xf32>
    %913 = arith.select %911, %894, %912 : vector<24x128xi1>, vector<24x128xf32>
    %c121_i32_388 = arith.constant 121 : i32
    %914 = tpu.dynamic_rotate %806 by %c121_i32_388 dim 1 : vector<24x128xf32>, i32 -> vector<24x128xf32>
    %c1_i32_389 = arith.constant 1 : i32
    %915 = vector.broadcast %c1_i32_389 : i32 to vector<1x128xi32>
    %916 = arith.addi %813, %915 : vector<1x128xi32>
    %c-1_i32_390 = arith.constant -1 : i32
    %917 = vector.broadcast %c-1_i32_390 : i32 to vector<1x128xi32>
    %918 = arith.addi %809, %917 : vector<1x128xi32>
    %c0_i32_391 = arith.constant 0 : i32
    %919 = vector.broadcast %c0_i32_391 : i32 to vector<1x128xi32>
    %920 = arith.cmpi sge, %916, %919 : vector<1x128xi32>
    %c7_i32_392 = arith.constant 7 : i32
    %921 = vector.broadcast %c7_i32_392 : i32 to vector<1x128xi32>
    %922 = arith.cmpi sle, %916, %921 : vector<1x128xi32>
    %923 = arith.andi %920, %922 : vector<1x128xi1>
    %c0_i32_393 = arith.constant 0 : i32
    %924 = vector.broadcast %c0_i32_393 : i32 to vector<1x128xi32>
    %925 = arith.cmpi sge, %918, %924 : vector<1x128xi32>
    %926 = arith.andi %923, %925 : vector<1x128xi1>
    %c7_i32_394 = arith.constant 7 : i32
    %927 = vector.broadcast %c7_i32_394 : i32 to vector<1x128xi32>
    %928 = arith.cmpi sle, %918, %927 : vector<1x128xi32>
    %929 = arith.andi %926, %928 : vector<1x128xi1>
    %cst_395 = arith.constant 0.000000e+00 : f32
    %930 = vector.shape_cast %929 : vector<1x128xi1> to vector<1x128xi1>
    %931 = vector.broadcast %930 : vector<1x128xi1> to vector<24x128xi1>
    %932 = vector.broadcast %cst_395 : f32 to vector<24x128xf32>
    %933 = arith.select %931, %914, %932 : vector<24x128xi1>, vector<24x128xf32>
    %c120_i32_396 = arith.constant 120 : i32
    %934 = tpu.dynamic_rotate %806 by %c120_i32_396 dim 1 : vector<24x128xf32>, i32 -> vector<24x128xf32>
    %c1_i32_397 = arith.constant 1 : i32
    %935 = vector.broadcast %c1_i32_397 : i32 to vector<1x128xi32>
    %936 = arith.addi %813, %935 : vector<1x128xi32>
    %c0_i32_398 = arith.constant 0 : i32
    %937 = vector.broadcast %c0_i32_398 : i32 to vector<1x128xi32>
    %938 = arith.addi %809, %937 : vector<1x128xi32>
    %c0_i32_399 = arith.constant 0 : i32
    %939 = vector.broadcast %c0_i32_399 : i32 to vector<1x128xi32>
    %940 = arith.cmpi sge, %936, %939 : vector<1x128xi32>
    %c7_i32_400 = arith.constant 7 : i32
    %941 = vector.broadcast %c7_i32_400 : i32 to vector<1x128xi32>
    %942 = arith.cmpi sle, %936, %941 : vector<1x128xi32>
    %943 = arith.andi %940, %942 : vector<1x128xi1>
    %c0_i32_401 = arith.constant 0 : i32
    %944 = vector.broadcast %c0_i32_401 : i32 to vector<1x128xi32>
    %945 = arith.cmpi sge, %938, %944 : vector<1x128xi32>
    %946 = arith.andi %943, %945 : vector<1x128xi1>
    %c7_i32_402 = arith.constant 7 : i32
    %947 = vector.broadcast %c7_i32_402 : i32 to vector<1x128xi32>
    %948 = arith.cmpi sle, %938, %947 : vector<1x128xi32>
    %949 = arith.andi %946, %948 : vector<1x128xi1>
    %cst_403 = arith.constant 0.000000e+00 : f32
    %950 = vector.shape_cast %949 : vector<1x128xi1> to vector<1x128xi1>
    %951 = vector.broadcast %950 : vector<1x128xi1> to vector<24x128xi1>
    %952 = vector.broadcast %cst_403 : f32 to vector<24x128xf32>
    %953 = arith.select %951, %934, %952 : vector<24x128xi1>, vector<24x128xf32>
    %c119_i32_404 = arith.constant 119 : i32
    %954 = tpu.dynamic_rotate %806 by %c119_i32_404 dim 1 : vector<24x128xf32>, i32 -> vector<24x128xf32>
    %c1_i32_405 = arith.constant 1 : i32
    %955 = vector.broadcast %c1_i32_405 : i32 to vector<1x128xi32>
    %956 = arith.addi %813, %955 : vector<1x128xi32>
    %c1_i32_406 = arith.constant 1 : i32
    %957 = vector.broadcast %c1_i32_406 : i32 to vector<1x128xi32>
    %958 = arith.addi %809, %957 : vector<1x128xi32>
    %c0_i32_407 = arith.constant 0 : i32
    %959 = vector.broadcast %c0_i32_407 : i32 to vector<1x128xi32>
    %960 = arith.cmpi sge, %956, %959 : vector<1x128xi32>
    %c7_i32_408 = arith.constant 7 : i32
    %961 = vector.broadcast %c7_i32_408 : i32 to vector<1x128xi32>
    %962 = arith.cmpi sle, %956, %961 : vector<1x128xi32>
    %963 = arith.andi %960, %962 : vector<1x128xi1>
    %c0_i32_409 = arith.constant 0 : i32
    %964 = vector.broadcast %c0_i32_409 : i32 to vector<1x128xi32>
    %965 = arith.cmpi sge, %958, %964 : vector<1x128xi32>
    %966 = arith.andi %963, %965 : vector<1x128xi1>
    %c7_i32_410 = arith.constant 7 : i32
    %967 = vector.broadcast %c7_i32_410 : i32 to vector<1x128xi32>
    %968 = arith.cmpi sle, %958, %967 : vector<1x128xi32>
    %969 = arith.andi %966, %968 : vector<1x128xi1>
    %cst_411 = arith.constant 0.000000e+00 : f32
    %970 = vector.shape_cast %969 : vector<1x128xi1> to vector<1x128xi1>
    %971 = vector.broadcast %970 : vector<1x128xi1> to vector<24x128xi1>
    %972 = vector.broadcast %cst_411 : f32 to vector<24x128xf32>
    %973 = arith.select %971, %954, %972 : vector<24x128xi1>, vector<24x128xf32>
    %974 = tpu.concatenate %833, %853, %873, %893, %806, %913, %933, %953, %973 in 0 : vector<24x128xf32>, vector<24x128xf32>, vector<24x128xf32>, vector<24x128xf32>, vector<24x128xf32>, vector<24x128xf32>, vector<24x128xf32>, vector<24x128xf32>, vector<24x128xf32> -> vector<216x128xf32>
    %975 = arith.truncf %974 : vector<216x128xf32> to vector<216x128xbf16>
    %c0_412 = arith.constant 0 : index
    %c0_413 = arith.constant 0 : index
    %976 = vector.load %arg32[%c0_412, %c0_413] : memref<24x216xbf16, #tpu.memory_space<vmem>>, vector<24x216xbf16>
    %cst_414 = arith.constant dense<0.000000e+00> : vector<24x128xf32>
    %977 = tpu.matmul %976, %975, %cst_414 {dimension_numbers = #tpu.dot_dimension_numbers<[1], [0], [0], [1], [0, 0, 1, 1], [], []>} : vector<24x216xbf16>, vector<216x128xbf16>, vector<24x128xf32> -> vector<24x128xf32>
    %c0_415 = arith.constant 0 : index
    %c0_416 = arith.constant 0 : index
    %978 = vector.load %arg33[%c0_415, %c0_416] : memref<24x1xf32, #tpu.memory_space<vmem>>, vector<24x1xf32>
    %979 = vector.broadcast %978 : vector<24x1xf32> to vector<24x128xf32>
    %980 = arith.addf %977, %979 : vector<24x128xf32>
    %cst_417 = arith.constant 0.000000e+00 : f32
    %981 = vector.broadcast %cst_417 : f32 to vector<24x128xf32>
    %982 = arith.maximumf %980, %981 : vector<24x128xf32>
    %983 = arith.truncf %982 : vector<24x128xf32> to vector<24x128xbf16>
    %c0_418 = arith.constant 0 : index
    %c0_419 = arith.constant 0 : index
    %984 = vector.load %arg34[%c0_418, %c0_419] : memref<96x24xbf16, #tpu.memory_space<vmem>>, vector<96x24xbf16>
    %cst_420 = arith.constant dense<0.000000e+00> : vector<96x128xf32>
    %985 = tpu.matmul %984, %983, %cst_420 {dimension_numbers = #tpu.dot_dimension_numbers<[1], [0], [0], [1], [0, 0, 1, 1], [], []>} : vector<96x24xbf16>, vector<24x128xbf16>, vector<96x128xf32> -> vector<96x128xf32>
    %c0_421 = arith.constant 0 : index
    %c0_422 = arith.constant 0 : index
    %986 = vector.load %arg35[%c0_421, %c0_422] : memref<96x1xf32, #tpu.memory_space<vmem>>, vector<96x1xf32>
    %987 = vector.broadcast %986 : vector<96x1xf32> to vector<96x128xf32>
    %988 = arith.addf %985, %987 : vector<96x128xf32>
    %cst_423 = arith.constant 0.000000e+00 : f32
    %989 = vector.broadcast %cst_423 : f32 to vector<96x128xf32>
    %990 = arith.maximumf %988, %989 : vector<96x128xf32>
    %c0_424 = arith.constant 0 : index
    %c0_425 = arith.constant 0 : index
    %991 = vector.load %arg36[%c0_424, %c0_425] : memref<96x64xbf16, #tpu.memory_space<vmem>>, vector<96x64xbf16>
    %cst_426 = arith.constant dense<0.000000e+00> : vector<96x128xf32>
    %992 = tpu.matmul %991, %799, %cst_426 {dimension_numbers = #tpu.dot_dimension_numbers<[1], [0], [0], [1], [0, 0, 1, 1], [], []>} : vector<96x64xbf16>, vector<64x128xbf16>, vector<96x128xf32> -> vector<96x128xf32>
    %c0_427 = arith.constant 0 : index
    %c0_428 = arith.constant 0 : index
    %993 = vector.load %arg37[%c0_427, %c0_428] : memref<96x1xf32, #tpu.memory_space<vmem>>, vector<96x1xf32>
    %994 = vector.broadcast %993 : vector<96x1xf32> to vector<96x128xf32>
    %995 = arith.addf %992, %994 : vector<96x128xf32>
    %996 = arith.addf %990, %995 : vector<96x128xf32>
    %cst_429 = arith.constant 0.000000e+00 : f32
    %997 = vector.broadcast %cst_429 : f32 to vector<96x128xf32>
    %998 = arith.maximumf %996, %997 : vector<96x128xf32>
    %999 = arith.truncf %998 : vector<96x128xf32> to vector<96x128xbf16>
    %c0_430 = arith.constant 0 : index
    %c0_431 = arith.constant 0 : index
    %1000 = vector.load %arg38[%c0_430, %c0_431] : memref<24x96xbf16, #tpu.memory_space<vmem>>, vector<24x96xbf16>
    %cst_432 = arith.constant dense<0.000000e+00> : vector<24x128xf32>
    %1001 = tpu.matmul %1000, %999, %cst_432 {dimension_numbers = #tpu.dot_dimension_numbers<[1], [0], [0], [1], [0, 0, 1, 1], [], []>} : vector<24x96xbf16>, vector<96x128xbf16>, vector<24x128xf32> -> vector<24x128xf32>
    %c0_433 = arith.constant 0 : index
    %c0_434 = arith.constant 0 : index
    %1002 = vector.load %arg39[%c0_433, %c0_434] : memref<24x1xf32, #tpu.memory_space<vmem>>, vector<24x1xf32>
    %1003 = vector.broadcast %1002 : vector<24x1xf32> to vector<24x128xf32>
    %1004 = arith.addf %1001, %1003 : vector<24x128xf32>
    %cst_435 = arith.constant 0.000000e+00 : f32
    %1005 = vector.broadcast %cst_435 : f32 to vector<24x128xf32>
    %1006 = arith.maximumf %1004, %1005 : vector<24x128xf32>
    %1007 = tpu.iota {dimensions = array<i32: 1>} : vector<1x128xi32>
    %c7_i32_436 = arith.constant 7 : i32
    %1008 = vector.broadcast %c7_i32_436 : i32 to vector<1x128xi32>
    %1009 = arith.andi %1007, %1008 : vector<1x128xi32>
    %c3_i32_437 = arith.constant 3 : i32
    %1010 = vector.broadcast %c3_i32_437 : i32 to vector<1x128xi32>
    %1011 = arith.shrsi %1007, %1010 : vector<1x128xi32>
    %c7_i32_438 = arith.constant 7 : i32
    %1012 = vector.broadcast %c7_i32_438 : i32 to vector<1x128xi32>
    %1013 = arith.andi %1011, %1012 : vector<1x128xi32>
    %c18_i32 = arith.constant 18 : i32
    %1014 = tpu.dynamic_rotate %1006 by %c18_i32 dim 1 : vector<24x128xf32>, i32 -> vector<24x128xf32>
    %c-2_i32 = arith.constant -2 : i32
    %1015 = vector.broadcast %c-2_i32 : i32 to vector<1x128xi32>
    %1016 = arith.addi %1013, %1015 : vector<1x128xi32>
    %c-2_i32_439 = arith.constant -2 : i32
    %1017 = vector.broadcast %c-2_i32_439 : i32 to vector<1x128xi32>
    %1018 = arith.addi %1009, %1017 : vector<1x128xi32>
    %c0_i32_440 = arith.constant 0 : i32
    %1019 = vector.broadcast %c0_i32_440 : i32 to vector<1x128xi32>
    %1020 = arith.cmpi sge, %1016, %1019 : vector<1x128xi32>
    %c6_i32 = arith.constant 6 : i32
    %1021 = vector.broadcast %c6_i32 : i32 to vector<1x128xi32>
    %1022 = arith.cmpi sle, %1016, %1021 : vector<1x128xi32>
    %1023 = arith.andi %1020, %1022 : vector<1x128xi1>
    %c0_i32_441 = arith.constant 0 : i32
    %1024 = vector.broadcast %c0_i32_441 : i32 to vector<1x128xi32>
    %1025 = arith.cmpi sge, %1018, %1024 : vector<1x128xi32>
    %1026 = arith.andi %1023, %1025 : vector<1x128xi1>
    %c6_i32_442 = arith.constant 6 : i32
    %1027 = vector.broadcast %c6_i32_442 : i32 to vector<1x128xi32>
    %1028 = arith.cmpi sle, %1018, %1027 : vector<1x128xi32>
    %1029 = arith.andi %1026, %1028 : vector<1x128xi1>
    %cst_443 = arith.constant 0.000000e+00 : f32
    %1030 = vector.shape_cast %1029 : vector<1x128xi1> to vector<1x128xi1>
    %1031 = vector.broadcast %1030 : vector<1x128xi1> to vector<24x128xi1>
    %1032 = vector.broadcast %cst_443 : f32 to vector<24x128xf32>
    %1033 = arith.select %1031, %1014, %1032 : vector<24x128xi1>, vector<24x128xf32>
    %c16_i32_444 = arith.constant 16 : i32
    %1034 = tpu.dynamic_rotate %1006 by %c16_i32_444 dim 1 : vector<24x128xf32>, i32 -> vector<24x128xf32>
    %c-2_i32_445 = arith.constant -2 : i32
    %1035 = vector.broadcast %c-2_i32_445 : i32 to vector<1x128xi32>
    %1036 = arith.addi %1013, %1035 : vector<1x128xi32>
    %c0_i32_446 = arith.constant 0 : i32
    %1037 = vector.broadcast %c0_i32_446 : i32 to vector<1x128xi32>
    %1038 = arith.addi %1009, %1037 : vector<1x128xi32>
    %c0_i32_447 = arith.constant 0 : i32
    %1039 = vector.broadcast %c0_i32_447 : i32 to vector<1x128xi32>
    %1040 = arith.cmpi sge, %1036, %1039 : vector<1x128xi32>
    %c6_i32_448 = arith.constant 6 : i32
    %1041 = vector.broadcast %c6_i32_448 : i32 to vector<1x128xi32>
    %1042 = arith.cmpi sle, %1036, %1041 : vector<1x128xi32>
    %1043 = arith.andi %1040, %1042 : vector<1x128xi1>
    %c0_i32_449 = arith.constant 0 : i32
    %1044 = vector.broadcast %c0_i32_449 : i32 to vector<1x128xi32>
    %1045 = arith.cmpi sge, %1038, %1044 : vector<1x128xi32>
    %1046 = arith.andi %1043, %1045 : vector<1x128xi1>
    %c6_i32_450 = arith.constant 6 : i32
    %1047 = vector.broadcast %c6_i32_450 : i32 to vector<1x128xi32>
    %1048 = arith.cmpi sle, %1038, %1047 : vector<1x128xi32>
    %1049 = arith.andi %1046, %1048 : vector<1x128xi1>
    %cst_451 = arith.constant 0.000000e+00 : f32
    %1050 = vector.shape_cast %1049 : vector<1x128xi1> to vector<1x128xi1>
    %1051 = vector.broadcast %1050 : vector<1x128xi1> to vector<24x128xi1>
    %1052 = vector.broadcast %cst_451 : f32 to vector<24x128xf32>
    %1053 = arith.select %1051, %1034, %1052 : vector<24x128xi1>, vector<24x128xf32>
    %c14_i32 = arith.constant 14 : i32
    %1054 = tpu.dynamic_rotate %1006 by %c14_i32 dim 1 : vector<24x128xf32>, i32 -> vector<24x128xf32>
    %c-2_i32_452 = arith.constant -2 : i32
    %1055 = vector.broadcast %c-2_i32_452 : i32 to vector<1x128xi32>
    %1056 = arith.addi %1013, %1055 : vector<1x128xi32>
    %c2_i32 = arith.constant 2 : i32
    %1057 = vector.broadcast %c2_i32 : i32 to vector<1x128xi32>
    %1058 = arith.addi %1009, %1057 : vector<1x128xi32>
    %c0_i32_453 = arith.constant 0 : i32
    %1059 = vector.broadcast %c0_i32_453 : i32 to vector<1x128xi32>
    %1060 = arith.cmpi sge, %1056, %1059 : vector<1x128xi32>
    %c6_i32_454 = arith.constant 6 : i32
    %1061 = vector.broadcast %c6_i32_454 : i32 to vector<1x128xi32>
    %1062 = arith.cmpi sle, %1056, %1061 : vector<1x128xi32>
    %1063 = arith.andi %1060, %1062 : vector<1x128xi1>
    %c0_i32_455 = arith.constant 0 : i32
    %1064 = vector.broadcast %c0_i32_455 : i32 to vector<1x128xi32>
    %1065 = arith.cmpi sge, %1058, %1064 : vector<1x128xi32>
    %1066 = arith.andi %1063, %1065 : vector<1x128xi1>
    %c6_i32_456 = arith.constant 6 : i32
    %1067 = vector.broadcast %c6_i32_456 : i32 to vector<1x128xi32>
    %1068 = arith.cmpi sle, %1058, %1067 : vector<1x128xi32>
    %1069 = arith.andi %1066, %1068 : vector<1x128xi1>
    %cst_457 = arith.constant 0.000000e+00 : f32
    %1070 = vector.shape_cast %1069 : vector<1x128xi1> to vector<1x128xi1>
    %1071 = vector.broadcast %1070 : vector<1x128xi1> to vector<24x128xi1>
    %1072 = vector.broadcast %cst_457 : f32 to vector<24x128xf32>
    %1073 = arith.select %1071, %1054, %1072 : vector<24x128xi1>, vector<24x128xf32>
    %c2_i32_458 = arith.constant 2 : i32
    %1074 = tpu.dynamic_rotate %1006 by %c2_i32_458 dim 1 : vector<24x128xf32>, i32 -> vector<24x128xf32>
    %c0_i32_459 = arith.constant 0 : i32
    %1075 = vector.broadcast %c0_i32_459 : i32 to vector<1x128xi32>
    %1076 = arith.addi %1013, %1075 : vector<1x128xi32>
    %c-2_i32_460 = arith.constant -2 : i32
    %1077 = vector.broadcast %c-2_i32_460 : i32 to vector<1x128xi32>
    %1078 = arith.addi %1009, %1077 : vector<1x128xi32>
    %c0_i32_461 = arith.constant 0 : i32
    %1079 = vector.broadcast %c0_i32_461 : i32 to vector<1x128xi32>
    %1080 = arith.cmpi sge, %1076, %1079 : vector<1x128xi32>
    %c6_i32_462 = arith.constant 6 : i32
    %1081 = vector.broadcast %c6_i32_462 : i32 to vector<1x128xi32>
    %1082 = arith.cmpi sle, %1076, %1081 : vector<1x128xi32>
    %1083 = arith.andi %1080, %1082 : vector<1x128xi1>
    %c0_i32_463 = arith.constant 0 : i32
    %1084 = vector.broadcast %c0_i32_463 : i32 to vector<1x128xi32>
    %1085 = arith.cmpi sge, %1078, %1084 : vector<1x128xi32>
    %1086 = arith.andi %1083, %1085 : vector<1x128xi1>
    %c6_i32_464 = arith.constant 6 : i32
    %1087 = vector.broadcast %c6_i32_464 : i32 to vector<1x128xi32>
    %1088 = arith.cmpi sle, %1078, %1087 : vector<1x128xi32>
    %1089 = arith.andi %1086, %1088 : vector<1x128xi1>
    %cst_465 = arith.constant 0.000000e+00 : f32
    %1090 = vector.shape_cast %1089 : vector<1x128xi1> to vector<1x128xi1>
    %1091 = vector.broadcast %1090 : vector<1x128xi1> to vector<24x128xi1>
    %1092 = vector.broadcast %cst_465 : f32 to vector<24x128xf32>
    %1093 = arith.select %1091, %1074, %1092 : vector<24x128xi1>, vector<24x128xf32>
    %c126_i32 = arith.constant 126 : i32
    %1094 = tpu.dynamic_rotate %1006 by %c126_i32 dim 1 : vector<24x128xf32>, i32 -> vector<24x128xf32>
    %c0_i32_466 = arith.constant 0 : i32
    %1095 = vector.broadcast %c0_i32_466 : i32 to vector<1x128xi32>
    %1096 = arith.addi %1013, %1095 : vector<1x128xi32>
    %c2_i32_467 = arith.constant 2 : i32
    %1097 = vector.broadcast %c2_i32_467 : i32 to vector<1x128xi32>
    %1098 = arith.addi %1009, %1097 : vector<1x128xi32>
    %c0_i32_468 = arith.constant 0 : i32
    %1099 = vector.broadcast %c0_i32_468 : i32 to vector<1x128xi32>
    %1100 = arith.cmpi sge, %1096, %1099 : vector<1x128xi32>
    %c6_i32_469 = arith.constant 6 : i32
    %1101 = vector.broadcast %c6_i32_469 : i32 to vector<1x128xi32>
    %1102 = arith.cmpi sle, %1096, %1101 : vector<1x128xi32>
    %1103 = arith.andi %1100, %1102 : vector<1x128xi1>
    %c0_i32_470 = arith.constant 0 : i32
    %1104 = vector.broadcast %c0_i32_470 : i32 to vector<1x128xi32>
    %1105 = arith.cmpi sge, %1098, %1104 : vector<1x128xi32>
    %1106 = arith.andi %1103, %1105 : vector<1x128xi1>
    %c6_i32_471 = arith.constant 6 : i32
    %1107 = vector.broadcast %c6_i32_471 : i32 to vector<1x128xi32>
    %1108 = arith.cmpi sle, %1098, %1107 : vector<1x128xi32>
    %1109 = arith.andi %1106, %1108 : vector<1x128xi1>
    %cst_472 = arith.constant 0.000000e+00 : f32
    %1110 = vector.shape_cast %1109 : vector<1x128xi1> to vector<1x128xi1>
    %1111 = vector.broadcast %1110 : vector<1x128xi1> to vector<24x128xi1>
    %1112 = vector.broadcast %cst_472 : f32 to vector<24x128xf32>
    %1113 = arith.select %1111, %1094, %1112 : vector<24x128xi1>, vector<24x128xf32>
    %c114_i32 = arith.constant 114 : i32
    %1114 = tpu.dynamic_rotate %1006 by %c114_i32 dim 1 : vector<24x128xf32>, i32 -> vector<24x128xf32>
    %c2_i32_473 = arith.constant 2 : i32
    %1115 = vector.broadcast %c2_i32_473 : i32 to vector<1x128xi32>
    %1116 = arith.addi %1013, %1115 : vector<1x128xi32>
    %c-2_i32_474 = arith.constant -2 : i32
    %1117 = vector.broadcast %c-2_i32_474 : i32 to vector<1x128xi32>
    %1118 = arith.addi %1009, %1117 : vector<1x128xi32>
    %c0_i32_475 = arith.constant 0 : i32
    %1119 = vector.broadcast %c0_i32_475 : i32 to vector<1x128xi32>
    %1120 = arith.cmpi sge, %1116, %1119 : vector<1x128xi32>
    %c6_i32_476 = arith.constant 6 : i32
    %1121 = vector.broadcast %c6_i32_476 : i32 to vector<1x128xi32>
    %1122 = arith.cmpi sle, %1116, %1121 : vector<1x128xi32>
    %1123 = arith.andi %1120, %1122 : vector<1x128xi1>
    %c0_i32_477 = arith.constant 0 : i32
    %1124 = vector.broadcast %c0_i32_477 : i32 to vector<1x128xi32>
    %1125 = arith.cmpi sge, %1118, %1124 : vector<1x128xi32>
    %1126 = arith.andi %1123, %1125 : vector<1x128xi1>
    %c6_i32_478 = arith.constant 6 : i32
    %1127 = vector.broadcast %c6_i32_478 : i32 to vector<1x128xi32>
    %1128 = arith.cmpi sle, %1118, %1127 : vector<1x128xi32>
    %1129 = arith.andi %1126, %1128 : vector<1x128xi1>
    %cst_479 = arith.constant 0.000000e+00 : f32
    %1130 = vector.shape_cast %1129 : vector<1x128xi1> to vector<1x128xi1>
    %1131 = vector.broadcast %1130 : vector<1x128xi1> to vector<24x128xi1>
    %1132 = vector.broadcast %cst_479 : f32 to vector<24x128xf32>
    %1133 = arith.select %1131, %1114, %1132 : vector<24x128xi1>, vector<24x128xf32>
    %c112_i32 = arith.constant 112 : i32
    %1134 = tpu.dynamic_rotate %1006 by %c112_i32 dim 1 : vector<24x128xf32>, i32 -> vector<24x128xf32>
    %c2_i32_480 = arith.constant 2 : i32
    %1135 = vector.broadcast %c2_i32_480 : i32 to vector<1x128xi32>
    %1136 = arith.addi %1013, %1135 : vector<1x128xi32>
    %c0_i32_481 = arith.constant 0 : i32
    %1137 = vector.broadcast %c0_i32_481 : i32 to vector<1x128xi32>
    %1138 = arith.addi %1009, %1137 : vector<1x128xi32>
    %c0_i32_482 = arith.constant 0 : i32
    %1139 = vector.broadcast %c0_i32_482 : i32 to vector<1x128xi32>
    %1140 = arith.cmpi sge, %1136, %1139 : vector<1x128xi32>
    %c6_i32_483 = arith.constant 6 : i32
    %1141 = vector.broadcast %c6_i32_483 : i32 to vector<1x128xi32>
    %1142 = arith.cmpi sle, %1136, %1141 : vector<1x128xi32>
    %1143 = arith.andi %1140, %1142 : vector<1x128xi1>
    %c0_i32_484 = arith.constant 0 : i32
    %1144 = vector.broadcast %c0_i32_484 : i32 to vector<1x128xi32>
    %1145 = arith.cmpi sge, %1138, %1144 : vector<1x128xi32>
    %1146 = arith.andi %1143, %1145 : vector<1x128xi1>
    %c6_i32_485 = arith.constant 6 : i32
    %1147 = vector.broadcast %c6_i32_485 : i32 to vector<1x128xi32>
    %1148 = arith.cmpi sle, %1138, %1147 : vector<1x128xi32>
    %1149 = arith.andi %1146, %1148 : vector<1x128xi1>
    %cst_486 = arith.constant 0.000000e+00 : f32
    %1150 = vector.shape_cast %1149 : vector<1x128xi1> to vector<1x128xi1>
    %1151 = vector.broadcast %1150 : vector<1x128xi1> to vector<24x128xi1>
    %1152 = vector.broadcast %cst_486 : f32 to vector<24x128xf32>
    %1153 = arith.select %1151, %1134, %1152 : vector<24x128xi1>, vector<24x128xf32>
    %c110_i32 = arith.constant 110 : i32
    %1154 = tpu.dynamic_rotate %1006 by %c110_i32 dim 1 : vector<24x128xf32>, i32 -> vector<24x128xf32>
    %c2_i32_487 = arith.constant 2 : i32
    %1155 = vector.broadcast %c2_i32_487 : i32 to vector<1x128xi32>
    %1156 = arith.addi %1013, %1155 : vector<1x128xi32>
    %c2_i32_488 = arith.constant 2 : i32
    %1157 = vector.broadcast %c2_i32_488 : i32 to vector<1x128xi32>
    %1158 = arith.addi %1009, %1157 : vector<1x128xi32>
    %c0_i32_489 = arith.constant 0 : i32
    %1159 = vector.broadcast %c0_i32_489 : i32 to vector<1x128xi32>
    %1160 = arith.cmpi sge, %1156, %1159 : vector<1x128xi32>
    %c6_i32_490 = arith.constant 6 : i32
    %1161 = vector.broadcast %c6_i32_490 : i32 to vector<1x128xi32>
    %1162 = arith.cmpi sle, %1156, %1161 : vector<1x128xi32>
    %1163 = arith.andi %1160, %1162 : vector<1x128xi1>
    %c0_i32_491 = arith.constant 0 : i32
    %1164 = vector.broadcast %c0_i32_491 : i32 to vector<1x128xi32>
    %1165 = arith.cmpi sge, %1158, %1164 : vector<1x128xi32>
    %1166 = arith.andi %1163, %1165 : vector<1x128xi1>
    %c6_i32_492 = arith.constant 6 : i32
    %1167 = vector.broadcast %c6_i32_492 : i32 to vector<1x128xi32>
    %1168 = arith.cmpi sle, %1158, %1167 : vector<1x128xi32>
    %1169 = arith.andi %1166, %1168 : vector<1x128xi1>
    %cst_493 = arith.constant 0.000000e+00 : f32
    %1170 = vector.shape_cast %1169 : vector<1x128xi1> to vector<1x128xi1>
    %1171 = vector.broadcast %1170 : vector<1x128xi1> to vector<24x128xi1>
    %1172 = vector.broadcast %cst_493 : f32 to vector<24x128xf32>
    %1173 = arith.select %1171, %1154, %1172 : vector<24x128xi1>, vector<24x128xf32>
    %1174 = tpu.concatenate %1033, %1053, %1073, %1093, %1006, %1113, %1133, %1153, %1173 in 0 : vector<24x128xf32>, vector<24x128xf32>, vector<24x128xf32>, vector<24x128xf32>, vector<24x128xf32>, vector<24x128xf32>, vector<24x128xf32>, vector<24x128xf32>, vector<24x128xf32> -> vector<216x128xf32>
    %1175 = arith.truncf %1174 : vector<216x128xf32> to vector<216x128xbf16>
    %c0_494 = arith.constant 0 : index
    %c0_495 = arith.constant 0 : index
    %1176 = vector.load %arg40[%c0_494, %c0_495] : memref<24x216xbf16, #tpu.memory_space<vmem>>, vector<24x216xbf16>
    %cst_496 = arith.constant dense<0.000000e+00> : vector<24x128xf32>
    %1177 = tpu.matmul %1176, %1175, %cst_496 {dimension_numbers = #tpu.dot_dimension_numbers<[1], [0], [0], [1], [0, 0, 1, 1], [], []>} : vector<24x216xbf16>, vector<216x128xbf16>, vector<24x128xf32> -> vector<24x128xf32>
    %c0_497 = arith.constant 0 : index
    %c0_498 = arith.constant 0 : index
    %1178 = vector.load %arg41[%c0_497, %c0_498] : memref<24x1xf32, #tpu.memory_space<vmem>>, vector<24x1xf32>
    %1179 = vector.broadcast %1178 : vector<24x1xf32> to vector<24x128xf32>
    %1180 = arith.addf %1177, %1179 : vector<24x128xf32>
    %cst_499 = arith.constant 0.000000e+00 : f32
    %1181 = vector.broadcast %cst_499 : f32 to vector<24x128xf32>
    %1182 = arith.maximumf %1180, %1181 : vector<24x128xf32>
    %1183 = arith.truncf %1182 : vector<24x128xf32> to vector<24x128xbf16>
    %c0_500 = arith.constant 0 : index
    %c0_501 = arith.constant 0 : index
    %1184 = vector.load %arg42[%c0_500, %c0_501] : memref<96x24xbf16, #tpu.memory_space<vmem>>, vector<96x24xbf16>
    %cst_502 = arith.constant dense<0.000000e+00> : vector<96x128xf32>
    %1185 = tpu.matmul %1184, %1183, %cst_502 {dimension_numbers = #tpu.dot_dimension_numbers<[1], [0], [0], [1], [0, 0, 1, 1], [], []>} : vector<96x24xbf16>, vector<24x128xbf16>, vector<96x128xf32> -> vector<96x128xf32>
    %c0_503 = arith.constant 0 : index
    %c0_504 = arith.constant 0 : index
    %1186 = vector.load %arg43[%c0_503, %c0_504] : memref<96x1xf32, #tpu.memory_space<vmem>>, vector<96x1xf32>
    %1187 = vector.broadcast %1186 : vector<96x1xf32> to vector<96x128xf32>
    %1188 = arith.addf %1185, %1187 : vector<96x128xf32>
    %cst_505 = arith.constant 0.000000e+00 : f32
    %1189 = vector.broadcast %cst_505 : f32 to vector<96x128xf32>
    %1190 = arith.maximumf %1188, %1189 : vector<96x128xf32>
    %1191 = arith.extf %999 : vector<96x128xbf16> to vector<96x128xf32>
    %1192 = arith.addf %1190, %1191 : vector<96x128xf32>
    %cst_506 = arith.constant 0.000000e+00 : f32
    %1193 = vector.broadcast %cst_506 : f32 to vector<96x128xf32>
    %1194 = arith.maximumf %1192, %1193 : vector<96x128xf32>
    %1195 = arith.truncf %1194 : vector<96x128xf32> to vector<96x128xbf16>
    %c0_507 = arith.constant 0 : index
    %c0_508 = arith.constant 0 : index
    %1196 = vector.load %arg44[%c0_507, %c0_508] : memref<128x32xbf16, #tpu.memory_space<vmem>>, vector<128x32xbf16>
    %cst_509 = arith.constant dense<0.000000e+00> : vector<96x32xf32>
    %1197 = tpu.matmul %1195, %1196, %cst_509 {dimension_numbers = #tpu.dot_dimension_numbers<[1], [0], [0], [1], [0, 0, 1, 1], [], []>} : vector<96x128xbf16>, vector<128x32xbf16>, vector<96x32xf32> -> vector<96x32xf32>
    %1198 = arith.truncf %1197 : vector<96x32xf32> to vector<96x32xbf16>
    %c0_510 = arith.constant 0 : index
    %c0_511 = arith.constant 0 : index
    %1199 = vector.load %arg45[%c0_510, %c0_511] : memref<128x96xbf16, #tpu.memory_space<vmem>>, vector<128x96xbf16>
    %cst_512 = arith.constant dense<0.000000e+00> : vector<128x32xf32>
    %1200 = tpu.matmul %1199, %1198, %cst_512 {dimension_numbers = #tpu.dot_dimension_numbers<[1], [0], [0], [1], [0, 0, 1, 1], [], []>} : vector<128x96xbf16>, vector<96x32xbf16>, vector<128x32xf32> -> vector<128x32xf32>
    %c0_513 = arith.constant 0 : index
    %c0_514 = arith.constant 0 : index
    %1201 = vector.load %arg46[%c0_513, %c0_514] : memref<128x1xf32, #tpu.memory_space<vmem>>, vector<128x1xf32>
    %1202 = vector.broadcast %1201 : vector<128x1xf32> to vector<128x32xf32>
    %1203 = arith.addf %1200, %1202 : vector<128x32xf32>
    %c0_515 = arith.constant 0 : index
    %c0_516 = arith.constant 0 : index
    %1204 = vector.load %arg47[%c0_515, %c0_516] : memref<128x32xf32, #tpu.memory_space<vmem>>, vector<128x32xf32>
    tpu.vector_store %arg47[%c0_515, %c0_516], %1203 {strides = array<i32>} : memref<128x32xf32, #tpu.memory_space<vmem>>, vector<128x32xf32>,
    return
  }
}

</mosaic_0001>

<llo_original>
// kernel: context_encoder_forward.1
$region0: #{context_encoder_forward.1}
  #allocation0 [shape = 'u32[]', space=smem, size = 0x4, offset = 0x4, fixed_abs, tag = 'smem constant byte address 0x4 - core index']
  #allocation1 [shape = 'u32[144,128]{1,0:T(1,128)}', space=vmem, size = 0x12000, scoped, tag = 'internal scratch']
  %s0 = inlined_call_operand.smem [shape: u32[48], index: -1, kind: input, shape index: {}]
  %s1 = sld [smem:[%s0]]
  %s2 = scalar_lea.smem %s0, 1
  %s3 = sld [smem:[%s2]]
  %s4 = scalar_lea.smem %s0, 2
  %s5 = sld [smem:[%s4]]
  %s6 = scalar_lea.smem %s0, 3
  %s7 = sld [smem:[%s6]]
  %s8 = scalar_lea.smem %s0, 4
  %s9 = sld [smem:[%s8]]
  %s10 = scalar_lea.smem %s0, 5
  %s11 = sld [smem:[%s10]]
  %s12 = scalar_lea.smem %s0, 6
  %s13 = sld [smem:[%s12]]
  %s14 = scalar_lea.smem %s0, 7
  %s15 = sld [smem:[%s14]]
  %s16 = scalar_lea.smem %s0, 8
  %s17 = sld [smem:[%s16]]
  %s18 = scalar_lea.smem %s0, 9
  %s19 = sld [smem:[%s18]]
  %s20 = scalar_lea.smem %s0, 10
  %s21 = sld [smem:[%s20]]
  %s22 = scalar_lea.smem %s0, 11
  %s23 = sld [smem:[%s22]]
  %s24 = scalar_lea.smem %s0, 12
  %s25 = sld [smem:[%s24]]
  %s26 = scalar_lea.smem %s0, 13
  %s27 = sld [smem:[%s26]]
  %s28 = scalar_lea.smem %s0, 14
  %s29 = sld [smem:[%s28]]
  %s30 = scalar_lea.smem %s0, 15
  %s31 = sld [smem:[%s30]]
  %s32 = scalar_lea.smem %s0, 16
  %s33 = sld [smem:[%s32]]
  %s34 = scalar_lea.smem %s0, 17
  %s35 = sld [smem:[%s34]]
  %s36 = scalar_lea.smem %s0, 18
  %s37 = sld [smem:[%s36]]
  %s38 = scalar_lea.smem %s0, 19
  %s39 = sld [smem:[%s38]]
  %s40 = scalar_lea.smem %s0, 20
  %s41 = sld [smem:[%s40]]
  %s42 = scalar_lea.smem %s0, 21
  %s43 = sld [smem:[%s42]]
  %s44 = scalar_lea.smem %s0, 22
  %s45 = sld [smem:[%s44]]
  %s46 = scalar_lea.smem %s0, 23
  %s47 = sld [smem:[%s46]]
  %s48 = scalar_lea.smem %s0, 24
  %s49 = sld [smem:[%s48]]
  %s50 = scalar_lea.smem %s0, 25
  %s51 = sld [smem:[%s50]]
  %s52 = scalar_lea.smem %s0, 26
  %s53 = sld [smem:[%s52]]
  %s54 = scalar_lea.smem %s0, 27
  %s55 = sld [smem:[%s54]]
  %s56 = scalar_lea.smem %s0, 28
  %s57 = sld [smem:[%s56]]
  %s58 = scalar_lea.smem %s0, 29
  %s59 = sld [smem:[%s58]]
  %s60 = scalar_lea.smem %s0, 30
  %s61 = sld [smem:[%s60]]
  %s62 = scalar_lea.smem %s0, 31
  %s63 = sld [smem:[%s62]]
  %s64 = scalar_lea.smem %s0, 32
  %s65 = sld [smem:[%s64]]
  %s66 = scalar_lea.smem %s0, 33
  %s67 = sld [smem:[%s66]]
  %s68 = scalar_lea.smem %s0, 34
  %s69 = sld [smem:[%s68]]
  %s70 = scalar_lea.smem %s0, 35
  %s71 = sld [smem:[%s70]]
  %s72 = scalar_lea.smem %s0, 36
  %s73 = sld [smem:[%s72]]
  %s74 = scalar_lea.smem %s0, 37
  %s75 = sld [smem:[%s74]]
  %s76 = scalar_lea.smem %s0, 38
  %s77 = sld [smem:[%s76]]
  %s78 = scalar_lea.smem %s0, 39
  %s79 = sld [smem:[%s78]]
  %s80 = scalar_lea.smem %s0, 40
  %s81 = sld [smem:[%s80]]
  %s82 = scalar_lea.smem %s0, 41
  %s83 = sld [smem:[%s82]]
  %s84 = scalar_lea.smem %s0, 42
  %s85 = sld [smem:[%s84]]
  %s86 = scalar_lea.smem %s0, 43
  %s87 = sld [smem:[%s86]]
  %s88 = scalar_lea.smem %s0, 44
  %s89 = sld [smem:[%s88]]
  %s90 = scalar_lea.smem %s0, 45
  %s91 = sld [smem:[%s90]]
  %s92 = scalar_lea.smem %s0, 46
  %s93 = sld [smem:[%s92]]
  %s94 = scalar_lea.smem %s0, 47
  %s95 = sld [smem:[%s94]]
  %s96 = sld [smem:[#allocation0]]
  $region198: #{context_encoder_forward.1} parent=0
    _
  %s98 = ssub.s32 1, %s96
  %s99 = scalar_select 0, %s98, %s96
  // Predicated region
  $region2: #{context_encoder_forward.1} parent=0 // pred_check
    _
  $region3: #{context_encoder_forward.1} parent=0 // pred_check_branch
    %101 = sbr.rel (0) target = $region5
  $region4: #{context_encoder_forward.1} parent=0 // pred_region
    _
  $region5: #{context_encoder_forward.1} parent=0 // pred_fallthru
    _
  // Predicated region
  $region6: #{context_encoder_forward.1} parent=0 // pred_check
    _
  $region7: #{context_encoder_forward.1} parent=0 // pred_check_branch
    %103 = sbr.rel (0) target = $region9
  $region8: #{context_encoder_forward.1} parent=0 // pred_region
    _
  $region9: #{context_encoder_forward.1} parent=0 // pred_fallthru
    _
  // Predicated region
  $region10: #{context_encoder_forward.1} parent=0 // pred_check
    _
  $region11: #{context_encoder_forward.1} parent=0 // pred_check_branch
    %105 = sbr.rel (0) target = $region13
  $region12: #{context_encoder_forward.1} parent=0 // pred_region
    _
  $region13: #{context_encoder_forward.1} parent=0 // pred_fallthru
    _
  // Predicated region
  $region14: #{context_encoder_forward.1} parent=0 // pred_check
    _
  $region15: #{context_encoder_forward.1} parent=0 // pred_check_branch
    %107 = sbr.rel (0) target = $region17
  $region16: #{context_encoder_forward.1} parent=0 // pred_region
    _
  $region17: #{context_encoder_forward.1} parent=0 // pred_fallthru
    _
  // Predicated region
  $region18: #{context_encoder_forward.1} parent=0 // pred_check
    _
  $region19: #{context_encoder_forward.1} parent=0 // pred_check_branch
    %109 = sbr.rel (0) target = $region21
  $region20: #{context_encoder_forward.1} parent=0 // pred_region
    _
  $region21: #{context_encoder_forward.1} parent=0 // pred_fallthru
    _
  // Predicated region
  $region22: #{context_encoder_forward.1} parent=0 // pred_check
    _
  $region23: #{context_encoder_forward.1} parent=0 // pred_check_branch
    %111 = sbr.rel (0) target = $region25
  $region24: #{context_encoder_forward.1} parent=0 // pred_region
    _
  $region25: #{context_encoder_forward.1} parent=0 // pred_fallthru
    _
  // Predicated region
  $region26: #{context_encoder_forward.1} parent=0 // pred_check
    _
  $region27: #{context_encoder_forward.1} parent=0 // pred_check_branch
    %113 = sbr.rel (0) target = $region29
  $region28: #{context_encoder_forward.1} parent=0 // pred_region
    _
  $region29: #{context_encoder_forward.1} parent=0 // pred_fallthru
    _
  // Predicated region
  $region30: #{context_encoder_forward.1} parent=0 // pred_check
    _
  $region31: #{context_encoder_forward.1} parent=0 // pred_check_branch
    %115 = sbr.rel (0) target = $region33
  $region32: #{context_encoder_forward.1} parent=0 // pred_region
    _
  $region33: #{context_encoder_forward.1} parent=0 // pred_fallthru
    _
  // Predicated region
  $region34: #{context_encoder_forward.1} parent=0 // pred_check
    _
  $region35: #{context_encoder_forward.1} parent=0 // pred_check_branch
    %117 = sbr.rel (0) target = $region37
  $region36: #{context_encoder_forward.1} parent=0 // pred_region
    _
  $region37: #{context_encoder_forward.1} parent=0 // pred_fallthru
    _
  // Predicated region
  $region38: #{context_encoder_forward.1} parent=0 // pred_check
    _
  $region39: #{context_encoder_forward.1} parent=0 // pred_check_branch
    %119 = sbr.rel (0) target = $region41
  $region40: #{context_encoder_forward.1} parent=0 // pred_region
    _
  $region41: #{context_encoder_forward.1} parent=0 // pred_fallthru
    _
  // Predicated region
  $region42: #{context_encoder_forward.1} parent=0 // pred_check
    _
  $region43: #{context_encoder_forward.1} parent=0 // pred_check_branch
    %121 = sbr.rel (0) target = $region45
  $region44: #{context_encoder_forward.1} parent=0 // pred_region
    _
  $region45: #{context_encoder_forward.1} parent=0 // pred_fallthru
    _
  // Predicated region
  $region46: #{context_encoder_forward.1} parent=0 // pred_check
    _
  $region47: #{context_encoder_forward.1} parent=0 // pred_check_branch
    %123 = sbr.rel (0) target = $region49
  $region48: #{context_encoder_forward.1} parent=0 // pred_region
    _
  $region49: #{context_encoder_forward.1} parent=0 // pred_fallthru
    _
  // Predicated region
  $region50: #{context_encoder_forward.1} parent=0 // pred_check
    _
  $region51: #{context_encoder_forward.1} parent=0 // pred_check_branch
    %125 = sbr.rel (0) target = $region53
  $region52: #{context_encoder_forward.1} parent=0 // pred_region
    _
  $region53: #{context_encoder_forward.1} parent=0 // pred_fallthru
    _
  // Predicated region
  $region54: #{context_encoder_forward.1} parent=0 // pred_check
    _
  $region55: #{context_encoder_forward.1} parent=0 // pred_check_branch
    %127 = sbr.rel (0) target = $region57
  $region56: #{context_encoder_forward.1} parent=0 // pred_region
    _
  $region57: #{context_encoder_forward.1} parent=0 // pred_fallthru
    _
  // Predicated region
  $region58: #{context_encoder_forward.1} parent=0 // pred_check
    _
  $region59: #{context_encoder_forward.1} parent=0 // pred_check_branch
    %129 = sbr.rel (0) target = $region61
  $region60: #{context_encoder_forward.1} parent=0 // pred_region
    _
  $region61: #{context_encoder_forward.1} parent=0 // pred_fallthru
    _
  // Predicated region
  $region62: #{context_encoder_forward.1} parent=0 // pred_check
    _
  $region63: #{context_encoder_forward.1} parent=0 // pred_check_branch
    %131 = sbr.rel (0) target = $region65
  $region64: #{context_encoder_forward.1} parent=0 // pred_region
    _
  $region65: #{context_encoder_forward.1} parent=0 // pred_fallthru
    _
  // Predicated region
  $region66: #{context_encoder_forward.1} parent=0 // pred_check
    _
  $region67: #{context_encoder_forward.1} parent=0 // pred_check_branch
    %133 = sbr.rel (0) target = $region69
  $region68: #{context_encoder_forward.1} parent=0 // pred_region
    _
  $region69: #{context_encoder_forward.1} parent=0 // pred_fallthru
    _
  // Predicated region
  $region70: #{context_encoder_forward.1} parent=0 // pred_check
    _
  $region71: #{context_encoder_forward.1} parent=0 // pred_check_branch
    %135 = sbr.rel (0) target = $region73
  $region72: #{context_encoder_forward.1} parent=0 // pred_region
    _
  $region73: #{context_encoder_forward.1} parent=0 // pred_fallthru
    _
  // Predicated region
  $region74: #{context_encoder_forward.1} parent=0 // pred_check
    _
  $region75: #{context_encoder_forward.1} parent=0 // pred_check_branch
    %137 = sbr.rel (0) target = $region77
  $region76: #{context_encoder_forward.1} parent=0 // pred_region
    _
  $region77: #{context_encoder_forward.1} parent=0 // pred_fallthru
    _
  // Predicated region
  $region78: #{context_encoder_forward.1} parent=0 // pred_check
    _
  $region79: #{context_encoder_forward.1} parent=0 // pred_check_branch
    %139 = sbr.rel (0) target = $region81
  $region80: #{context_encoder_forward.1} parent=0 // pred_region
    _
  $region81: #{context_encoder_forward.1} parent=0 // pred_fallthru
    _
  // Predicated region
  $region82: #{context_encoder_forward.1} parent=0 // pred_check
    _
  $region83: #{context_encoder_forward.1} parent=0 // pred_check_branch
    %141 = sbr.rel (0) target = $region85
  $region84: #{context_encoder_forward.1} parent=0 // pred_region
    _
  $region85: #{context_encoder_forward.1} parent=0 // pred_fallthru
    _
  // Predicated region
  $region86: #{context_encoder_forward.1} parent=0 // pred_check
    _
  $region87: #{context_encoder_forward.1} parent=0 // pred_check_branch
    %143 = sbr.rel (0) target = $region89
  $region88: #{context_encoder_forward.1} parent=0 // pred_region
    _
  $region89: #{context_encoder_forward.1} parent=0 // pred_fallthru
    _
  // Predicated region
  $region90: #{context_encoder_forward.1} parent=0 // pred_check
    _
  $region91: #{context_encoder_forward.1} parent=0 // pred_check_branch
    %145 = sbr.rel (0) target = $region93
  $region92: #{context_encoder_forward.1} parent=0 // pred_region
    _
  $region93: #{context_encoder_forward.1} parent=0 // pred_fallthru
    _
  // Predicated region
  $region94: #{context_encoder_forward.1} parent=0 // pred_check
    _
  $region95: #{context_encoder_forward.1} parent=0 // pred_check_branch
    %147 = sbr.rel (0) target = $region97
  $region96: #{context_encoder_forward.1} parent=0 // pred_region
    _
  $region97: #{context_encoder_forward.1} parent=0 // pred_fallthru
    _
  // Predicated region
  $region98: #{context_encoder_forward.1} parent=0 // pred_check
    _
  $region99: #{context_encoder_forward.1} parent=0 // pred_check_branch
    %149 = sbr.rel (0) target = $region101
  $region100: #{context_encoder_forward.1} parent=0 // pred_region
    _
  $region101: #{context_encoder_forward.1} parent=0 // pred_fallthru
    _
  // Predicated region
  $region102: #{context_encoder_forward.1} parent=0 // pred_check
    _
  $region103: #{context_encoder_forward.1} parent=0 // pred_check_branch
    %151 = sbr.rel (0) target = $region105
  $region104: #{context_encoder_forward.1} parent=0 // pred_region
    _
  $region105: #{context_encoder_forward.1} parent=0 // pred_fallthru
    _
  // Predicated region
  $region106: #{context_encoder_forward.1} parent=0 // pred_check
    _
  $region107: #{context_encoder_forward.1} parent=0 // pred_check_branch
    %153 = sbr.rel (0) target = $region109
  $region108: #{context_encoder_forward.1} parent=0 // pred_region
    _
  $region109: #{context_encoder_forward.1} parent=0 // pred_fallthru
    _
  // Predicated region
  $region110: #{context_encoder_forward.1} parent=0 // pred_check
    _
  $region111: #{context_encoder_forward.1} parent=0 // pred_check_branch
    %155 = sbr.rel (0) target = $region113
  $region112: #{context_encoder_forward.1} parent=0 // pred_region
    _
  $region113: #{context_encoder_forward.1} parent=0 // pred_fallthru
    _
  // Predicated region
  $region114: #{context_encoder_forward.1} parent=0 // pred_check
    _
  $region115: #{context_encoder_forward.1} parent=0 // pred_check_branch
    %157 = sbr.rel (0) target = $region117
  $region116: #{context_encoder_forward.1} parent=0 // pred_region
    _
  $region117: #{context_encoder_forward.1} parent=0 // pred_fallthru
    _
  // Predicated region
  $region118: #{context_encoder_forward.1} parent=0 // pred_check
    _
  $region119: #{context_encoder_forward.1} parent=0 // pred_check_branch
    %159 = sbr.rel (0) target = $region121
  $region120: #{context_encoder_forward.1} parent=0 // pred_region
    _
  $region121: #{context_encoder_forward.1} parent=0 // pred_fallthru
    _
  // Predicated region
  $region122: #{context_encoder_forward.1} parent=0 // pred_check
    _
  $region123: #{context_encoder_forward.1} parent=0 // pred_check_branch
    %161 = sbr.rel (0) target = $region125
  $region124: #{context_encoder_forward.1} parent=0 // pred_region
    _
  $region125: #{context_encoder_forward.1} parent=0 // pred_fallthru
    _
  // Predicated region
  $region126: #{context_encoder_forward.1} parent=0 // pred_check
    _
  $region127: #{context_encoder_forward.1} parent=0 // pred_check_branch
    %163 = sbr.rel (0) target = $region129
  $region128: #{context_encoder_forward.1} parent=0 // pred_region
    _
  $region129: #{context_encoder_forward.1} parent=0 // pred_fallthru
    _
  // Predicated region
  $region130: #{context_encoder_forward.1} parent=0 // pred_check
    _
  $region131: #{context_encoder_forward.1} parent=0 // pred_check_branch
    %165 = sbr.rel (0) target = $region133
  $region132: #{context_encoder_forward.1} parent=0 // pred_region
    _
  $region133: #{context_encoder_forward.1} parent=0 // pred_fallthru
    _
  // Predicated region
  $region134: #{context_encoder_forward.1} parent=0 // pred_check
    _
  $region135: #{context_encoder_forward.1} parent=0 // pred_check_branch
    %167 = sbr.rel (0) target = $region137
  $region136: #{context_encoder_forward.1} parent=0 // pred_region
    _
  $region137: #{context_encoder_forward.1} parent=0 // pred_fallthru
    _
  // Predicated region
  $region138: #{context_encoder_forward.1} parent=0 // pred_check
    _
  $region139: #{context_encoder_forward.1} parent=0 // pred_check_branch
    %169 = sbr.rel (0) target = $region141
  $region140: #{context_encoder_forward.1} parent=0 // pred_region
    _
  $region141: #{context_encoder_forward.1} parent=0 // pred_fallthru
    _
  // Predicated region
  $region142: #{context_encoder_forward.1} parent=0 // pred_check
    _
  $region143: #{context_encoder_forward.1} parent=0 // pred_check_branch
    %171 = sbr.rel (0) target = $region145
  $region144: #{context_encoder_forward.1} parent=0 // pred_region
    _
  $region145: #{context_encoder_forward.1} parent=0 // pred_fallthru
    _
  // Predicated region
  $region146: #{context_encoder_forward.1} parent=0 // pred_check
    _
  $region147: #{context_encoder_forward.1} parent=0 // pred_check_branch
    %173 = sbr.rel (0) target = $region149
  $region148: #{context_encoder_forward.1} parent=0 // pred_region
    _
  $region149: #{context_encoder_forward.1} parent=0 // pred_fallthru
    _
  // Predicated region
  $region150: #{context_encoder_forward.1} parent=0 // pred_check
    _
  $region151: #{context_encoder_forward.1} parent=0 // pred_check_branch
    %175 = sbr.rel (0) target = $region153
  $region152: #{context_encoder_forward.1} parent=0 // pred_region
    _
  $region153: #{context_encoder_forward.1} parent=0 // pred_fallthru
    _
  // Predicated region
  $region154: #{context_encoder_forward.1} parent=0 // pred_check
    _
  $region155: #{context_encoder_forward.1} parent=0 // pred_check_branch
    %177 = sbr.rel (0) target = $region157
  $region156: #{context_encoder_forward.1} parent=0 // pred_region
    _
  $region157: #{context_encoder_forward.1} parent=0 // pred_fallthru
    _
  // Predicated region
  $region158: #{context_encoder_forward.1} parent=0 // pred_check
    _
  $region159: #{context_encoder_forward.1} parent=0 // pred_check_branch
    %179 = sbr.rel (0) target = $region161
  $region160: #{context_encoder_forward.1} parent=0 // pred_region
    _
  $region161: #{context_encoder_forward.1} parent=0 // pred_fallthru
    _
  // Predicated region
  $region162: #{context_encoder_forward.1} parent=0 // pred_check
    _
  $region163: #{context_encoder_forward.1} parent=0 // pred_check_branch
    %181 = sbr.rel (0) target = $region165
  $region164: #{context_encoder_forward.1} parent=0 // pred_region
    _
  $region165: #{context_encoder_forward.1} parent=0 // pred_fallthru
    _
  // Predicated region
  $region166: #{context_encoder_forward.1} parent=0 // pred_check
    _
  $region167: #{context_encoder_forward.1} parent=0 // pred_check_branch
    %183 = sbr.rel (0) target = $region169
  $region168: #{context_encoder_forward.1} parent=0 // pred_region
    _
  $region169: #{context_encoder_forward.1} parent=0 // pred_fallthru
    _
  // Predicated region
  $region170: #{context_encoder_forward.1} parent=0 // pred_check
    _
  $region171: #{context_encoder_forward.1} parent=0 // pred_check_branch
    %185 = sbr.rel (0) target = $region173
  $region172: #{context_encoder_forward.1} parent=0 // pred_region
    _
  $region173: #{context_encoder_forward.1} parent=0 // pred_fallthru
    _
  // Predicated region
  $region174: #{context_encoder_forward.1} parent=0 // pred_check
    _
  $region175: #{context_encoder_forward.1} parent=0 // pred_check_branch
    %187 = sbr.rel (0) target = $region177
  $region176: #{context_encoder_forward.1} parent=0 // pred_region
    _
  $region177: #{context_encoder_forward.1} parent=0 // pred_fallthru
    _
  // Predicated region
  $region178: #{context_encoder_forward.1} parent=0 // pred_check
    _
  $region179: #{context_encoder_forward.1} parent=0 // pred_check_branch
    %189 = sbr.rel (0) target = $region181
  $region180: #{context_encoder_forward.1} parent=0 // pred_region
    _
  $region181: #{context_encoder_forward.1} parent=0 // pred_fallthru
    _
  // Predicated region
  $region182: #{context_encoder_forward.1} parent=0 // pred_check
    _
  $region183: #{context_encoder_forward.1} parent=0 // pred_check_branch
    %191 = sbr.rel (0) target = $region185
  $region184: #{context_encoder_forward.1} parent=0 // pred_region
    _
  $region185: #{context_encoder_forward.1} parent=0 // pred_fallthru
    _
  // Predicated region
  $region186: #{context_encoder_forward.1} parent=0 // pred_check
    _
  $region187: #{context_encoder_forward.1} parent=0 // pred_check_branch
    %193 = sbr.rel (0) target = $region189
  $region188: #{context_encoder_forward.1} parent=0 // pred_region
    _
  $region189: #{context_encoder_forward.1} parent=0 // pred_fallthru
    _
  %v195 = vld [vmem:[%s1] sm:$0xff]
  %v196 = vld [vmem:[%s1 + $0x8] sm:$0xff]
  %v197 = vld [vmem:[%s1 + $0x10] sm:$0xff]
  %v198 = vld [vmem:[%s1 + $0x18] sm:$0xff]
  %v199 = vld [vmem:[%s1 + $0x20] sm:$0xff]
  %v200 = vld [vmem:[%s1 + $0x28] sm:$0xff]
  %v201 = vld [vmem:[%s1 + $0x30] sm:$0xff]
  %v202 = vld [vmem:[%s1 + $0x38] sm:$0xff]
  %v203 = vld [vmem:[%s1 + $0x40] sm:$0xff]
  %v204 = vld [vmem:[%s1 + $0x48] sm:$0xff]
  %v205 = vld [vmem:[%s1 + $0x50] sm:$0xff]
  %v206 = vld [vmem:[%s1 + $0x58] sm:$0xff]
  %v207 = vld [vmem:[%s1 + $0x60] sm:$0xff]
  %v208 = vld [vmem:[%s1 + $0x68] sm:$0xff]
  %v209 = vld [vmem:[%s1 + $0x70] sm:$0xff]
  %v210 = vld [vmem:[%s1 + $0x78] sm:$0xff]
  %v211 = vld [vmem:[%s1 + $0x80] sm:$0xff]
  %v212 = vld [vmem:[%s1 + $0x88] sm:$0xff]
  %v213 = vld [vmem:[%s1 + $0x90] sm:$0xff]
  %v214 = vld [vmem:[%s1 + $0x98] sm:$0xff]
  %v215 = vld [vmem:[%s1 + $0xa0] sm:$0xff]
  %v216 = vld [vmem:[%s1 + $0xa8] sm:$0xff]
  %v217 = vld [vmem:[%s1 + $0xb0] sm:$0xff]
  %v218 = vld [vmem:[%s1 + $0xb8] sm:$0xff]
  %v219 = vld [vmem:[%s1 + $0xc0] sm:$0xff]
  %v220 = vld [vmem:[%s1 + $0xc8] sm:$0xff]
  %v221 = vld [vmem:[%s1 + $0xd0] sm:$0xff]
  %v222 = vld [vmem:[%s1 + $0xd8] sm:$0xff]
  %v223 = vld [vmem:[%s1 + $0xe0] sm:$0xff]
  %v224 = vld [vmem:[%s1 + $0xe8] sm:$0xff]
  %v225 = vld [vmem:[%s1 + $0xf0] sm:$0xff]
  %v226 = vld [vmem:[%s1 + $0xf8] sm:$0xff]
  %v227 = vld [vmem:[%s1 + $0x100] sm:$0xff]
  %v228 = vld [vmem:[%s1 + $0x108] sm:$0xff]
  %v229 = vld [vmem:[%s1 + $0x110] sm:$0xff]
  %v230 = vld [vmem:[%s1 + $0x118] sm:$0xff]
  %v231 = vld [vmem:[%s1 + $0x120] sm:$0xff]
  %v232 = vld [vmem:[%s1 + $0x128] sm:$0xff]
  %v233 = vld [vmem:[%s1 + $0x130] sm:$0xff]
  %v234 = vld [vmem:[%s1 + $0x138] sm:$0xff]
  %v235 = vld [vmem:[%s3] sm:$0xff]
  %v236 = vld [vmem:[%s3 + $0x8] sm:$0xff]
  %v237 = vld [vmem:[%s3 + $0x10] sm:$0xff]
  %v238 = vld [vmem:[%s3 + $0x18] sm:$0xff]
  %v239 = vld [vmem:[%s5] sm:$0xff]
  %v240 = vld [vmem:[%s5 + $0x8] sm:$0xff]
  %v241 = vld [vmem:[%s5 + $0x10] sm:$0xff]
  %v242 = vld [vmem:[%s5 + $0x18] sm:$0xff]
  %244 = vset.pattern.permute.xlu0 0
  %245 = vperm.xlu0 %244, %v239
  %v246 = vpop.permute.xlu0 %245
  %249 = vset.pattern.permute.xlu0 0
  %250 = vperm.xlu0 %249, %v240
  %v251 = vpop.permute.xlu0 %250
  %254 = vset.pattern.permute.xlu0 0
  %255 = vperm.xlu0 %254, %v241
  %v256 = vpop.permute.xlu0 %255
  %259 = vset.pattern.permute.xlu0 0
  %260 = vperm.xlu0 %259, %v242
  %v261 = vpop.permute.xlu0 %260
  %v267 = vunpack.c.l.b16 %v235
  %v268 = vunpack.c.h.b16 %v235
  %v269 = vunpack.c.l.b16 %v236
  %v270 = vunpack.c.h.b16 %v236
  %v271 = vunpack.c.l.b16 %v237
  %v272 = vunpack.c.h.b16 %v237
  %v273 = vunpack.c.l.b16 %v238
  %v274 = vunpack.c.h.b16 %v238
  %v275 = vpack.c.b16 %v269, %v267
  %v276 = vpack.c.b16 %v270, %v268
  %v277 = vpack.c.b16 %v273, %v271
  %v278 = vpack.c.b16 %v274, %v272
  %v321 = vunpack.c.l.b16 %v195
  %v322 = vunpack.c.h.b16 %v195
  %v323 = vunpack.c.l.b16 %v196
  %v324 = vunpack.c.h.b16 %v196
  %v325 = vunpack.c.l.b16 %v197
  %v326 = vunpack.c.h.b16 %v197
  %v327 = vunpack.c.l.b16 %v198
  %v328 = vunpack.c.h.b16 %v198
  %v329 = vunpack.c.l.b16 %v199
  %v330 = vunpack.c.h.b16 %v199
  %v331 = vunpack.c.l.b16 %v200
  %v332 = vunpack.c.h.b16 %v200
  %v333 = vunpack.c.l.b16 %v201
  %v334 = vunpack.c.h.b16 %v201
  %v335 = vunpack.c.l.b16 %v202
  %v336 = vunpack.c.h.b16 %v202
  %v337 = vunpack.c.l.b16 %v203
  %v338 = vunpack.c.h.b16 %v203
  %v339 = vunpack.c.l.b16 %v204
  %v340 = vunpack.c.h.b16 %v204
  %v341 = vunpack.c.l.b16 %v205
  %v342 = vunpack.c.h.b16 %v205
  %v343 = vunpack.c.l.b16 %v206
  %v344 = vunpack.c.h.b16 %v206
  %v345 = vunpack.c.l.b16 %v207
  %v346 = vunpack.c.h.b16 %v207
  %v347 = vunpack.c.l.b16 %v208
  %v348 = vunpack.c.h.b16 %v208
  %v349 = vunpack.c.l.b16 %v209
  %v350 = vunpack.c.h.b16 %v209
  %v351 = vunpack.c.l.b16 %v210
  %v352 = vunpack.c.h.b16 %v210
  %v353 = vunpack.c.l.b16 %v211
  %v354 = vunpack.c.h.b16 %v211
  %v355 = vunpack.c.l.b16 %v212
  %v356 = vunpack.c.h.b16 %v212
  %v357 = vunpack.c.l.b16 %v213
  %v358 = vunpack.c.h.b16 %v213
  %v359 = vunpack.c.l.b16 %v214
  %v360 = vunpack.c.h.b16 %v214
  %v361 = vunpack.c.l.b16 %v215
  %v362 = vunpack.c.h.b16 %v215
  %v363 = vunpack.c.l.b16 %v216
  %v364 = vunpack.c.h.b16 %v216
  %v365 = vunpack.c.l.b16 %v217
  %v366 = vunpack.c.h.b16 %v217
  %v367 = vunpack.c.l.b16 %v218
  %v368 = vunpack.c.h.b16 %v218
  %v369 = vunpack.c.l.b16 %v219
  %v370 = vunpack.c.h.b16 %v219
  %v371 = vunpack.c.l.b16 %v220
  %v372 = vunpack.c.h.b16 %v220
  %v373 = vunpack.c.l.b16 %v221
  %v374 = vunpack.c.h.b16 %v221
  %v375 = vunpack.c.l.b16 %v222
  %v376 = vunpack.c.h.b16 %v222
  %v377 = vunpack.c.l.b16 %v223
  %v378 = vunpack.c.h.b16 %v223
  %v379 = vunpack.c.l.b16 %v224
  %v380 = vunpack.c.h.b16 %v224
  %v381 = vunpack.c.l.b16 %v225
  %v382 = vunpack.c.h.b16 %v225
  %v383 = vunpack.c.l.b16 %v226
  %v384 = vunpack.c.h.b16 %v226
  %v385 = vunpack.c.l.b16 %v227
  %v386 = vunpack.c.h.b16 %v227
  %v387 = vunpack.c.l.b16 %v228
  %v388 = vunpack.c.h.b16 %v228
  %v389 = vunpack.c.l.b16 %v229
  %v390 = vunpack.c.h.b16 %v229
  %v391 = vunpack.c.l.b16 %v230
  %v392 = vunpack.c.h.b16 %v230
  %v393 = vunpack.c.l.b16 %v231
  %v394 = vunpack.c.h.b16 %v231
  %v395 = vunpack.c.l.b16 %v232
  %v396 = vunpack.c.h.b16 %v232
  %v397 = vunpack.c.l.b16 %v233
  %v398 = vunpack.c.h.b16 %v233
  %v399 = vunpack.c.l.b16 %v234
  %v400 = vunpack.c.h.b16 %v234
  %v401 = vpack.c.b16 %v325, %v321
  %v402 = vpack.c.b16 %v326, %v322
  %v403 = vpack.c.b16 %v327, %v323
  %v404 = vpack.c.b16 %v328, %v324
  %v405 = vpack.c.b16 %v333, %v329
  %v406 = vpack.c.b16 %v334, %v330
  %v407 = vpack.c.b16 %v335, %v331
  %v408 = vpack.c.b16 %v336, %v332
  %v409 = vpack.c.b16 %v341, %v337
  %v410 = vpack.c.b16 %v342, %v338
  %v411 = vpack.c.b16 %v343, %v339
  %v412 = vpack.c.b16 %v344, %v340
  %v413 = vpack.c.b16 %v349, %v345
  %v414 = vpack.c.b16 %v350, %v346
  %v415 = vpack.c.b16 %v351, %v347
  %v416 = vpack.c.b16 %v352, %v348
  %v417 = vpack.c.b16 %v357, %v353
  %v418 = vpack.c.b16 %v358, %v354
  %v419 = vpack.c.b16 %v359, %v355
  %v420 = vpack.c.b16 %v360, %v356
  %v421 = vpack.c.b16 %v365, %v361
  %v422 = vpack.c.b16 %v366, %v362
  %v423 = vpack.c.b16 %v367, %v363
  %v424 = vpack.c.b16 %v368, %v364
  %v425 = vpack.c.b16 %v373, %v369
  %v426 = vpack.c.b16 %v374, %v370
  %v427 = vpack.c.b16 %v375, %v371
  %v428 = vpack.c.b16 %v376, %v372
  %v429 = vpack.c.b16 %v381, %v377
  %v430 = vpack.c.b16 %v382, %v378
  %v431 = vpack.c.b16 %v383, %v379
  %v432 = vpack.c.b16 %v384, %v380
  %v433 = vpack.c.b16 %v389, %v385
  %v434 = vpack.c.b16 %v390, %v386
  %v435 = vpack.c.b16 %v391, %v387
  %v436 = vpack.c.b16 %v392, %v388
  %v437 = vpack.c.b16 %v397, %v393
  %v438 = vpack.c.b16 %v398, %v394
  %v439 = vpack.c.b16 %v399, %v395
  %v440 = vpack.c.b16 %v400, %v396
  %vm481 = vcmask 261120
  %v483 = vsel %vm481, %v276, 0
  %v486 = vsel %vm481, %v278, 0
  %488 = vmatprep.subr.bf16.mxu0 %v430
  %489 = vmatpush1.bf16.msra.mxu0 %v429
  %490 = vmatprep.subr.bf16.mxu0 %v426
  %491 = vmatpush1.bf16.msra.mxu0 %v425
  %492 = vmatprep.subr.bf16.mxu0 %v422
  %493 = vmatpush1.bf16.msra.mxu0 %v421
  %494 = vmatprep.subr.bf16.mxu0 %v418
  %495 = vmatpush1.bf16.msra.mxu0 %v417
  %496 = vmatprep.subr.bf16.mxu0 %v414
  %497 = vmatpush1.bf16.msra.mxu0 %v413
  %498 = vmatprep.subr.bf16.mxu0 %v410
  %499 = vmatpush1.bf16.msra.mxu0 %v409
  %500 = vmatprep.subr.bf16.mxu0 %v406
  %501 = vmatpush1.bf16.msra.mxu0 %v405
  %502 = vmatprep.subr.bf16.mxu0 %v402
  %503 = vmatpush1.bf16.msra.mxu0 %v401
  %504 = vmatprep.subr.bf16.mxu0 0
  %505 = vmatpush2.bf16.msra.mxu0 0
  %506 = vmatprep.subr.bf16.mxu0 0
  %507 = vmatpush2.bf16.msra.mxu0 0
  %508 = vmatprep.subr.bf16.mxu0 0
  %509 = vmatpush2.bf16.msra.mxu0 0
  %510 = vmatprep.subr.bf16.mxu0 0
  %511 = vmatpush2.bf16.msra.mxu0 0
  %512 = vmatprep.subr.bf16.mxu0 0
  %513 = vmatpush2.bf16.msra.mxu0 0
  %514 = vmatprep.subr.bf16.mxu0 0
  %515 = vmatpush2.bf16.msra.mxu0 0
  %516 = vmatprep.subr.bf16.mxu0 %v438
  %517 = vmatpush2.bf16.msra.mxu0 %v437
  %518 = vmatprep.subr.bf16.mxu0 %v434
  %519 = vmatpush2.bf16.msra.mxu0 %v433
  %520 = vmatprep.mubr.bf16.mxu0 %v483
  %521 = vmatmul.mubr.bf16.gmra.mxu0 %v275
  %v522 = vpop.f32.mrf.mxu0
  %v523 = vadd.f32 %v246, %v522
  %v524 = vpop.f32.mrf.mxu0
  %v525 = vadd.f32 %v246, %v524
  %v526 = vpop.f32.mrf.mxu0
  %v527 = vadd.f32 %v251, %v526
  %v528 = vpop.f32.mrf.mxu0
  %v529 = vadd.f32 %v251, %v528
  %530 = vmatprep.mubr.bf16.mxu0 %v486
  %531 = vmatmul.mubr.bf16.gmra.mxu0 %v277
  %v532 = vpop.f32.mrf.mxu0
  %v533 = vadd.f32 %v256, %v532
  %v534 = vpop.f32.mrf.mxu0
  %v535 = vadd.f32 %v256, %v534
  %v536 = vpop.f32.mrf.mxu0
  %v537 = vadd.f32 %v261, %v536
  %v538 = vpop.f32.mrf.mxu0
  %v539 = vadd.f32 %v261, %v538
  %540 = vdwg.mxu0
  %541 = vmatprep.subr.bf16.mxu0 %v432
  %542 = vmatpush1.bf16.msra.mxu0 %v431
  %543 = vmatprep.subr.bf16.mxu0 %v428
  %544 = vmatpush1.bf16.msra.mxu0 %v427
  %545 = vmatprep.subr.bf16.mxu0 %v424
  %546 = vmatpush1.bf16.msra.mxu0 %v423
  %547 = vmatprep.subr.bf16.mxu0 %v420
  %548 = vmatpush1.bf16.msra.mxu0 %v419
  %549 = vmatprep.subr.bf16.mxu0 %v416
  %550 = vmatpush1.bf16.msra.mxu0 %v415
  %551 = vmatprep.subr.bf16.mxu0 %v412
  %552 = vmatpush1.bf16.msra.mxu0 %v411
  %553 = vmatprep.subr.bf16.mxu0 %v408
  %554 = vmatpush1.bf16.msra.mxu0 %v407
  %555 = vmatprep.subr.bf16.mxu0 %v404
  %556 = vmatpush1.bf16.msra.mxu0 %v403
  %557 = vmatprep.subr.bf16.mxu0 0
  %558 = vmatpush2.bf16.msra.mxu0 0
  %559 = vmatprep.subr.bf16.mxu0 0
  %560 = vmatpush2.bf16.msra.mxu0 0
  %561 = vmatprep.subr.bf16.mxu0 0
  %562 = vmatpush2.bf16.msra.mxu0 0
  %563 = vmatprep.subr.bf16.mxu0 0
  %564 = vmatpush2.bf16.msra.mxu0 0
  %565 = vmatprep.subr.bf16.mxu0 0
  %566 = vmatpush2.bf16.msra.mxu0 0
  %567 = vmatprep.subr.bf16.mxu0 0
  %568 = vmatpush2.bf16.msra.mxu0 0
  %569 = vmatprep.subr.bf16.mxu0 %v440
  %570 = vmatpush2.bf16.msra.mxu0 %v439
  %571 = vmatprep.subr.bf16.mxu0 %v436
  %572 = vmatpush2.bf16.msra.mxu0 %v435
  %573 = vmatprep.mubr.bf16.mxu0 %v483
  %574 = vmatmul.mubr.bf16.gmra.mxu0 %v275
  %v575 = vpop.f32.mrf.mxu0
  %v576 = vadd.f32 %v246, %v575
  %v577 = vpop.f32.mrf.mxu0
  %v578 = vadd.f32 %v246, %v577
  %v579 = vpop.f32.mrf.mxu0
  %v580 = vadd.f32 %v251, %v579
  %v581 = vpop.f32.mrf.mxu0
  %v582 = vadd.f32 %v251, %v581
  %583 = vmatprep.mubr.bf16.mxu0 %v486
  %584 = vmatmul.mubr.bf16.gmra.mxu0 %v277
  %v585 = vpop.f32.mrf.mxu0
  %v586 = vadd.f32 %v256, %v585
  %v587 = vpop.f32.mrf.mxu0
  %v588 = vadd.f32 %v256, %v587
  %v589 = vpop.f32.mrf.mxu0
  %v590 = vadd.f32 %v261, %v589
  %v591 = vpop.f32.mrf.mxu0
  %v592 = vadd.f32 %v261, %v591
  %593 = vdwg.mxu0
  %v594 = vmax.f32 %v523, 0.0
  %v595 = vmax.f32 %v525, 0.0
  %v596 = vmax.f32 %v576, 0.0
  %v597 = vmax.f32 %v578, 0.0
  %v598 = vmax.f32 %v527, 0.0
  %v599 = vmax.f32 %v529, 0.0
  %v600 = vmax.f32 %v580, 0.0
  %v601 = vmax.f32 %v582, 0.0
  %v602 = vmax.f32 %v533, 0.0
  %v603 = vmax.f32 %v535, 0.0
  %v604 = vmax.f32 %v586, 0.0
  %v605 = vmax.f32 %v588, 0.0
  %v606 = vmax.f32 %v537, 0.0
  %v607 = vmax.f32 %v539, 0.0
  %v608 = vmax.f32 %v590, 0.0
  %v609 = vmax.f32 %v592, 0.0
  %v610 = vpack.c.bf16 %v598, %v594
  %v611 = vpack.c.bf16 %v599, %v595
  %v612 = vpack.c.bf16 %v600, %v596
  %v613 = vpack.c.bf16 %v601, %v597
  %v614 = vpack.c.bf16 %v606, %v602
  %v615 = vpack.c.bf16 %v607, %v603
  %v616 = vpack.c.bf16 %v608, %v604
  %v617 = vpack.c.bf16 %v609, %v605
  %v618 = vld [vmem:[%s7] sm:$0xf]
  %v619 = vld [vmem:[%s9] sm:$0xff]
  %621 = vset.pattern.permute.xlu0 0
  %622 = vperm.xlu0 %621, %v619
  %v623 = vpop.permute.xlu0 %622
  %v626 = vsel %vm481, %v618, 0
  %628 = vmatprep.subr.bf16.mxu0 0
  %629 = vmatpush1.bf16.msra.mxu0 0
  %630 = vmatprep.subr.bf16.mxu0 0
  %631 = vmatpush1.bf16.msra.mxu0 0
  %632 = vmatprep.subr.bf16.mxu0 0
  %633 = vmatpush1.bf16.msra.mxu0 0
  %634 = vmatprep.subr.bf16.mxu0 0
  %635 = vmatpush1.bf16.msra.mxu0 0
  %636 = vmatprep.subr.bf16.mxu0 0
  %637 = vmatpush1.bf16.msra.mxu0 0
  %638 = vmatprep.subr.bf16.mxu0 0
  %639 = vmatpush1.bf16.msra.mxu0 0
  %640 = vmatprep.subr.bf16.mxu0 %v615
  %641 = vmatpush1.bf16.msra.mxu0 %v614
  %642 = vmatprep.subr.bf16.mxu0 %v611
  %643 = vmatpush1.bf16.msra.mxu0 %v610
  %644 = vmatprep.subr.bf16.mxu0 0
  %645 = vmatpush2.bf16.msra.mxu0 0
  %646 = vmatprep.subr.bf16.mxu0 0
  %647 = vmatpush2.bf16.msra.mxu0 0
  %648 = vmatprep.subr.bf16.mxu0 0
  %649 = vmatpush2.bf16.msra.mxu0 0
  %650 = vmatprep.subr.bf16.mxu0 0
  %651 = vmatpush2.bf16.msra.mxu0 0
  %652 = vmatprep.subr.bf16.mxu0 0
  %653 = vmatpush2.bf16.msra.mxu0 0
  %654 = vmatprep.subr.bf16.mxu0 0
  %655 = vmatpush2.bf16.msra.mxu0 0
  %656 = vmatprep.subr.bf16.mxu0 0
  %657 = vmatpush2.bf16.msra.mxu0 0
  %658 = vmatprep.subr.bf16.mxu0 0
  %659 = vmatpush2.bf16.msra.mxu0 0
  %660 = vmatprep.mubr.bf16.mxu0 0
  %661 = vmatmul.mubr.bf16.gmra.mxu0 %v626
  %v662 = vpop.f32.mrf.mxu0
  %v663 = vadd.f32 %v623, %v662
  %v664 = vpop.f32.mrf.mxu0
  %v665 = vadd.f32 %v623, %v664
  %v666 = vpop.f32.mrf.mxu0
  %v667 = vpop.f32.mrf.mxu0
  %668 = vdwg.mxu0
  %669 = vmatprep.subr.bf16.mxu0 0
  %670 = vmatpush1.bf16.msra.mxu0 0
  %671 = vmatprep.subr.bf16.mxu0 0
  %672 = vmatpush1.bf16.msra.mxu0 0
  %673 = vmatprep.subr.bf16.mxu0 0
  %674 = vmatpush1.bf16.msra.mxu0 0
  %675 = vmatprep.subr.bf16.mxu0 0
  %676 = vmatpush1.bf16.msra.mxu0 0
  %677 = vmatprep.subr.bf16.mxu0 0
  %678 = vmatpush1.bf16.msra.mxu0 0
  %679 = vmatprep.subr.bf16.mxu0 0
  %680 = vmatpush1.bf16.msra.mxu0 0
  %681 = vmatprep.subr.bf16.mxu0 %v617
  %682 = vmatpush1.bf16.msra.mxu0 %v616
  %683 = vmatprep.subr.bf16.mxu0 %v613
  %684 = vmatpush1.bf16.msra.mxu0 %v612
  %685 = vmatprep.subr.bf16.mxu0 0
  %686 = vmatpush2.bf16.msra.mxu0 0
  %687 = vmatprep.subr.bf16.mxu0 0
  %688 = vmatpush2.bf16.msra.mxu0 0
  %689 = vmatprep.subr.bf16.mxu0 0
  %690 = vmatpush2.bf16.msra.mxu0 0
  %691 = vmatprep.subr.bf16.mxu0 0
  %692 = vmatpush2.bf16.msra.mxu0 0
  %693 = vmatprep.subr.bf16.mxu0 0
  %694 = vmatpush2.bf16.msra.mxu0 0
  %695 = vmatprep.subr.bf16.mxu0 0
  %696 = vmatpush2.bf16.msra.mxu0 0
  %697 = vmatprep.subr.bf16.mxu0 0
  %698 = vmatpush2.bf16.msra.mxu0 0
  %699 = vmatprep.subr.bf16.mxu0 0
  %700 = vmatpush2.bf16.msra.mxu0 0
  %701 = vmatprep.mubr.bf16.mxu0 0
  %702 = vmatmul.mubr.bf16.gmra.mxu0 %v626
  %v703 = vpop.f32.mrf.mxu0
  %v704 = vadd.f32 %v623, %v703
  %v705 = vpop.f32.mrf.mxu0
  %v706 = vadd.f32 %v623, %v705
  %v707 = vpop.f32.mrf.mxu0
  %v708 = vpop.f32.mrf.mxu0
  %709 = vdwg.mxu0
  %v710 = vmax.f32 %v663, 0.0
  %v711 = vmax.f32 %v665, 0.0
  %v712 = vmax.f32 %v704, 0.0
  %v713 = vmax.f32 %v706, 0.0
  %v714 = vlaneseq
  %v715 = vand.u32 %v714, 127
  %v716 = vadd.s32 %v715, 128
  %v717 = vadd.s32 %v715, 256
  %v718 = vadd.s32 %v715, 384
  %v719 = vand.u32 %v715, 15
  %v720 = vand.u32 %v716, 15
  %v721 = vand.u32 %v717, 15
  %v722 = vand.u32 %v718, 15
  %v723 = vshra.s32 %v715, 4
  %v724 = vshra.s32 %v716, 4
  %v725 = vshra.s32 %v717, 4
  %v726 = vshra.s32 %v718, 4
  %v727 = vand.u32 %v723, 15
  %v728 = vand.u32 %v724, 15
  %v729 = vand.u32 %v725, 15
  %v730 = vand.u32 %v726, 15
  %731 = vrot.lane.b32.xlu0 %v710, 17
  %v732 = vpop.permute.xlu0 %731
  %733 = vrot.lane.b32.xlu0 %v711, 17
  %v734 = vpop.permute.xlu0 %733
  %735 = vrot.lane.b32.xlu0 %v712, 17
  %v736 = vpop.permute.xlu0 %735
  %737 = vrot.lane.b32.xlu0 %v713, 17
  %v738 = vpop.permute.xlu0 %737
  %vm739 = vcmp.lt.s32.totalorder %v715, 17
  %v740 = vsel %vm739, %v736, %v738
  %v741 = vsel %vm739, %v734, %v736
  %v742 = vsel %vm739, %v732, %v734
  %v743 = vsel %vm739, %v738, %v732
  %v744 = vadd.s32 %v727, 4294967295
  %v745 = vadd.s32 %v728, 4294967295
  %v746 = vadd.s32 %v729, 4294967295
  %v747 = vadd.s32 %v730, 4294967295
  %v748 = vadd.s32 %v719, 4294967295
  %v749 = vadd.s32 %v720, 4294967295
  %v750 = vadd.s32 %v721, 4294967295
  %v751 = vadd.s32 %v722, 4294967295
  %vm752 = vcmp.ge.s32.totalorder %v744, 0
  %vm753 = vcmp.ge.s32.totalorder %v745, 0
  %vm754 = vcmp.ge.s32.totalorder %v746, 0
  %vm755 = vcmp.ge.s32.totalorder %v747, 0
  %vm756 = vcmp.le.s32.totalorder %v744, 15
  %vm757 = vcmp.le.s32.totalorder %v745, 15
  %vm758 = vcmp.le.s32.totalorder %v746, 15
  %vm759 = vcmp.le.s32.totalorder %v747, 15
  %vm760 = vmand %vm752, %vm756
  %vm761 = vmand %vm753, %vm757
  %vm762 = vmand %vm754, %vm758
  %vm763 = vmand %vm755, %vm759
  %vm764 = vcmp.ge.s32.totalorder %v748, 0
  %vm765 = vcmp.ge.s32.totalorder %v749, 0
  %vm766 = vcmp.ge.s32.totalorder %v750, 0
  %vm767 = vcmp.ge.s32.totalorder %v751, 0
  %vm768 = vmand %vm760, %vm764
  %vm769 = vmand %vm761, %vm765
  %vm770 = vmand %vm762, %vm766
  %vm771 = vmand %vm763, %vm767
  %vm772 = vcmp.le.s32.totalorder %v748, 15
  %vm773 = vcmp.le.s32.totalorder %v749, 15
  %vm774 = vcmp.le.s32.totalorder %v750, 15
  %vm775 = vcmp.le.s32.totalorder %v751, 15
  %vm776 = vmand %vm768, %vm772
  %vm777 = vmand %vm769, %vm773
  %vm778 = vmand %vm770, %vm774
  %vm779 = vmand %vm771, %vm775
  %v780 = vsel %vm776, 1, 0
  %v781 = vsel %vm777, 1, 0
  %v782 = vsel %vm778, 1, 0
  %v783 = vsel %vm779, 1, 0
  %vm784 = vcmp.eq.s32.totalorder %v780, 1
  %vm785 = vcmp.eq.s32.totalorder %v781, 1
  %vm786 = vcmp.eq.s32.totalorder %v782, 1
  %vm787 = vcmp.eq.s32.totalorder %v783, 1
  %v788 = vsel %vm784, %v743, 0.0
  %v789 = vsel %vm785, %v742, 0.0
  %v790 = vsel %vm786, %v741, 0.0
  %v791 = vsel %vm787, %v740, 0.0
  %792 = vrot.lane.b32.xlu0 %v710, 16
  %v793 = vpop.permute.xlu0 %792
  %794 = vrot.lane.b32.xlu0 %v711, 16
  %v795 = vpop.permute.xlu0 %794
  %796 = vrot.lane.b32.xlu0 %v712, 16
  %v797 = vpop.permute.xlu0 %796
  %798 = vrot.lane.b32.xlu0 %v713, 16
  %v799 = vpop.permute.xlu0 %798
  %vm800 = vcmp.lt.s32.totalorder %v715, 16
  %v801 = vsel %vm800, %v797, %v799
  %v802 = vsel %vm800, %v795, %v797
  %v803 = vsel %vm800, %v793, %v795
  %v804 = vsel %vm800, %v799, %v793
  %vm805 = vcmp.ge.s32.totalorder %v719, 0
  %vm806 = vcmp.ge.s32.totalorder %v720, 0
  %vm807 = vcmp.ge.s32.totalorder %v721, 0
  %vm808 = vcmp.ge.s32.totalorder %v722, 0
  %vm809 = vmand %vm760, %vm805
  %vm810 = vmand %vm761, %vm806
  %vm811 = vmand %vm762, %vm807
  %vm812 = vmand %vm763, %vm808
  %vm813 = vcmp.le.s32.totalorder %v719, 15
  %vm814 = vcmp.le.s32.totalorder %v720, 15
  %vm815 = vcmp.le.s32.totalorder %v721, 15
  %vm816 = vcmp.le.s32.totalorder %v722, 15
  %vm817 = vmand %vm809, %vm813
  %vm818 = vmand %vm810, %vm814
  %vm819 = vmand %vm811, %vm815
  %vm820 = vmand %vm812, %vm816
  %v821 = vsel %vm817, 1, 0
  %v822 = vsel %vm818, 1, 0
  %v823 = vsel %vm819, 1, 0
  %v824 = vsel %vm820, 1, 0
  %vm825 = vcmp.eq.s32.totalorder %v821, 1
  %vm826 = vcmp.eq.s32.totalorder %v822, 1
  %vm827 = vcmp.eq.s32.totalorder %v823, 1
  %vm828 = vcmp.eq.s32.totalorder %v824, 1
  %v829 = vsel %vm825, %v804, 0.0
  %v830 = vsel %vm826, %v803, 0.0
  %v831 = vsel %vm827, %v802, 0.0
  %v832 = vsel %vm828, %v801, 0.0
  %833 = vrot.lane.b32.xlu0 %v710, 15
  %v834 = vpop.permute.xlu0 %833
  %835 = vrot.lane.b32.xlu0 %v711, 15
  %v836 = vpop.permute.xlu0 %835
  %837 = vrot.lane.b32.xlu0 %v712, 15
  %v838 = vpop.permute.xlu0 %837
  %839 = vrot.lane.b32.xlu0 %v713, 15
  %v840 = vpop.permute.xlu0 %839
  %vm841 = vcmp.lt.s32.totalorder %v715, 15
  %v842 = vsel %vm841, %v838, %v840
  %v843 = vsel %vm841, %v836, %v838
  %v844 = vsel %vm841, %v834, %v836
  %v845 = vsel %vm841, %v840, %v834
  %v846 = vadd.s32 %v719, 1
  %v847 = vadd.s32 %v720, 1
  %v848 = vadd.s32 %v721, 1
  %v849 = vadd.s32 %v722, 1
  %vm850 = vcmp.ge.s32.totalorder %v846, 0
  %vm851 = vcmp.ge.s32.totalorder %v847, 0
  %vm852 = vcmp.ge.s32.totalorder %v848, 0
  %vm853 = vcmp.ge.s32.totalorder %v849, 0
  %vm854 = vmand %vm760, %vm850
  %vm855 = vmand %vm761, %vm851
  %vm856 = vmand %vm762, %vm852
  %vm857 = vmand %vm763, %vm853
  %vm858 = vcmp.le.s32.totalorder %v846, 15
  %vm859 = vcmp.le.s32.totalorder %v847, 15
  %vm860 = vcmp.le.s32.totalorder %v848, 15
  %vm861 = vcmp.le.s32.totalorder %v849, 15
  %vm862 = vmand %vm854, %vm858
  %vm863 = vmand %vm855, %vm859
  %vm864 = vmand %vm856, %vm860
  %vm865 = vmand %vm857, %vm861
  %v866 = vsel %vm862, 1, 0
  %v867 = vsel %vm863, 1, 0
  %v868 = vsel %vm864, 1, 0
  %v869 = vsel %vm865, 1, 0
  %vm870 = vcmp.eq.s32.totalorder %v866, 1
  %vm871 = vcmp.eq.s32.totalorder %v867, 1
  %vm872 = vcmp.eq.s32.totalorder %v868, 1
  %vm873 = vcmp.eq.s32.totalorder %v869, 1
  %v874 = vsel %vm870, %v845, 0.0
  %v875 = vsel %vm871, %v844, 0.0
  %v876 = vsel %vm872, %v843, 0.0
  %v877 = vsel %vm873, %v842, 0.0
  %878 = vrot.lane.b32.xlu0 %v710, 1
  %v879 = vpop.permute.xlu0 %878
  %880 = vrot.lane.b32.xlu0 %v711, 1
  %v881 = vpop.permute.xlu0 %880
  %882 = vrot.lane.b32.xlu0 %v712, 1
  %v883 = vpop.permute.xlu0 %882
  %884 = vrot.lane.b32.xlu0 %v713, 1
  %v885 = vpop.permute.xlu0 %884
  %vm886 = vcmp.lt.s32.totalorder %v715, 1
  %v887 = vsel %vm886, %v883, %v885
  %v888 = vsel %vm886, %v881, %v883
  %v889 = vsel %vm886, %v879, %v881
  %v890 = vsel %vm886, %v885, %v879
  %vm891 = vcmp.ge.s32.totalorder %v727, 0
  %vm892 = vcmp.ge.s32.totalorder %v728, 0
  %vm893 = vcmp.ge.s32.totalorder %v729, 0
  %vm894 = vcmp.ge.s32.totalorder %v730, 0
  %vm895 = vcmp.le.s32.totalorder %v727, 15
  %vm896 = vcmp.le.s32.totalorder %v728, 15
  %vm897 = vcmp.le.s32.totalorder %v729, 15
  %vm898 = vcmp.le.s32.totalorder %v730, 15
  %vm899 = vmand %vm891, %vm895
  %vm900 = vmand %vm892, %vm896
  %vm901 = vmand %vm893, %vm897
  %vm902 = vmand %vm894, %vm898
  %vm903 = vmand %vm899, %vm764
  %vm904 = vmand %vm900, %vm765
  %vm905 = vmand %vm901, %vm766
  %vm906 = vmand %vm902, %vm767
  %vm907 = vmand %vm903, %vm772
  %vm908 = vmand %vm904, %vm773
  %vm909 = vmand %vm905, %vm774
  %vm910 = vmand %vm906, %vm775
  %v911 = vsel %vm907, 1, 0
  %v912 = vsel %vm908, 1, 0
  %v913 = vsel %vm909, 1, 0
  %v914 = vsel %vm910, 1, 0
  %vm915 = vcmp.eq.s32.totalorder %v911, 1
  %vm916 = vcmp.eq.s32.totalorder %v912, 1
  %vm917 = vcmp.eq.s32.totalorder %v913, 1
  %vm918 = vcmp.eq.s32.totalorder %v914, 1
  %v919 = vsel %vm915, %v890, 0.0
  %v920 = vsel %vm916, %v889, 0.0
  %v921 = vsel %vm917, %v888, 0.0
  %v922 = vsel %vm918, %v887, 0.0
  %923 = vrot.lane.b32.xlu0 %v710, 127
  %v924 = vpop.permute.xlu0 %923
  %925 = vrot.lane.b32.xlu0 %v711, 127
  %v926 = vpop.permute.xlu0 %925
  %927 = vrot.lane.b32.xlu0 %v712, 127
  %v928 = vpop.permute.xlu0 %927
  %929 = vrot.lane.b32.xlu0 %v713, 127
  %v930 = vpop.permute.xlu0 %929
  %vm931 = vcmp.lt.s32.totalorder %v715, 127
  %v932 = vsel %vm931, %v928, %v930
  %v933 = vsel %vm931, %v926, %v928
  %v934 = vsel %vm931, %v924, %v926
  %v935 = vsel %vm931, %v930, %v924
  %vm936 = vmand %vm899, %vm850
  %vm937 = vmand %vm900, %vm851
  %vm938 = vmand %vm901, %vm852
  %vm939 = vmand %vm902, %vm853
  %vm940 = vmand %vm936, %vm858
  %vm941 = vmand %vm937, %vm859
  %vm942 = vmand %vm938, %vm860
  %vm943 = vmand %vm939, %vm861
  %v944 = vsel %vm940, 1, 0
  %v945 = vsel %vm941, 1, 0
  %v946 = vsel %vm942, 1, 0
  %v947 = vsel %vm943, 1, 0
  %vm948 = vcmp.eq.s32.totalorder %v944, 1
  %vm949 = vcmp.eq.s32.totalorder %v945, 1
  %vm950 = vcmp.eq.s32.totalorder %v946, 1
  %vm951 = vcmp.eq.s32.totalorder %v947, 1
  %v952 = vsel %vm948, %v934, 0.0
  %v953 = vsel %vm949, %v933, 0.0
  %v954 = vsel %vm950, %v932, 0.0
  %v955 = vsel %vm951, %v935, 0.0
  %956 = vrot.lane.b32.xlu0 %v710, 113
  %v957 = vpop.permute.xlu0 %956
  %958 = vrot.lane.b32.xlu0 %v711, 113
  %v959 = vpop.permute.xlu0 %958
  %960 = vrot.lane.b32.xlu0 %v712, 113
  %v961 = vpop.permute.xlu0 %960
  %962 = vrot.lane.b32.xlu0 %v713, 113
  %v963 = vpop.permute.xlu0 %962
  %vm964 = vcmp.lt.s32.totalorder %v715, 113
  %v965 = vsel %vm964, %v961, %v963
  %v966 = vsel %vm964, %v959, %v961
  %v967 = vsel %vm964, %v957, %v959
  %v968 = vsel %vm964, %v963, %v957
  %v969 = vadd.s32 %v727, 1
  %v970 = vadd.s32 %v728, 1
  %v971 = vadd.s32 %v729, 1
  %v972 = vadd.s32 %v730, 1
  %vm973 = vcmp.ge.s32.totalorder %v969, 0
  %vm974 = vcmp.ge.s32.totalorder %v970, 0
  %vm975 = vcmp.ge.s32.totalorder %v971, 0
  %vm976 = vcmp.ge.s32.totalorder %v972, 0
  %vm977 = vcmp.le.s32.totalorder %v969, 15
  %vm978 = vcmp.le.s32.totalorder %v970, 15
  %vm979 = vcmp.le.s32.totalorder %v971, 15
  %vm980 = vcmp.le.s32.totalorder %v972, 15
  %vm981 = vmand %vm973, %vm977
  %vm982 = vmand %vm974, %vm978
  %vm983 = vmand %vm975, %vm979
  %vm984 = vmand %vm976, %vm980
  %vm985 = vmand %vm981, %vm764
  %vm986 = vmand %vm982, %vm765
  %vm987 = vmand %vm983, %vm766
  %vm988 = vmand %vm984, %vm767
  %vm989 = vmand %vm985, %vm772
  %vm990 = vmand %vm986, %vm773
  %vm991 = vmand %vm987, %vm774
  %vm992 = vmand %vm988, %vm775
  %v993 = vsel %vm989, 1, 0
  %v994 = vsel %vm990, 1, 0
  %v995 = vsel %vm991, 1, 0
  %v996 = vsel %vm992, 1, 0
  %vm997 = vcmp.eq.s32.totalorder %v993, 1
  %vm998 = vcmp.eq.s32.totalorder %v994, 1
  %vm999 = vcmp.eq.s32.totalorder %v995, 1
  %vm1000 = vcmp.eq.s32.totalorder %v996, 1
  %v1001 = vsel %vm997, %v967, 0.0
  %v1002 = vsel %vm998, %v966, 0.0
  %v1003 = vsel %vm999, %v965, 0.0
  %v1004 = vsel %vm1000, %v968, 0.0
  %1005 = vrot.lane.b32.xlu0 %v710, 112
  %v1006 = vpop.permute.xlu0 %1005
  %1007 = vrot.lane.b32.xlu0 %v711, 112
  %v1008 = vpop.permute.xlu0 %1007
  %1009 = vrot.lane.b32.xlu0 %v712, 112
  %v1010 = vpop.permute.xlu0 %1009
  %1011 = vrot.lane.b32.xlu0 %v713, 112
  %v1012 = vpop.permute.xlu0 %1011
  %vm1013 = vcmp.lt.s32.totalorder %v715, 112
  %v1014 = vsel %vm1013, %v1010, %v1012
  %v1015 = vsel %vm1013, %v1008, %v1010
  %v1016 = vsel %vm1013, %v1006, %v1008
  %v1017 = vsel %vm1013, %v1012, %v1006
  %vm1018 = vmand %vm981, %vm805
  %vm1019 = vmand %vm982, %vm806
  %vm1020 = vmand %vm983, %vm807
  %vm1021 = vmand %vm984, %vm808
  %vm1022 = vmand %vm1018, %vm813
  %vm1023 = vmand %vm1019, %vm814
  %vm1024 = vmand %vm1020, %vm815
  %vm1025 = vmand %vm1021, %vm816
  %v1026 = vsel %vm1022, 1, 0
  %v1027 = vsel %vm1023, 1, 0
  %v1028 = vsel %vm1024, 1, 0
  %v1029 = vsel %vm1025, 1, 0
  %vm1030 = vcmp.eq.s32.totalorder %v1026, 1
  %vm1031 = vcmp.eq.s32.totalorder %v1027, 1
  %vm1032 = vcmp.eq.s32.totalorder %v1028, 1
  %vm1033 = vcmp.eq.s32.totalorder %v1029, 1
  %v1034 = vsel %vm1030, %v1016, 0.0
  %v1035 = vsel %vm1031, %v1015, 0.0
  %v1036 = vsel %vm1032, %v1014, 0.0
  %v1037 = vsel %vm1033, %v1017, 0.0
  %1038 = vrot.lane.b32.xlu0 %v710, 111
  %v1039 = vpop.permute.xlu0 %1038
  %1040 = vrot.lane.b32.xlu0 %v711, 111
  %v1041 = vpop.permute.xlu0 %1040
  %1042 = vrot.lane.b32.xlu0 %v712, 111
  %v1043 = vpop.permute.xlu0 %1042
  %1044 = vrot.lane.b32.xlu0 %v713, 111
  %v1045 = vpop.permute.xlu0 %1044
  %vm1046 = vcmp.lt.s32.totalorder %v715, 111
  %v1047 = vsel %vm1046, %v1043, %v1045
  %v1048 = vsel %vm1046, %v1041, %v1043
  %v1049 = vsel %vm1046, %v1039, %v1041
  %v1050 = vsel %vm1046, %v1045, %v1039
  %vm1051 = vmand %vm981, %vm850
  %vm1052 = vmand %vm982, %vm851
  %vm1053 = vmand %vm983, %vm852
  %vm1054 = vmand %vm984, %vm853
  %vm1055 = vmand %vm1051, %vm858
  %vm1056 = vmand %vm1052, %vm859
  %vm1057 = vmand %vm1053, %vm860
  %vm1058 = vmand %vm1054, %vm861
  %v1059 = vsel %vm1055, 1, 0
  %v1060 = vsel %vm1056, 1, 0
  %v1061 = vsel %vm1057, 1, 0
  %v1062 = vsel %vm1058, 1, 0
  %vm1063 = vcmp.eq.s32.totalorder %v1059, 1
  %vm1064 = vcmp.eq.s32.totalorder %v1060, 1
  %vm1065 = vcmp.eq.s32.totalorder %v1061, 1
  %vm1066 = vcmp.eq.s32.totalorder %v1062, 1
  %v1067 = vsel %vm1063, %v1049, 0.0
  %v1068 = vsel %vm1064, %v1048, 0.0
  %v1069 = vsel %vm1065, %v1047, 0.0
  %v1070 = vsel %vm1066, %v1050, 0.0
  %v1071 = vpack.c.bf16 %v829, %v788
  %v1072 = vpack.c.bf16 %v830, %v789
  %v1073 = vpack.c.bf16 %v831, %v790
  %v1074 = vpack.c.bf16 %v832, %v791
  %v1075 = vpack.c.bf16 %v919, %v874
  %v1076 = vpack.c.bf16 %v920, %v875
  %v1077 = vpack.c.bf16 %v921, %v876
  %v1078 = vpack.c.bf16 %v922, %v877
  %v1079 = vpack.c.bf16 %v952, %v710
  %v1080 = vpack.c.bf16 %v953, %v711
  %v1081 = vpack.c.bf16 %v954, %v712
  %v1082 = vpack.c.bf16 %v955, %v713
  %v1083 = vpack.c.bf16 %v1034, %v1001
  %v1084 = vpack.c.bf16 %v1035, %v1002
  %v1085 = vpack.c.bf16 %v1036, %v1003
  %v1086 = vpack.c.bf16 %v1037, %v1004
  %v1087 = vpack.c.bf16 %v1067, %v1067
  %v1088 = vpack.c.bf16 %v1068, %v1068
  %v1089 = vpack.c.bf16 %v1069, %v1069
  %v1090 = vpack.c.bf16 %v1070, %v1070
  %v1091 = vld [vmem:[%s11] sm:$0xf]
  %v1092 = vld [vmem:[%s13] sm:$0xff]
  %1094 = vset.pattern.permute.xlu0 0
  %1095 = vperm.xlu0 %1094, %v1092
  %v1096 = vpop.permute.xlu0 %1095
  %vm1098 = vcmask 588800
  %v1100 = vsel %vm1098, %v1091, 0
  %vm1102 = vcmask 1043456
  %v1104 = vsel %vm1102, %v1087, 0
  %v1107 = vsel %vm1102, %v1088, 0
  %v1110 = vsel %vm1102, %v1089, 0
  %v1113 = vsel %vm1102, %v1090, 0
  %1115 = vmatprep.subr.bf16.mxu0 0
  %1116 = vmatpush1.bf16.msra.mxu0 0
  %1117 = vmatprep.subr.bf16.mxu0 0
  %1118 = vmatpush1.bf16.msra.mxu0 0
  %1119 = vmatprep.subr.bf16.mxu0 0
  %1120 = vmatpush1.bf16.msra.mxu0 0
  %1121 = vmatprep.subr.bf16.mxu0 %v1107
  %1122 = vmatpush1.bf16.msra.mxu0 %v1104
  %1123 = vmatprep.subr.bf16.mxu0 %v1084
  %1124 = vmatpush1.bf16.msra.mxu0 %v1083
  %1125 = vmatprep.subr.bf16.mxu0 %v1080
  %1126 = vmatpush1.bf16.msra.mxu0 %v1079
  %1127 = vmatprep.subr.bf16.mxu0 %v1076
  %1128 = vmatpush1.bf16.msra.mxu0 %v1075
  %1129 = vmatprep.subr.bf16.mxu0 %v1072
  %1130 = vmatpush1.bf16.msra.mxu0 %v1071
  %1131 = vmatprep.subr.bf16.mxu0 0
  %1132 = vmatpush2.bf16.msra.mxu0 0
  %1133 = vmatprep.subr.bf16.mxu0 0
  %1134 = vmatpush2.bf16.msra.mxu0 0
  %1135 = vmatprep.subr.bf16.mxu0 0
  %1136 = vmatpush2.bf16.msra.mxu0 0
  %1137 = vmatprep.subr.bf16.mxu0 0
  %1138 = vmatpush2.bf16.msra.mxu0 0
  %1139 = vmatprep.subr.bf16.mxu0 0
  %1140 = vmatpush2.bf16.msra.mxu0 0
  %1141 = vmatprep.subr.bf16.mxu0 0
  %1142 = vmatpush2.bf16.msra.mxu0 0
  %1143 = vmatprep.subr.bf16.mxu0 0
  %1144 = vmatpush2.bf16.msra.mxu0 0
  %1145 = vmatprep.subr.bf16.mxu0 0
  %1146 = vmatpush2.bf16.msra.mxu0 0
  %1147 = vmatprep.mubr.bf16.mxu0 0
  %1148 = vmatmul.mubr.bf16.gmra.mxu0 %v1100
  %v1149 = vpop.f32.mrf.mxu0
  %v1150 = vadd.f32 %v1096, %v1149
  %v1151 = vpop.f32.mrf.mxu0
  %v1152 = vadd.f32 %v1096, %v1151
  %v1153 = vpop.f32.mrf.mxu0
  %v1154 = vpop.f32.mrf.mxu0
  %1155 = vdwg.mxu0
  %1156 = vmatprep.subr.bf16.mxu0 0
  %1157 = vmatpush1.bf16.msra.mxu0 0
  %1158 = vmatprep.subr.bf16.mxu0 0
  %1159 = vmatpush1.bf16.msra.mxu0 0
  %1160 = vmatprep.subr.bf16.mxu0 0
  %1161 = vmatpush1.bf16.msra.mxu0 0
  %1162 = vmatprep.subr.bf16.mxu0 %v1113
  %1163 = vmatpush1.bf16.msra.mxu0 %v1110
  %1164 = vmatprep.subr.bf16.mxu0 %v1086
  %1165 = vmatpush1.bf16.msra.mxu0 %v1085
  %1166 = vmatprep.subr.bf16.mxu0 %v1082
  %1167 = vmatpush1.bf16.msra.mxu0 %v1081
  %1168 = vmatprep.subr.bf16.mxu0 %v1078
  %1169 = vmatpush1.bf16.msra.mxu0 %v1077
  %1170 = vmatprep.subr.bf16.mxu0 %v1074
  %1171 = vmatpush1.bf16.msra.mxu0 %v1073
  %1172 = vmatprep.subr.bf16.mxu0 0
  %1173 = vmatpush2.bf16.msra.mxu0 0
  %1174 = vmatprep.subr.bf16.mxu0 0
  %1175 = vmatpush2.bf16.msra.mxu0 0
  %1176 = vmatprep.subr.bf16.mxu0 0
  %1177 = vmatpush2.bf16.msra.mxu0 0
  %1178 = vmatprep.subr.bf16.mxu0 0
  %1179 = vmatpush2.bf16.msra.mxu0 0
  %1180 = vmatprep.subr.bf16.mxu0 0
  %1181 = vmatpush2.bf16.msra.mxu0 0
  %1182 = vmatprep.subr.bf16.mxu0 0
  %1183 = vmatpush2.bf16.msra.mxu0 0
  %1184 = vmatprep.subr.bf16.mxu0 0
  %1185 = vmatpush2.bf16.msra.mxu0 0
  %1186 = vmatprep.subr.bf16.mxu0 0
  %1187 = vmatpush2.bf16.msra.mxu0 0
  %1188 = vmatprep.mubr.bf16.mxu0 0
  %1189 = vmatmul.mubr.bf16.gmra.mxu0 %v1100
  %v1190 = vpop.f32.mrf.mxu0
  %v1191 = vadd.f32 %v1096, %v1190
  %v1192 = vpop.f32.mrf.mxu0
  %v1193 = vadd.f32 %v1096, %v1192
  %v1194 = vpop.f32.mrf.mxu0
  %v1195 = vpop.f32.mrf.mxu0
  %1196 = vdwg.mxu0
  %v1197 = vmax.f32 %v1150, 0.0
  %v1198 = vmax.f32 %v1152, 0.0
  %v1199 = vmax.f32 %v1191, 0.0
  %v1200 = vmax.f32 %v1193, 0.0
  %v1201 = vpack.c.bf16 %v1197, %v1197
  %v1202 = vpack.c.bf16 %v1198, %v1198
  %v1203 = vpack.c.bf16 %v1199, %v1199
  %v1204 = vpack.c.bf16 %v1200, %v1200
  %v1205 = vld [vmem:[%s15] sm:$0xf]
  %v1206 = vld [vmem:[%s15 + $0x4] sm:$0xf]
  %v1207 = vld [vmem:[%s15 + $0x8] sm:$0xf]
  %v1208 = vld [vmem:[%s15 + $0xc] sm:$0xf]
  %v1209 = vld [vmem:[%s17] sm:$0xff]
  %v1210 = vld [vmem:[%s17 + $0x8] sm:$0xff]
  %v1211 = vld [vmem:[%s17 + $0x10] sm:$0xff]
  %v1212 = vld [vmem:[%s17 + $0x18] sm:$0xff]
  %1214 = vset.pattern.permute.xlu0 0
  %1215 = vperm.xlu0 %1214, %v1209
  %v1216 = vpop.permute.xlu0 %1215
  %1219 = vset.pattern.permute.xlu0 0
  %1220 = vperm.xlu0 %1219, %v1210
  %v1221 = vpop.permute.xlu0 %1220
  %1224 = vset.pattern.permute.xlu0 0
  %1225 = vperm.xlu0 %1224, %v1211
  %v1226 = vpop.permute.xlu0 %1225
  %1229 = vset.pattern.permute.xlu0 0
  %1230 = vperm.xlu0 %1229, %v1212
  %v1231 = vpop.permute.xlu0 %1230
  %v1237 = vunpack.c.l.b16 %v1205
  %v1238 = vunpack.c.l.b16 %v1206
  %v1239 = vunpack.c.l.b16 %v1207
  %v1240 = vunpack.c.l.b16 %v1208
  %v1241 = vpack.c.b16 %v1238, %v1237
  %v1242 = vpack.c.b16 %v1240, %v1239
  %vm1243 = vcmask 64512
  %v1245 = vsel %vm1243, %v1241, 0
  %v1248 = vsel %vm1243, %v1242, 0
  %v1251 = vsel %vm1102, %v1201, 0
  %v1254 = vsel %vm1102, %v1202, 0
  %v1257 = vsel %vm1102, %v1203, 0
  %v1260 = vsel %vm1102, %v1204, 0
  %1262 = vmatprep.subr.bf16.mxu0 0
  %1263 = vmatpush1.bf16.msra.mxu0 0
  %1264 = vmatprep.subr.bf16.mxu0 0
  %1265 = vmatpush1.bf16.msra.mxu0 0
  %1266 = vmatprep.subr.bf16.mxu0 0
  %1267 = vmatpush1.bf16.msra.mxu0 0
  %1268 = vmatprep.subr.bf16.mxu0 0
  %1269 = vmatpush1.bf16.msra.mxu0 0
  %1270 = vmatprep.subr.bf16.mxu0 0
  %1271 = vmatpush1.bf16.msra.mxu0 0
  %1272 = vmatprep.subr.bf16.mxu0 0
  %1273 = vmatpush1.bf16.msra.mxu0 0
  %1274 = vmatprep.subr.bf16.mxu0 0
  %1275 = vmatpush1.bf16.msra.mxu0 0
  %1276 = vmatprep.subr.bf16.mxu0 %v1254
  %1277 = vmatpush1.bf16.msra.mxu0 %v1251
  %1278 = vmatprep.subr.bf16.mxu0 0
  %1279 = vmatpush2.bf16.msra.mxu0 0
  %1280 = vmatprep.subr.bf16.mxu0 0
  %1281 = vmatpush2.bf16.msra.mxu0 0
  %1282 = vmatprep.subr.bf16.mxu0 0
  %1283 = vmatpush2.bf16.msra.mxu0 0
  %1284 = vmatprep.subr.bf16.mxu0 0
  %1285 = vmatpush2.bf16.msra.mxu0 0
  %1286 = vmatprep.subr.bf16.mxu0 0
  %1287 = vmatpush2.bf16.msra.mxu0 0
  %1288 = vmatprep.subr.bf16.mxu0 0
  %1289 = vmatpush2.bf16.msra.mxu0 0
  %1290 = vmatprep.subr.bf16.mxu0 0
  %1291 = vmatpush2.bf16.msra.mxu0 0
  %1292 = vmatprep.subr.bf16.mxu0 0
  %1293 = vmatpush2.bf16.msra.mxu0 0
  %1294 = vmatprep.mubr.bf16.mxu0 0
  %1295 = vmatmul.mubr.bf16.gmra.mxu0 %v1245
  %v1296 = vpop.f32.mrf.mxu0
  %v1297 = vadd.f32 %v1216, %v1296
  %v1298 = vpop.f32.mrf.mxu0
  %v1299 = vadd.f32 %v1216, %v1298
  %v1300 = vpop.f32.mrf.mxu0
  %v1301 = vadd.f32 %v1221, %v1300
  %v1302 = vpop.f32.mrf.mxu0
  %v1303 = vadd.f32 %v1221, %v1302
  %1304 = vmatprep.mubr.bf16.mxu0 0
  %1305 = vmatmul.mubr.bf16.gmra.mxu0 %v1248
  %v1306 = vpop.f32.mrf.mxu0
  %v1307 = vadd.f32 %v1226, %v1306
  %v1308 = vpop.f32.mrf.mxu0
  %v1309 = vadd.f32 %v1226, %v1308
  %v1310 = vpop.f32.mrf.mxu0
  %v1311 = vadd.f32 %v1231, %v1310
  %v1312 = vpop.f32.mrf.mxu0
  %v1313 = vadd.f32 %v1231, %v1312
  %1314 = vdwg.mxu0
  %1315 = vmatprep.subr.bf16.mxu0 0
  %1316 = vmatpush1.bf16.msra.mxu0 0
  %1317 = vmatprep.subr.bf16.mxu0 0
  %1318 = vmatpush1.bf16.msra.mxu0 0
  %1319 = vmatprep.subr.bf16.mxu0 0
  %1320 = vmatpush1.bf16.msra.mxu0 0
  %1321 = vmatprep.subr.bf16.mxu0 0
  %1322 = vmatpush1.bf16.msra.mxu0 0
  %1323 = vmatprep.subr.bf16.mxu0 0
  %1324 = vmatpush1.bf16.msra.mxu0 0
  %1325 = vmatprep.subr.bf16.mxu0 0
  %1326 = vmatpush1.bf16.msra.mxu0 0
  %1327 = vmatprep.subr.bf16.mxu0 0
  %1328 = vmatpush1.bf16.msra.mxu0 0
  %1329 = vmatprep.subr.bf16.mxu0 %v1260
  %1330 = vmatpush1.bf16.msra.mxu0 %v1257
  %1331 = vmatprep.subr.bf16.mxu0 0
  %1332 = vmatpush2.bf16.msra.mxu0 0
  %1333 = vmatprep.subr.bf16.mxu0 0
  %1334 = vmatpush2.bf16.msra.mxu0 0
  %1335 = vmatprep.subr.bf16.mxu0 0
  %1336 = vmatpush2.bf16.msra.mxu0 0
  %1337 = vmatprep.subr.bf16.mxu0 0
  %1338 = vmatpush2.bf16.msra.mxu0 0
  %1339 = vmatprep.subr.bf16.mxu0 0
  %1340 = vmatpush2.bf16.msra.mxu0 0
  %1341 = vmatprep.subr.bf16.mxu0 0
  %1342 = vmatpush2.bf16.msra.mxu0 0
  %1343 = vmatprep.subr.bf16.mxu0 0
  %1344 = vmatpush2.bf16.msra.mxu0 0
  %1345 = vmatprep.subr.bf16.mxu0 0
  %1346 = vmatpush2.bf16.msra.mxu0 0
  %1347 = vmatprep.mubr.bf16.mxu0 0
  %1348 = vmatmul.mubr.bf16.gmra.mxu0 %v1245
  %v1349 = vpop.f32.mrf.mxu0
  %v1350 = vadd.f32 %v1216, %v1349
  %v1351 = vpop.f32.mrf.mxu0
  %v1352 = vadd.f32 %v1216, %v1351
  %v1353 = vpop.f32.mrf.mxu0
  %v1354 = vadd.f32 %v1221, %v1353
  %v1355 = vpop.f32.mrf.mxu0
  %v1356 = vadd.f32 %v1221, %v1355
  %1357 = vmatprep.mubr.bf16.mxu0 0
  %1358 = vmatmul.mubr.bf16.gmra.mxu0 %v1248
  %v1359 = vpop.f32.mrf.mxu0
  %v1360 = vadd.f32 %v1226, %v1359
  %v1361 = vpop.f32.mrf.mxu0
  %v1362 = vadd.f32 %v1226, %v1361
  %v1363 = vpop.f32.mrf.mxu0
  %v1364 = vadd.f32 %v1231, %v1363
  %v1365 = vpop.f32.mrf.mxu0
  %v1366 = vadd.f32 %v1231, %v1365
  %1367 = vdwg.mxu0
  %v1368 = vmax.f32 %v1297, 0.0
  %v1369 = vmax.f32 %v1299, 0.0
  %v1370 = vmax.f32 %v1350, 0.0
  %v1371 = vmax.f32 %v1352, 0.0
  %v1372 = vmax.f32 %v1301, 0.0
  %v1373 = vmax.f32 %v1303, 0.0
  %v1374 = vmax.f32 %v1354, 0.0
  %v1375 = vmax.f32 %v1356, 0.0
  %v1376 = vmax.f32 %v1307, 0.0
  %v1377 = vmax.f32 %v1309, 0.0
  %v1378 = vmax.f32 %v1360, 0.0
  %v1379 = vmax.f32 %v1362, 0.0
  %v1380 = vmax.f32 %v1311, 0.0
  %v1381 = vmax.f32 %v1313, 0.0
  %v1382 = vmax.f32 %v1364, 0.0
  %v1383 = vmax.f32 %v1366, 0.0
  %v1384 = vunpack.c.l.bf16 %v610
  %v1385 = vunpack.c.l.bf16 %v611
  %v1386 = vunpack.c.l.bf16 %v612
  %v1387 = vunpack.c.l.bf16 %v613
  %v1388 = vunpack.c.h.bf16 %v610
  %v1389 = vunpack.c.h.bf16 %v611
  %v1390 = vunpack.c.h.bf16 %v612
  %v1391 = vunpack.c.h.bf16 %v613
  %v1392 = vunpack.c.l.bf16 %v614
  %v1393 = vunpack.c.l.bf16 %v615
  %v1394 = vunpack.c.l.bf16 %v616
  %v1395 = vunpack.c.l.bf16 %v617
  %v1396 = vunpack.c.h.bf16 %v614
  %v1397 = vunpack.c.h.bf16 %v615
  %v1398 = vunpack.c.h.bf16 %v616
  %v1399 = vunpack.c.h.bf16 %v617
  %v1400 = vadd.f32 %v1368, %v1384
  %v1401 = vadd.f32 %v1369, %v1385
  %v1402 = vadd.f32 %v1370, %v1386
  %v1403 = vadd.f32 %v1371, %v1387
  %v1404 = vadd.f32 %v1372, %v1388
  %v1405 = vadd.f32 %v1373, %v1389
  %v1406 = vadd.f32 %v1374, %v1390
  %v1407 = vadd.f32 %v1375, %v1391
  %v1408 = vadd.f32 %v1376, %v1392
  %v1409 = vadd.f32 %v1377, %v1393
  %v1410 = vadd.f32 %v1378, %v1394
  %v1411 = vadd.f32 %v1379, %v1395
  %v1412 = vadd.f32 %v1380, %v1396
  %v1413 = vadd.f32 %v1381, %v1397
  %v1414 = vadd.f32 %v1382, %v1398
  %v1415 = vadd.f32 %v1383, %v1399
  %v1416 = vmax.f32 %v1400, 0.0
  %v1417 = vmax.f32 %v1401, 0.0
  %v1418 = vmax.f32 %v1402, 0.0
  %v1419 = vmax.f32 %v1403, 0.0
  %v1420 = vmax.f32 %v1404, 0.0
  %v1421 = vmax.f32 %v1405, 0.0
  %v1422 = vmax.f32 %v1406, 0.0
  %v1423 = vmax.f32 %v1407, 0.0
  %v1424 = vmax.f32 %v1408, 0.0
  %v1425 = vmax.f32 %v1409, 0.0
  %v1426 = vmax.f32 %v1410, 0.0
  %v1427 = vmax.f32 %v1411, 0.0
  %v1428 = vmax.f32 %v1412, 0.0
  %v1429 = vmax.f32 %v1413, 0.0
  %v1430 = vmax.f32 %v1414, 0.0
  %v1431 = vmax.f32 %v1415, 0.0
  %v1432 = vpack.c.bf16 %v1420, %v1416
  %v1433 = vpack.c.bf16 %v1421, %v1417
  %v1434 = vpack.c.bf16 %v1422, %v1418
  %v1435 = vpack.c.bf16 %v1423, %v1419
  %v1436 = vpack.c.bf16 %v1428, %v1424
  %v1437 = vpack.c.bf16 %v1429, %v1425
  %v1438 = vpack.c.bf16 %v1430, %v1426
  %v1439 = vpack.c.bf16 %v1431, %v1427
  %v1440 = vld [vmem:[%s19] sm:$0xf]
  %v1441 = vld [vmem:[%s21] sm:$0xff]
  %1443 = vset.pattern.permute.xlu0 0
  %1444 = vperm.xlu0 %1443, %v1441
  %v1445 = vpop.permute.xlu0 %1444
  %v1448 = vsel %vm481, %v1440, 0
  %1450 = vmatprep.subr.bf16.mxu0 0
  %1451 = vmatpush1.bf16.msra.mxu0 0
  %1452 = vmatprep.subr.bf16.mxu0 0
  %1453 = vmatpush1.bf16.msra.mxu0 0
  %1454 = vmatprep.subr.bf16.mxu0 0
  %1455 = vmatpush1.bf16.msra.mxu0 0
  %1456 = vmatprep.subr.bf16.mxu0 0
  %1457 = vmatpush1.bf16.msra.mxu0 0
  %1458 = vmatprep.subr.bf16.mxu0 0
  %1459 = vmatpush1.bf16.msra.mxu0 0
  %1460 = vmatprep.subr.bf16.mxu0 0
  %1461 = vmatpush1.bf16.msra.mxu0 0
  %1462 = vmatprep.subr.bf16.mxu0 %v1437
  %1463 = vmatpush1.bf16.msra.mxu0 %v1436
  %1464 = vmatprep.subr.bf16.mxu0 %v1433
  %1465 = vmatpush1.bf16.msra.mxu0 %v1432
  %1466 = vmatprep.subr.bf16.mxu0 0
  %1467 = vmatpush2.bf16.msra.mxu0 0
  %1468 = vmatprep.subr.bf16.mxu0 0
  %1469 = vmatpush2.bf16.msra.mxu0 0
  %1470 = vmatprep.subr.bf16.mxu0 0
  %1471 = vmatpush2.bf16.msra.mxu0 0
  %1472 = vmatprep.subr.bf16.mxu0 0
  %1473 = vmatpush2.bf16.msra.mxu0 0
  %1474 = vmatprep.subr.bf16.mxu0 0
  %1475 = vmatpush2.bf16.msra.mxu0 0
  %1476 = vmatprep.subr.bf16.mxu0 0
  %1477 = vmatpush2.bf16.msra.mxu0 0
  %1478 = vmatprep.subr.bf16.mxu0 0
  %1479 = vmatpush2.bf16.msra.mxu0 0
  %1480 = vmatprep.subr.bf16.mxu0 0
  %1481 = vmatpush2.bf16.msra.mxu0 0
  %1482 = vmatprep.mubr.bf16.mxu0 0
  %1483 = vmatmul.mubr.bf16.gmra.mxu0 %v1448
  %v1484 = vpop.f32.mrf.mxu0
  %v1485 = vadd.f32 %v1445, %v1484
  %v1486 = vpop.f32.mrf.mxu0
  %v1487 = vadd.f32 %v1445, %v1486
  %v1488 = vpop.f32.mrf.mxu0
  %v1489 = vpop.f32.mrf.mxu0
  %1490 = vdwg.mxu0
  %1491 = vmatprep.subr.bf16.mxu0 0
  %1492 = vmatpush1.bf16.msra.mxu0 0
  %1493 = vmatprep.subr.bf16.mxu0 0
  %1494 = vmatpush1.bf16.msra.mxu0 0
  %1495 = vmatprep.subr.bf16.mxu0 0
  %1496 = vmatpush1.bf16.msra.mxu0 0
  %1497 = vmatprep.subr.bf16.mxu0 0
  %1498 = vmatpush1.bf16.msra.mxu0 0
  %1499 = vmatprep.subr.bf16.mxu0 0
  %1500 = vmatpush1.bf16.msra.mxu0 0
  %1501 = vmatprep.subr.bf16.mxu0 0
  %1502 = vmatpush1.bf16.msra.mxu0 0
  %1503 = vmatprep.subr.bf16.mxu0 %v1439
  %1504 = vmatpush1.bf16.msra.mxu0 %v1438
  %1505 = vmatprep.subr.bf16.mxu0 %v1435
  %1506 = vmatpush1.bf16.msra.mxu0 %v1434
  %1507 = vmatprep.subr.bf16.mxu0 0
  %1508 = vmatpush2.bf16.msra.mxu0 0
  %1509 = vmatprep.subr.bf16.mxu0 0
  %1510 = vmatpush2.bf16.msra.mxu0 0
  %1511 = vmatprep.subr.bf16.mxu0 0
  %1512 = vmatpush2.bf16.msra.mxu0 0
  %1513 = vmatprep.subr.bf16.mxu0 0
  %1514 = vmatpush2.bf16.msra.mxu0 0
  %1515 = vmatprep.subr.bf16.mxu0 0
  %1516 = vmatpush2.bf16.msra.mxu0 0
  %1517 = vmatprep.subr.bf16.mxu0 0
  %1518 = vmatpush2.bf16.msra.mxu0 0
  %1519 = vmatprep.subr.bf16.mxu0 0
  %1520 = vmatpush2.bf16.msra.mxu0 0
  %1521 = vmatprep.subr.bf16.mxu0 0
  %1522 = vmatpush2.bf16.msra.mxu0 0
  %1523 = vmatprep.mubr.bf16.mxu0 0
  %1524 = vmatmul.mubr.bf16.gmra.mxu0 %v1448
  %v1525 = vpop.f32.mrf.mxu0
  %v1526 = vadd.f32 %v1445, %v1525
  %v1527 = vpop.f32.mrf.mxu0
  %v1528 = vadd.f32 %v1445, %v1527
  %v1529 = vpop.f32.mrf.mxu0
  %v1530 = vpop.f32.mrf.mxu0
  %1531 = vdwg.mxu0
  %v1532 = vmax.f32 %v1485, 0.0
  %v1533 = vmax.f32 %v1487, 0.0
  %v1534 = vmax.f32 %v1526, 0.0
  %v1535 = vmax.f32 %v1528, 0.0
  %1536 = vrot.lane.b32.xlu0 %v1532, 17
  %v1537 = vpop.permute.xlu0 %1536
  %1538 = vrot.lane.b32.xlu0 %v1533, 17
  %v1539 = vpop.permute.xlu0 %1538
  %1540 = vrot.lane.b32.xlu0 %v1534, 17
  %v1541 = vpop.permute.xlu0 %1540
  %1542 = vrot.lane.b32.xlu0 %v1535, 17
  %v1543 = vpop.permute.xlu0 %1542
  %v1544 = vsel %vm739, %v1541, %v1543
  %v1545 = vsel %vm739, %v1539, %v1541
  %v1546 = vsel %vm739, %v1537, %v1539
  %v1547 = vsel %vm739, %v1543, %v1537
  %v1548 = vsel %vm784, %v1547, 0.0
  %v1549 = vsel %vm785, %v1546, 0.0
  %v1550 = vsel %vm786, %v1545, 0.0
  %v1551 = vsel %vm787, %v1544, 0.0
  %1552 = vrot.lane.b32.xlu0 %v1532, 16
  %v1553 = vpop.permute.xlu0 %1552
  %1554 = vrot.lane.b32.xlu0 %v1533, 16
  %v1555 = vpop.permute.xlu0 %1554
  %1556 = vrot.lane.b32.xlu0 %v1534, 16
  %v1557 = vpop.permute.xlu0 %1556
  %1558 = vrot.lane.b32.xlu0 %v1535, 16
  %v1559 = vpop.permute.xlu0 %1558
  %v1560 = vsel %vm800, %v1557, %v1559
  %v1561 = vsel %vm800, %v1555, %v1557
  %v1562 = vsel %vm800, %v1553, %v1555
  %v1563 = vsel %vm800, %v1559, %v1553
  %v1564 = vsel %vm825, %v1563, 0.0
  %v1565 = vsel %vm826, %v1562, 0.0
  %v1566 = vsel %vm827, %v1561, 0.0
  %v1567 = vsel %vm828, %v1560, 0.0
  %1568 = vrot.lane.b32.xlu0 %v1532, 15
  %v1569 = vpop.permute.xlu0 %1568
  %1570 = vrot.lane.b32.xlu0 %v1533, 15
  %v1571 = vpop.permute.xlu0 %1570
  %1572 = vrot.lane.b32.xlu0 %v1534, 15
  %v1573 = vpop.permute.xlu0 %1572
  %1574 = vrot.lane.b32.xlu0 %v1535, 15
  %v1575 = vpop.permute.xlu0 %1574
  %v1576 = vsel %vm841, %v1573, %v1575
  %v1577 = vsel %vm841, %v1571, %v1573
  %v1578 = vsel %vm841, %v1569, %v1571
  %v1579 = vsel %vm841, %v1575, %v1569
  %v1580 = vsel %vm870, %v1579, 0.0
  %v1581 = vsel %vm871, %v1578, 0.0
  %v1582 = vsel %vm872, %v1577, 0.0
  %v1583 = vsel %vm873, %v1576, 0.0
  %1584 = vrot.lane.b32.xlu0 %v1532, 1
  %v1585 = vpop.permute.xlu0 %1584
  %1586 = vrot.lane.b32.xlu0 %v1533, 1
  %v1587 = vpop.permute.xlu0 %1586
  %1588 = vrot.lane.b32.xlu0 %v1534, 1
  %v1589 = vpop.permute.xlu0 %1588
  %1590 = vrot.lane.b32.xlu0 %v1535, 1
  %v1591 = vpop.permute.xlu0 %1590
  %v1592 = vsel %vm886, %v1589, %v1591
  %v1593 = vsel %vm886, %v1587, %v1589
  %v1594 = vsel %vm886, %v1585, %v1587
  %v1595 = vsel %vm886, %v1591, %v1585
  %v1596 = vsel %vm915, %v1595, 0.0
  %v1597 = vsel %vm916, %v1594, 0.0
  %v1598 = vsel %vm917, %v1593, 0.0
  %v1599 = vsel %vm918, %v1592, 0.0
  %1600 = vrot.lane.b32.xlu0 %v1532, 127
  %v1601 = vpop.permute.xlu0 %1600
  %1602 = vrot.lane.b32.xlu0 %v1533, 127
  %v1603 = vpop.permute.xlu0 %1602
  %1604 = vrot.lane.b32.xlu0 %v1534, 127
  %v1605 = vpop.permute.xlu0 %1604
  %1606 = vrot.lane.b32.xlu0 %v1535, 127
  %v1607 = vpop.permute.xlu0 %1606
  %v1608 = vsel %vm931, %v1605, %v1607
  %v1609 = vsel %vm931, %v1603, %v1605
  %v1610 = vsel %vm931, %v1601, %v1603
  %v1611 = vsel %vm931, %v1607, %v1601
  %v1612 = vsel %vm948, %v1610, 0.0
  %v1613 = vsel %vm949, %v1609, 0.0
  %v1614 = vsel %vm950, %v1608, 0.0
  %v1615 = vsel %vm951, %v1611, 0.0
  %1616 = vrot.lane.b32.xlu0 %v1532, 113
  %v1617 = vpop.permute.xlu0 %1616
  %1618 = vrot.lane.b32.xlu0 %v1533, 113
  %v1619 = vpop.permute.xlu0 %1618
  %1620 = vrot.lane.b32.xlu0 %v1534, 113
  %v1621 = vpop.permute.xlu0 %1620
  %1622 = vrot.lane.b32.xlu0 %v1535, 113
  %v1623 = vpop.permute.xlu0 %1622
  %v1624 = vsel %vm964, %v1621, %v1623
  %v1625 = vsel %vm964, %v1619, %v1621
  %v1626 = vsel %vm964, %v1617, %v1619
  %v1627 = vsel %vm964, %v1623, %v1617
  %v1628 = vsel %vm997, %v1626, 0.0
  %v1629 = vsel %vm998, %v1625, 0.0
  %v1630 = vsel %vm999, %v1624, 0.0
  %v1631 = vsel %vm1000, %v1627, 0.0
  %1632 = vrot.lane.b32.xlu0 %v1532, 112
  %v1633 = vpop.permute.xlu0 %1632
  %1634 = vrot.lane.b32.xlu0 %v1533, 112
  %v1635 = vpop.permute.xlu0 %1634
  %1636 = vrot.lane.b32.xlu0 %v1534, 112
  %v1637 = vpop.permute.xlu0 %1636
  %1638 = vrot.lane.b32.xlu0 %v1535, 112
  %v1639 = vpop.permute.xlu0 %1638
  %v1640 = vsel %vm1013, %v1637, %v1639
  %v1641 = vsel %vm1013, %v1635, %v1637
  %v1642 = vsel %vm1013, %v1633, %v1635
  %v1643 = vsel %vm1013, %v1639, %v1633
  %v1644 = vsel %vm1030, %v1642, 0.0
  %v1645 = vsel %vm1031, %v1641, 0.0
  %v1646 = vsel %vm1032, %v1640, 0.0
  %v1647 = vsel %vm1033, %v1643, 0.0
  %1648 = vrot.lane.b32.xlu0 %v1532, 111
  %v1649 = vpop.permute.xlu0 %1648
  %1650 = vrot.lane.b32.xlu0 %v1533, 111
  %v1651 = vpop.permute.xlu0 %1650
  %1652 = vrot.lane.b32.xlu0 %v1534, 111
  %v1653 = vpop.permute.xlu0 %1652
  %1654 = vrot.lane.b32.xlu0 %v1535, 111
  %v1655 = vpop.permute.xlu0 %1654
  %v1656 = vsel %vm1046, %v1653, %v1655
  %v1657 = vsel %vm1046, %v1651, %v1653
  %v1658 = vsel %vm1046, %v1649, %v1651
  %v1659 = vsel %vm1046, %v1655, %v1649
  %v1660 = vsel %vm1063, %v1658, 0.0
  %v1661 = vsel %vm1064, %v1657, 0.0
  %v1662 = vsel %vm1065, %v1656, 0.0
  %v1663 = vsel %vm1066, %v1659, 0.0
  %v1664 = vpack.c.bf16 %v1564, %v1548
  %v1665 = vpack.c.bf16 %v1565, %v1549
  %v1666 = vpack.c.bf16 %v1566, %v1550
  %v1667 = vpack.c.bf16 %v1567, %v1551
  %v1668 = vpack.c.bf16 %v1596, %v1580
  %v1669 = vpack.c.bf16 %v1597, %v1581
  %v1670 = vpack.c.bf16 %v1598, %v1582
  %v1671 = vpack.c.bf16 %v1599, %v1583
  %v1672 = vpack.c.bf16 %v1612, %v1532
  %v1673 = vpack.c.bf16 %v1613, %v1533
  %v1674 = vpack.c.bf16 %v1614, %v1534
  %v1675 = vpack.c.bf16 %v1615, %v1535
  %v1676 = vpack.c.bf16 %v1644, %v1628
  %v1677 = vpack.c.bf16 %v1645, %v1629
  %v1678 = vpack.c.bf16 %v1646, %v1630
  %v1679 = vpack.c.bf16 %v1647, %v1631
  %v1680 = vpack.c.bf16 %v1660, %v1660
  %v1681 = vpack.c.bf16 %v1661, %v1661
  %v1682 = vpack.c.bf16 %v1662, %v1662
  %v1683 = vpack.c.bf16 %v1663, %v1663
  %v1684 = vld [vmem:[%s23] sm:$0xf]
  %v1685 = vld [vmem:[%s25] sm:$0xff]
  %1687 = vset.pattern.permute.xlu0 0
  %1688 = vperm.xlu0 %1687, %v1685
  %v1689 = vpop.permute.xlu0 %1688
  %v1692 = vsel %vm1098, %v1684, 0
  %v1695 = vsel %vm1102, %v1680, 0
  %v1698 = vsel %vm1102, %v1681, 0
  %v1701 = vsel %vm1102, %v1682, 0
  %v1704 = vsel %vm1102, %v1683, 0
  %1706 = vmatprep.subr.bf16.mxu0 0
  %1707 = vmatpush1.bf16.msra.mxu0 0
  %1708 = vmatprep.subr.bf16.mxu0 0
  %1709 = vmatpush1.bf16.msra.mxu0 0
  %1710 = vmatprep.subr.bf16.mxu0 0
  %1711 = vmatpush1.bf16.msra.mxu0 0
  %1712 = vmatprep.subr.bf16.mxu0 %v1698
  %1713 = vmatpush1.bf16.msra.mxu0 %v1695
  %1714 = vmatprep.subr.bf16.mxu0 %v1677
  %1715 = vmatpush1.bf16.msra.mxu0 %v1676
  %1716 = vmatprep.subr.bf16.mxu0 %v1673
  %1717 = vmatpush1.bf16.msra.mxu0 %v1672
  %1718 = vmatprep.subr.bf16.mxu0 %v1669
  %1719 = vmatpush1.bf16.msra.mxu0 %v1668
  %1720 = vmatprep.subr.bf16.mxu0 %v1665
  %1721 = vmatpush1.bf16.msra.mxu0 %v1664
  %1722 = vmatprep.subr.bf16.mxu0 0
  %1723 = vmatpush2.bf16.msra.mxu0 0
  %1724 = vmatprep.subr.bf16.mxu0 0
  %1725 = vmatpush2.bf16.msra.mxu0 0
  %1726 = vmatprep.subr.bf16.mxu0 0
  %1727 = vmatpush2.bf16.msra.mxu0 0
  %1728 = vmatprep.subr.bf16.mxu0 0
  %1729 = vmatpush2.bf16.msra.mxu0 0
  %1730 = vmatprep.subr.bf16.mxu0 0
  %1731 = vmatpush2.bf16.msra.mxu0 0
  %1732 = vmatprep.subr.bf16.mxu0 0
  %1733 = vmatpush2.bf16.msra.mxu0 0
  %1734 = vmatprep.subr.bf16.mxu0 0
  %1735 = vmatpush2.bf16.msra.mxu0 0
  %1736 = vmatprep.subr.bf16.mxu0 0
  %1737 = vmatpush2.bf16.msra.mxu0 0
  %1738 = vmatprep.mubr.bf16.mxu0 0
  %1739 = vmatmul.mubr.bf16.gmra.mxu0 %v1692
  %v1740 = vpop.f32.mrf.mxu0
  %v1741 = vadd.f32 %v1689, %v1740
  %v1742 = vpop.f32.mrf.mxu0
  %v1743 = vadd.f32 %v1689, %v1742
  %v1744 = vpop.f32.mrf.mxu0
  %v1745 = vpop.f32.mrf.mxu0
  %1746 = vdwg.mxu0
  %1747 = vmatprep.subr.bf16.mxu0 0
  %1748 = vmatpush1.bf16.msra.mxu0 0
  %1749 = vmatprep.subr.bf16.mxu0 0
  %1750 = vmatpush1.bf16.msra.mxu0 0
  %1751 = vmatprep.subr.bf16.mxu0 0
  %1752 = vmatpush1.bf16.msra.mxu0 0
  %1753 = vmatprep.subr.bf16.mxu0 %v1704
  %1754 = vmatpush1.bf16.msra.mxu0 %v1701
  %1755 = vmatprep.subr.bf16.mxu0 %v1679
  %1756 = vmatpush1.bf16.msra.mxu0 %v1678
  %1757 = vmatprep.subr.bf16.mxu0 %v1675
  %1758 = vmatpush1.bf16.msra.mxu0 %v1674
  %1759 = vmatprep.subr.bf16.mxu0 %v1671
  %1760 = vmatpush1.bf16.msra.mxu0 %v1670
  %1761 = vmatprep.subr.bf16.mxu0 %v1667
  %1762 = vmatpush1.bf16.msra.mxu0 %v1666
  %1763 = vmatprep.subr.bf16.mxu0 0
  %1764 = vmatpush2.bf16.msra.mxu0 0
  %1765 = vmatprep.subr.bf16.mxu0 0
  %1766 = vmatpush2.bf16.msra.mxu0 0
  %1767 = vmatprep.subr.bf16.mxu0 0
  %1768 = vmatpush2.bf16.msra.mxu0 0
  %1769 = vmatprep.subr.bf16.mxu0 0
  %1770 = vmatpush2.bf16.msra.mxu0 0
  %1771 = vmatprep.subr.bf16.mxu0 0
  %1772 = vmatpush2.bf16.msra.mxu0 0
  %1773 = vmatprep.subr.bf16.mxu0 0
  %1774 = vmatpush2.bf16.msra.mxu0 0
  %1775 = vmatprep.subr.bf16.mxu0 0
  %1776 = vmatpush2.bf16.msra.mxu0 0
  %1777 = vmatprep.subr.bf16.mxu0 0
  %1778 = vmatpush2.bf16.msra.mxu0 0
  %1779 = vmatprep.mubr.bf16.mxu0 0
  %1780 = vmatmul.mubr.bf16.gmra.mxu0 %v1692
  %v1781 = vpop.f32.mrf.mxu0
  %v1782 = vadd.f32 %v1689, %v1781
  %v1783 = vpop.f32.mrf.mxu0
  %v1784 = vadd.f32 %v1689, %v1783
  %v1785 = vpop.f32.mrf.mxu0
  %v1786 = vpop.f32.mrf.mxu0
  %1787 = vdwg.mxu0
  %v1788 = vmax.f32 %v1741, 0.0
  %v1789 = vmax.f32 %v1743, 0.0
  %v1790 = vmax.f32 %v1782, 0.0
  %v1791 = vmax.f32 %v1784, 0.0
  %v1792 = vpack.c.bf16 %v1788, %v1788
  %v1793 = vpack.c.bf16 %v1789, %v1789
  %v1794 = vpack.c.bf16 %v1790, %v1790
  %v1795 = vpack.c.bf16 %v1791, %v1791
  %v1796 = vld [vmem:[%s27] sm:$0xf]
  %v1797 = vld [vmem:[%s27 + $0x4] sm:$0xf]
  %v1798 = vld [vmem:[%s27 + $0x8] sm:$0xf]
  %v1799 = vld [vmem:[%s27 + $0xc] sm:$0xf]
  %v1800 = vld [vmem:[%s29] sm:$0xff]
  %v1801 = vld [vmem:[%s29 + $0x8] sm:$0xff]
  %v1802 = vld [vmem:[%s29 + $0x10] sm:$0xff]
  %v1803 = vld [vmem:[%s29 + $0x18] sm:$0xff]
  %1805 = vset.pattern.permute.xlu0 0
  %1806 = vperm.xlu0 %1805, %v1800
  %v1807 = vpop.permute.xlu0 %1806
  %1810 = vset.pattern.permute.xlu0 0
  %1811 = vperm.xlu0 %1810, %v1801
  %v1812 = vpop.permute.xlu0 %1811
  %1815 = vset.pattern.permute.xlu0 0
  %1816 = vperm.xlu0 %1815, %v1802
  %v1817 = vpop.permute.xlu0 %1816
  %1820 = vset.pattern.permute.xlu0 0
  %1821 = vperm.xlu0 %1820, %v1803
  %v1822 = vpop.permute.xlu0 %1821
  %v1828 = vunpack.c.l.b16 %v1796
  %v1829 = vunpack.c.l.b16 %v1797
  %v1830 = vunpack.c.l.b16 %v1798
  %v1831 = vunpack.c.l.b16 %v1799
  %v1832 = vpack.c.b16 %v1829, %v1828
  %v1833 = vpack.c.b16 %v1831, %v1830
  %v1835 = vsel %vm1243, %v1832, 0
  %v1838 = vsel %vm1243, %v1833, 0
  %v1841 = vsel %vm1102, %v1792, 0
  %v1844 = vsel %vm1102, %v1793, 0
  %v1847 = vsel %vm1102, %v1794, 0
  %v1850 = vsel %vm1102, %v1795, 0
  %1852 = vmatprep.subr.bf16.mxu0 0
  %1853 = vmatpush1.bf16.msra.mxu0 0
  %1854 = vmatprep.subr.bf16.mxu0 0
  %1855 = vmatpush1.bf16.msra.mxu0 0
  %1856 = vmatprep.subr.bf16.mxu0 0
  %1857 = vmatpush1.bf16.msra.mxu0 0
  %1858 = vmatprep.subr.bf16.mxu0 0
  %1859 = vmatpush1.bf16.msra.mxu0 0
  %1860 = vmatprep.subr.bf16.mxu0 0
  %1861 = vmatpush1.bf16.msra.mxu0 0
  %1862 = vmatprep.subr.bf16.mxu0 0
  %1863 = vmatpush1.bf16.msra.mxu0 0
  %1864 = vmatprep.subr.bf16.mxu0 0
  %1865 = vmatpush1.bf16.msra.mxu0 0
  %1866 = vmatprep.subr.bf16.mxu0 %v1844
  %1867 = vmatpush1.bf16.msra.mxu0 %v1841
  %1868 = vmatprep.subr.bf16.mxu0 0
  %1869 = vmatpush2.bf16.msra.mxu0 0
  %1870 = vmatprep.subr.bf16.mxu0 0
  %1871 = vmatpush2.bf16.msra.mxu0 0
  %1872 = vmatprep.subr.bf16.mxu0 0
  %1873 = vmatpush2.bf16.msra.mxu0 0
  %1874 = vmatprep.subr.bf16.mxu0 0
  %1875 = vmatpush2.bf16.msra.mxu0 0
  %1876 = vmatprep.subr.bf16.mxu0 0
  %1877 = vmatpush2.bf16.msra.mxu0 0
  %1878 = vmatprep.subr.bf16.mxu0 0
  %1879 = vmatpush2.bf16.msra.mxu0 0
  %1880 = vmatprep.subr.bf16.mxu0 0
  %1881 = vmatpush2.bf16.msra.mxu0 0
  %1882 = vmatprep.subr.bf16.mxu0 0
  %1883 = vmatpush2.bf16.msra.mxu0 0
  %1884 = vmatprep.mubr.bf16.mxu0 0
  %1885 = vmatmul.mubr.bf16.gmra.mxu0 %v1835
  %v1886 = vpop.f32.mrf.mxu0
  %v1887 = vadd.f32 %v1807, %v1886
  %v1888 = vpop.f32.mrf.mxu0
  %v1889 = vadd.f32 %v1807, %v1888
  %v1890 = vpop.f32.mrf.mxu0
  %v1891 = vadd.f32 %v1812, %v1890
  %v1892 = vpop.f32.mrf.mxu0
  %v1893 = vadd.f32 %v1812, %v1892
  %1894 = vmatprep.mubr.bf16.mxu0 0
  %1895 = vmatmul.mubr.bf16.gmra.mxu0 %v1838
  %v1896 = vpop.f32.mrf.mxu0
  %v1897 = vadd.f32 %v1817, %v1896
  %v1898 = vpop.f32.mrf.mxu0
  %v1899 = vadd.f32 %v1817, %v1898
  %v1900 = vpop.f32.mrf.mxu0
  %v1901 = vadd.f32 %v1822, %v1900
  %v1902 = vpop.f32.mrf.mxu0
  %v1903 = vadd.f32 %v1822, %v1902
  %1904 = vdwg.mxu0
  %1905 = vmatprep.subr.bf16.mxu0 0
  %1906 = vmatpush1.bf16.msra.mxu0 0
  %1907 = vmatprep.subr.bf16.mxu0 0
  %1908 = vmatpush1.bf16.msra.mxu0 0
  %1909 = vmatprep.subr.bf16.mxu0 0
  %1910 = vmatpush1.bf16.msra.mxu0 0
  %1911 = vmatprep.subr.bf16.mxu0 0
  %1912 = vmatpush1.bf16.msra.mxu0 0
  %1913 = vmatprep.subr.bf16.mxu0 0
  %1914 = vmatpush1.bf16.msra.mxu0 0
  %1915 = vmatprep.subr.bf16.mxu0 0
  %1916 = vmatpush1.bf16.msra.mxu0 0
  %1917 = vmatprep.subr.bf16.mxu0 0
  %1918 = vmatpush1.bf16.msra.mxu0 0
  %1919 = vmatprep.subr.bf16.mxu0 %v1850
  %1920 = vmatpush1.bf16.msra.mxu0 %v1847
  %1921 = vmatprep.subr.bf16.mxu0 0
  %1922 = vmatpush2.bf16.msra.mxu0 0
  %1923 = vmatprep.subr.bf16.mxu0 0
  %1924 = vmatpush2.bf16.msra.mxu0 0
  %1925 = vmatprep.subr.bf16.mxu0 0
  %1926 = vmatpush2.bf16.msra.mxu0 0
  %1927 = vmatprep.subr.bf16.mxu0 0
  %1928 = vmatpush2.bf16.msra.mxu0 0
  %1929 = vmatprep.subr.bf16.mxu0 0
  %1930 = vmatpush2.bf16.msra.mxu0 0
  %1931 = vmatprep.subr.bf16.mxu0 0
  %1932 = vmatpush2.bf16.msra.mxu0 0
  %1933 = vmatprep.subr.bf16.mxu0 0
  %1934 = vmatpush2.bf16.msra.mxu0 0
  %1935 = vmatprep.subr.bf16.mxu0 0
  %1936 = vmatpush2.bf16.msra.mxu0 0
  %1937 = vmatprep.mubr.bf16.mxu0 0
  %1938 = vmatmul.mubr.bf16.gmra.mxu0 %v1835
  %v1939 = vpop.f32.mrf.mxu0
  %v1940 = vadd.f32 %v1807, %v1939
  %v1941 = vpop.f32.mrf.mxu0
  %v1942 = vadd.f32 %v1807, %v1941
  %v1943 = vpop.f32.mrf.mxu0
  %v1944 = vadd.f32 %v1812, %v1943
  %v1945 = vpop.f32.mrf.mxu0
  %v1946 = vadd.f32 %v1812, %v1945
  %1947 = vmatprep.mubr.bf16.mxu0 0
  %1948 = vmatmul.mubr.bf16.gmra.mxu0 %v1838
  %v1949 = vpop.f32.mrf.mxu0
  %v1950 = vadd.f32 %v1817, %v1949
  %v1951 = vpop.f32.mrf.mxu0
  %v1952 = vadd.f32 %v1817, %v1951
  %v1953 = vpop.f32.mrf.mxu0
  %v1954 = vadd.f32 %v1822, %v1953
  %v1955 = vpop.f32.mrf.mxu0
  %v1956 = vadd.f32 %v1822, %v1955
  %1957 = vdwg.mxu0
  %v1958 = vmax.f32 %v1887, 0.0
  %v1959 = vmax.f32 %v1889, 0.0
  %v1960 = vmax.f32 %v1940, 0.0
  %v1961 = vmax.f32 %v1942, 0.0
  %v1962 = vmax.f32 %v1891, 0.0
  %v1963 = vmax.f32 %v1893, 0.0
  %v1964 = vmax.f32 %v1944, 0.0
  %v1965 = vmax.f32 %v1946, 0.0
  %v1966 = vmax.f32 %v1897, 0.0
  %v1967 = vmax.f32 %v1899, 0.0
  %v1968 = vmax.f32 %v1950, 0.0
  %v1969 = vmax.f32 %v1952, 0.0
  %v1970 = vmax.f32 %v1901, 0.0
  %v1971 = vmax.f32 %v1903, 0.0
  %v1972 = vmax.f32 %v1954, 0.0
  %v1973 = vmax.f32 %v1956, 0.0
  %v1974 = vunpack.c.l.bf16 %v1432
  %v1975 = vunpack.c.l.bf16 %v1433
  %v1976 = vunpack.c.l.bf16 %v1434
  %v1977 = vunpack.c.l.bf16 %v1435
  %v1978 = vunpack.c.h.bf16 %v1432
  %v1979 = vunpack.c.h.bf16 %v1433
  %v1980 = vunpack.c.h.bf16 %v1434
  %v1981 = vunpack.c.h.bf16 %v1435
  %v1982 = vunpack.c.l.bf16 %v1436
  %v1983 = vunpack.c.l.bf16 %v1437
  %v1984 = vunpack.c.l.bf16 %v1438
  %v1985 = vunpack.c.l.bf16 %v1439
  %v1986 = vunpack.c.h.bf16 %v1436
  %v1987 = vunpack.c.h.bf16 %v1437
  %v1988 = vunpack.c.h.bf16 %v1438
  %v1989 = vunpack.c.h.bf16 %v1439
  %v1990 = vadd.f32 %v1958, %v1974
  %v1991 = vadd.f32 %v1959, %v1975
  %v1992 = vadd.f32 %v1960, %v1976
  %v1993 = vadd.f32 %v1961, %v1977
  %v1994 = vadd.f32 %v1962, %v1978
  %v1995 = vadd.f32 %v1963, %v1979
  %v1996 = vadd.f32 %v1964, %v1980
  %v1997 = vadd.f32 %v1965, %v1981
  %v1998 = vadd.f32 %v1966, %v1982
  %v1999 = vadd.f32 %v1967, %v1983
  %v2000 = vadd.f32 %v1968, %v1984
  %v2001 = vadd.f32 %v1969, %v1985
  %v2002 = vadd.f32 %v1970, %v1986
  %v2003 = vadd.f32 %v1971, %v1987
  %v2004 = vadd.f32 %v1972, %v1988
  %v2005 = vadd.f32 %v1973, %v1989
  %v2006 = vmax.f32 %v1990, 0.0
  %v2007 = vmax.f32 %v1991, 0.0
  %v2008 = vmax.f32 %v1992, 0.0
  %v2009 = vmax.f32 %v1993, 0.0
  %v2010 = vmax.f32 %v1994, 0.0
  %v2011 = vmax.f32 %v1995, 0.0
  %v2012 = vmax.f32 %v1996, 0.0
  %v2013 = vmax.f32 %v1997, 0.0
  %v2014 = vmax.f32 %v1998, 0.0
  %v2015 = vmax.f32 %v1999, 0.0
  %v2016 = vmax.f32 %v2000, 0.0
  %v2017 = vmax.f32 %v2001, 0.0
  %v2018 = vmax.f32 %v2002, 0.0
  %v2019 = vmax.f32 %v2003, 0.0
  %v2020 = vmax.f32 %v2004, 0.0
  %v2021 = vmax.f32 %v2005, 0.0
  %v2022 = vpack.c.bf16 %v2010, %v2006
  %v2023 = vpack.c.bf16 %v2011, %v2007
  %v2024 = vpack.c.bf16 %v2012, %v2008
  %v2025 = vpack.c.bf16 %v2013, %v2009
  %v2026 = vpack.c.bf16 %v2018, %v2014
  %v2027 = vpack.c.bf16 %v2019, %v2015
  %v2028 = vpack.c.bf16 %v2020, %v2016
  %v2029 = vpack.c.bf16 %v2021, %v2017
  %v2030 = vld [vmem:[%s31] sm:$0xf]
  %v2031 = vld [vmem:[%s31 + $0x4] sm:$0xf]
  %v2032 = vld [vmem:[%s33] sm:$0xff]
  %v2033 = vld [vmem:[%s33 + $0x8] sm:$0xff]
  %2035 = vset.pattern.permute.xlu0 0
  %2036 = vperm.xlu0 %2035, %v2032
  %v2037 = vpop.permute.xlu0 %2036
  %2040 = vset.pattern.permute.xlu0 0
  %2041 = vperm.xlu0 %2040, %v2033
  %v2042 = vpop.permute.xlu0 %2041
  %v2046 = vunpack.c.l.b16 %v2030
  %v2047 = vunpack.c.l.b16 %v2031
  %v2048 = vpack.c.b16 %v2047, %v2046
  %v2050 = vsel %vm481, %v2048, 0
  %2052 = vmatprep.subr.bf16.mxu0 0
  %2053 = vmatpush1.bf16.msra.mxu0 0
  %2054 = vmatprep.subr.bf16.mxu0 0
  %2055 = vmatpush1.bf16.msra.mxu0 0
  %2056 = vmatprep.subr.bf16.mxu0 0
  %2057 = vmatpush1.bf16.msra.mxu0 0
  %2058 = vmatprep.subr.bf16.mxu0 0
  %2059 = vmatpush1.bf16.msra.mxu0 0
  %2060 = vmatprep.subr.bf16.mxu0 0
  %2061 = vmatpush1.bf16.msra.mxu0 0
  %2062 = vmatprep.subr.bf16.mxu0 0
  %2063 = vmatpush1.bf16.msra.mxu0 0
  %2064 = vmatprep.subr.bf16.mxu0 %v2027
  %2065 = vmatpush1.bf16.msra.mxu0 %v2026
  %2066 = vmatprep.subr.bf16.mxu0 %v2023
  %2067 = vmatpush1.bf16.msra.mxu0 %v2022
  %2068 = vmatprep.subr.bf16.mxu0 0
  %2069 = vmatpush2.bf16.msra.mxu0 0
  %2070 = vmatprep.subr.bf16.mxu0 0
  %2071 = vmatpush2.bf16.msra.mxu0 0
  %2072 = vmatprep.subr.bf16.mxu0 0
  %2073 = vmatpush2.bf16.msra.mxu0 0
  %2074 = vmatprep.subr.bf16.mxu0 0
  %2075 = vmatpush2.bf16.msra.mxu0 0
  %2076 = vmatprep.subr.bf16.mxu0 0
  %2077 = vmatpush2.bf16.msra.mxu0 0
  %2078 = vmatprep.subr.bf16.mxu0 0
  %2079 = vmatpush2.bf16.msra.mxu0 0
  %2080 = vmatprep.subr.bf16.mxu0 0
  %2081 = vmatpush2.bf16.msra.mxu0 0
  %2082 = vmatprep.subr.bf16.mxu0 0
  %2083 = vmatpush2.bf16.msra.mxu0 0
  %2084 = vmatprep.mubr.bf16.mxu0 0
  %2085 = vmatmul.mubr.bf16.gmra.mxu0 %v2050
  %v2086 = vpop.f32.mrf.mxu0
  %v2087 = vadd.f32 %v2037, %v2086
  %v2088 = vpop.f32.mrf.mxu0
  %v2089 = vadd.f32 %v2037, %v2088
  %v2090 = vpop.f32.mrf.mxu0
  %v2091 = vadd.f32 %v2042, %v2090
  %v2092 = vpop.f32.mrf.mxu0
  %v2093 = vadd.f32 %v2042, %v2092
  %2094 = vdwg.mxu0
  %2095 = vmatprep.subr.bf16.mxu0 0
  %2096 = vmatpush1.bf16.msra.mxu0 0
  %2097 = vmatprep.subr.bf16.mxu0 0
  %2098 = vmatpush1.bf16.msra.mxu0 0
  %2099 = vmatprep.subr.bf16.mxu0 0
  %2100 = vmatpush1.bf16.msra.mxu0 0
  %2101 = vmatprep.subr.bf16.mxu0 0
  %2102 = vmatpush1.bf16.msra.mxu0 0
  %2103 = vmatprep.subr.bf16.mxu0 0
  %2104 = vmatpush1.bf16.msra.mxu0 0
  %2105 = vmatprep.subr.bf16.mxu0 0
  %2106 = vmatpush1.bf16.msra.mxu0 0
  %2107 = vmatprep.subr.bf16.mxu0 %v2029
  %2108 = vmatpush1.bf16.msra.mxu0 %v2028
  %2109 = vmatprep.subr.bf16.mxu0 %v2025
  %2110 = vmatpush1.bf16.msra.mxu0 %v2024
  %2111 = vmatprep.subr.bf16.mxu0 0
  %2112 = vmatpush2.bf16.msra.mxu0 0
  %2113 = vmatprep.subr.bf16.mxu0 0
  %2114 = vmatpush2.bf16.msra.mxu0 0
  %2115 = vmatprep.subr.bf16.mxu0 0
  %2116 = vmatpush2.bf16.msra.mxu0 0
  %2117 = vmatprep.subr.bf16.mxu0 0
  %2118 = vmatpush2.bf16.msra.mxu0 0
  %2119 = vmatprep.subr.bf16.mxu0 0
  %2120 = vmatpush2.bf16.msra.mxu0 0
  %2121 = vmatprep.subr.bf16.mxu0 0
  %2122 = vmatpush2.bf16.msra.mxu0 0
  %2123 = vmatprep.subr.bf16.mxu0 0
  %2124 = vmatpush2.bf16.msra.mxu0 0
  %2125 = vmatprep.subr.bf16.mxu0 0
  %2126 = vmatpush2.bf16.msra.mxu0 0
  %2127 = vmatprep.mubr.bf16.mxu0 0
  %2128 = vmatmul.mubr.bf16.gmra.mxu0 %v2050
  %v2129 = vpop.f32.mrf.mxu0
  %v2130 = vadd.f32 %v2037, %v2129
  %v2131 = vpop.f32.mrf.mxu0
  %v2132 = vadd.f32 %v2037, %v2131
  %v2133 = vpop.f32.mrf.mxu0
  %v2134 = vadd.f32 %v2042, %v2133
  %v2135 = vpop.f32.mrf.mxu0
  %v2136 = vadd.f32 %v2042, %v2135
  %2137 = vdwg.mxu0
  %v2138 = vmax.f32 %v2087, 0.0
  %v2139 = vmax.f32 %v2089, 0.0
  %v2140 = vmax.f32 %v2130, 0.0
  %v2141 = vmax.f32 %v2132, 0.0
  %v2142 = vmax.f32 %v2091, 0.0
  %v2143 = vmax.f32 %v2093, 0.0
  %v2144 = vmax.f32 %v2134, 0.0
  %v2145 = vmax.f32 %v2136, 0.0
  %2146 = vrot.lane.b32.xlu0 %v2138, 17
  %v2147 = vpop.permute.xlu0 %2146
  %2148 = vrot.lane.b32.xlu0 %v2142, 17
  %v2149 = vpop.permute.xlu0 %2148
  %2150 = vrot.lane.b32.xlu0 %v2139, 17
  %v2151 = vpop.permute.xlu0 %2150
  %2152 = vrot.lane.b32.xlu0 %v2143, 17
  %v2153 = vpop.permute.xlu0 %2152
  %2154 = vrot.lane.b32.xlu0 %v2140, 17
  %v2155 = vpop.permute.xlu0 %2154
  %2156 = vrot.lane.b32.xlu0 %v2144, 17
  %v2157 = vpop.permute.xlu0 %2156
  %2158 = vrot.lane.b32.xlu0 %v2141, 17
  %v2159 = vpop.permute.xlu0 %2158
  %2160 = vrot.lane.b32.xlu0 %v2145, 17
  %v2161 = vpop.permute.xlu0 %2160
  %v2162 = vsel %vm739, %v2155, %v2159
  %v2163 = vsel %vm739, %v2157, %v2161
  %v2164 = vsel %vm739, %v2151, %v2155
  %v2165 = vsel %vm739, %v2153, %v2157
  %v2166 = vsel %vm739, %v2147, %v2151
  %v2167 = vsel %vm739, %v2149, %v2153
  %v2168 = vsel %vm739, %v2159, %v2147
  %v2169 = vsel %vm739, %v2161, %v2149
  %v2170 = vsel %vm784, %v2168, 0.0
  %v2171 = vsel %vm785, %v2166, 0.0
  %v2172 = vsel %vm786, %v2164, 0.0
  %v2173 = vsel %vm787, %v2162, 0.0
  %v2174 = vsel %vm784, %v2169, 0.0
  %v2175 = vsel %vm785, %v2167, 0.0
  %v2176 = vsel %vm786, %v2165, 0.0
  %v2177 = vsel %vm787, %v2163, 0.0
  %2178 = vrot.lane.b32.xlu0 %v2138, 16
  %v2179 = vpop.permute.xlu0 %2178
  %2180 = vrot.lane.b32.xlu0 %v2142, 16
  %v2181 = vpop.permute.xlu0 %2180
  %2182 = vrot.lane.b32.xlu0 %v2139, 16
  %v2183 = vpop.permute.xlu0 %2182
  %2184 = vrot.lane.b32.xlu0 %v2143, 16
  %v2185 = vpop.permute.xlu0 %2184
  %2186 = vrot.lane.b32.xlu0 %v2140, 16
  %v2187 = vpop.permute.xlu0 %2186
  %2188 = vrot.lane.b32.xlu0 %v2144, 16
  %v2189 = vpop.permute.xlu0 %2188
  %2190 = vrot.lane.b32.xlu0 %v2141, 16
  %v2191 = vpop.permute.xlu0 %2190
  %2192 = vrot.lane.b32.xlu0 %v2145, 16
  %v2193 = vpop.permute.xlu0 %2192
  %v2194 = vsel %vm800, %v2187, %v2191
  %v2195 = vsel %vm800, %v2189, %v2193
  %v2196 = vsel %vm800, %v2183, %v2187
  %v2197 = vsel %vm800, %v2185, %v2189
  %v2198 = vsel %vm800, %v2179, %v2183
  %v2199 = vsel %vm800, %v2181, %v2185
  %v2200 = vsel %vm800, %v2191, %v2179
  %v2201 = vsel %vm800, %v2193, %v2181
  %v2202 = vsel %vm825, %v2200, 0.0
  %v2203 = vsel %vm826, %v2198, 0.0
  %v2204 = vsel %vm827, %v2196, 0.0
  %v2205 = vsel %vm828, %v2194, 0.0
  %v2206 = vsel %vm825, %v2201, 0.0
  %v2207 = vsel %vm826, %v2199, 0.0
  %v2208 = vsel %vm827, %v2197, 0.0
  %v2209 = vsel %vm828, %v2195, 0.0
  %2210 = vrot.lane.b32.xlu0 %v2138, 15
  %v2211 = vpop.permute.xlu0 %2210
  %2212 = vrot.lane.b32.xlu0 %v2142, 15
  %v2213 = vpop.permute.xlu0 %2212
  %2214 = vrot.lane.b32.xlu0 %v2139, 15
  %v2215 = vpop.permute.xlu0 %2214
  %2216 = vrot.lane.b32.xlu0 %v2143, 15
  %v2217 = vpop.permute.xlu0 %2216
  %2218 = vrot.lane.b32.xlu0 %v2140, 15
  %v2219 = vpop.permute.xlu0 %2218
  %2220 = vrot.lane.b32.xlu0 %v2144, 15
  %v2221 = vpop.permute.xlu0 %2220
  %2222 = vrot.lane.b32.xlu0 %v2141, 15
  %v2223 = vpop.permute.xlu0 %2222
  %2224 = vrot.lane.b32.xlu0 %v2145, 15
  %v2225 = vpop.permute.xlu0 %2224
  %v2226 = vsel %vm841, %v2219, %v2223
  %v2227 = vsel %vm841, %v2221, %v2225
  %v2228 = vsel %vm841, %v2215, %v2219
  %v2229 = vsel %vm841, %v2217, %v2221
  %v2230 = vsel %vm841, %v2211, %v2215
  %v2231 = vsel %vm841, %v2213, %v2217
  %v2232 = vsel %vm841, %v2223, %v2211
  %v2233 = vsel %vm841, %v2225, %v2213
  %v2234 = vsel %vm870, %v2232, 0.0
  %v2235 = vsel %vm871, %v2230, 0.0
  %v2236 = vsel %vm872, %v2228, 0.0
  %v2237 = vsel %vm873, %v2226, 0.0
  %v2238 = vsel %vm870, %v2233, 0.0
  %v2239 = vsel %vm871, %v2231, 0.0
  %v2240 = vsel %vm872, %v2229, 0.0
  %v2241 = vsel %vm873, %v2227, 0.0
  %2242 = vrot.lane.b32.xlu0 %v2138, 1
  %v2243 = vpop.permute.xlu0 %2242
  %2244 = vrot.lane.b32.xlu0 %v2142, 1
  %v2245 = vpop.permute.xlu0 %2244
  %2246 = vrot.lane.b32.xlu0 %v2139, 1
  %v2247 = vpop.permute.xlu0 %2246
  %2248 = vrot.lane.b32.xlu0 %v2143, 1
  %v2249 = vpop.permute.xlu0 %2248
  %2250 = vrot.lane.b32.xlu0 %v2140, 1
  %v2251 = vpop.permute.xlu0 %2250
  %2252 = vrot.lane.b32.xlu0 %v2144, 1
  %v2253 = vpop.permute.xlu0 %2252
  %2254 = vrot.lane.b32.xlu0 %v2141, 1
  %v2255 = vpop.permute.xlu0 %2254
  %2256 = vrot.lane.b32.xlu0 %v2145, 1
  %v2257 = vpop.permute.xlu0 %2256
  %v2258 = vsel %vm886, %v2251, %v2255
  %v2259 = vsel %vm886, %v2253, %v2257
  %v2260 = vsel %vm886, %v2247, %v2251
  %v2261 = vsel %vm886, %v2249, %v2253
  %v2262 = vsel %vm886, %v2243, %v2247
  %v2263 = vsel %vm886, %v2245, %v2249
  %v2264 = vsel %vm886, %v2255, %v2243
  %v2265 = vsel %vm886, %v2257, %v2245
  %v2266 = vsel %vm915, %v2264, 0.0
  %v2267 = vsel %vm916, %v2262, 0.0
  %v2268 = vsel %vm917, %v2260, 0.0
  %v2269 = vsel %vm918, %v2258, 0.0
  %v2270 = vsel %vm915, %v2265, 0.0
  %v2271 = vsel %vm916, %v2263, 0.0
  %v2272 = vsel %vm917, %v2261, 0.0
  %v2273 = vsel %vm918, %v2259, 0.0
  %2274 = vrot.lane.b32.xlu0 %v2138, 127
  %v2275 = vpop.permute.xlu0 %2274
  %2276 = vrot.lane.b32.xlu0 %v2142, 127
  %v2277 = vpop.permute.xlu0 %2276
  %2278 = vrot.lane.b32.xlu0 %v2139, 127
  %v2279 = vpop.permute.xlu0 %2278
  %2280 = vrot.lane.b32.xlu0 %v2143, 127
  %v2281 = vpop.permute.xlu0 %2280
  %2282 = vrot.lane.b32.xlu0 %v2140, 127
  %v2283 = vpop.permute.xlu0 %2282
  %2284 = vrot.lane.b32.xlu0 %v2144, 127
  %v2285 = vpop.permute.xlu0 %2284
  %2286 = vrot.lane.b32.xlu0 %v2141, 127
  %v2287 = vpop.permute.xlu0 %2286
  %2288 = vrot.lane.b32.xlu0 %v2145, 127
  %v2289 = vpop.permute.xlu0 %2288
  %v2290 = vsel %vm931, %v2283, %v2287
  %v2291 = vsel %vm931, %v2285, %v2289
  %v2292 = vsel %vm931, %v2279, %v2283
  %v2293 = vsel %vm931, %v2281, %v2285
  %v2294 = vsel %vm931, %v2275, %v2279
  %v2295 = vsel %vm931, %v2277, %v2281
  %v2296 = vsel %vm931, %v2287, %v2275
  %v2297 = vsel %vm931, %v2289, %v2277
  %v2298 = vsel %vm948, %v2294, 0.0
  %v2299 = vsel %vm949, %v2292, 0.0
  %v2300 = vsel %vm950, %v2290, 0.0
  %v2301 = vsel %vm951, %v2296, 0.0
  %v2302 = vsel %vm948, %v2295, 0.0
  %v2303 = vsel %vm949, %v2293, 0.0
  %v2304 = vsel %vm950, %v2291, 0.0
  %v2305 = vsel %vm951, %v2297, 0.0
  %2306 = vrot.lane.b32.xlu0 %v2138, 113
  %v2307 = vpop.permute.xlu0 %2306
  %2308 = vrot.lane.b32.xlu0 %v2142, 113
  %v2309 = vpop.permute.xlu0 %2308
  %2310 = vrot.lane.b32.xlu0 %v2139, 113
  %v2311 = vpop.permute.xlu0 %2310
  %2312 = vrot.lane.b32.xlu0 %v2143, 113
  %v2313 = vpop.permute.xlu0 %2312
  %2314 = vrot.lane.b32.xlu0 %v2140, 113
  %v2315 = vpop.permute.xlu0 %2314
  %2316 = vrot.lane.b32.xlu0 %v2144, 113
  %v2317 = vpop.permute.xlu0 %2316
  %2318 = vrot.lane.b32.xlu0 %v2141, 113
  %v2319 = vpop.permute.xlu0 %2318
  %2320 = vrot.lane.b32.xlu0 %v2145, 113
  %v2321 = vpop.permute.xlu0 %2320
  %v2322 = vsel %vm964, %v2315, %v2319
  %v2323 = vsel %vm964, %v2317, %v2321
  %v2324 = vsel %vm964, %v2311, %v2315
  %v2325 = vsel %vm964, %v2313, %v2317
  %v2326 = vsel %vm964, %v2307, %v2311
  %v2327 = vsel %vm964, %v2309, %v2313
  %v2328 = vsel %vm964, %v2319, %v2307
  %v2329 = vsel %vm964, %v2321, %v2309
  %v2330 = vsel %vm997, %v2326, 0.0
  %v2331 = vsel %vm998, %v2324, 0.0
  %v2332 = vsel %vm999, %v2322, 0.0
  %v2333 = vsel %vm1000, %v2328, 0.0
  %v2334 = vsel %vm997, %v2327, 0.0
  %v2335 = vsel %vm998, %v2325, 0.0
  %v2336 = vsel %vm999, %v2323, 0.0
  %v2337 = vsel %vm1000, %v2329, 0.0
  %2338 = vrot.lane.b32.xlu0 %v2138, 112
  %v2339 = vpop.permute.xlu0 %2338
  %2340 = vrot.lane.b32.xlu0 %v2142, 112
  %v2341 = vpop.permute.xlu0 %2340
  %2342 = vrot.lane.b32.xlu0 %v2139, 112
  %v2343 = vpop.permute.xlu0 %2342
  %2344 = vrot.lane.b32.xlu0 %v2143, 112
  %v2345 = vpop.permute.xlu0 %2344
  %2346 = vrot.lane.b32.xlu0 %v2140, 112
  %v2347 = vpop.permute.xlu0 %2346
  %2348 = vrot.lane.b32.xlu0 %v2144, 112
  %v2349 = vpop.permute.xlu0 %2348
  %2350 = vrot.lane.b32.xlu0 %v2141, 112
  %v2351 = vpop.permute.xlu0 %2350
  %2352 = vrot.lane.b32.xlu0 %v2145, 112
  %v2353 = vpop.permute.xlu0 %2352
  %v2354 = vsel %vm1013, %v2347, %v2351
  %v2355 = vsel %vm1013, %v2349, %v2353
  %v2356 = vsel %vm1013, %v2343, %v2347
  %v2357 = vsel %vm1013, %v2345, %v2349
  %v2358 = vsel %vm1013, %v2339, %v2343
  %v2359 = vsel %vm1013, %v2341, %v2345
  %v2360 = vsel %vm1013, %v2351, %v2339
  %v2361 = vsel %vm1013, %v2353, %v2341
  %v2362 = vsel %vm1030, %v2358, 0.0
  %v2363 = vsel %vm1031, %v2356, 0.0
  %v2364 = vsel %vm1032, %v2354, 0.0
  %v2365 = vsel %vm1033, %v2360, 0.0
  %v2366 = vsel %vm1030, %v2359, 0.0
  %v2367 = vsel %vm1031, %v2357, 0.0
  %v2368 = vsel %vm1032, %v2355, 0.0
  %v2369 = vsel %vm1033, %v2361, 0.0
  %2370 = vrot.lane.b32.xlu0 %v2138, 111
  %v2371 = vpop.permute.xlu0 %2370
  %2372 = vrot.lane.b32.xlu0 %v2142, 111
  %v2373 = vpop.permute.xlu0 %2372
  %2374 = vrot.lane.b32.xlu0 %v2139, 111
  %v2375 = vpop.permute.xlu0 %2374
  %2376 = vrot.lane.b32.xlu0 %v2143, 111
  %v2377 = vpop.permute.xlu0 %2376
  %2378 = vrot.lane.b32.xlu0 %v2140, 111
  %v2379 = vpop.permute.xlu0 %2378
  %2380 = vrot.lane.b32.xlu0 %v2144, 111
  %v2381 = vpop.permute.xlu0 %2380
  %2382 = vrot.lane.b32.xlu0 %v2141, 111
  %v2383 = vpop.permute.xlu0 %2382
  %2384 = vrot.lane.b32.xlu0 %v2145, 111
  %v2385 = vpop.permute.xlu0 %2384
  %v2386 = vsel %vm1046, %v2379, %v2383
  %v2387 = vsel %vm1046, %v2381, %v2385
  %v2388 = vsel %vm1046, %v2375, %v2379
  %v2389 = vsel %vm1046, %v2377, %v2381
  %v2390 = vsel %vm1046, %v2371, %v2375
  %v2391 = vsel %vm1046, %v2373, %v2377
  %v2392 = vsel %vm1046, %v2383, %v2371
  %v2393 = vsel %vm1046, %v2385, %v2373
  %v2394 = vsel %vm1063, %v2390, 0.0
  %v2395 = vsel %vm1064, %v2388, 0.0
  %v2396 = vsel %vm1065, %v2386, 0.0
  %v2397 = vsel %vm1066, %v2392, 0.0
  %v2398 = vsel %vm1063, %v2391, 0.0
  %v2399 = vsel %vm1064, %v2389, 0.0
  %v2400 = vsel %vm1065, %v2387, 0.0
  %v2401 = vsel %vm1066, %v2393, 0.0
  %v2402 = vpack.c.bf16 %v2174, %v2170
  %v2403 = vpack.c.bf16 %v2175, %v2171
  %v2404 = vpack.c.bf16 %v2176, %v2172
  %v2405 = vpack.c.bf16 %v2177, %v2173
  %v2406 = vpack.c.bf16 %v2206, %v2202
  %v2407 = vpack.c.bf16 %v2207, %v2203
  %v2408 = vpack.c.bf16 %v2208, %v2204
  %v2409 = vpack.c.bf16 %v2209, %v2205
  %v2410 = vpack.c.bf16 %v2238, %v2234
  %v2411 = vpack.c.bf16 %v2239, %v2235
  %v2412 = vpack.c.bf16 %v2240, %v2236
  %v2413 = vpack.c.bf16 %v2241, %v2237
  %v2414 = vpack.c.bf16 %v2270, %v2266
  %v2415 = vpack.c.bf16 %v2271, %v2267
  %v2416 = vpack.c.bf16 %v2272, %v2268
  %v2417 = vpack.c.bf16 %v2273, %v2269
  %v2418 = vpack.c.bf16 %v2142, %v2138
  %v2419 = vpack.c.bf16 %v2143, %v2139
  %v2420 = vpack.c.bf16 %v2144, %v2140
  %v2421 = vpack.c.bf16 %v2145, %v2141
  %v2422 = vpack.c.bf16 %v2302, %v2298
  %v2423 = vpack.c.bf16 %v2303, %v2299
  %v2424 = vpack.c.bf16 %v2304, %v2300
  %v2425 = vpack.c.bf16 %v2305, %v2301
  %v2426 = vpack.c.bf16 %v2334, %v2330
  %v2427 = vpack.c.bf16 %v2335, %v2331
  %v2428 = vpack.c.bf16 %v2336, %v2332
  %v2429 = vpack.c.bf16 %v2337, %v2333
  %v2430 = vpack.c.bf16 %v2366, %v2362
  %v2431 = vpack.c.bf16 %v2367, %v2363
  %v2432 = vpack.c.bf16 %v2368, %v2364
  %v2433 = vpack.c.bf16 %v2369, %v2365
  %v2434 = vpack.c.bf16 %v2398, %v2394
  %v2435 = vpack.c.bf16 %v2399, %v2395
  %v2436 = vpack.c.bf16 %v2400, %v2396
  %v2437 = vpack.c.bf16 %v2401, %v2397
  %v2438 = vld [vmem:[%s35] sm:$0xff]
  %v2439 = vld [vmem:[%s35 + $0x8] sm:$0xff]
  %v2440 = vld [vmem:[%s37] sm:$0xff]
  %v2441 = vld [vmem:[%s37 + $0x8] sm:$0xff]
  %2443 = vset.pattern.permute.xlu0 0
  %2444 = vperm.xlu0 %2443, %v2440
  %v2445 = vpop.permute.xlu0 %2444
  %2448 = vset.pattern.permute.xlu0 0
  %2449 = vperm.xlu0 %2448, %v2441
  %v2450 = vpop.permute.xlu0 %2449
  %v2454 = vunpack.c.l.b16 %v2438
  %v2455 = vunpack.c.h.b16 %v2438
  %v2456 = vunpack.c.l.b16 %v2439
  %v2457 = vunpack.c.h.b16 %v2439
  %v2458 = vpack.c.b16 %v2456, %v2454
  %v2459 = vpack.c.b16 %v2457, %v2455
  %vm2461 = vcmask 130048
  %v2463 = vsel %vm2461, %v2459, 0
  %2465 = vmatprep.subr.bf16.mxu0 %v2431
  %2466 = vmatpush1.bf16.msra.mxu0 %v2430
  %2467 = vmatprep.subr.bf16.mxu0 %v2427
  %2468 = vmatpush1.bf16.msra.mxu0 %v2426
  %2469 = vmatprep.subr.bf16.mxu0 %v2423
  %2470 = vmatpush1.bf16.msra.mxu0 %v2422
  %2471 = vmatprep.subr.bf16.mxu0 %v2419
  %2472 = vmatpush1.bf16.msra.mxu0 %v2418
  %2473 = vmatprep.subr.bf16.mxu0 %v2415
  %2474 = vmatpush1.bf16.msra.mxu0 %v2414
  %2475 = vmatprep.subr.bf16.mxu0 %v2411
  %2476 = vmatpush1.bf16.msra.mxu0 %v2410
  %2477 = vmatprep.subr.bf16.mxu0 %v2407
  %2478 = vmatpush1.bf16.msra.mxu0 %v2406
  %2479 = vmatprep.subr.bf16.mxu0 %v2403
  %2480 = vmatpush1.bf16.msra.mxu0 %v2402
  %2481 = vmatprep.subr.bf16.mxu0 0
  %2482 = vmatpush2.bf16.msra.mxu0 0
  %2483 = vmatprep.subr.bf16.mxu0 0
  %2484 = vmatpush2.bf16.msra.mxu0 0
  %2485 = vmatprep.subr.bf16.mxu0 0
  %2486 = vmatpush2.bf16.msra.mxu0 0
  %2487 = vmatprep.subr.bf16.mxu0 0
  %2488 = vmatpush2.bf16.msra.mxu0 0
  %2489 = vmatprep.subr.bf16.mxu0 0
  %2490 = vmatpush2.bf16.msra.mxu0 0
  %2491 = vmatprep.subr.bf16.mxu0 0
  %2492 = vmatpush2.bf16.msra.mxu0 0
  %2493 = vmatprep.subr.bf16.mxu0 0
  %2494 = vmatpush2.bf16.msra.mxu0 0
  %2495 = vmatprep.subr.bf16.mxu0 %v2435
  %2496 = vmatpush2.bf16.msra.mxu0 %v2434
  %2497 = vmatprep.mubr.bf16.mxu0 %v2463
  %2498 = vmatmul.mubr.bf16.gmra.mxu0 %v2458
  %v2499 = vpop.f32.mrf.mxu0
  %v2500 = vadd.f32 %v2445, %v2499
  %v2501 = vpop.f32.mrf.mxu0
  %v2502 = vadd.f32 %v2445, %v2501
  %v2503 = vpop.f32.mrf.mxu0
  %v2504 = vadd.f32 %v2450, %v2503
  %v2505 = vpop.f32.mrf.mxu0
  %v2506 = vadd.f32 %v2450, %v2505
  %2507 = vdwg.mxu0
  %2508 = vmatprep.subr.bf16.mxu0 %v2433
  %2509 = vmatpush1.bf16.msra.mxu0 %v2432
  %2510 = vmatprep.subr.bf16.mxu0 %v2429
  %2511 = vmatpush1.bf16.msra.mxu0 %v2428
  %2512 = vmatprep.subr.bf16.mxu0 %v2425
  %2513 = vmatpush1.bf16.msra.mxu0 %v2424
  %2514 = vmatprep.subr.bf16.mxu0 %v2421
  %2515 = vmatpush1.bf16.msra.mxu0 %v2420
  %2516 = vmatprep.subr.bf16.mxu0 %v2417
  %2517 = vmatpush1.bf16.msra.mxu0 %v2416
  %2518 = vmatprep.subr.bf16.mxu0 %v2413
  %2519 = vmatpush1.bf16.msra.mxu0 %v2412
  %2520 = vmatprep.subr.bf16.mxu0 %v2409
  %2521 = vmatpush1.bf16.msra.mxu0 %v2408
  %2522 = vmatprep.subr.bf16.mxu0 %v2405
  %2523 = vmatpush1.bf16.msra.mxu0 %v2404
  %2524 = vmatprep.subr.bf16.mxu0 0
  %2525 = vmatpush2.bf16.msra.mxu0 0
  %2526 = vmatprep.subr.bf16.mxu0 0
  %2527 = vmatpush2.bf16.msra.mxu0 0
  %2528 = vmatprep.subr.bf16.mxu0 0
  %2529 = vmatpush2.bf16.msra.mxu0 0
  %2530 = vmatprep.subr.bf16.mxu0 0
  %2531 = vmatpush2.bf16.msra.mxu0 0
  %2532 = vmatprep.subr.bf16.mxu0 0
  %2533 = vmatpush2.bf16.msra.mxu0 0
  %2534 = vmatprep.subr.bf16.mxu0 0
  %2535 = vmatpush2.bf16.msra.mxu0 0
  %2536 = vmatprep.subr.bf16.mxu0 0
  %2537 = vmatpush2.bf16.msra.mxu0 0
  %2538 = vmatprep.subr.bf16.mxu0 %v2437
  %2539 = vmatpush2.bf16.msra.mxu0 %v2436
  %2540 = vmatprep.mubr.bf16.mxu0 %v2463
  %2541 = vmatmul.mubr.bf16.gmra.mxu0 %v2458
  %v2542 = vpop.f32.mrf.mxu0
  %v2543 = vadd.f32 %v2445, %v2542
  %v2544 = vpop.f32.mrf.mxu0
  %v2545 = vadd.f32 %v2445, %v2544
  %v2546 = vpop.f32.mrf.mxu0
  %v2547 = vadd.f32 %v2450, %v2546
  %v2548 = vpop.f32.mrf.mxu0
  %v2549 = vadd.f32 %v2450, %v2548
  %2550 = vdwg.mxu0
  %v2551 = vmax.f32 %v2500, 0.0
  %v2552 = vmax.f32 %v2502, 0.0
  %v2553 = vmax.f32 %v2543, 0.0
  %v2554 = vmax.f32 %v2545, 0.0
  %v2555 = vmax.f32 %v2504, 0.0
  %v2556 = vmax.f32 %v2506, 0.0
  %v2557 = vmax.f32 %v2547, 0.0
  %v2558 = vmax.f32 %v2549, 0.0
  %v2559 = vpack.c.bf16 %v2555, %v2551
  %v2560 = vpack.c.bf16 %v2556, %v2552
  %v2561 = vpack.c.bf16 %v2557, %v2553
  %v2562 = vpack.c.bf16 %v2558, %v2554
  %v2563 = vld [vmem:[%s39] sm:$0xf]
  %v2564 = vld [vmem:[%s39 + $0x4] sm:$0xf]
  %v2565 = vld [vmem:[%s39 + $0x8] sm:$0xf]
  %v2566 = vld [vmem:[%s39 + $0xc] sm:$0xf]
  %v2567 = vld [vmem:[%s39 + $0x10] sm:$0xf]
  %v2568 = vld [vmem:[%s39 + $0x14] sm:$0xf]
  %v2569 = vld [vmem:[%s39 + $0x18] sm:$0xf]
  %v2570 = vld [vmem:[%s39 + $0x1c] sm:$0xf]
  %v2571 = vld [vmem:[%s41] sm:$0xff]
  %v2572 = vld [vmem:[%s41 + $0x8] sm:$0xff]
  %v2573 = vld [vmem:[%s41 + $0x10] sm:$0xff]
  %v2574 = vld [vmem:[%s41 + $0x18] sm:$0xff]
  %v2575 = vld [vmem:[%s41 + $0x20] sm:$0xff]
  %v2576 = vld [vmem:[%s41 + $0x28] sm:$0xff]
  %v2577 = vld [vmem:[%s41 + $0x30] sm:$0xff]
  %v2578 = vld [vmem:[%s41 + $0x38] sm:$0xff]
  %2580 = vset.pattern.permute.xlu0 0
  %2581 = vperm.xlu0 %2580, %v2571
  %v2582 = vpop.permute.xlu0 %2581
  %2585 = vset.pattern.permute.xlu0 0
  %2586 = vperm.xlu0 %2585, %v2572
  %v2587 = vpop.permute.xlu0 %2586
  %2590 = vset.pattern.permute.xlu0 0
  %2591 = vperm.xlu0 %2590, %v2573
  %v2592 = vpop.permute.xlu0 %2591
  %2595 = vset.pattern.permute.xlu0 0
  %2596 = vperm.xlu0 %2595, %v2574
  %v2597 = vpop.permute.xlu0 %2596
  %2600 = vset.pattern.permute.xlu0 0
  %2601 = vperm.xlu0 %2600, %v2575
  %v2602 = vpop.permute.xlu0 %2601
  %2605 = vset.pattern.permute.xlu0 0
  %2606 = vperm.xlu0 %2605, %v2576
  %v2607 = vpop.permute.xlu0 %2606
  %2610 = vset.pattern.permute.xlu0 0
  %2611 = vperm.xlu0 %2610, %v2577
  %v2612 = vpop.permute.xlu0 %2611
  %2615 = vset.pattern.permute.xlu0 0
  %2616 = vperm.xlu0 %2615, %v2578
  %v2617 = vpop.permute.xlu0 %2616
  %v2627 = vunpack.c.l.b16 %v2563
  %v2628 = vunpack.c.l.b16 %v2564
  %v2629 = vunpack.c.l.b16 %v2565
  %v2630 = vunpack.c.l.b16 %v2566
  %v2631 = vunpack.c.l.b16 %v2567
  %v2632 = vunpack.c.l.b16 %v2568
  %v2633 = vunpack.c.l.b16 %v2569
  %v2634 = vunpack.c.l.b16 %v2570
  %v2635 = vpack.c.b16 %v2628, %v2627
  %v2636 = vpack.c.b16 %v2630, %v2629
  %v2637 = vpack.c.b16 %v2632, %v2631
  %v2638 = vpack.c.b16 %v2634, %v2633
  %v2640 = vsel %vm2461, %v2635, 0
  %v2643 = vsel %vm2461, %v2636, 0
  %v2646 = vsel %vm2461, %v2637, 0
  %v2649 = vsel %vm2461, %v2638, 0
  %2651 = vmatprep.subr.bf16.mxu0 0
  %2652 = vmatpush1.bf16.msra.mxu0 0
  %2653 = vmatprep.subr.bf16.mxu0 0
  %2654 = vmatpush1.bf16.msra.mxu0 0
  %2655 = vmatprep.subr.bf16.mxu0 0
  %2656 = vmatpush1.bf16.msra.mxu0 0
  %2657 = vmatprep.subr.bf16.mxu0 0
  %2658 = vmatpush1.bf16.msra.mxu0 0
  %2659 = vmatprep.subr.bf16.mxu0 0
  %2660 = vmatpush1.bf16.msra.mxu0 0
  %2661 = vmatprep.subr.bf16.mxu0 0
  %2662 = vmatpush1.bf16.msra.mxu0 0
  %2663 = vmatprep.subr.bf16.mxu0 0
  %2664 = vmatpush1.bf16.msra.mxu0 0
  %2665 = vmatprep.subr.bf16.mxu0 %v2560
  %2666 = vmatpush1.bf16.msra.mxu0 %v2559
  %2667 = vmatprep.subr.bf16.mxu0 0
  %2668 = vmatpush2.bf16.msra.mxu0 0
  %2669 = vmatprep.subr.bf16.mxu0 0
  %2670 = vmatpush2.bf16.msra.mxu0 0
  %2671 = vmatprep.subr.bf16.mxu0 0
  %2672 = vmatpush2.bf16.msra.mxu0 0
  %2673 = vmatprep.subr.bf16.mxu0 0
  %2674 = vmatpush2.bf16.msra.mxu0 0
  %2675 = vmatprep.subr.bf16.mxu0 0
  %2676 = vmatpush2.bf16.msra.mxu0 0
  %2677 = vmatprep.subr.bf16.mxu0 0
  %2678 = vmatpush2.bf16.msra.mxu0 0
  %2679 = vmatprep.subr.bf16.mxu0 0
  %2680 = vmatpush2.bf16.msra.mxu0 0
  %2681 = vmatprep.subr.bf16.mxu0 0
  %2682 = vmatpush2.bf16.msra.mxu0 0
  %2683 = vmatprep.mubr.bf16.mxu0 0
  %2684 = vmatmul.mubr.bf16.gmra.mxu0 %v2640
  %v2685 = vpop.f32.mrf.mxu0
  %v2686 = vadd.f32 %v2582, %v2685
  %v2687 = vpop.f32.mrf.mxu0
  %v2688 = vadd.f32 %v2582, %v2687
  %v2689 = vpop.f32.mrf.mxu0
  %v2690 = vadd.f32 %v2587, %v2689
  %v2691 = vpop.f32.mrf.mxu0
  %v2692 = vadd.f32 %v2587, %v2691
  %2693 = vmatprep.mubr.bf16.mxu0 0
  %2694 = vmatmul.mubr.bf16.gmra.mxu0 %v2643
  %v2695 = vpop.f32.mrf.mxu0
  %v2696 = vadd.f32 %v2592, %v2695
  %v2697 = vpop.f32.mrf.mxu0
  %v2698 = vadd.f32 %v2592, %v2697
  %v2699 = vpop.f32.mrf.mxu0
  %v2700 = vadd.f32 %v2597, %v2699
  %v2701 = vpop.f32.mrf.mxu0
  %v2702 = vadd.f32 %v2597, %v2701
  %2703 = vmatprep.mubr.bf16.mxu0 0
  %2704 = vmatmul.mubr.bf16.gmra.mxu0 %v2646
  %v2705 = vpop.f32.mrf.mxu0
  %v2706 = vadd.f32 %v2602, %v2705
  %v2707 = vpop.f32.mrf.mxu0
  %v2708 = vadd.f32 %v2602, %v2707
  %v2709 = vpop.f32.mrf.mxu0
  %v2710 = vadd.f32 %v2607, %v2709
  %v2711 = vpop.f32.mrf.mxu0
  %v2712 = vadd.f32 %v2607, %v2711
  %2713 = vmatprep.mubr.bf16.mxu0 0
  %2714 = vmatmul.mubr.bf16.gmra.mxu0 %v2649
  %v2715 = vpop.f32.mrf.mxu0
  %v2716 = vadd.f32 %v2612, %v2715
  %v2717 = vpop.f32.mrf.mxu0
  %v2718 = vadd.f32 %v2612, %v2717
  %v2719 = vpop.f32.mrf.mxu0
  %v2720 = vadd.f32 %v2617, %v2719
  %v2721 = vpop.f32.mrf.mxu0
  %v2722 = vadd.f32 %v2617, %v2721
  %2723 = vdwg.mxu0
  %2724 = vmatprep.subr.bf16.mxu0 0
  %2725 = vmatpush1.bf16.msra.mxu0 0
  %2726 = vmatprep.subr.bf16.mxu0 0
  %2727 = vmatpush1.bf16.msra.mxu0 0
  %2728 = vmatprep.subr.bf16.mxu0 0
  %2729 = vmatpush1.bf16.msra.mxu0 0
  %2730 = vmatprep.subr.bf16.mxu0 0
  %2731 = vmatpush1.bf16.msra.mxu0 0
  %2732 = vmatprep.subr.bf16.mxu0 0
  %2733 = vmatpush1.bf16.msra.mxu0 0
  %2734 = vmatprep.subr.bf16.mxu0 0
  %2735 = vmatpush1.bf16.msra.mxu0 0
  %2736 = vmatprep.subr.bf16.mxu0 0
  %2737 = vmatpush1.bf16.msra.mxu0 0
  %2738 = vmatprep.subr.bf16.mxu0 %v2562
  %2739 = vmatpush1.bf16.msra.mxu0 %v2561
  %2740 = vmatprep.subr.bf16.mxu0 0
  %2741 = vmatpush2.bf16.msra.mxu0 0
  %2742 = vmatprep.subr.bf16.mxu0 0
  %2743 = vmatpush2.bf16.msra.mxu0 0
  %2744 = vmatprep.subr.bf16.mxu0 0
  %2745 = vmatpush2.bf16.msra.mxu0 0
  %2746 = vmatprep.subr.bf16.mxu0 0
  %2747 = vmatpush2.bf16.msra.mxu0 0
  %2748 = vmatprep.subr.bf16.mxu0 0
  %2749 = vmatpush2.bf16.msra.mxu0 0
  %2750 = vmatprep.subr.bf16.mxu0 0
  %2751 = vmatpush2.bf16.msra.mxu0 0
  %2752 = vmatprep.subr.bf16.mxu0 0
  %2753 = vmatpush2.bf16.msra.mxu0 0
  %2754 = vmatprep.subr.bf16.mxu0 0
  %2755 = vmatpush2.bf16.msra.mxu0 0
  %2756 = vmatprep.mubr.bf16.mxu0 0
  %2757 = vmatmul.mubr.bf16.gmra.mxu0 %v2640
  %v2758 = vpop.f32.mrf.mxu0
  %v2759 = vadd.f32 %v2582, %v2758
  %v2760 = vpop.f32.mrf.mxu0
  %v2761 = vadd.f32 %v2582, %v2760
  %v2762 = vpop.f32.mrf.mxu0
  %v2763 = vadd.f32 %v2587, %v2762
  %v2764 = vpop.f32.mrf.mxu0
  %v2765 = vadd.f32 %v2587, %v2764
  %2766 = vmatprep.mubr.bf16.mxu0 0
  %2767 = vmatmul.mubr.bf16.gmra.mxu0 %v2643
  %v2768 = vpop.f32.mrf.mxu0
  %v2769 = vadd.f32 %v2592, %v2768
  %v2770 = vpop.f32.mrf.mxu0
  %v2771 = vadd.f32 %v2592, %v2770
  %v2772 = vpop.f32.mrf.mxu0
  %v2773 = vadd.f32 %v2597, %v2772
  %v2774 = vpop.f32.mrf.mxu0
  %v2775 = vadd.f32 %v2597, %v2774
  %2776 = vmatprep.mubr.bf16.mxu0 0
  %2777 = vmatmul.mubr.bf16.gmra.mxu0 %v2646
  %v2778 = vpop.f32.mrf.mxu0
  %v2779 = vadd.f32 %v2602, %v2778
  %v2780 = vpop.f32.mrf.mxu0
  %v2781 = vadd.f32 %v2602, %v2780
  %v2782 = vpop.f32.mrf.mxu0
  %v2783 = vadd.f32 %v2607, %v2782
  %v2784 = vpop.f32.mrf.mxu0
  %v2785 = vadd.f32 %v2607, %v2784
  %2786 = vmatprep.mubr.bf16.mxu0 0
  %2787 = vmatmul.mubr.bf16.gmra.mxu0 %v2649
  %v2788 = vpop.f32.mrf.mxu0
  %v2789 = vadd.f32 %v2612, %v2788
  %v2790 = vpop.f32.mrf.mxu0
  %v2791 = vadd.f32 %v2612, %v2790
  %v2792 = vpop.f32.mrf.mxu0
  %v2793 = vadd.f32 %v2617, %v2792
  %v2794 = vpop.f32.mrf.mxu0
  %v2795 = vadd.f32 %v2617, %v2794
  %2796 = vdwg.mxu0
  %v2797 = vmax.f32 %v2686, 0.0
  %v2798 = vmax.f32 %v2688, 0.0
  %v2799 = vmax.f32 %v2759, 0.0
  %v2800 = vmax.f32 %v2761, 0.0
  %v2801 = vmax.f32 %v2690, 0.0
  %v2802 = vmax.f32 %v2692, 0.0
  %v2803 = vmax.f32 %v2763, 0.0
  %v2804 = vmax.f32 %v2765, 0.0
  %v2805 = vmax.f32 %v2696, 0.0
  %v2806 = vmax.f32 %v2698, 0.0
  %v2807 = vmax.f32 %v2769, 0.0
  %v2808 = vmax.f32 %v2771, 0.0
  %v2809 = vmax.f32 %v2700, 0.0
  %v2810 = vmax.f32 %v2702, 0.0
  %v2811 = vmax.f32 %v2773, 0.0
  %v2812 = vmax.f32 %v2775, 0.0
  %v2813 = vmax.f32 %v2706, 0.0
  %v2814 = vmax.f32 %v2708, 0.0
  %v2815 = vmax.f32 %v2779, 0.0
  %v2816 = vmax.f32 %v2781, 0.0
  %v2817 = vmax.f32 %v2710, 0.0
  %v2818 = vmax.f32 %v2712, 0.0
  %v2819 = vmax.f32 %v2783, 0.0
  %v2820 = vmax.f32 %v2785, 0.0
  %v2821 = vmax.f32 %v2716, 0.0
  %v2822 = vmax.f32 %v2718, 0.0
  %v2823 = vmax.f32 %v2789, 0.0
  %v2824 = vmax.f32 %v2791, 0.0
  %v2825 = vmax.f32 %v2720, 0.0
  %v2826 = vmax.f32 %v2722, 0.0
  %v2827 = vmax.f32 %v2793, 0.0
  %v2828 = vmax.f32 %v2795, 0.0
  %v2829 = vld [vmem:[%s43] sm:$0xf]
  %v2830 = vld [vmem:[%s43 + $0x4] sm:$0xf]
  %v2831 = vld [vmem:[%s43 + $0x8] sm:$0xf]
  %v2832 = vld [vmem:[%s43 + $0xc] sm:$0xf]
  %v2833 = vld [vmem:[%s43 + $0x10] sm:$0xf]
  %v2834 = vld [vmem:[%s43 + $0x14] sm:$0xf]
  %v2835 = vld [vmem:[%s43 + $0x18] sm:$0xf]
  %v2836 = vld [vmem:[%s43 + $0x1c] sm:$0xf]
  %v2837 = vld [vmem:[%s45] sm:$0xff]
  %v2838 = vld [vmem:[%s45 + $0x8] sm:$0xff]
  %v2839 = vld [vmem:[%s45 + $0x10] sm:$0xff]
  %v2840 = vld [vmem:[%s45 + $0x18] sm:$0xff]
  %v2841 = vld [vmem:[%s45 + $0x20] sm:$0xff]
  %v2842 = vld [vmem:[%s45 + $0x28] sm:$0xff]
  %v2843 = vld [vmem:[%s45 + $0x30] sm:$0xff]
  %v2844 = vld [vmem:[%s45 + $0x38] sm:$0xff]
  %2846 = vset.pattern.permute.xlu0 0
  %2847 = vperm.xlu0 %2846, %v2837
  %v2848 = vpop.permute.xlu0 %2847
  %2851 = vset.pattern.permute.xlu0 0
  %2852 = vperm.xlu0 %2851, %v2838
  %v2853 = vpop.permute.xlu0 %2852
  %2856 = vset.pattern.permute.xlu0 0
  %2857 = vperm.xlu0 %2856, %v2839
  %v2858 = vpop.permute.xlu0 %2857
  %2861 = vset.pattern.permute.xlu0 0
  %2862 = vperm.xlu0 %2861, %v2840
  %v2863 = vpop.permute.xlu0 %2862
  %2866 = vset.pattern.permute.xlu0 0
  %2867 = vperm.xlu0 %2866, %v2841
  %v2868 = vpop.permute.xlu0 %2867
  %2871 = vset.pattern.permute.xlu0 0
  %2872 = vperm.xlu0 %2871, %v2842
  %v2873 = vpop.permute.xlu0 %2872
  %2876 = vset.pattern.permute.xlu0 0
  %2877 = vperm.xlu0 %2876, %v2843
  %v2878 = vpop.permute.xlu0 %2877
  %2881 = vset.pattern.permute.xlu0 0
  %2882 = vperm.xlu0 %2881, %v2844
  %v2883 = vpop.permute.xlu0 %2882
  %v2893 = vunpack.c.l.b16 %v2829
  %v2894 = vunpack.c.l.b16 %v2830
  %v2895 = vunpack.c.l.b16 %v2831
  %v2896 = vunpack.c.l.b16 %v2832
  %v2897 = vunpack.c.l.b16 %v2833
  %v2898 = vunpack.c.l.b16 %v2834
  %v2899 = vunpack.c.l.b16 %v2835
  %v2900 = vunpack.c.l.b16 %v2836
  %v2901 = vpack.c.b16 %v2894, %v2893
  %v2902 = vpack.c.b16 %v2896, %v2895
  %v2903 = vpack.c.b16 %v2898, %v2897
  %v2904 = vpack.c.b16 %v2900, %v2899
  %v2906 = vsel %vm481, %v2901, 0
  %v2909 = vsel %vm481, %v2902, 0
  %v2912 = vsel %vm481, %v2903, 0
  %v2915 = vsel %vm481, %v2904, 0
  %2917 = vmatprep.subr.bf16.mxu0 0
  %2918 = vmatpush1.bf16.msra.mxu0 0
  %2919 = vmatprep.subr.bf16.mxu0 0
  %2920 = vmatpush1.bf16.msra.mxu0 0
  %2921 = vmatprep.subr.bf16.mxu0 0
  %2922 = vmatpush1.bf16.msra.mxu0 0
  %2923 = vmatprep.subr.bf16.mxu0 0
  %2924 = vmatpush1.bf16.msra.mxu0 0
  %2925 = vmatprep.subr.bf16.mxu0 0
  %2926 = vmatpush1.bf16.msra.mxu0 0
  %2927 = vmatprep.subr.bf16.mxu0 0
  %2928 = vmatpush1.bf16.msra.mxu0 0
  %2929 = vmatprep.subr.bf16.mxu0 %v2027
  %2930 = vmatpush1.bf16.msra.mxu0 %v2026
  %2931 = vmatprep.subr.bf16.mxu0 %v2023
  %2932 = vmatpush1.bf16.msra.mxu0 %v2022
  %2933 = vmatprep.subr.bf16.mxu0 0
  %2934 = vmatpush2.bf16.msra.mxu0 0
  %2935 = vmatprep.subr.bf16.mxu0 0
  %2936 = vmatpush2.bf16.msra.mxu0 0
  %2937 = vmatprep.subr.bf16.mxu0 0
  %2938 = vmatpush2.bf16.msra.mxu0 0
  %2939 = vmatprep.subr.bf16.mxu0 0
  %2940 = vmatpush2.bf16.msra.mxu0 0
  %2941 = vmatprep.subr.bf16.mxu0 0
  %2942 = vmatpush2.bf16.msra.mxu0 0
  %2943 = vmatprep.subr.bf16.mxu0 0
  %2944 = vmatpush2.bf16.msra.mxu0 0
  %2945 = vmatprep.subr.bf16.mxu0 0
  %2946 = vmatpush2.bf16.msra.mxu0 0
  %2947 = vmatprep.subr.bf16.mxu0 0
  %2948 = vmatpush2.bf16.msra.mxu0 0
  %2949 = vmatprep.mubr.bf16.mxu0 0
  %2950 = vmatmul.mubr.bf16.gmra.mxu0 %v2906
  %v2951 = vpop.f32.mrf.mxu0
  %v2952 = vadd.f32 %v2848, %v2951
  %v2953 = vpop.f32.mrf.mxu0
  %v2954 = vadd.f32 %v2848, %v2953
  %v2955 = vpop.f32.mrf.mxu0
  %v2956 = vadd.f32 %v2853, %v2955
  %v2957 = vpop.f32.mrf.mxu0
  %v2958 = vadd.f32 %v2853, %v2957
  %2959 = vmatprep.mubr.bf16.mxu0 0
  %2960 = vmatmul.mubr.bf16.gmra.mxu0 %v2909
  %v2961 = vpop.f32.mrf.mxu0
  %v2962 = vadd.f32 %v2858, %v2961
  %v2963 = vpop.f32.mrf.mxu0
  %v2964 = vadd.f32 %v2858, %v2963
  %v2965 = vpop.f32.mrf.mxu0
  %v2966 = vadd.f32 %v2863, %v2965
  %v2967 = vpop.f32.mrf.mxu0
  %v2968 = vadd.f32 %v2863, %v2967
  %2969 = vmatprep.mubr.bf16.mxu0 0
  %2970 = vmatmul.mubr.bf16.gmra.mxu0 %v2912
  %v2971 = vpop.f32.mrf.mxu0
  %v2972 = vadd.f32 %v2868, %v2971
  %v2973 = vpop.f32.mrf.mxu0
  %v2974 = vadd.f32 %v2868, %v2973
  %v2975 = vpop.f32.mrf.mxu0
  %v2976 = vadd.f32 %v2873, %v2975
  %v2977 = vpop.f32.mrf.mxu0
  %v2978 = vadd.f32 %v2873, %v2977
  %2979 = vmatprep.mubr.bf16.mxu0 0
  %2980 = vmatmul.mubr.bf16.gmra.mxu0 %v2915
  %v2981 = vpop.f32.mrf.mxu0
  %v2982 = vadd.f32 %v2878, %v2981
  %v2983 = vpop.f32.mrf.mxu0
  %v2984 = vadd.f32 %v2878, %v2983
  %v2985 = vpop.f32.mrf.mxu0
  %v2986 = vadd.f32 %v2883, %v2985
  %v2987 = vpop.f32.mrf.mxu0
  %v2988 = vadd.f32 %v2883, %v2987
  %2989 = vdwg.mxu0
  %2990 = vmatprep.subr.bf16.mxu0 0
  %2991 = vmatpush1.bf16.msra.mxu0 0
  %2992 = vmatprep.subr.bf16.mxu0 0
  %2993 = vmatpush1.bf16.msra.mxu0 0
  %2994 = vmatprep.subr.bf16.mxu0 0
  %2995 = vmatpush1.bf16.msra.mxu0 0
  %2996 = vmatprep.subr.bf16.mxu0 0
  %2997 = vmatpush1.bf16.msra.mxu0 0
  %2998 = vmatprep.subr.bf16.mxu0 0
  %2999 = vmatpush1.bf16.msra.mxu0 0
  %3000 = vmatprep.subr.bf16.mxu0 0
  %3001 = vmatpush1.bf16.msra.mxu0 0
  %3002 = vmatprep.subr.bf16.mxu0 %v2029
  %3003 = vmatpush1.bf16.msra.mxu0 %v2028
  %3004 = vmatprep.subr.bf16.mxu0 %v2025
  %3005 = vmatpush1.bf16.msra.mxu0 %v2024
  %3006 = vmatprep.subr.bf16.mxu0 0
  %3007 = vmatpush2.bf16.msra.mxu0 0
  %3008 = vmatprep.subr.bf16.mxu0 0
  %3009 = vmatpush2.bf16.msra.mxu0 0
  %3010 = vmatprep.subr.bf16.mxu0 0
  %3011 = vmatpush2.bf16.msra.mxu0 0
  %3012 = vmatprep.subr.bf16.mxu0 0
  %3013 = vmatpush2.bf16.msra.mxu0 0
  %3014 = vmatprep.subr.bf16.mxu0 0
  %3015 = vmatpush2.bf16.msra.mxu0 0
  %3016 = vmatprep.subr.bf16.mxu0 0
  %3017 = vmatpush2.bf16.msra.mxu0 0
  %3018 = vmatprep.subr.bf16.mxu0 0
  %3019 = vmatpush2.bf16.msra.mxu0 0
  %3020 = vmatprep.subr.bf16.mxu0 0
  %3021 = vmatpush2.bf16.msra.mxu0 0
  %3022 = vmatprep.mubr.bf16.mxu0 0
  %3023 = vmatmul.mubr.bf16.gmra.mxu0 %v2906
  %v3024 = vpop.f32.mrf.mxu0
  %v3025 = vadd.f32 %v2848, %v3024
  %v3026 = vpop.f32.mrf.mxu0
  %v3027 = vadd.f32 %v2848, %v3026
  %v3028 = vpop.f32.mrf.mxu0
  %v3029 = vadd.f32 %v2853, %v3028
  %v3030 = vpop.f32.mrf.mxu0
  %v3031 = vadd.f32 %v2853, %v3030
  %3032 = vmatprep.mubr.bf16.mxu0 0
  %3033 = vmatmul.mubr.bf16.gmra.mxu0 %v2909
  %v3034 = vpop.f32.mrf.mxu0
  %v3035 = vadd.f32 %v2858, %v3034
  %v3036 = vpop.f32.mrf.mxu0
  %v3037 = vadd.f32 %v2858, %v3036
  %v3038 = vpop.f32.mrf.mxu0
  %v3039 = vadd.f32 %v2863, %v3038
  %v3040 = vpop.f32.mrf.mxu0
  %v3041 = vadd.f32 %v2863, %v3040
  %3042 = vmatprep.mubr.bf16.mxu0 0
  %3043 = vmatmul.mubr.bf16.gmra.mxu0 %v2912
  %v3044 = vpop.f32.mrf.mxu0
  %v3045 = vadd.f32 %v2868, %v3044
  %v3046 = vpop.f32.mrf.mxu0
  %v3047 = vadd.f32 %v2868, %v3046
  %v3048 = vpop.f32.mrf.mxu0
  %v3049 = vadd.f32 %v2873, %v3048
  %v3050 = vpop.f32.mrf.mxu0
  %v3051 = vadd.f32 %v2873, %v3050
  %3052 = vmatprep.mubr.bf16.mxu0 0
  %3053 = vmatmul.mubr.bf16.gmra.mxu0 %v2915
  %v3054 = vpop.f32.mrf.mxu0
  %v3055 = vadd.f32 %v2878, %v3054
  %v3056 = vpop.f32.mrf.mxu0
  %v3057 = vadd.f32 %v2878, %v3056
  %v3058 = vpop.f32.mrf.mxu0
  %v3059 = vadd.f32 %v2883, %v3058
  %v3060 = vpop.f32.mrf.mxu0
  %v3061 = vadd.f32 %v2883, %v3060
  %3062 = vdwg.mxu0
  %v3063 = vadd.f32 %v2797, %v2952
  %v3064 = vadd.f32 %v2798, %v2954
  %v3065 = vadd.f32 %v2799, %v3025
  %v3066 = vadd.f32 %v2800, %v3027
  %v3067 = vadd.f32 %v2801, %v2956
  %v3068 = vadd.f32 %v2802, %v2958
  %v3069 = vadd.f32 %v2803, %v3029
  %v3070 = vadd.f32 %v2804, %v3031
  %v3071 = vadd.f32 %v2805, %v2962
  %v3072 = vadd.f32 %v2806, %v2964
  %v3073 = vadd.f32 %v2807, %v3035
  %v3074 = vadd.f32 %v2808, %v3037
  %v3075 = vadd.f32 %v2809, %v2966
  %v3076 = vadd.f32 %v2810, %v2968
  %v3077 = vadd.f32 %v2811, %v3039
  %v3078 = vadd.f32 %v2812, %v3041
  %v3079 = vadd.f32 %v2813, %v2972
  %v3080 = vadd.f32 %v2814, %v2974
  %v3081 = vadd.f32 %v2815, %v3045
  %v3082 = vadd.f32 %v2816, %v3047
  %v3083 = vadd.f32 %v2817, %v2976
  %v3084 = vadd.f32 %v2818, %v2978
  %v3085 = vadd.f32 %v2819, %v3049
  %v3086 = vadd.f32 %v2820, %v3051
  %v3087 = vadd.f32 %v2821, %v2982
  %v3088 = vadd.f32 %v2822, %v2984
  %v3089 = vadd.f32 %v2823, %v3055
  %v3090 = vadd.f32 %v2824, %v3057
  %v3091 = vadd.f32 %v2825, %v2986
  %v3092 = vadd.f32 %v2826, %v2988
  %v3093 = vadd.f32 %v2827, %v3059
  %v3094 = vadd.f32 %v2828, %v3061
  %v3095 = vmax.f32 %v3063, 0.0
  %v3096 = vmax.f32 %v3064, 0.0
  %v3097 = vmax.f32 %v3065, 0.0
  %v3098 = vmax.f32 %v3066, 0.0
  %v3099 = vmax.f32 %v3067, 0.0
  %v3100 = vmax.f32 %v3068, 0.0
  %v3101 = vmax.f32 %v3069, 0.0
  %v3102 = vmax.f32 %v3070, 0.0
  %v3103 = vmax.f32 %v3071, 0.0
  %v3104 = vmax.f32 %v3072, 0.0
  %v3105 = vmax.f32 %v3073, 0.0
  %v3106 = vmax.f32 %v3074, 0.0
  %v3107 = vmax.f32 %v3075, 0.0
  %v3108 = vmax.f32 %v3076, 0.0
  %v3109 = vmax.f32 %v3077, 0.0
  %v3110 = vmax.f32 %v3078, 0.0
  %v3111 = vmax.f32 %v3079, 0.0
  %v3112 = vmax.f32 %v3080, 0.0
  %v3113 = vmax.f32 %v3081, 0.0
  %v3114 = vmax.f32 %v3082, 0.0
  %v3115 = vmax.f32 %v3083, 0.0
  %v3116 = vmax.f32 %v3084, 0.0
  %v3117 = vmax.f32 %v3085, 0.0
  %v3118 = vmax.f32 %v3086, 0.0
  %v3119 = vmax.f32 %v3087, 0.0
  %v3120 = vmax.f32 %v3088, 0.0
  %v3121 = vmax.f32 %v3089, 0.0
  %v3122 = vmax.f32 %v3090, 0.0
  %v3123 = vmax.f32 %v3091, 0.0
  %v3124 = vmax.f32 %v3092, 0.0
  %v3125 = vmax.f32 %v3093, 0.0
  %v3126 = vmax.f32 %v3094, 0.0
  %v3127 = vpack.c.bf16 %v3099, %v3095
  %v3128 = vpack.c.bf16 %v3100, %v3096
  %v3129 = vpack.c.bf16 %v3101, %v3097
  %v3130 = vpack.c.bf16 %v3102, %v3098
  %v3131 = vpack.c.bf16 %v3107, %v3103
  %v3132 = vpack.c.bf16 %v3108, %v3104
  %v3133 = vpack.c.bf16 %v3109, %v3105
  %v3134 = vpack.c.bf16 %v3110, %v3106
  %v3135 = vpack.c.bf16 %v3115, %v3111
  %v3136 = vpack.c.bf16 %v3116, %v3112
  %v3137 = vpack.c.bf16 %v3117, %v3113
  %v3138 = vpack.c.bf16 %v3118, %v3114
  %v3139 = vpack.c.bf16 %v3123, %v3119
  %v3140 = vpack.c.bf16 %v3124, %v3120
  %v3141 = vpack.c.bf16 %v3125, %v3121
  %v3142 = vpack.c.bf16 %v3126, %v3122
  %v3143 = vld [vmem:[%s47] sm:$0xf]
  %v3144 = vld [vmem:[%s47 + $0x4] sm:$0xf]
  %v3145 = vld [vmem:[%s47 + $0x8] sm:$0xf]
  %v3146 = vld [vmem:[%s47 + $0xc] sm:$0xf]
  %v3147 = vld [vmem:[%s47 + $0x10] sm:$0xf]
  %v3148 = vld [vmem:[%s47 + $0x14] sm:$0xf]
  %v3149 = vld [vmem:[%s47 + $0x18] sm:$0xf]
  %v3150 = vld [vmem:[%s47 + $0x1c] sm:$0xf]
  %v3151 = vld [vmem:[%s47 + $0x20] sm:$0xf]
  %v3152 = vld [vmem:[%s47 + $0x24] sm:$0xf]
  %v3153 = vld [vmem:[%s47 + $0x28] sm:$0xf]
  %v3154 = vld [vmem:[%s47 + $0x2c] sm:$0xf]
  %v3155 = vld [vmem:[%s47 + $0x30] sm:$0xf]
  %v3156 = vld [vmem:[%s47 + $0x34] sm:$0xf]
  %v3157 = vld [vmem:[%s47 + $0x38] sm:$0xf]
  %v3158 = vld [vmem:[%s47 + $0x3c] sm:$0xf]
  %v3159 = vld [vmem:[%s47 + $0x40] sm:$0xf]
  %v3160 = vld [vmem:[%s47 + $0x44] sm:$0xf]
  %v3161 = vld [vmem:[%s47 + $0x48] sm:$0xf]
  %v3162 = vld [vmem:[%s47 + $0x4c] sm:$0xf]
  %v3163 = vld [vmem:[%s47 + $0x50] sm:$0xf]
  %v3164 = vld [vmem:[%s47 + $0x54] sm:$0xf]
  %v3165 = vld [vmem:[%s47 + $0x58] sm:$0xf]
  %v3166 = vld [vmem:[%s47 + $0x5c] sm:$0xf]
  %v3167 = vld [vmem:[%s47 + $0x60] sm:$0xf]
  %v3168 = vld [vmem:[%s47 + $0x64] sm:$0xf]
  %v3169 = vld [vmem:[%s47 + $0x68] sm:$0xf]
  %v3170 = vld [vmem:[%s47 + $0x6c] sm:$0xf]
  %v3171 = vld [vmem:[%s47 + $0x70] sm:$0xf]
  %v3172 = vld [vmem:[%s47 + $0x74] sm:$0xf]
  %v3173 = vld [vmem:[%s47 + $0x78] sm:$0xf]
  %v3174 = vld [vmem:[%s47 + $0x7c] sm:$0xf]
  %v3175 = vld [vmem:[%s47 + $0x80] sm:$0xf]
  %v3176 = vld [vmem:[%s47 + $0x84] sm:$0xf]
  %v3177 = vld [vmem:[%s47 + $0x88] sm:$0xf]
  %v3178 = vld [vmem:[%s47 + $0x8c] sm:$0xf]
  %v3179 = vld [vmem:[%s47 + $0x90] sm:$0xf]
  %v3180 = vld [vmem:[%s47 + $0x94] sm:$0xf]
  %v3181 = vld [vmem:[%s47 + $0x98] sm:$0xf]
  %v3182 = vld [vmem:[%s47 + $0x9c] sm:$0xf]
  %v3183 = vld [vmem:[%s47 + $0xa0] sm:$0xf]
  %v3184 = vld [vmem:[%s47 + $0xa4] sm:$0xf]
  %v3185 = vld [vmem:[%s47 + $0xa8] sm:$0xf]
  %v3186 = vld [vmem:[%s47 + $0xac] sm:$0xf]
  %v3187 = vld [vmem:[%s47 + $0xb0] sm:$0xf]
  %v3188 = vld [vmem:[%s47 + $0xb4] sm:$0xf]
  %v3189 = vld [vmem:[%s47 + $0xb8] sm:$0xf]
  %v3190 = vld [vmem:[%s47 + $0xbc] sm:$0xf]
  %v3191 = vld [vmem:[%s47 + $0xc0] sm:$0xf]
  %v3192 = vld [vmem:[%s47 + $0xc4] sm:$0xf]
  %v3193 = vld [vmem:[%s47 + $0xc8] sm:$0xf]
  %v3194 = vld [vmem:[%s47 + $0xcc] sm:$0xf]
  %v3195 = vld [vmem:[%s47 + $0xd0] sm:$0xf]
  %v3196 = vld [vmem:[%s47 + $0xd4] sm:$0xf]
  %v3197 = vld [vmem:[%s47 + $0xd8] sm:$0xf]
  %v3198 = vld [vmem:[%s47 + $0xdc] sm:$0xf]
  %v3199 = vld [vmem:[%s47 + $0xe0] sm:$0xf]
  %v3200 = vld [vmem:[%s47 + $0xe4] sm:$0xf]
  %v3201 = vld [vmem:[%s47 + $0xe8] sm:$0xf]
  %v3202 = vld [vmem:[%s47 + $0xec] sm:$0xf]
  %v3203 = vld [vmem:[%s47 + $0xf0] sm:$0xf]
  %v3204 = vld [vmem:[%s47 + $0xf4] sm:$0xf]
  %v3205 = vld [vmem:[%s47 + $0xf8] sm:$0xf]
  %v3206 = vld [vmem:[%s47 + $0xfc] sm:$0xf]
  %v3271 = vunpack.c.l.b16 %v3143
  %v3272 = vunpack.c.l.b16 %v3144
  %v3273 = vunpack.c.l.b16 %v3145
  %v3274 = vunpack.c.l.b16 %v3146
  %v3275 = vunpack.c.l.b16 %v3147
  %v3276 = vunpack.c.l.b16 %v3148
  %v3277 = vunpack.c.l.b16 %v3149
  %v3278 = vunpack.c.l.b16 %v3150
  %v3279 = vunpack.c.l.b16 %v3151
  %v3280 = vunpack.c.l.b16 %v3152
  %v3281 = vunpack.c.l.b16 %v3153
  %v3282 = vunpack.c.l.b16 %v3154
  %v3283 = vunpack.c.l.b16 %v3155
  %v3284 = vunpack.c.l.b16 %v3156
  %v3285 = vunpack.c.l.b16 %v3157
  %v3286 = vunpack.c.l.b16 %v3158
  %v3287 = vunpack.c.l.b16 %v3159
  %v3288 = vunpack.c.l.b16 %v3160
  %v3289 = vunpack.c.l.b16 %v3161
  %v3290 = vunpack.c.l.b16 %v3162
  %v3291 = vunpack.c.l.b16 %v3163
  %v3292 = vunpack.c.l.b16 %v3164
  %v3293 = vunpack.c.l.b16 %v3165
  %v3294 = vunpack.c.l.b16 %v3166
  %v3295 = vunpack.c.l.b16 %v3167
  %v3296 = vunpack.c.l.b16 %v3168
  %v3297 = vunpack.c.l.b16 %v3169
  %v3298 = vunpack.c.l.b16 %v3170
  %v3299 = vunpack.c.l.b16 %v3171
  %v3300 = vunpack.c.l.b16 %v3172
  %v3301 = vunpack.c.l.b16 %v3173
  %v3302 = vunpack.c.l.b16 %v3174
  %v3303 = vunpack.c.l.b16 %v3175
  %v3304 = vunpack.c.l.b16 %v3176
  %v3305 = vunpack.c.l.b16 %v3177
  %v3306 = vunpack.c.l.b16 %v3178
  %v3307 = vunpack.c.l.b16 %v3179
  %v3308 = vunpack.c.l.b16 %v3180
  %v3309 = vunpack.c.l.b16 %v3181
  %v3310 = vunpack.c.l.b16 %v3182
  %v3311 = vunpack.c.l.b16 %v3183
  %v3312 = vunpack.c.l.b16 %v3184
  %v3313 = vunpack.c.l.b16 %v3185
  %v3314 = vunpack.c.l.b16 %v3186
  %v3315 = vunpack.c.l.b16 %v3187
  %v3316 = vunpack.c.l.b16 %v3188
  %v3317 = vunpack.c.l.b16 %v3189
  %v3318 = vunpack.c.l.b16 %v3190
  %v3319 = vunpack.c.l.b16 %v3191
  %v3320 = vunpack.c.l.b16 %v3192
  %v3321 = vunpack.c.l.b16 %v3193
  %v3322 = vunpack.c.l.b16 %v3194
  %v3323 = vunpack.c.l.b16 %v3195
  %v3324 = vunpack.c.l.b16 %v3196
  %v3325 = vunpack.c.l.b16 %v3197
  %v3326 = vunpack.c.l.b16 %v3198
  %v3327 = vunpack.c.l.b16 %v3199
  %v3328 = vunpack.c.l.b16 %v3200
  %v3329 = vunpack.c.l.b16 %v3201
  %v3330 = vunpack.c.l.b16 %v3202
  %v3331 = vunpack.c.l.b16 %v3203
  %v3332 = vunpack.c.l.b16 %v3204
  %v3333 = vunpack.c.l.b16 %v3205
  %v3334 = vunpack.c.l.b16 %v3206
  %v3335 = vpack.c.b16 %v3272, %v3271
  %v3336 = vpack.c.b16 %v3274, %v3273
  %v3337 = vpack.c.b16 %v3276, %v3275
  %v3338 = vpack.c.b16 %v3278, %v3277
  %v3339 = vpack.c.b16 %v3280, %v3279
  %v3340 = vpack.c.b16 %v3282, %v3281
  %v3341 = vpack.c.b16 %v3284, %v3283
  %v3342 = vpack.c.b16 %v3286, %v3285
  %v3343 = vpack.c.b16 %v3288, %v3287
  %v3344 = vpack.c.b16 %v3290, %v3289
  %v3345 = vpack.c.b16 %v3292, %v3291
  %v3346 = vpack.c.b16 %v3294, %v3293
  %v3347 = vpack.c.b16 %v3296, %v3295
  %v3348 = vpack.c.b16 %v3298, %v3297
  %v3349 = vpack.c.b16 %v3300, %v3299
  %v3350 = vpack.c.b16 %v3302, %v3301
  %v3351 = vpack.c.b16 %v3304, %v3303
  %v3352 = vpack.c.b16 %v3306, %v3305
  %v3353 = vpack.c.b16 %v3308, %v3307
  %v3354 = vpack.c.b16 %v3310, %v3309
  %v3355 = vpack.c.b16 %v3312, %v3311
  %v3356 = vpack.c.b16 %v3314, %v3313
  %v3357 = vpack.c.b16 %v3316, %v3315
  %v3358 = vpack.c.b16 %v3318, %v3317
  %v3359 = vpack.c.b16 %v3320, %v3319
  %v3360 = vpack.c.b16 %v3322, %v3321
  %v3361 = vpack.c.b16 %v3324, %v3323
  %v3362 = vpack.c.b16 %v3326, %v3325
  %v3363 = vpack.c.b16 %v3328, %v3327
  %v3364 = vpack.c.b16 %v3330, %v3329
  %v3365 = vpack.c.b16 %v3332, %v3331
  %v3366 = vpack.c.b16 %v3334, %v3333
  %3399 = vmatprep.subr.bf16.mxu0 0
  %3400 = vmatpush1.bf16.msra.mxu0 %v3342
  %3401 = vmatprep.subr.bf16.mxu0 0
  %3402 = vmatpush1.bf16.msra.mxu0 %v3341
  %3403 = vmatprep.subr.bf16.mxu0 0
  %3404 = vmatpush1.bf16.msra.mxu0 %v3340
  %3405 = vmatprep.subr.bf16.mxu0 0
  %3406 = vmatpush1.bf16.msra.mxu0 %v3339
  %3407 = vmatprep.subr.bf16.mxu0 0
  %3408 = vmatpush1.bf16.msra.mxu0 %v3338
  %3409 = vmatprep.subr.bf16.mxu0 0
  %3410 = vmatpush1.bf16.msra.mxu0 %v3337
  %3411 = vmatprep.subr.bf16.mxu0 0
  %3412 = vmatpush1.bf16.msra.mxu0 %v3336
  %3413 = vmatprep.subr.bf16.mxu0 0
  %3414 = vmatpush1.bf16.msra.mxu0 %v3335
  %3415 = vmatprep.subr.bf16.mxu0 0
  %3416 = vmatpush2.bf16.msra.mxu0 %v3350
  %3417 = vmatprep.subr.bf16.mxu0 0
  %3418 = vmatpush2.bf16.msra.mxu0 %v3349
  %3419 = vmatprep.subr.bf16.mxu0 0
  %3420 = vmatpush2.bf16.msra.mxu0 %v3348
  %3421 = vmatprep.subr.bf16.mxu0 0
  %3422 = vmatpush2.bf16.msra.mxu0 %v3347
  %3423 = vmatprep.subr.bf16.mxu0 0
  %3424 = vmatpush2.bf16.msra.mxu0 %v3346
  %3425 = vmatprep.subr.bf16.mxu0 0
  %3426 = vmatpush2.bf16.msra.mxu0 %v3345
  %3427 = vmatprep.subr.bf16.mxu0 0
  %3428 = vmatpush2.bf16.msra.mxu0 %v3344
  %3429 = vmatprep.subr.bf16.mxu0 0
  %3430 = vmatpush2.bf16.msra.mxu0 %v3343
  %3431 = vmatprep.mubr.bf16.mxu0 %v3128
  %3432 = vmatmul.mubr.bf16.gmra.mxu0 %v3127
  %v3433 = vpop.f32.mrf.mxu0
  %v3434 = vadd.f32 0.0, %v3433
  %v3435 = vpop.f32.mrf.mxu0
  %v3436 = vpop.f32.mrf.mxu0
  %v3437 = vadd.f32 0.0, %v3436
  %v3438 = vpop.f32.mrf.mxu0
  %3439 = vmatprep.mubr.bf16.mxu0 %v3132
  %3440 = vmatmul.mubr.bf16.gmra.mxu0 %v3131
  %v3441 = vpop.f32.mrf.mxu0
  %v3442 = vadd.f32 0.0, %v3441
  %v3443 = vpop.f32.mrf.mxu0
  %v3444 = vpop.f32.mrf.mxu0
  %v3445 = vadd.f32 0.0, %v3444
  %v3446 = vpop.f32.mrf.mxu0
  %3447 = vmatprep.mubr.bf16.mxu0 %v3136
  %3448 = vmatmul.mubr.bf16.gmra.mxu0 %v3135
  %v3449 = vpop.f32.mrf.mxu0
  %v3450 = vadd.f32 0.0, %v3449
  %v3451 = vpop.f32.mrf.mxu0
  %v3452 = vpop.f32.mrf.mxu0
  %v3453 = vadd.f32 0.0, %v3452
  %v3454 = vpop.f32.mrf.mxu0
  %3455 = vmatprep.mubr.bf16.mxu0 %v3140
  %3456 = vmatmul.mubr.bf16.gmra.mxu0 %v3139
  %v3457 = vpop.f32.mrf.mxu0
  %v3458 = vadd.f32 0.0, %v3457
  %v3459 = vpop.f32.mrf.mxu0
  %v3460 = vpop.f32.mrf.mxu0
  %v3461 = vadd.f32 0.0, %v3460
  %v3462 = vpop.f32.mrf.mxu0
  %3463 = vdwg.mxu0
  %3464 = vmatprep.subr.bf16.mxu0 0
  %3465 = vmatpush1.bf16.msra.mxu0 %v3358
  %3466 = vmatprep.subr.bf16.mxu0 0
  %3467 = vmatpush1.bf16.msra.mxu0 %v3357
  %3468 = vmatprep.subr.bf16.mxu0 0
  %3469 = vmatpush1.bf16.msra.mxu0 %v3356
  %3470 = vmatprep.subr.bf16.mxu0 0
  %3471 = vmatpush1.bf16.msra.mxu0 %v3355
  %3472 = vmatprep.subr.bf16.mxu0 0
  %3473 = vmatpush1.bf16.msra.mxu0 %v3354
  %3474 = vmatprep.subr.bf16.mxu0 0
  %3475 = vmatpush1.bf16.msra.mxu0 %v3353
  %3476 = vmatprep.subr.bf16.mxu0 0
  %3477 = vmatpush1.bf16.msra.mxu0 %v3352
  %3478 = vmatprep.subr.bf16.mxu0 0
  %3479 = vmatpush1.bf16.msra.mxu0 %v3351
  %3480 = vmatprep.subr.bf16.mxu0 0
  %3481 = vmatpush2.bf16.msra.mxu0 %v3366
  %3482 = vmatprep.subr.bf16.mxu0 0
  %3483 = vmatpush2.bf16.msra.mxu0 %v3365
  %3484 = vmatprep.subr.bf16.mxu0 0
  %3485 = vmatpush2.bf16.msra.mxu0 %v3364
  %3486 = vmatprep.subr.bf16.mxu0 0
  %3487 = vmatpush2.bf16.msra.mxu0 %v3363
  %3488 = vmatprep.subr.bf16.mxu0 0
  %3489 = vmatpush2.bf16.msra.mxu0 %v3362
  %3490 = vmatprep.subr.bf16.mxu0 0
  %3491 = vmatpush2.bf16.msra.mxu0 %v3361
  %3492 = vmatprep.subr.bf16.mxu0 0
  %3493 = vmatpush2.bf16.msra.mxu0 %v3360
  %3494 = vmatprep.subr.bf16.mxu0 0
  %3495 = vmatpush2.bf16.msra.mxu0 %v3359
  %3496 = vmatprep.mubr.bf16.mxu0 %v3130
  %3497 = vmatmul.mubr.bf16.gmra.mxu0 %v3129
  %v3498 = vpop.f32.mrf.mxu0
  %v3499 = vadd.f32 %v3434, %v3498
  %v3500 = vpop.f32.mrf.mxu0
  %v3501 = vpop.f32.mrf.mxu0
  %v3502 = vadd.f32 %v3437, %v3501
  %v3503 = vpop.f32.mrf.mxu0
  %3504 = vmatprep.mubr.bf16.mxu0 %v3134
  %3505 = vmatmul.mubr.bf16.gmra.mxu0 %v3133
  %v3506 = vpop.f32.mrf.mxu0
  %v3507 = vadd.f32 %v3442, %v3506
  %v3508 = vpop.f32.mrf.mxu0
  %v3509 = vpop.f32.mrf.mxu0
  %v3510 = vadd.f32 %v3445, %v3509
  %v3511 = vpop.f32.mrf.mxu0
  %3512 = vmatprep.mubr.bf16.mxu0 %v3138
  %3513 = vmatmul.mubr.bf16.gmra.mxu0 %v3137
  %v3514 = vpop.f32.mrf.mxu0
  %v3515 = vadd.f32 %v3450, %v3514
  %v3516 = vpop.f32.mrf.mxu0
  %v3517 = vpop.f32.mrf.mxu0
  %v3518 = vadd.f32 %v3453, %v3517
  %v3519 = vpop.f32.mrf.mxu0
  %3520 = vmatprep.mubr.bf16.mxu0 %v3142
  %3521 = vmatmul.mubr.bf16.gmra.mxu0 %v3141
  %v3522 = vpop.f32.mrf.mxu0
  %v3523 = vadd.f32 %v3458, %v3522
  %v3524 = vpop.f32.mrf.mxu0
  %v3525 = vpop.f32.mrf.mxu0
  %v3526 = vadd.f32 %v3461, %v3525
  %v3527 = vpop.f32.mrf.mxu0
  %3528 = vdwg.mxu0
  %v3529 = vpack.c.bf16 %v3502, %v3499
  %v3530 = vpack.c.bf16 %v3510, %v3507
  %v3531 = vpack.c.bf16 %v3518, %v3515
  %v3532 = vpack.c.bf16 %v3526, %v3523
  %v3533 = vld [vmem:[%s49] sm:$0xf]
  %v3534 = vld [vmem:[%s49 + $0x4] sm:$0xf]
  %v3535 = vld [vmem:[%s51] sm:$0xff]
  %v3536 = vld [vmem:[%s51 + $0x8] sm:$0xff]
  %3538 = vset.pattern.permute.xlu0 0
  %3539 = vperm.xlu0 %3538, %v3535
  %v3540 = vpop.permute.xlu0 %3539
  %3543 = vset.pattern.permute.xlu0 0
  %3544 = vperm.xlu0 %3543, %v3536
  %v3545 = vpop.permute.xlu0 %3544
  %v3549 = vunpack.c.l.b16 %v3533
  %v3550 = vunpack.c.l.b16 %v3534
  %v3551 = vpack.c.b16 %v3550, %v3549
  %vm3552 = vcmask 523264
  %v3554 = vsel %vm3552, %v3551, 0
  %3556 = vmatprep.subr.bf16.mxu0 0
  %3557 = vmatpush1.bf16.msra.mxu0 0
  %3558 = vmatprep.subr.bf16.mxu0 0
  %3559 = vmatpush1.bf16.msra.mxu0 0
  %3560 = vmatprep.subr.bf16.mxu0 0
  %3561 = vmatpush1.bf16.msra.mxu0 0
  %3562 = vmatprep.subr.bf16.mxu0 0
  %3563 = vmatpush1.bf16.msra.mxu0 0
  %3564 = vmatprep.subr.bf16.mxu0 0
  %3565 = vmatpush1.bf16.msra.mxu0 %v3532
  %3566 = vmatprep.subr.bf16.mxu0 0
  %3567 = vmatpush1.bf16.msra.mxu0 %v3531
  %3568 = vmatprep.subr.bf16.mxu0 0
  %3569 = vmatpush1.bf16.msra.mxu0 %v3530
  %3570 = vmatprep.subr.bf16.mxu0 0
  %3571 = vmatpush1.bf16.msra.mxu0 %v3529
  %3572 = vmatprep.subr.bf16.mxu0 0
  %3573 = vmatpush2.bf16.msra.mxu0 0
  %3574 = vmatprep.subr.bf16.mxu0 0
  %3575 = vmatpush2.bf16.msra.mxu0 0
  %3576 = vmatprep.subr.bf16.mxu0 0
  %3577 = vmatpush2.bf16.msra.mxu0 0
  %3578 = vmatprep.subr.bf16.mxu0 0
  %3579 = vmatpush2.bf16.msra.mxu0 0
  %3580 = vmatprep.subr.bf16.mxu0 0
  %3581 = vmatpush2.bf16.msra.mxu0 0
  %3582 = vmatprep.subr.bf16.mxu0 0
  %3583 = vmatpush2.bf16.msra.mxu0 0
  %3584 = vmatprep.subr.bf16.mxu0 0
  %3585 = vmatpush2.bf16.msra.mxu0 0
  %3586 = vmatprep.subr.bf16.mxu0 0
  %3587 = vmatpush2.bf16.msra.mxu0 0
  %3588 = vmatprep.mubr.bf16.mxu0 0
  %3589 = vmatmul.mubr.bf16.gmra.mxu0 %v3554
  %v3590 = vpop.f32.mrf.mxu0
  %v3591 = vadd.f32 %v3540, %v3590
  %v3592 = vpop.f32.mrf.mxu0
  %v3593 = vpop.f32.mrf.mxu0
  %v3594 = vadd.f32 %v3545, %v3593
  %v3595 = vpop.f32.mrf.mxu0
  %3596 = vdwg.mxu0
  %v3597 = vmax.f32 %v3591, 0.0
  %v3598 = vmax.f32 %v3594, 0.0
  %v3599 = vand.u32 %v715, 7
  %v3600 = vshra.s32 %v715, 3
  %v3601 = vand.u32 %v3600, 7
  %3602 = vrot.lane.b32.xlu0 %v3597, 9
  %v3603 = vpop.permute.xlu0 %3602
  %3604 = vrot.lane.b32.xlu0 %v3598, 9
  %v3605 = vpop.permute.xlu0 %3604
  %v3606 = vadd.s32 %v3601, 4294967295
  %v3607 = vadd.s32 %v3599, 4294967295
  %vm3608 = vcmp.ge.s32.totalorder %v3606, 0
  %vm3609 = vcmp.le.s32.totalorder %v3606, 7
  %vm3610 = vmand %vm3608, %vm3609
  %vm3611 = vcmp.ge.s32.totalorder %v3607, 0
  %vm3612 = vmand %vm3610, %vm3611
  %vm3613 = vcmp.le.s32.totalorder %v3607, 7
  %vm3614 = vmand %vm3612, %vm3613
  %v3615 = vsel %vm3614, 1, 0
  %vm3616 = vcmp.eq.s32.totalorder %v3615, 1
  %v3617 = vsel %vm3616, %v3603, 0.0
  %v3618 = vsel %vm3616, %v3605, 0.0
  %3619 = vrot.lane.b32.xlu0 %v3597, 8
  %v3620 = vpop.permute.xlu0 %3619
  %3621 = vrot.lane.b32.xlu0 %v3598, 8
  %v3622 = vpop.permute.xlu0 %3621
  %vm3623 = vcmp.ge.s32.totalorder %v3599, 0
  %vm3624 = vmand %vm3610, %vm3623
  %vm3625 = vcmp.le.s32.totalorder %v3599, 7
  %vm3626 = vmand %vm3624, %vm3625
  %v3627 = vsel %vm3626, 1, 0
  %vm3628 = vcmp.eq.s32.totalorder %v3627, 1
  %v3629 = vsel %vm3628, %v3620, 0.0
  %v3630 = vsel %vm3628, %v3622, 0.0
  %3631 = vrot.lane.b32.xlu0 %v3597, 7
  %v3632 = vpop.permute.xlu0 %3631
  %3633 = vrot.lane.b32.xlu0 %v3598, 7
  %v3634 = vpop.permute.xlu0 %3633
  %v3635 = vadd.s32 %v3599, 1
  %vm3636 = vcmp.ge.s32.totalorder %v3635, 0
  %vm3637 = vmand %vm3610, %vm3636
  %vm3638 = vcmp.le.s32.totalorder %v3635, 7
  %vm3639 = vmand %vm3637, %vm3638
  %v3640 = vsel %vm3639, 1, 0
  %vm3641 = vcmp.eq.s32.totalorder %v3640, 1
  %v3642 = vsel %vm3641, %v3632, 0.0
  %v3643 = vsel %vm3641, %v3634, 0.0
  %3644 = vrot.lane.b32.xlu0 %v3597, 1
  %v3645 = vpop.permute.xlu0 %3644
  %3646 = vrot.lane.b32.xlu0 %v3598, 1
  %v3647 = vpop.permute.xlu0 %3646
  %vm3648 = vcmp.ge.s32.totalorder %v3601, 0
  %vm3649 = vcmp.le.s32.totalorder %v3601, 7
  %vm3650 = vmand %vm3648, %vm3649
  %vm3651 = vmand %vm3650, %vm3611
  %vm3652 = vmand %vm3651, %vm3613
  %v3653 = vsel %vm3652, 1, 0
  %vm3654 = vcmp.eq.s32.totalorder %v3653, 1
  %v3655 = vsel %vm3654, %v3645, 0.0
  %v3656 = vsel %vm3654, %v3647, 0.0
  %3657 = vrot.lane.b32.xlu0 %v3597, 127
  %v3658 = vpop.permute.xlu0 %3657
  %3659 = vrot.lane.b32.xlu0 %v3598, 127
  %v3660 = vpop.permute.xlu0 %3659
  %vm3661 = vmand %vm3650, %vm3636
  %vm3662 = vmand %vm3661, %vm3638
  %v3663 = vsel %vm3662, 1, 0
  %vm3664 = vcmp.eq.s32.totalorder %v3663, 1
  %v3665 = vsel %vm3664, %v3658, 0.0
  %v3666 = vsel %vm3664, %v3660, 0.0
  %3667 = vrot.lane.b32.xlu0 %v3597, 121
  %v3668 = vpop.permute.xlu0 %3667
  %3669 = vrot.lane.b32.xlu0 %v3598, 121
  %v3670 = vpop.permute.xlu0 %3669
  %v3671 = vadd.s32 %v3601, 1
  %vm3672 = vcmp.ge.s32.totalorder %v3671, 0
  %vm3673 = vcmp.le.s32.totalorder %v3671, 7
  %vm3674 = vmand %vm3672, %vm3673
  %vm3675 = vmand %vm3674, %vm3611
  %vm3676 = vmand %vm3675, %vm3613
  %v3677 = vsel %vm3676, 1, 0
  %vm3678 = vcmp.eq.s32.totalorder %v3677, 1
  %v3679 = vsel %vm3678, %v3668, 0.0
  %v3680 = vsel %vm3678, %v3670, 0.0
  %3681 = vrot.lane.b32.xlu0 %v3597, 120
  %v3682 = vpop.permute.xlu0 %3681
  %3683 = vrot.lane.b32.xlu0 %v3598, 120
  %v3684 = vpop.permute.xlu0 %3683
  %vm3685 = vmand %vm3674, %vm3623
  %vm3686 = vmand %vm3685, %vm3625
  %v3687 = vsel %vm3686, 1, 0
  %vm3688 = vcmp.eq.s32.totalorder %v3687, 1
  %v3689 = vsel %vm3688, %v3682, 0.0
  %v3690 = vsel %vm3688, %v3684, 0.0
  %3691 = vrot.lane.b32.xlu0 %v3597, 119
  %v3692 = vpop.permute.xlu0 %3691
  %3693 = vrot.lane.b32.xlu0 %v3598, 119
  %v3694 = vpop.permute.xlu0 %3693
  %vm3695 = vmand %vm3674, %vm3636
  %vm3696 = vmand %vm3695, %vm3638
  %v3697 = vsel %vm3696, 1, 0
  %vm3698 = vcmp.eq.s32.totalorder %v3697, 1
  %v3699 = vsel %vm3698, %v3692, 0.0
  %v3700 = vsel %vm3698, %v3694, 0.0
  %v3701 = vpack.c.bf16 %v3618, %v3617
  %v3702 = vpack.c.bf16 %v3630, %v3629
  %v3703 = vpack.c.bf16 %v3643, %v3642
  %v3704 = vpack.c.bf16 %v3656, %v3655
  %v3705 = vpack.c.bf16 %v3598, %v3597
  %v3706 = vpack.c.bf16 %v3666, %v3665
  %v3707 = vpack.c.bf16 %v3680, %v3679
  %v3708 = vpack.c.bf16 %v3690, %v3689
  %v3709 = vpack.c.bf16 %v3700, %v3699
  %v3710 = vld [vmem:[%s53] sm:$0xff]
  %v3711 = vld [vmem:[%s53 + $0x8] sm:$0xff]
  %v3712 = vld [vmem:[%s55] sm:$0xff]
  %v3713 = vld [vmem:[%s55 + $0x8] sm:$0xff]
  %3715 = vset.pattern.permute.xlu0 0
  %3716 = vperm.xlu0 %3715, %v3712
  %v3717 = vpop.permute.xlu0 %3716
  %3720 = vset.pattern.permute.xlu0 0
  %3721 = vperm.xlu0 %3720, %v3713
  %v3722 = vpop.permute.xlu0 %3721
  %v3726 = vunpack.c.l.b16 %v3710
  %v3727 = vunpack.c.h.b16 %v3710
  %v3728 = vunpack.c.l.b16 %v3711
  %v3729 = vunpack.c.h.b16 %v3711
  %v3730 = vpack.c.b16 %v3728, %v3726
  %v3731 = vpack.c.b16 %v3729, %v3727
  %v3734 = vsel %vm2461, %v3731, 0
  %3736 = vmatprep.subr.bf16.mxu0 0
  %3737 = vmatpush1.bf16.msra.mxu0 %v3708
  %3738 = vmatprep.subr.bf16.mxu0 0
  %3739 = vmatpush1.bf16.msra.mxu0 %v3707
  %3740 = vmatprep.subr.bf16.mxu0 0
  %3741 = vmatpush1.bf16.msra.mxu0 %v3706
  %3742 = vmatprep.subr.bf16.mxu0 0
  %3743 = vmatpush1.bf16.msra.mxu0 %v3705
  %3744 = vmatprep.subr.bf16.mxu0 0
  %3745 = vmatpush1.bf16.msra.mxu0 %v3704
  %3746 = vmatprep.subr.bf16.mxu0 0
  %3747 = vmatpush1.bf16.msra.mxu0 %v3703
  %3748 = vmatprep.subr.bf16.mxu0 0
  %3749 = vmatpush1.bf16.msra.mxu0 %v3702
  %3750 = vmatprep.subr.bf16.mxu0 0
  %3751 = vmatpush1.bf16.msra.mxu0 %v3701
  %3752 = vmatprep.subr.bf16.mxu0 0
  %3753 = vmatpush2.bf16.msra.mxu0 0
  %3754 = vmatprep.subr.bf16.mxu0 0
  %3755 = vmatpush2.bf16.msra.mxu0 0
  %3756 = vmatprep.subr.bf16.mxu0 0
  %3757 = vmatpush2.bf16.msra.mxu0 0
  %3758 = vmatprep.subr.bf16.mxu0 0
  %3759 = vmatpush2.bf16.msra.mxu0 0
  %3760 = vmatprep.subr.bf16.mxu0 0
  %3761 = vmatpush2.bf16.msra.mxu0 0
  %3762 = vmatprep.subr.bf16.mxu0 0
  %3763 = vmatpush2.bf16.msra.mxu0 0
  %3764 = vmatprep.subr.bf16.mxu0 0
  %3765 = vmatpush2.bf16.msra.mxu0 0
  %3766 = vmatprep.subr.bf16.mxu0 0
  %3767 = vmatpush2.bf16.msra.mxu0 %v3709
  %3768 = vmatprep.mubr.bf16.mxu0 %v3734
  %3769 = vmatmul.mubr.bf16.gmra.mxu0 %v3730
  %v3770 = vpop.f32.mrf.mxu0
  %v3771 = vadd.f32 %v3717, %v3770
  %v3772 = vpop.f32.mrf.mxu0
  %v3773 = vpop.f32.mrf.mxu0
  %v3774 = vadd.f32 %v3722, %v3773
  %v3775 = vpop.f32.mrf.mxu0
  %3776 = vdwg.mxu0
  %v3777 = vmax.f32 %v3771, 0.0
  %v3778 = vmax.f32 %v3774, 0.0
  %v3779 = vpack.c.bf16 %v3778, %v3777
  %v3780 = vld [vmem:[%s57] sm:$0xf]
  %v3781 = vld [vmem:[%s57 + $0x4] sm:$0xf]
  %v3782 = vld [vmem:[%s57 + $0x8] sm:$0xf]
  %v3783 = vld [vmem:[%s57 + $0xc] sm:$0xf]
  %v3784 = vld [vmem:[%s57 + $0x10] sm:$0xf]
  %v3785 = vld [vmem:[%s57 + $0x14] sm:$0xf]
  %v3786 = vld [vmem:[%s57 + $0x18] sm:$0xf]
  %v3787 = vld [vmem:[%s57 + $0x1c] sm:$0xf]
  %v3788 = vld [vmem:[%s59] sm:$0xff]
  %v3789 = vld [vmem:[%s59 + $0x8] sm:$0xff]
  %v3790 = vld [vmem:[%s59 + $0x10] sm:$0xff]
  %v3791 = vld [vmem:[%s59 + $0x18] sm:$0xff]
  %v3792 = vld [vmem:[%s59 + $0x20] sm:$0xff]
  %v3793 = vld [vmem:[%s59 + $0x28] sm:$0xff]
  %v3794 = vld [vmem:[%s59 + $0x30] sm:$0xff]
  %v3795 = vld [vmem:[%s59 + $0x38] sm:$0xff]
  %3797 = vset.pattern.permute.xlu0 0
  %3798 = vperm.xlu0 %3797, %v3788
  %v3799 = vpop.permute.xlu0 %3798
  %3802 = vset.pattern.permute.xlu0 0
  %3803 = vperm.xlu0 %3802, %v3789
  %v3804 = vpop.permute.xlu0 %3803
  %3807 = vset.pattern.permute.xlu0 0
  %3808 = vperm.xlu0 %3807, %v3790
  %v3809 = vpop.permute.xlu0 %3808
  %3812 = vset.pattern.permute.xlu0 0
  %3813 = vperm.xlu0 %3812, %v3791
  %v3814 = vpop.permute.xlu0 %3813
  %3817 = vset.pattern.permute.xlu0 0
  %3818 = vperm.xlu0 %3817, %v3792
  %v3819 = vpop.permute.xlu0 %3818
  %3822 = vset.pattern.permute.xlu0 0
  %3823 = vperm.xlu0 %3822, %v3793
  %v3824 = vpop.permute.xlu0 %3823
  %3827 = vset.pattern.permute.xlu0 0
  %3828 = vperm.xlu0 %3827, %v3794
  %v3829 = vpop.permute.xlu0 %3828
  %3832 = vset.pattern.permute.xlu0 0
  %3833 = vperm.xlu0 %3832, %v3795
  %v3834 = vpop.permute.xlu0 %3833
  %v3844 = vunpack.c.l.b16 %v3780
  %v3845 = vunpack.c.l.b16 %v3781
  %v3846 = vunpack.c.l.b16 %v3782
  %v3847 = vunpack.c.l.b16 %v3783
  %v3848 = vunpack.c.l.b16 %v3784
  %v3849 = vunpack.c.l.b16 %v3785
  %v3850 = vunpack.c.l.b16 %v3786
  %v3851 = vunpack.c.l.b16 %v3787
  %v3852 = vpack.c.b16 %v3845, %v3844
  %v3853 = vpack.c.b16 %v3847, %v3846
  %v3854 = vpack.c.b16 %v3849, %v3848
  %v3855 = vpack.c.b16 %v3851, %v3850
  %v3857 = vsel %vm2461, %v3852, 0
  %v3860 = vsel %vm2461, %v3853, 0
  %v3863 = vsel %vm2461, %v3854, 0
  %v3866 = vsel %vm2461, %v3855, 0
  %3868 = vmatprep.subr.bf16.mxu0 0
  %3869 = vmatpush1.bf16.msra.mxu0 0
  %3870 = vmatprep.subr.bf16.mxu0 0
  %3871 = vmatpush1.bf16.msra.mxu0 0
  %3872 = vmatprep.subr.bf16.mxu0 0
  %3873 = vmatpush1.bf16.msra.mxu0 0
  %3874 = vmatprep.subr.bf16.mxu0 0
  %3875 = vmatpush1.bf16.msra.mxu0 0
  %3876 = vmatprep.subr.bf16.mxu0 0
  %3877 = vmatpush1.bf16.msra.mxu0 0
  %3878 = vmatprep.subr.bf16.mxu0 0
  %3879 = vmatpush1.bf16.msra.mxu0 0
  %3880 = vmatprep.subr.bf16.mxu0 0
  %3881 = vmatpush1.bf16.msra.mxu0 0
  %3882 = vmatprep.subr.bf16.mxu0 0
  %3883 = vmatpush1.bf16.msra.mxu0 %v3779
  %3884 = vmatprep.subr.bf16.mxu0 0
  %3885 = vmatpush2.bf16.msra.mxu0 0
  %3886 = vmatprep.subr.bf16.mxu0 0
  %3887 = vmatpush2.bf16.msra.mxu0 0
  %3888 = vmatprep.subr.bf16.mxu0 0
  %3889 = vmatpush2.bf16.msra.mxu0 0
  %3890 = vmatprep.subr.bf16.mxu0 0
  %3891 = vmatpush2.bf16.msra.mxu0 0
  %3892 = vmatprep.subr.bf16.mxu0 0
  %3893 = vmatpush2.bf16.msra.mxu0 0
  %3894 = vmatprep.subr.bf16.mxu0 0
  %3895 = vmatpush2.bf16.msra.mxu0 0
  %3896 = vmatprep.subr.bf16.mxu0 0
  %3897 = vmatpush2.bf16.msra.mxu0 0
  %3898 = vmatprep.subr.bf16.mxu0 0
  %3899 = vmatpush2.bf16.msra.mxu0 0
  %3900 = vmatprep.mubr.bf16.mxu0 0
  %3901 = vmatmul.mubr.bf16.gmra.mxu0 %v3857
  %v3902 = vpop.f32.mrf.mxu0
  %v3903 = vadd.f32 %v3799, %v3902
  %v3904 = vpop.f32.mrf.mxu0
  %v3905 = vpop.f32.mrf.mxu0
  %v3906 = vadd.f32 %v3804, %v3905
  %v3907 = vpop.f32.mrf.mxu0
  %3908 = vmatprep.mubr.bf16.mxu0 0
  %3909 = vmatmul.mubr.bf16.gmra.mxu0 %v3860
  %v3910 = vpop.f32.mrf.mxu0
  %v3911 = vadd.f32 %v3809, %v3910
  %v3912 = vpop.f32.mrf.mxu0
  %v3913 = vpop.f32.mrf.mxu0
  %v3914 = vadd.f32 %v3814, %v3913
  %v3915 = vpop.f32.mrf.mxu0
  %3916 = vmatprep.mubr.bf16.mxu0 0
  %3917 = vmatmul.mubr.bf16.gmra.mxu0 %v3863
  %v3918 = vpop.f32.mrf.mxu0
  %v3919 = vadd.f32 %v3819, %v3918
  %v3920 = vpop.f32.mrf.mxu0
  %v3921 = vpop.f32.mrf.mxu0
  %v3922 = vadd.f32 %v3824, %v3921
  %v3923 = vpop.f32.mrf.mxu0
  %3924 = vmatprep.mubr.bf16.mxu0 0
  %3925 = vmatmul.mubr.bf16.gmra.mxu0 %v3866
  %v3926 = vpop.f32.mrf.mxu0
  %v3927 = vadd.f32 %v3829, %v3926
  %v3928 = vpop.f32.mrf.mxu0
  %v3929 = vpop.f32.mrf.mxu0
  %v3930 = vadd.f32 %v3834, %v3929
  %v3931 = vpop.f32.mrf.mxu0
  %3932 = vdwg.mxu0
  %v3933 = vmax.f32 %v3903, 0.0
  %v3934 = vmax.f32 %v3906, 0.0
  %v3935 = vmax.f32 %v3911, 0.0
  %v3936 = vmax.f32 %v3914, 0.0
  %v3937 = vmax.f32 %v3919, 0.0
  %v3938 = vmax.f32 %v3922, 0.0
  %v3939 = vmax.f32 %v3927, 0.0
  %v3940 = vmax.f32 %v3930, 0.0
  %v3941 = vunpack.c.l.bf16 %v3529
  %v3942 = vunpack.c.h.bf16 %v3529
  %v3943 = vunpack.c.l.bf16 %v3530
  %v3944 = vunpack.c.h.bf16 %v3530
  %v3945 = vunpack.c.l.bf16 %v3531
  %v3946 = vunpack.c.h.bf16 %v3531
  %v3947 = vunpack.c.l.bf16 %v3532
  %v3948 = vunpack.c.h.bf16 %v3532
  %v3949 = vadd.f32 %v3933, %v3941
  %v3950 = vadd.f32 %v3934, %v3942
  %v3951 = vadd.f32 %v3935, %v3943
  %v3952 = vadd.f32 %v3936, %v3944
  %v3953 = vadd.f32 %v3937, %v3945
  %v3954 = vadd.f32 %v3938, %v3946
  %v3955 = vadd.f32 %v3939, %v3947
  %v3956 = vadd.f32 %v3940, %v3948
  %v3957 = vmax.f32 %v3949, 0.0
  %v3958 = vmax.f32 %v3950, 0.0
  %v3959 = vmax.f32 %v3951, 0.0
  %v3960 = vmax.f32 %v3952, 0.0
  %v3961 = vmax.f32 %v3953, 0.0
  %v3962 = vmax.f32 %v3954, 0.0
  %v3963 = vmax.f32 %v3955, 0.0
  %v3964 = vmax.f32 %v3956, 0.0
  %v3965 = vpack.c.bf16 %v3958, %v3957
  %v3966 = vpack.c.bf16 %v3960, %v3959
  %v3967 = vpack.c.bf16 %v3962, %v3961
  %v3968 = vpack.c.bf16 %v3964, %v3963
  %v3969 = vld [vmem:[%s61] sm:$0xf]
  %v3970 = vld [vmem:[%s61 + $0x4] sm:$0xf]
  %v3971 = vld [vmem:[%s61 + $0x8] sm:$0xf]
  %v3972 = vld [vmem:[%s63] sm:$0xff]
  %v3973 = vld [vmem:[%s63 + $0x8] sm:$0xff]
  %v3974 = vld [vmem:[%s63 + $0x10] sm:$0xff]
  %3976 = vset.pattern.permute.xlu0 0
  %3977 = vperm.xlu0 %3976, %v3972
  %v3978 = vpop.permute.xlu0 %3977
  %3981 = vset.pattern.permute.xlu0 0
  %3982 = vperm.xlu0 %3981, %v3973
  %v3983 = vpop.permute.xlu0 %3982
  %3986 = vset.pattern.permute.xlu0 0
  %3987 = vperm.xlu0 %3986, %v3974
  %v3988 = vpop.permute.xlu0 %3987
  %v3993 = vunpack.c.l.b16 %v3969
  %v3994 = vunpack.c.l.b16 %v3970
  %v3995 = vunpack.c.l.b16 %v3971
  %v3996 = vpack.c.b16 %v3994, %v3993
  %v3997 = vpack.c.b16 %v3995, %v3995
  %v3999 = vsel %vm3552, %v3996, 0
  %v4002 = vsel %vm3552, %v3997, 0
  %4004 = vmatprep.subr.bf16.mxu0 0
  %4005 = vmatpush1.bf16.msra.mxu0 0
  %4006 = vmatprep.subr.bf16.mxu0 0
  %4007 = vmatpush1.bf16.msra.mxu0 0
  %4008 = vmatprep.subr.bf16.mxu0 0
  %4009 = vmatpush1.bf16.msra.mxu0 0
  %4010 = vmatprep.subr.bf16.mxu0 0
  %4011 = vmatpush1.bf16.msra.mxu0 0
  %4012 = vmatprep.subr.bf16.mxu0 0
  %4013 = vmatpush1.bf16.msra.mxu0 %v3968
  %4014 = vmatprep.subr.bf16.mxu0 0
  %4015 = vmatpush1.bf16.msra.mxu0 %v3967
  %4016 = vmatprep.subr.bf16.mxu0 0
  %4017 = vmatpush1.bf16.msra.mxu0 %v3966
  %4018 = vmatprep.subr.bf16.mxu0 0
  %4019 = vmatpush1.bf16.msra.mxu0 %v3965
  %4020 = vmatprep.subr.bf16.mxu0 0
  %4021 = vmatpush2.bf16.msra.mxu0 0
  %4022 = vmatprep.subr.bf16.mxu0 0
  %4023 = vmatpush2.bf16.msra.mxu0 0
  %4024 = vmatprep.subr.bf16.mxu0 0
  %4025 = vmatpush2.bf16.msra.mxu0 0
  %4026 = vmatprep.subr.bf16.mxu0 0
  %4027 = vmatpush2.bf16.msra.mxu0 0
  %4028 = vmatprep.subr.bf16.mxu0 0
  %4029 = vmatpush2.bf16.msra.mxu0 0
  %4030 = vmatprep.subr.bf16.mxu0 0
  %4031 = vmatpush2.bf16.msra.mxu0 0
  %4032 = vmatprep.subr.bf16.mxu0 0
  %4033 = vmatpush2.bf16.msra.mxu0 0
  %4034 = vmatprep.subr.bf16.mxu0 0
  %4035 = vmatpush2.bf16.msra.mxu0 0
  %4036 = vmatprep.mubr.bf16.mxu0 0
  %4037 = vmatmul.mubr.bf16.gmra.mxu0 %v3999
  %v4038 = vpop.f32.mrf.mxu0
  %v4039 = vadd.f32 %v3978, %v4038
  %v4040 = vpop.f32.mrf.mxu0
  %v4041 = vpop.f32.mrf.mxu0
  %v4042 = vadd.f32 %v3983, %v4041
  %v4043 = vpop.f32.mrf.mxu0
  %4044 = vmatprep.mubr.bf16.mxu0 0
  %4045 = vmatmul.mubr.bf16.gmra.mxu0 %v4002
  %v4046 = vpop.f32.mrf.mxu0
  %v4047 = vadd.f32 %v3988, %v4046
  %v4048 = vpop.f32.mrf.mxu0
  %v4049 = vpop.f32.mrf.mxu0
  %v4050 = vpop.f32.mrf.mxu0
  %4051 = vdwg.mxu0
  %v4052 = vmax.f32 %v4039, 0.0
  %v4053 = vmax.f32 %v4042, 0.0
  %v4054 = vmax.f32 %v4047, 0.0
  %4055 = vrot.lane.b32.xlu0 %v4052, 9
  %v4056 = vpop.permute.xlu0 %4055
  %4057 = vrot.lane.b32.xlu0 %v4053, 9
  %v4058 = vpop.permute.xlu0 %4057
  %4059 = vrot.lane.b32.xlu0 %v4054, 9
  %v4060 = vpop.permute.xlu0 %4059
  %v4061 = vsel %vm3616, %v4056, 0.0
  %v4062 = vsel %vm3616, %v4058, 0.0
  %v4063 = vsel %vm3616, %v4060, 0.0
  %4064 = vrot.lane.b32.xlu0 %v4052, 8
  %v4065 = vpop.permute.xlu0 %4064
  %4066 = vrot.lane.b32.xlu0 %v4053, 8
  %v4067 = vpop.permute.xlu0 %4066
  %4068 = vrot.lane.b32.xlu0 %v4054, 8
  %v4069 = vpop.permute.xlu0 %4068
  %v4070 = vsel %vm3628, %v4065, 0.0
  %v4071 = vsel %vm3628, %v4067, 0.0
  %v4072 = vsel %vm3628, %v4069, 0.0
  %4073 = vrot.lane.b32.xlu0 %v4052, 7
  %v4074 = vpop.permute.xlu0 %4073
  %4075 = vrot.lane.b32.xlu0 %v4053, 7
  %v4076 = vpop.permute.xlu0 %4075
  %4077 = vrot.lane.b32.xlu0 %v4054, 7
  %v4078 = vpop.permute.xlu0 %4077
  %v4079 = vsel %vm3641, %v4074, 0.0
  %v4080 = vsel %vm3641, %v4076, 0.0
  %v4081 = vsel %vm3641, %v4078, 0.0
  %4082 = vrot.lane.b32.xlu0 %v4052, 1
  %v4083 = vpop.permute.xlu0 %4082
  %4084 = vrot.lane.b32.xlu0 %v4053, 1
  %v4085 = vpop.permute.xlu0 %4084
  %4086 = vrot.lane.b32.xlu0 %v4054, 1
  %v4087 = vpop.permute.xlu0 %4086
  %v4088 = vsel %vm3654, %v4083, 0.0
  %v4089 = vsel %vm3654, %v4085, 0.0
  %v4090 = vsel %vm3654, %v4087, 0.0
  %4091 = vrot.lane.b32.xlu0 %v4052, 127
  %v4092 = vpop.permute.xlu0 %4091
  %4093 = vrot.lane.b32.xlu0 %v4053, 127
  %v4094 = vpop.permute.xlu0 %4093
  %4095 = vrot.lane.b32.xlu0 %v4054, 127
  %v4096 = vpop.permute.xlu0 %4095
  %v4097 = vsel %vm3664, %v4092, 0.0
  %v4098 = vsel %vm3664, %v4094, 0.0
  %v4099 = vsel %vm3664, %v4096, 0.0
  %4100 = vrot.lane.b32.xlu0 %v4052, 121
  %v4101 = vpop.permute.xlu0 %4100
  %4102 = vrot.lane.b32.xlu0 %v4053, 121
  %v4103 = vpop.permute.xlu0 %4102
  %4104 = vrot.lane.b32.xlu0 %v4054, 121
  %v4105 = vpop.permute.xlu0 %4104
  %v4106 = vsel %vm3678, %v4101, 0.0
  %v4107 = vsel %vm3678, %v4103, 0.0
  %v4108 = vsel %vm3678, %v4105, 0.0
  %4109 = vrot.lane.b32.xlu0 %v4052, 120
  %v4110 = vpop.permute.xlu0 %4109
  %4111 = vrot.lane.b32.xlu0 %v4053, 120
  %v4112 = vpop.permute.xlu0 %4111
  %4113 = vrot.lane.b32.xlu0 %v4054, 120
  %v4114 = vpop.permute.xlu0 %4113
  %v4115 = vsel %vm3688, %v4110, 0.0
  %v4116 = vsel %vm3688, %v4112, 0.0
  %v4117 = vsel %vm3688, %v4114, 0.0
  %4118 = vrot.lane.b32.xlu0 %v4052, 119
  %v4119 = vpop.permute.xlu0 %4118
  %4120 = vrot.lane.b32.xlu0 %v4053, 119
  %v4121 = vpop.permute.xlu0 %4120
  %4122 = vrot.lane.b32.xlu0 %v4054, 119
  %v4123 = vpop.permute.xlu0 %4122
  %v4124 = vsel %vm3698, %v4119, 0.0
  %v4125 = vsel %vm3698, %v4121, 0.0
  %v4126 = vsel %vm3698, %v4123, 0.0
  %v4127 = vpack.c.bf16 %v4062, %v4061
  %v4128 = vpack.c.bf16 %v4070, %v4063
  %v4129 = vpack.c.bf16 %v4072, %v4071
  %v4130 = vpack.c.bf16 %v4080, %v4079
  %v4131 = vpack.c.bf16 %v4088, %v4081
  %v4132 = vpack.c.bf16 %v4090, %v4089
  %v4133 = vpack.c.bf16 %v4053, %v4052
  %v4134 = vpack.c.bf16 %v4097, %v4054
  %v4135 = vpack.c.bf16 %v4099, %v4098
  %v4136 = vpack.c.bf16 %v4107, %v4106
  %v4137 = vpack.c.bf16 %v4115, %v4108
  %v4138 = vpack.c.bf16 %v4117, %v4116
  %v4139 = vpack.c.bf16 %v4125, %v4124
  %v4140 = vpack.c.bf16 %v4126, %v4126
  %v4141 = vld [vmem:[%s65] sm:$0xff]
  %v4142 = vld [vmem:[%s65 + $0x8] sm:$0xff]
  %v4143 = vld [vmem:[%s65 + $0x10] sm:$0xff]
  %v4144 = vld [vmem:[%s67] sm:$0xff]
  %v4145 = vld [vmem:[%s67 + $0x8] sm:$0xff]
  %v4146 = vld [vmem:[%s67 + $0x10] sm:$0xff]
  %4148 = vset.pattern.permute.xlu0 0
  %4149 = vperm.xlu0 %4148, %v4144
  %v4150 = vpop.permute.xlu0 %4149
  %4153 = vset.pattern.permute.xlu0 0
  %4154 = vperm.xlu0 %4153, %v4145
  %v4155 = vpop.permute.xlu0 %4154
  %4158 = vset.pattern.permute.xlu0 0
  %4159 = vperm.xlu0 %4158, %v4146
  %v4160 = vpop.permute.xlu0 %4159
  %v4165 = vunpack.c.l.b16 %v4141
  %v4166 = vunpack.c.h.b16 %v4141
  %v4167 = vunpack.c.l.b16 %v4142
  %v4168 = vunpack.c.h.b16 %v4142
  %v4169 = vunpack.c.l.b16 %v4143
  %v4170 = vunpack.c.h.b16 %v4143
  %v4171 = vpack.c.b16 %v4167, %v4165
  %v4172 = vpack.c.b16 %v4168, %v4166
  %v4173 = vpack.c.b16 %v4169, %v4169
  %v4174 = vpack.c.b16 %v4170, %v4170
  %vm4177 = vcmask 719872
  %v4179 = vsel %vm4177, %v4172, 0
  %v4182 = vsel %vm4177, %v4174, 0
  %v4185 = vsel %vm1102, %v4140, 0
  %4187 = vmatprep.subr.bf16.mxu0 0
  %4188 = vmatpush1.bf16.msra.mxu0 %v4134
  %4189 = vmatprep.subr.bf16.mxu0 0
  %4190 = vmatpush1.bf16.msra.mxu0 %v4133
  %4191 = vmatprep.subr.bf16.mxu0 0
  %4192 = vmatpush1.bf16.msra.mxu0 %v4132
  %4193 = vmatprep.subr.bf16.mxu0 0
  %4194 = vmatpush1.bf16.msra.mxu0 %v4131
  %4195 = vmatprep.subr.bf16.mxu0 0
  %4196 = vmatpush1.bf16.msra.mxu0 %v4130
  %4197 = vmatprep.subr.bf16.mxu0 0
  %4198 = vmatpush1.bf16.msra.mxu0 %v4129
  %4199 = vmatprep.subr.bf16.mxu0 0
  %4200 = vmatpush1.bf16.msra.mxu0 %v4128
  %4201 = vmatprep.subr.bf16.mxu0 0
  %4202 = vmatpush1.bf16.msra.mxu0 %v4127
  %4203 = vmatprep.subr.bf16.mxu0 0
  %4204 = vmatpush2.bf16.msra.mxu0 0
  %4205 = vmatprep.subr.bf16.mxu0 0
  %4206 = vmatpush2.bf16.msra.mxu0 0
  %4207 = vmatprep.subr.bf16.mxu0 0
  %4208 = vmatpush2.bf16.msra.mxu0 %v4185
  %4209 = vmatprep.subr.bf16.mxu0 0
  %4210 = vmatpush2.bf16.msra.mxu0 %v4139
  %4211 = vmatprep.subr.bf16.mxu0 0
  %4212 = vmatpush2.bf16.msra.mxu0 %v4138
  %4213 = vmatprep.subr.bf16.mxu0 0
  %4214 = vmatpush2.bf16.msra.mxu0 %v4137
  %4215 = vmatprep.subr.bf16.mxu0 0
  %4216 = vmatpush2.bf16.msra.mxu0 %v4136
  %4217 = vmatprep.subr.bf16.mxu0 0
  %4218 = vmatpush2.bf16.msra.mxu0 %v4135
  %4219 = vmatprep.mubr.bf16.mxu0 %v4179
  %4220 = vmatmul.mubr.bf16.gmra.mxu0 %v4171
  %v4221 = vpop.f32.mrf.mxu0
  %v4222 = vadd.f32 %v4150, %v4221
  %v4223 = vpop.f32.mrf.mxu0
  %v4224 = vpop.f32.mrf.mxu0
  %v4225 = vadd.f32 %v4155, %v4224
  %v4226 = vpop.f32.mrf.mxu0
  %4227 = vmatprep.mubr.bf16.mxu0 %v4182
  %4228 = vmatmul.mubr.bf16.gmra.mxu0 %v4173
  %v4229 = vpop.f32.mrf.mxu0
  %v4230 = vadd.f32 %v4160, %v4229
  %v4231 = vpop.f32.mrf.mxu0
  %v4232 = vpop.f32.mrf.mxu0
  %v4233 = vpop.f32.mrf.mxu0
  %4234 = vdwg.mxu0
  %v4235 = vmax.f32 %v4222, 0.0
  %v4236 = vmax.f32 %v4225, 0.0
  %v4237 = vmax.f32 %v4230, 0.0
  %v4238 = vpack.c.bf16 %v4236, %v4235
  %v4239 = vpack.c.bf16 %v4237, %v4237
  %v4240 = vld [vmem:[%s69] sm:$0xf]
  %v4241 = vld [vmem:[%s69 + $0x4] sm:$0xf]
  %v4242 = vld [vmem:[%s69 + $0x8] sm:$0xf]
  %v4243 = vld [vmem:[%s69 + $0xc] sm:$0xf]
  %v4244 = vld [vmem:[%s69 + $0x10] sm:$0xf]
  %v4245 = vld [vmem:[%s69 + $0x14] sm:$0xf]
  %v4246 = vld [vmem:[%s69 + $0x18] sm:$0xf]
  %v4247 = vld [vmem:[%s69 + $0x1c] sm:$0xf]
  %v4248 = vld [vmem:[%s69 + $0x20] sm:$0xf]
  %v4249 = vld [vmem:[%s69 + $0x24] sm:$0xf]
  %v4250 = vld [vmem:[%s69 + $0x28] sm:$0xf]
  %v4251 = vld [vmem:[%s69 + $0x2c] sm:$0xf]
  %v4252 = vld [vmem:[%s71] sm:$0xff]
  %v4253 = vld [vmem:[%s71 + $0x8] sm:$0xff]
  %v4254 = vld [vmem:[%s71 + $0x10] sm:$0xff]
  %v4255 = vld [vmem:[%s71 + $0x18] sm:$0xff]
  %v4256 = vld [vmem:[%s71 + $0x20] sm:$0xff]
  %v4257 = vld [vmem:[%s71 + $0x28] sm:$0xff]
  %v4258 = vld [vmem:[%s71 + $0x30] sm:$0xff]
  %v4259 = vld [vmem:[%s71 + $0x38] sm:$0xff]
  %v4260 = vld [vmem:[%s71 + $0x40] sm:$0xff]
  %v4261 = vld [vmem:[%s71 + $0x48] sm:$0xff]
  %v4262 = vld [vmem:[%s71 + $0x50] sm:$0xff]
  %v4263 = vld [vmem:[%s71 + $0x58] sm:$0xff]
  %4265 = vset.pattern.permute.xlu0 0
  %4266 = vperm.xlu0 %4265, %v4252
  %v4267 = vpop.permute.xlu0 %4266
  %4270 = vset.pattern.permute.xlu0 0
  %4271 = vperm.xlu0 %4270, %v4253
  %v4272 = vpop.permute.xlu0 %4271
  %4275 = vset.pattern.permute.xlu0 0
  %4276 = vperm.xlu0 %4275, %v4254
  %v4277 = vpop.permute.xlu0 %4276
  %4280 = vset.pattern.permute.xlu0 0
  %4281 = vperm.xlu0 %4280, %v4255
  %v4282 = vpop.permute.xlu0 %4281
  %4285 = vset.pattern.permute.xlu0 0
  %4286 = vperm.xlu0 %4285, %v4256
  %v4287 = vpop.permute.xlu0 %4286
  %4290 = vset.pattern.permute.xlu0 0
  %4291 = vperm.xlu0 %4290, %v4257
  %v4292 = vpop.permute.xlu0 %4291
  %4295 = vset.pattern.permute.xlu0 0
  %4296 = vperm.xlu0 %4295, %v4258
  %v4297 = vpop.permute.xlu0 %4296
  %4300 = vset.pattern.permute.xlu0 0
  %4301 = vperm.xlu0 %4300, %v4259
  %v4302 = vpop.permute.xlu0 %4301
  %4305 = vset.pattern.permute.xlu0 0
  %4306 = vperm.xlu0 %4305, %v4260
  %v4307 = vpop.permute.xlu0 %4306
  %4310 = vset.pattern.permute.xlu0 0
  %4311 = vperm.xlu0 %4310, %v4261
  %v4312 = vpop.permute.xlu0 %4311
  %4315 = vset.pattern.permute.xlu0 0
  %4316 = vperm.xlu0 %4315, %v4262
  %v4317 = vpop.permute.xlu0 %4316
  %4320 = vset.pattern.permute.xlu0 0
  %4321 = vperm.xlu0 %4320, %v4263
  %v4322 = vpop.permute.xlu0 %4321
  %v4336 = vunpack.c.l.b16 %v4240
  %v4337 = vunpack.c.l.b16 %v4241
  %v4338 = vunpack.c.l.b16 %v4242
  %v4339 = vunpack.c.l.b16 %v4243
  %v4340 = vunpack.c.l.b16 %v4244
  %v4341 = vunpack.c.l.b16 %v4245
  %v4342 = vunpack.c.l.b16 %v4246
  %v4343 = vunpack.c.l.b16 %v4247
  %v4344 = vunpack.c.l.b16 %v4248
  %v4345 = vunpack.c.l.b16 %v4249
  %v4346 = vunpack.c.l.b16 %v4250
  %v4347 = vunpack.c.l.b16 %v4251
  %v4348 = vpack.c.b16 %v4337, %v4336
  %v4349 = vpack.c.b16 %v4339, %v4338
  %v4350 = vpack.c.b16 %v4341, %v4340
  %v4351 = vpack.c.b16 %v4343, %v4342
  %v4352 = vpack.c.b16 %v4345, %v4344
  %v4353 = vpack.c.b16 %v4347, %v4346
  %vm4354 = vcmask 195584
  %v4356 = vsel %vm4354, %v4348, 0
  %v4359 = vsel %vm4354, %v4349, 0
  %v4362 = vsel %vm4354, %v4350, 0
  %v4365 = vsel %vm4354, %v4351, 0
  %v4368 = vsel %vm4354, %v4352, 0
  %v4371 = vsel %vm4354, %v4353, 0
  %v4374 = vsel %vm1102, %v4239, 0
  %4376 = vmatprep.subr.bf16.mxu0 0
  %4377 = vmatpush1.bf16.msra.mxu0 0
  %4378 = vmatprep.subr.bf16.mxu0 0
  %4379 = vmatpush1.bf16.msra.mxu0 0
  %4380 = vmatprep.subr.bf16.mxu0 0
  %4381 = vmatpush1.bf16.msra.mxu0 0
  %4382 = vmatprep.subr.bf16.mxu0 0
  %4383 = vmatpush1.bf16.msra.mxu0 0
  %4384 = vmatprep.subr.bf16.mxu0 0
  %4385 = vmatpush1.bf16.msra.mxu0 0
  %4386 = vmatprep.subr.bf16.mxu0 0
  %4387 = vmatpush1.bf16.msra.mxu0 0
  %4388 = vmatprep.subr.bf16.mxu0 0
  %4389 = vmatpush1.bf16.msra.mxu0 %v4374
  %4390 = vmatprep.subr.bf16.mxu0 0
  %4391 = vmatpush1.bf16.msra.mxu0 %v4238
  %4392 = vmatprep.subr.bf16.mxu0 0
  %4393 = vmatpush2.bf16.msra.mxu0 0
  %4394 = vmatprep.subr.bf16.mxu0 0
  %4395 = vmatpush2.bf16.msra.mxu0 0
  %4396 = vmatprep.subr.bf16.mxu0 0
  %4397 = vmatpush2.bf16.msra.mxu0 0
  %4398 = vmatprep.subr.bf16.mxu0 0
  %4399 = vmatpush2.bf16.msra.mxu0 0
  %4400 = vmatprep.subr.bf16.mxu0 0
  %4401 = vmatpush2.bf16.msra.mxu0 0
  %4402 = vmatprep.subr.bf16.mxu0 0
  %4403 = vmatpush2.bf16.msra.mxu0 0
  %4404 = vmatprep.subr.bf16.mxu0 0
  %4405 = vmatpush2.bf16.msra.mxu0 0
  %4406 = vmatprep.subr.bf16.mxu0 0
  %4407 = vmatpush2.bf16.msra.mxu0 0
  %4408 = vmatprep.mubr.bf16.mxu0 0
  %4409 = vmatmul.mubr.bf16.gmra.mxu0 %v4356
  %v4410 = vpop.f32.mrf.mxu0
  %v4411 = vadd.f32 %v4267, %v4410
  %v4412 = vpop.f32.mrf.mxu0
  %v4413 = vpop.f32.mrf.mxu0
  %v4414 = vadd.f32 %v4272, %v4413
  %v4415 = vpop.f32.mrf.mxu0
  %4416 = vmatprep.mubr.bf16.mxu0 0
  %4417 = vmatmul.mubr.bf16.gmra.mxu0 %v4359
  %v4418 = vpop.f32.mrf.mxu0
  %v4419 = vadd.f32 %v4277, %v4418
  %v4420 = vpop.f32.mrf.mxu0
  %v4421 = vpop.f32.mrf.mxu0
  %v4422 = vadd.f32 %v4282, %v4421
  %v4423 = vpop.f32.mrf.mxu0
  %4424 = vmatprep.mubr.bf16.mxu0 0
  %4425 = vmatmul.mubr.bf16.gmra.mxu0 %v4362
  %v4426 = vpop.f32.mrf.mxu0
  %v4427 = vadd.f32 %v4287, %v4426
  %v4428 = vpop.f32.mrf.mxu0
  %v4429 = vpop.f32.mrf.mxu0
  %v4430 = vadd.f32 %v4292, %v4429
  %v4431 = vpop.f32.mrf.mxu0
  %4432 = vmatprep.mubr.bf16.mxu0 0
  %4433 = vmatmul.mubr.bf16.gmra.mxu0 %v4365
  %v4434 = vpop.f32.mrf.mxu0
  %v4435 = vadd.f32 %v4297, %v4434
  %v4436 = vpop.f32.mrf.mxu0
  %v4437 = vpop.f32.mrf.mxu0
  %v4438 = vadd.f32 %v4302, %v4437
  %v4439 = vpop.f32.mrf.mxu0
  %4440 = vmatprep.mubr.bf16.mxu0 0
  %4441 = vmatmul.mubr.bf16.gmra.mxu0 %v4368
  %v4442 = vpop.f32.mrf.mxu0
  %v4443 = vadd.f32 %v4307, %v4442
  %v4444 = vpop.f32.mrf.mxu0
  %v4445 = vpop.f32.mrf.mxu0
  %v4446 = vadd.f32 %v4312, %v4445
  %v4447 = vpop.f32.mrf.mxu0
  %4448 = vmatprep.mubr.bf16.mxu0 0
  %4449 = vmatmul.mubr.bf16.gmra.mxu0 %v4371
  %v4450 = vpop.f32.mrf.mxu0
  %v4451 = vadd.f32 %v4317, %v4450
  %v4452 = vpop.f32.mrf.mxu0
  %v4453 = vpop.f32.mrf.mxu0
  %v4454 = vadd.f32 %v4322, %v4453
  %v4455 = vpop.f32.mrf.mxu0
  %4456 = vdwg.mxu0
  %v4457 = vmax.f32 %v4411, 0.0
  %v4458 = vmax.f32 %v4414, 0.0
  %v4459 = vmax.f32 %v4419, 0.0
  %v4460 = vmax.f32 %v4422, 0.0
  %v4461 = vmax.f32 %v4427, 0.0
  %v4462 = vmax.f32 %v4430, 0.0
  %v4463 = vmax.f32 %v4435, 0.0
  %v4464 = vmax.f32 %v4438, 0.0
  %v4465 = vmax.f32 %v4443, 0.0
  %v4466 = vmax.f32 %v4446, 0.0
  %v4467 = vmax.f32 %v4451, 0.0
  %v4468 = vmax.f32 %v4454, 0.0
  %v4469 = vld [vmem:[%s73] sm:$0xf]
  %v4470 = vld [vmem:[%s73 + $0x4] sm:$0xf]
  %v4471 = vld [vmem:[%s73 + $0x8] sm:$0xf]
  %v4472 = vld [vmem:[%s73 + $0xc] sm:$0xf]
  %v4473 = vld [vmem:[%s73 + $0x10] sm:$0xf]
  %v4474 = vld [vmem:[%s73 + $0x14] sm:$0xf]
  %v4475 = vld [vmem:[%s73 + $0x18] sm:$0xf]
  %v4476 = vld [vmem:[%s73 + $0x1c] sm:$0xf]
  %v4477 = vld [vmem:[%s73 + $0x20] sm:$0xf]
  %v4478 = vld [vmem:[%s73 + $0x24] sm:$0xf]
  %v4479 = vld [vmem:[%s73 + $0x28] sm:$0xf]
  %v4480 = vld [vmem:[%s73 + $0x2c] sm:$0xf]
  %v4481 = vld [vmem:[%s75] sm:$0xff]
  %v4482 = vld [vmem:[%s75 + $0x8] sm:$0xff]
  %v4483 = vld [vmem:[%s75 + $0x10] sm:$0xff]
  %v4484 = vld [vmem:[%s75 + $0x18] sm:$0xff]
  %v4485 = vld [vmem:[%s75 + $0x20] sm:$0xff]
  %v4486 = vld [vmem:[%s75 + $0x28] sm:$0xff]
  %v4487 = vld [vmem:[%s75 + $0x30] sm:$0xff]
  %v4488 = vld [vmem:[%s75 + $0x38] sm:$0xff]
  %v4489 = vld [vmem:[%s75 + $0x40] sm:$0xff]
  %v4490 = vld [vmem:[%s75 + $0x48] sm:$0xff]
  %v4491 = vld [vmem:[%s75 + $0x50] sm:$0xff]
  %v4492 = vld [vmem:[%s75 + $0x58] sm:$0xff]
  %4494 = vset.pattern.permute.xlu0 0
  %4495 = vperm.xlu0 %4494, %v4481
  %v4496 = vpop.permute.xlu0 %4495
  %4499 = vset.pattern.permute.xlu0 0
  %4500 = vperm.xlu0 %4499, %v4482
  %v4501 = vpop.permute.xlu0 %4500
  %4504 = vset.pattern.permute.xlu0 0
  %4505 = vperm.xlu0 %4504, %v4483
  %v4506 = vpop.permute.xlu0 %4505
  %4509 = vset.pattern.permute.xlu0 0
  %4510 = vperm.xlu0 %4509, %v4484
  %v4511 = vpop.permute.xlu0 %4510
  %4514 = vset.pattern.permute.xlu0 0
  %4515 = vperm.xlu0 %4514, %v4485
  %v4516 = vpop.permute.xlu0 %4515
  %4519 = vset.pattern.permute.xlu0 0
  %4520 = vperm.xlu0 %4519, %v4486
  %v4521 = vpop.permute.xlu0 %4520
  %4524 = vset.pattern.permute.xlu0 0
  %4525 = vperm.xlu0 %4524, %v4487
  %v4526 = vpop.permute.xlu0 %4525
  %4529 = vset.pattern.permute.xlu0 0
  %4530 = vperm.xlu0 %4529, %v4488
  %v4531 = vpop.permute.xlu0 %4530
  %4534 = vset.pattern.permute.xlu0 0
  %4535 = vperm.xlu0 %4534, %v4489
  %v4536 = vpop.permute.xlu0 %4535
  %4539 = vset.pattern.permute.xlu0 0
  %4540 = vperm.xlu0 %4539, %v4490
  %v4541 = vpop.permute.xlu0 %4540
  %4544 = vset.pattern.permute.xlu0 0
  %4545 = vperm.xlu0 %4544, %v4491
  %v4546 = vpop.permute.xlu0 %4545
  %4549 = vset.pattern.permute.xlu0 0
  %4550 = vperm.xlu0 %4549, %v4492
  %v4551 = vpop.permute.xlu0 %4550
  %v4565 = vunpack.c.l.b16 %v4469
  %v4566 = vunpack.c.l.b16 %v4470
  %v4567 = vunpack.c.l.b16 %v4471
  %v4568 = vunpack.c.l.b16 %v4472
  %v4569 = vunpack.c.l.b16 %v4473
  %v4570 = vunpack.c.l.b16 %v4474
  %v4571 = vunpack.c.l.b16 %v4475
  %v4572 = vunpack.c.l.b16 %v4476
  %v4573 = vunpack.c.l.b16 %v4477
  %v4574 = vunpack.c.l.b16 %v4478
  %v4575 = vunpack.c.l.b16 %v4479
  %v4576 = vunpack.c.l.b16 %v4480
  %v4577 = vpack.c.b16 %v4566, %v4565
  %v4578 = vpack.c.b16 %v4568, %v4567
  %v4579 = vpack.c.b16 %v4570, %v4569
  %v4580 = vpack.c.b16 %v4572, %v4571
  %v4581 = vpack.c.b16 %v4574, %v4573
  %v4582 = vpack.c.b16 %v4576, %v4575
  %v4584 = vsel %vm3552, %v4577, 0
  %v4587 = vsel %vm3552, %v4578, 0
  %v4590 = vsel %vm3552, %v4579, 0
  %v4593 = vsel %vm3552, %v4580, 0
  %v4596 = vsel %vm3552, %v4581, 0
  %v4599 = vsel %vm3552, %v4582, 0
  %4601 = vmatprep.subr.bf16.mxu0 0
  %4602 = vmatpush1.bf16.msra.mxu0 0
  %4603 = vmatprep.subr.bf16.mxu0 0
  %4604 = vmatpush1.bf16.msra.mxu0 0
  %4605 = vmatprep.subr.bf16.mxu0 0
  %4606 = vmatpush1.bf16.msra.mxu0 0
  %4607 = vmatprep.subr.bf16.mxu0 0
  %4608 = vmatpush1.bf16.msra.mxu0 0
  %4609 = vmatprep.subr.bf16.mxu0 0
  %4610 = vmatpush1.bf16.msra.mxu0 %v3968
  %4611 = vmatprep.subr.bf16.mxu0 0
  %4612 = vmatpush1.bf16.msra.mxu0 %v3967
  %4613 = vmatprep.subr.bf16.mxu0 0
  %4614 = vmatpush1.bf16.msra.mxu0 %v3966
  %4615 = vmatprep.subr.bf16.mxu0 0
  %4616 = vmatpush1.bf16.msra.mxu0 %v3965
  %4617 = vmatprep.subr.bf16.mxu0 0
  %4618 = vmatpush2.bf16.msra.mxu0 0
  %4619 = vmatprep.subr.bf16.mxu0 0
  %4620 = vmatpush2.bf16.msra.mxu0 0
  %4621 = vmatprep.subr.bf16.mxu0 0
  %4622 = vmatpush2.bf16.msra.mxu0 0
  %4623 = vmatprep.subr.bf16.mxu0 0
  %4624 = vmatpush2.bf16.msra.mxu0 0
  %4625 = vmatprep.subr.bf16.mxu0 0
  %4626 = vmatpush2.bf16.msra.mxu0 0
  %4627 = vmatprep.subr.bf16.mxu0 0
  %4628 = vmatpush2.bf16.msra.mxu0 0
  %4629 = vmatprep.subr.bf16.mxu0 0
  %4630 = vmatpush2.bf16.msra.mxu0 0
  %4631 = vmatprep.subr.bf16.mxu0 0
  %4632 = vmatpush2.bf16.msra.mxu0 0
  %4633 = vmatprep.mubr.bf16.mxu0 0
  %4634 = vmatmul.mubr.bf16.gmra.mxu0 %v4584
  %v4635 = vpop.f32.mrf.mxu0
  %v4636 = vadd.f32 %v4496, %v4635
  %v4637 = vpop.f32.mrf.mxu0
  %v4638 = vpop.f32.mrf.mxu0
  %v4639 = vadd.f32 %v4501, %v4638
  %v4640 = vpop.f32.mrf.mxu0
  %4641 = vmatprep.mubr.bf16.mxu0 0
  %4642 = vmatmul.mubr.bf16.gmra.mxu0 %v4587
  %v4643 = vpop.f32.mrf.mxu0
  %v4644 = vadd.f32 %v4506, %v4643
  %v4645 = vpop.f32.mrf.mxu0
  %v4646 = vpop.f32.mrf.mxu0
  %v4647 = vadd.f32 %v4511, %v4646
  %v4648 = vpop.f32.mrf.mxu0
  %4649 = vmatprep.mubr.bf16.mxu0 0
  %4650 = vmatmul.mubr.bf16.gmra.mxu0 %v4590
  %v4651 = vpop.f32.mrf.mxu0
  %v4652 = vadd.f32 %v4516, %v4651
  %v4653 = vpop.f32.mrf.mxu0
  %v4654 = vpop.f32.mrf.mxu0
  %v4655 = vadd.f32 %v4521, %v4654
  %v4656 = vpop.f32.mrf.mxu0
  %4657 = vmatprep.mubr.bf16.mxu0 0
  %4658 = vmatmul.mubr.bf16.gmra.mxu0 %v4593
  %v4659 = vpop.f32.mrf.mxu0
  %v4660 = vadd.f32 %v4526, %v4659
  %v4661 = vpop.f32.mrf.mxu0
  %v4662 = vpop.f32.mrf.mxu0
  %v4663 = vadd.f32 %v4531, %v4662
  %v4664 = vpop.f32.mrf.mxu0
  %4665 = vmatprep.mubr.bf16.mxu0 0
  %4666 = vmatmul.mubr.bf16.gmra.mxu0 %v4596
  %v4667 = vpop.f32.mrf.mxu0
  %v4668 = vadd.f32 %v4536, %v4667
  %v4669 = vpop.f32.mrf.mxu0
  %v4670 = vpop.f32.mrf.mxu0
  %v4671 = vadd.f32 %v4541, %v4670
  %v4672 = vpop.f32.mrf.mxu0
  %4673 = vmatprep.mubr.bf16.mxu0 0
  %4674 = vmatmul.mubr.bf16.gmra.mxu0 %v4599
  %v4675 = vpop.f32.mrf.mxu0
  %v4676 = vadd.f32 %v4546, %v4675
  %v4677 = vpop.f32.mrf.mxu0
  %v4678 = vpop.f32.mrf.mxu0
  %v4679 = vadd.f32 %v4551, %v4678
  %v4680 = vpop.f32.mrf.mxu0
  %4681 = vdwg.mxu0
  %v4682 = vadd.f32 %v4457, %v4636
  %v4683 = vadd.f32 %v4458, %v4639
  %v4684 = vadd.f32 %v4459, %v4644
  %v4685 = vadd.f32 %v4460, %v4647
  %v4686 = vadd.f32 %v4461, %v4652
  %v4687 = vadd.f32 %v4462, %v4655
  %v4688 = vadd.f32 %v4463, %v4660
  %v4689 = vadd.f32 %v4464, %v4663
  %v4690 = vadd.f32 %v4465, %v4668
  %v4691 = vadd.f32 %v4466, %v4671
  %v4692 = vadd.f32 %v4467, %v4676
  %v4693 = vadd.f32 %v4468, %v4679
  %v4694 = vmax.f32 %v4682, 0.0
  %v4695 = vmax.f32 %v4683, 0.0
  %v4696 = vmax.f32 %v4684, 0.0
  %v4697 = vmax.f32 %v4685, 0.0
  %v4698 = vmax.f32 %v4686, 0.0
  %v4699 = vmax.f32 %v4687, 0.0
  %v4700 = vmax.f32 %v4688, 0.0
  %v4701 = vmax.f32 %v4689, 0.0
  %v4702 = vmax.f32 %v4690, 0.0
  %v4703 = vmax.f32 %v4691, 0.0
  %v4704 = vmax.f32 %v4692, 0.0
  %v4705 = vmax.f32 %v4693, 0.0
  %v4706 = vpack.c.bf16 %v4695, %v4694
  %v4707 = vpack.c.bf16 %v4697, %v4696
  %v4708 = vpack.c.bf16 %v4699, %v4698
  %v4709 = vpack.c.bf16 %v4701, %v4700
  %v4710 = vpack.c.bf16 %v4703, %v4702
  %v4711 = vpack.c.bf16 %v4705, %v4704
  %v4712 = vld [vmem:[%s77] sm:$0xf]
  %v4713 = vld [vmem:[%s77 + $0x4] sm:$0xf]
  %v4714 = vld [vmem:[%s77 + $0x8] sm:$0xf]
  %v4715 = vld [vmem:[%s79] sm:$0xff]
  %v4716 = vld [vmem:[%s79 + $0x8] sm:$0xff]
  %v4717 = vld [vmem:[%s79 + $0x10] sm:$0xff]
  %4719 = vset.pattern.permute.xlu0 0
  %4720 = vperm.xlu0 %4719, %v4715
  %v4721 = vpop.permute.xlu0 %4720
  %4724 = vset.pattern.permute.xlu0 0
  %4725 = vperm.xlu0 %4724, %v4716
  %v4726 = vpop.permute.xlu0 %4725
  %4729 = vset.pattern.permute.xlu0 0
  %4730 = vperm.xlu0 %4729, %v4717
  %v4731 = vpop.permute.xlu0 %4730
  %v4736 = vunpack.c.l.b16 %v4712
  %v4737 = vunpack.c.l.b16 %v4713
  %v4738 = vunpack.c.l.b16 %v4714
  %v4739 = vpack.c.b16 %v4737, %v4736
  %v4740 = vpack.c.b16 %v4738, %v4738
  %vm4741 = vcmask 785408
  %v4743 = vsel %vm4741, %v4739, 0
  %v4746 = vsel %vm4741, %v4740, 0
  %4748 = vmatprep.subr.bf16.mxu0 0
  %4749 = vmatpush1.bf16.msra.mxu0 0
  %4750 = vmatprep.subr.bf16.mxu0 0
  %4751 = vmatpush1.bf16.msra.mxu0 0
  %4752 = vmatprep.subr.bf16.mxu0 0
  %4753 = vmatpush1.bf16.msra.mxu0 %v4711
  %4754 = vmatprep.subr.bf16.mxu0 0
  %4755 = vmatpush1.bf16.msra.mxu0 %v4710
  %4756 = vmatprep.subr.bf16.mxu0 0
  %4757 = vmatpush1.bf16.msra.mxu0 %v4709
  %4758 = vmatprep.subr.bf16.mxu0 0
  %4759 = vmatpush1.bf16.msra.mxu0 %v4708
  %4760 = vmatprep.subr.bf16.mxu0 0
  %4761 = vmatpush1.bf16.msra.mxu0 %v4707
  %4762 = vmatprep.subr.bf16.mxu0 0
  %4763 = vmatpush1.bf16.msra.mxu0 %v4706
  %4764 = vmatprep.subr.bf16.mxu0 0
  %4765 = vmatpush2.bf16.msra.mxu0 0
  %4766 = vmatprep.subr.bf16.mxu0 0
  %4767 = vmatpush2.bf16.msra.mxu0 0
  %4768 = vmatprep.subr.bf16.mxu0 0
  %4769 = vmatpush2.bf16.msra.mxu0 0
  %4770 = vmatprep.subr.bf16.mxu0 0
  %4771 = vmatpush2.bf16.msra.mxu0 0
  %4772 = vmatprep.subr.bf16.mxu0 0
  %4773 = vmatpush2.bf16.msra.mxu0 0
  %4774 = vmatprep.subr.bf16.mxu0 0
  %4775 = vmatpush2.bf16.msra.mxu0 0
  %4776 = vmatprep.subr.bf16.mxu0 0
  %4777 = vmatpush2.bf16.msra.mxu0 0
  %4778 = vmatprep.subr.bf16.mxu0 0
  %4779 = vmatpush2.bf16.msra.mxu0 0
  %4780 = vmatprep.mubr.bf16.mxu0 0
  %4781 = vmatmul.mubr.bf16.gmra.mxu0 %v4743
  %v4782 = vpop.f32.mrf.mxu0
  %v4783 = vadd.f32 %v4721, %v4782
  %v4784 = vpop.f32.mrf.mxu0
  %v4785 = vpop.f32.mrf.mxu0
  %v4786 = vadd.f32 %v4726, %v4785
  %v4787 = vpop.f32.mrf.mxu0
  %4788 = vmatprep.mubr.bf16.mxu0 0
  %4789 = vmatmul.mubr.bf16.gmra.mxu0 %v4746
  %v4790 = vpop.f32.mrf.mxu0
  %v4791 = vadd.f32 %v4731, %v4790
  %v4792 = vpop.f32.mrf.mxu0
  %v4793 = vpop.f32.mrf.mxu0
  %v4794 = vpop.f32.mrf.mxu0
  %4795 = vdwg.mxu0
  %v4796 = vmax.f32 %v4783, 0.0
  %v4797 = vmax.f32 %v4786, 0.0
  %v4798 = vmax.f32 %v4791, 0.0
  %4799 = vrot.lane.b32.xlu0 %v4796, 18
  %v4800 = vpop.permute.xlu0 %4799
  %4801 = vrot.lane.b32.xlu0 %v4797, 18
  %v4802 = vpop.permute.xlu0 %4801
  %4803 = vrot.lane.b32.xlu0 %v4798, 18
  %v4804 = vpop.permute.xlu0 %4803
  %v4805 = vadd.s32 %v3601, 4294967294
  %v4806 = vadd.s32 %v3599, 4294967294
  %vm4807 = vcmp.ge.s32.totalorder %v4805, 0
  %vm4808 = vcmp.le.s32.totalorder %v4805, 6
  %vm4809 = vmand %vm4807, %vm4808
  %vm4810 = vcmp.ge.s32.totalorder %v4806, 0
  %vm4811 = vmand %vm4809, %vm4810
  %vm4812 = vcmp.le.s32.totalorder %v4806, 6
  %vm4813 = vmand %vm4811, %vm4812
  %v4814 = vsel %vm4813, 1, 0
  %vm4815 = vcmp.eq.s32.totalorder %v4814, 1
  %v4816 = vsel %vm4815, %v4800, 0.0
  %v4817 = vsel %vm4815, %v4802, 0.0
  %v4818 = vsel %vm4815, %v4804, 0.0
  %4819 = vrot.lane.b32.xlu0 %v4796, 16
  %v4820 = vpop.permute.xlu0 %4819
  %4821 = vrot.lane.b32.xlu0 %v4797, 16
  %v4822 = vpop.permute.xlu0 %4821
  %4823 = vrot.lane.b32.xlu0 %v4798, 16
  %v4824 = vpop.permute.xlu0 %4823
  %vm4825 = vmand %vm4809, %vm3623
  %vm4826 = vcmp.le.s32.totalorder %v3599, 6
  %vm4827 = vmand %vm4825, %vm4826
  %v4828 = vsel %vm4827, 1, 0
  %vm4829 = vcmp.eq.s32.totalorder %v4828, 1
  %v4830 = vsel %vm4829, %v4820, 0.0
  %v4831 = vsel %vm4829, %v4822, 0.0
  %v4832 = vsel %vm4829, %v4824, 0.0
  %4833 = vrot.lane.b32.xlu0 %v4796, 14
  %v4834 = vpop.permute.xlu0 %4833
  %4835 = vrot.lane.b32.xlu0 %v4797, 14
  %v4836 = vpop.permute.xlu0 %4835
  %4837 = vrot.lane.b32.xlu0 %v4798, 14
  %v4838 = vpop.permute.xlu0 %4837
  %v4839 = vadd.s32 %v3599, 2
  %vm4840 = vcmp.ge.s32.totalorder %v4839, 0
  %vm4841 = vmand %vm4809, %vm4840
  %vm4842 = vcmp.le.s32.totalorder %v4839, 6
  %vm4843 = vmand %vm4841, %vm4842
  %v4844 = vsel %vm4843, 1, 0
  %vm4845 = vcmp.eq.s32.totalorder %v4844, 1
  %v4846 = vsel %vm4845, %v4834, 0.0
  %v4847 = vsel %vm4845, %v4836, 0.0
  %v4848 = vsel %vm4845, %v4838, 0.0
  %4849 = vrot.lane.b32.xlu0 %v4796, 2
  %v4850 = vpop.permute.xlu0 %4849
  %4851 = vrot.lane.b32.xlu0 %v4797, 2
  %v4852 = vpop.permute.xlu0 %4851
  %4853 = vrot.lane.b32.xlu0 %v4798, 2
  %v4854 = vpop.permute.xlu0 %4853
  %vm4855 = vcmp.le.s32.totalorder %v3601, 6
  %vm4856 = vmand %vm3648, %vm4855
  %vm4857 = vmand %vm4856, %vm4810
  %vm4858 = vmand %vm4857, %vm4812
  %v4859 = vsel %vm4858, 1, 0
  %vm4860 = vcmp.eq.s32.totalorder %v4859, 1
  %v4861 = vsel %vm4860, %v4850, 0.0
  %v4862 = vsel %vm4860, %v4852, 0.0
  %v4863 = vsel %vm4860, %v4854, 0.0
  %4864 = vrot.lane.b32.xlu0 %v4796, 126
  %v4865 = vpop.permute.xlu0 %4864
  %4866 = vrot.lane.b32.xlu0 %v4797, 126
  %v4867 = vpop.permute.xlu0 %4866
  %4868 = vrot.lane.b32.xlu0 %v4798, 126
  %v4869 = vpop.permute.xlu0 %4868
  %vm4870 = vmand %vm4856, %vm4840
  %vm4871 = vmand %vm4870, %vm4842
  %v4872 = vsel %vm4871, 1, 0
  %vm4873 = vcmp.eq.s32.totalorder %v4872, 1
  %v4874 = vsel %vm4873, %v4865, 0.0
  %v4875 = vsel %vm4873, %v4867, 0.0
  %v4876 = vsel %vm4873, %v4869, 0.0
  %4877 = vrot.lane.b32.xlu0 %v4796, 114
  %v4878 = vpop.permute.xlu0 %4877
  %4879 = vrot.lane.b32.xlu0 %v4797, 114
  %v4880 = vpop.permute.xlu0 %4879
  %4881 = vrot.lane.b32.xlu0 %v4798, 114
  %v4882 = vpop.permute.xlu0 %4881
  %v4883 = vadd.s32 %v3601, 2
  %vm4884 = vcmp.ge.s32.totalorder %v4883, 0
  %vm4885 = vcmp.le.s32.totalorder %v4883, 6
  %vm4886 = vmand %vm4884, %vm4885
  %vm4887 = vmand %vm4886, %vm4810
  %vm4888 = vmand %vm4887, %vm4812
  %v4889 = vsel %vm4888, 1, 0
  %vm4890 = vcmp.eq.s32.totalorder %v4889, 1
  %v4891 = vsel %vm4890, %v4878, 0.0
  %v4892 = vsel %vm4890, %v4880, 0.0
  %v4893 = vsel %vm4890, %v4882, 0.0
  %4894 = vrot.lane.b32.xlu0 %v4796, 112
  %v4895 = vpop.permute.xlu0 %4894
  %4896 = vrot.lane.b32.xlu0 %v4797, 112
  %v4897 = vpop.permute.xlu0 %4896
  %4898 = vrot.lane.b32.xlu0 %v4798, 112
  %v4899 = vpop.permute.xlu0 %4898
  %vm4900 = vmand %vm4886, %vm3623
  %vm4901 = vmand %vm4900, %vm4826
  %v4902 = vsel %vm4901, 1, 0
  %vm4903 = vcmp.eq.s32.totalorder %v4902, 1
  %v4904 = vsel %vm4903, %v4895, 0.0
  %v4905 = vsel %vm4903, %v4897, 0.0
  %v4906 = vsel %vm4903, %v4899, 0.0
  %4907 = vrot.lane.b32.xlu0 %v4796, 110
  %v4908 = vpop.permute.xlu0 %4907
  %4909 = vrot.lane.b32.xlu0 %v4797, 110
  %v4910 = vpop.permute.xlu0 %4909
  %4911 = vrot.lane.b32.xlu0 %v4798, 110
  %v4912 = vpop.permute.xlu0 %4911
  %vm4913 = vmand %vm4886, %vm4840
  %vm4914 = vmand %vm4913, %vm4842
  %v4915 = vsel %vm4914, 1, 0
  %vm4916 = vcmp.eq.s32.totalorder %v4915, 1
  %v4917 = vsel %vm4916, %v4908, 0.0
  %v4918 = vsel %vm4916, %v4910, 0.0
  %v4919 = vsel %vm4916, %v4912, 0.0
  %v4920 = vpack.c.bf16 %v4817, %v4816
  %v4921 = vpack.c.bf16 %v4830, %v4818
  %v4922 = vpack.c.bf16 %v4832, %v4831
  %v4923 = vpack.c.bf16 %v4847, %v4846
  %v4924 = vpack.c.bf16 %v4861, %v4848
  %v4925 = vpack.c.bf16 %v4863, %v4862
  %v4926 = vpack.c.bf16 %v4797, %v4796
  %v4927 = vpack.c.bf16 %v4874, %v4798
  %v4928 = vpack.c.bf16 %v4876, %v4875
  %v4929 = vpack.c.bf16 %v4892, %v4891
  %v4930 = vpack.c.bf16 %v4904, %v4893
  %v4931 = vpack.c.bf16 %v4906, %v4905
  %v4932 = vpack.c.bf16 %v4918, %v4917
  %v4933 = vpack.c.bf16 %v4919, %v4919
  %v4934 = vld [vmem:[%s81] sm:$0xff]
  %v4935 = vld [vmem:[%s81 + $0x8] sm:$0xff]
  %v4936 = vld [vmem:[%s81 + $0x10] sm:$0xff]
  %v4937 = vld [vmem:[%s83] sm:$0xff]
  %v4938 = vld [vmem:[%s83 + $0x8] sm:$0xff]
  %v4939 = vld [vmem:[%s83 + $0x10] sm:$0xff]
  %4941 = vset.pattern.permute.xlu0 0
  %4942 = vperm.xlu0 %4941, %v4937
  %v4943 = vpop.permute.xlu0 %4942
  %4946 = vset.pattern.permute.xlu0 0
  %4947 = vperm.xlu0 %4946, %v4938
  %v4948 = vpop.permute.xlu0 %4947
  %4951 = vset.pattern.permute.xlu0 0
  %4952 = vperm.xlu0 %4951, %v4939
  %v4953 = vpop.permute.xlu0 %4952
  %v4958 = vunpack.c.l.b16 %v4934
  %v4959 = vunpack.c.h.b16 %v4934
  %v4960 = vunpack.c.l.b16 %v4935
  %v4961 = vunpack.c.h.b16 %v4935
  %v4962 = vunpack.c.l.b16 %v4936
  %v4963 = vunpack.c.h.b16 %v4936
  %v4964 = vpack.c.b16 %v4960, %v4958
  %v4965 = vpack.c.b16 %v4961, %v4959
  %v4966 = vpack.c.b16 %v4962, %v4962
  %v4967 = vpack.c.b16 %v4963, %v4963
  %v4971 = vsel %vm4177, %v4965, 0
  %v4974 = vsel %vm4177, %v4967, 0
  %v4977 = vsel %vm1102, %v4933, 0
  %4979 = vmatprep.subr.bf16.mxu0 0
  %4980 = vmatpush1.bf16.msra.mxu0 %v4927
  %4981 = vmatprep.subr.bf16.mxu0 0
  %4982 = vmatpush1.bf16.msra.mxu0 %v4926
  %4983 = vmatprep.subr.bf16.mxu0 0
  %4984 = vmatpush1.bf16.msra.mxu0 %v4925
  %4985 = vmatprep.subr.bf16.mxu0 0
  %4986 = vmatpush1.bf16.msra.mxu0 %v4924
  %4987 = vmatprep.subr.bf16.mxu0 0
  %4988 = vmatpush1.bf16.msra.mxu0 %v4923
  %4989 = vmatprep.subr.bf16.mxu0 0
  %4990 = vmatpush1.bf16.msra.mxu0 %v4922
  %4991 = vmatprep.subr.bf16.mxu0 0
  %4992 = vmatpush1.bf16.msra.mxu0 %v4921
  %4993 = vmatprep.subr.bf16.mxu0 0
  %4994 = vmatpush1.bf16.msra.mxu0 %v4920
  %4995 = vmatprep.subr.bf16.mxu0 0
  %4996 = vmatpush2.bf16.msra.mxu0 0
  %4997 = vmatprep.subr.bf16.mxu0 0
  %4998 = vmatpush2.bf16.msra.mxu0 0
  %4999 = vmatprep.subr.bf16.mxu0 0
  %5000 = vmatpush2.bf16.msra.mxu0 %v4977
  %5001 = vmatprep.subr.bf16.mxu0 0
  %5002 = vmatpush2.bf16.msra.mxu0 %v4932
  %5003 = vmatprep.subr.bf16.mxu0 0
  %5004 = vmatpush2.bf16.msra.mxu0 %v4931
  %5005 = vmatprep.subr.bf16.mxu0 0
  %5006 = vmatpush2.bf16.msra.mxu0 %v4930
  %5007 = vmatprep.subr.bf16.mxu0 0
  %5008 = vmatpush2.bf16.msra.mxu0 %v4929
  %5009 = vmatprep.subr.bf16.mxu0 0
  %5010 = vmatpush2.bf16.msra.mxu0 %v4928
  %5011 = vmatprep.mubr.bf16.mxu0 %v4971
  %5012 = vmatmul.mubr.bf16.gmra.mxu0 %v4964
  %v5013 = vpop.f32.mrf.mxu0
  %v5014 = vadd.f32 %v4943, %v5013
  %v5015 = vpop.f32.mrf.mxu0
  %v5016 = vpop.f32.mrf.mxu0
  %v5017 = vadd.f32 %v4948, %v5016
  %v5018 = vpop.f32.mrf.mxu0
  %5019 = vmatprep.mubr.bf16.mxu0 %v4974
  %5020 = vmatmul.mubr.bf16.gmra.mxu0 %v4966
  %v5021 = vpop.f32.mrf.mxu0
  %v5022 = vadd.f32 %v4953, %v5021
  %v5023 = vpop.f32.mrf.mxu0
  %v5024 = vpop.f32.mrf.mxu0
  %v5025 = vpop.f32.mrf.mxu0
  %5026 = vdwg.mxu0
  %v5027 = vmax.f32 %v5014, 0.0
  %v5028 = vmax.f32 %v5017, 0.0
  %v5029 = vmax.f32 %v5022, 0.0
  %v5030 = vpack.c.bf16 %v5028, %v5027
  %v5031 = vpack.c.bf16 %v5029, %v5029
  %v5032 = vld [vmem:[%s85] sm:$0xf]
  %v5033 = vld [vmem:[%s85 + $0x4] sm:$0xf]
  %v5034 = vld [vmem:[%s85 + $0x8] sm:$0xf]
  %v5035 = vld [vmem:[%s85 + $0xc] sm:$0xf]
  %v5036 = vld [vmem:[%s85 + $0x10] sm:$0xf]
  %v5037 = vld [vmem:[%s85 + $0x14] sm:$0xf]
  %v5038 = vld [vmem:[%s85 + $0x18] sm:$0xf]
  %v5039 = vld [vmem:[%s85 + $0x1c] sm:$0xf]
  %v5040 = vld [vmem:[%s85 + $0x20] sm:$0xf]
  %v5041 = vld [vmem:[%s85 + $0x24] sm:$0xf]
  %v5042 = vld [vmem:[%s85 + $0x28] sm:$0xf]
  %v5043 = vld [vmem:[%s85 + $0x2c] sm:$0xf]
  %v5044 = vld [vmem:[%s87] sm:$0xff]
  %v5045 = vld [vmem:[%s87 + $0x8] sm:$0xff]
  %v5046 = vld [vmem:[%s87 + $0x10] sm:$0xff]
  %v5047 = vld [vmem:[%s87 + $0x18] sm:$0xff]
  %v5048 = vld [vmem:[%s87 + $0x20] sm:$0xff]
  %v5049 = vld [vmem:[%s87 + $0x28] sm:$0xff]
  %v5050 = vld [vmem:[%s87 + $0x30] sm:$0xff]
  %v5051 = vld [vmem:[%s87 + $0x38] sm:$0xff]
  %v5052 = vld [vmem:[%s87 + $0x40] sm:$0xff]
  %v5053 = vld [vmem:[%s87 + $0x48] sm:$0xff]
  %v5054 = vld [vmem:[%s87 + $0x50] sm:$0xff]
  %v5055 = vld [vmem:[%s87 + $0x58] sm:$0xff]
  %5057 = vset.pattern.permute.xlu0 0
  %5058 = vperm.xlu0 %5057, %v5044
  %v5059 = vpop.permute.xlu0 %5058
  %5062 = vset.pattern.permute.xlu0 0
  %5063 = vperm.xlu0 %5062, %v5045
  %v5064 = vpop.permute.xlu0 %5063
  %5067 = vset.pattern.permute.xlu0 0
  %5068 = vperm.xlu0 %5067, %v5046
  %v5069 = vpop.permute.xlu0 %5068
  %5072 = vset.pattern.permute.xlu0 0
  %5073 = vperm.xlu0 %5072, %v5047
  %v5074 = vpop.permute.xlu0 %5073
  %5077 = vset.pattern.permute.xlu0 0
  %5078 = vperm.xlu0 %5077, %v5048
  %v5079 = vpop.permute.xlu0 %5078
  %5082 = vset.pattern.permute.xlu0 0
  %5083 = vperm.xlu0 %5082, %v5049
  %v5084 = vpop.permute.xlu0 %5083
  %5087 = vset.pattern.permute.xlu0 0
  %5088 = vperm.xlu0 %5087, %v5050
  %v5089 = vpop.permute.xlu0 %5088
  %5092 = vset.pattern.permute.xlu0 0
  %5093 = vperm.xlu0 %5092, %v5051
  %v5094 = vpop.permute.xlu0 %5093
  %5097 = vset.pattern.permute.xlu0 0
  %5098 = vperm.xlu0 %5097, %v5052
  %v5099 = vpop.permute.xlu0 %5098
  %5102 = vset.pattern.permute.xlu0 0
  %5103 = vperm.xlu0 %5102, %v5053
  %v5104 = vpop.permute.xlu0 %5103
  %5107 = vset.pattern.permute.xlu0 0
  %5108 = vperm.xlu0 %5107, %v5054
  %v5109 = vpop.permute.xlu0 %5108
  %5112 = vset.pattern.permute.xlu0 0
  %5113 = vperm.xlu0 %5112, %v5055
  %v5114 = vpop.permute.xlu0 %5113
  %v5128 = vunpack.c.l.b16 %v5032
  %v5129 = vunpack.c.l.b16 %v5033
  %v5130 = vunpack.c.l.b16 %v5034
  %v5131 = vunpack.c.l.b16 %v5035
  %v5132 = vunpack.c.l.b16 %v5036
  %v5133 = vunpack.c.l.b16 %v5037
  %v5134 = vunpack.c.l.b16 %v5038
  %v5135 = vunpack.c.l.b16 %v5039
  %v5136 = vunpack.c.l.b16 %v5040
  %v5137 = vunpack.c.l.b16 %v5041
  %v5138 = vunpack.c.l.b16 %v5042
  %v5139 = vunpack.c.l.b16 %v5043
  %v5140 = vpack.c.b16 %v5129, %v5128
  %v5141 = vpack.c.b16 %v5131, %v5130
  %v5142 = vpack.c.b16 %v5133, %v5132
  %v5143 = vpack.c.b16 %v5135, %v5134
  %v5144 = vpack.c.b16 %v5137, %v5136
  %v5145 = vpack.c.b16 %v5139, %v5138
  %v5147 = vsel %vm4354, %v5140, 0
  %v5150 = vsel %vm4354, %v5141, 0
  %v5153 = vsel %vm4354, %v5142, 0
  %v5156 = vsel %vm4354, %v5143, 0
  %v5159 = vsel %vm4354, %v5144, 0
  %v5162 = vsel %vm4354, %v5145, 0
  %v5165 = vsel %vm1102, %v5031, 0
  %5167 = vmatprep.subr.bf16.mxu0 0
  %5168 = vmatpush1.bf16.msra.mxu0 0
  %5169 = vmatprep.subr.bf16.mxu0 0
  %5170 = vmatpush1.bf16.msra.mxu0 0
  %5171 = vmatprep.subr.bf16.mxu0 0
  %5172 = vmatpush1.bf16.msra.mxu0 0
  %5173 = vmatprep.subr.bf16.mxu0 0
  %5174 = vmatpush1.bf16.msra.mxu0 0
  %5175 = vmatprep.subr.bf16.mxu0 0
  %5176 = vmatpush1.bf16.msra.mxu0 0
  %5177 = vmatprep.subr.bf16.mxu0 0
  %5178 = vmatpush1.bf16.msra.mxu0 0
  %5179 = vmatprep.subr.bf16.mxu0 0
  %5180 = vmatpush1.bf16.msra.mxu0 %v5165
  %5181 = vmatprep.subr.bf16.mxu0 0
  %5182 = vmatpush1.bf16.msra.mxu0 %v5030
  %5183 = vmatprep.subr.bf16.mxu0 0
  %5184 = vmatpush2.bf16.msra.mxu0 0
  %5185 = vmatprep.subr.bf16.mxu0 0
  %5186 = vmatpush2.bf16.msra.mxu0 0
  %5187 = vmatprep.subr.bf16.mxu0 0
  %5188 = vmatpush2.bf16.msra.mxu0 0
  %5189 = vmatprep.subr.bf16.mxu0 0
  %5190 = vmatpush2.bf16.msra.mxu0 0
  %5191 = vmatprep.subr.bf16.mxu0 0
  %5192 = vmatpush2.bf16.msra.mxu0 0
  %5193 = vmatprep.subr.bf16.mxu0 0
  %5194 = vmatpush2.bf16.msra.mxu0 0
  %5195 = vmatprep.subr.bf16.mxu0 0
  %5196 = vmatpush2.bf16.msra.mxu0 0
  %5197 = vmatprep.subr.bf16.mxu0 0
  %5198 = vmatpush2.bf16.msra.mxu0 0
  %5199 = vmatprep.mubr.bf16.mxu0 0
  %5200 = vmatmul.mubr.bf16.gmra.mxu0 %v5147
  %v5201 = vpop.f32.mrf.mxu0
  %v5202 = vadd.f32 %v5059, %v5201
  %v5203 = vpop.f32.mrf.mxu0
  %v5204 = vpop.f32.mrf.mxu0
  %v5205 = vadd.f32 %v5064, %v5204
  %v5206 = vpop.f32.mrf.mxu0
  %5207 = vmatprep.mubr.bf16.mxu0 0
  %5208 = vmatmul.mubr.bf16.gmra.mxu0 %v5150
  %v5209 = vpop.f32.mrf.mxu0
  %v5210 = vadd.f32 %v5069, %v5209
  %v5211 = vpop.f32.mrf.mxu0
  %v5212 = vpop.f32.mrf.mxu0
  %v5213 = vadd.f32 %v5074, %v5212
  %v5214 = vpop.f32.mrf.mxu0
  %5215 = vmatprep.mubr.bf16.mxu0 0
  %5216 = vmatmul.mubr.bf16.gmra.mxu0 %v5153
  %v5217 = vpop.f32.mrf.mxu0
  %v5218 = vadd.f32 %v5079, %v5217
  %v5219 = vpop.f32.mrf.mxu0
  %v5220 = vpop.f32.mrf.mxu0
  %v5221 = vadd.f32 %v5084, %v5220
  %v5222 = vpop.f32.mrf.mxu0
  %5223 = vmatprep.mubr.bf16.mxu0 0
  %5224 = vmatmul.mubr.bf16.gmra.mxu0 %v5156
  %v5225 = vpop.f32.mrf.mxu0
  %v5226 = vadd.f32 %v5089, %v5225
  %v5227 = vpop.f32.mrf.mxu0
  %v5228 = vpop.f32.mrf.mxu0
  %v5229 = vadd.f32 %v5094, %v5228
  %v5230 = vpop.f32.mrf.mxu0
  %5231 = vmatprep.mubr.bf16.mxu0 0
  %5232 = vmatmul.mubr.bf16.gmra.mxu0 %v5159
  %v5233 = vpop.f32.mrf.mxu0
  %v5234 = vadd.f32 %v5099, %v5233
  %v5235 = vpop.f32.mrf.mxu0
  %v5236 = vpop.f32.mrf.mxu0
  %v5237 = vadd.f32 %v5104, %v5236
  %v5238 = vpop.f32.mrf.mxu0
  %5239 = vmatprep.mubr.bf16.mxu0 0
  %5240 = vmatmul.mubr.bf16.gmra.mxu0 %v5162
  %v5241 = vpop.f32.mrf.mxu0
  %v5242 = vadd.f32 %v5109, %v5241
  %v5243 = vpop.f32.mrf.mxu0
  %v5244 = vpop.f32.mrf.mxu0
  %v5245 = vadd.f32 %v5114, %v5244
  %v5246 = vpop.f32.mrf.mxu0
  %5247 = vdwg.mxu0
  %v5248 = vmax.f32 %v5202, 0.0
  %v5249 = vmax.f32 %v5205, 0.0
  %v5250 = vmax.f32 %v5210, 0.0
  %v5251 = vmax.f32 %v5213, 0.0
  %v5252 = vmax.f32 %v5218, 0.0
  %v5253 = vmax.f32 %v5221, 0.0
  %v5254 = vmax.f32 %v5226, 0.0
  %v5255 = vmax.f32 %v5229, 0.0
  %v5256 = vmax.f32 %v5234, 0.0
  %v5257 = vmax.f32 %v5237, 0.0
  %v5258 = vmax.f32 %v5242, 0.0
  %v5259 = vmax.f32 %v5245, 0.0
  %v5260 = vunpack.c.l.bf16 %v4706
  %v5261 = vunpack.c.h.bf16 %v4706
  %v5262 = vunpack.c.l.bf16 %v4707
  %v5263 = vunpack.c.h.bf16 %v4707
  %v5264 = vunpack.c.l.bf16 %v4708
  %v5265 = vunpack.c.h.bf16 %v4708
  %v5266 = vunpack.c.l.bf16 %v4709
  %v5267 = vunpack.c.h.bf16 %v4709
  %v5268 = vunpack.c.l.bf16 %v4710
  %v5269 = vunpack.c.h.bf16 %v4710
  %v5270 = vunpack.c.l.bf16 %v4711
  %v5271 = vunpack.c.h.bf16 %v4711
  %v5272 = vadd.f32 %v5248, %v5260
  %v5273 = vadd.f32 %v5249, %v5261
  %v5274 = vadd.f32 %v5250, %v5262
  %v5275 = vadd.f32 %v5251, %v5263
  %v5276 = vadd.f32 %v5252, %v5264
  %v5277 = vadd.f32 %v5253, %v5265
  %v5278 = vadd.f32 %v5254, %v5266
  %v5279 = vadd.f32 %v5255, %v5267
  %v5280 = vadd.f32 %v5256, %v5268
  %v5281 = vadd.f32 %v5257, %v5269
  %v5282 = vadd.f32 %v5258, %v5270
  %v5283 = vadd.f32 %v5259, %v5271
  %v5284 = vmax.f32 %v5272, 0.0
  %v5285 = vmax.f32 %v5273, 0.0
  %v5286 = vmax.f32 %v5274, 0.0
  %v5287 = vmax.f32 %v5275, 0.0
  %v5288 = vmax.f32 %v5276, 0.0
  %v5289 = vmax.f32 %v5277, 0.0
  %v5290 = vmax.f32 %v5278, 0.0
  %v5291 = vmax.f32 %v5279, 0.0
  %v5292 = vmax.f32 %v5280, 0.0
  %v5293 = vmax.f32 %v5281, 0.0
  %v5294 = vmax.f32 %v5282, 0.0
  %v5295 = vmax.f32 %v5283, 0.0
  %v5296 = vpack.c.bf16 %v5285, %v5284
  %v5297 = vpack.c.bf16 %v5287, %v5286
  %v5298 = vpack.c.bf16 %v5289, %v5288
  %v5299 = vpack.c.bf16 %v5291, %v5290
  %v5300 = vpack.c.bf16 %v5293, %v5292
  %v5301 = vpack.c.bf16 %v5295, %v5294
  %v5302 = vld [vmem:[%s89] sm:$0xf]
  %v5303 = vld [vmem:[%s89 + $0x4] sm:$0xf]
  %v5304 = vld [vmem:[%s89 + $0x8] sm:$0xf]
  %v5305 = vld [vmem:[%s89 + $0xc] sm:$0xf]
  %v5306 = vld [vmem:[%s89 + $0x10] sm:$0xf]
  %v5307 = vld [vmem:[%s89 + $0x14] sm:$0xf]
  %v5308 = vld [vmem:[%s89 + $0x18] sm:$0xf]
  %v5309 = vld [vmem:[%s89 + $0x1c] sm:$0xf]
  %v5310 = vld [vmem:[%s89 + $0x20] sm:$0xf]
  %v5311 = vld [vmem:[%s89 + $0x24] sm:$0xf]
  %v5312 = vld [vmem:[%s89 + $0x28] sm:$0xf]
  %v5313 = vld [vmem:[%s89 + $0x2c] sm:$0xf]
  %v5314 = vld [vmem:[%s89 + $0x30] sm:$0xf]
  %v5315 = vld [vmem:[%s89 + $0x34] sm:$0xf]
  %v5316 = vld [vmem:[%s89 + $0x38] sm:$0xf]
  %v5317 = vld [vmem:[%s89 + $0x3c] sm:$0xf]
  %v5334 = vunpack.c.l.b16 %v5302
  %v5335 = vunpack.c.l.b16 %v5303
  %v5336 = vunpack.c.l.b16 %v5304
  %v5337 = vunpack.c.l.b16 %v5305
  %v5338 = vunpack.c.l.b16 %v5306
  %v5339 = vunpack.c.l.b16 %v5307
  %v5340 = vunpack.c.l.b16 %v5308
  %v5341 = vunpack.c.l.b16 %v5309
  %v5342 = vunpack.c.l.b16 %v5310
  %v5343 = vunpack.c.l.b16 %v5311
  %v5344 = vunpack.c.l.b16 %v5312
  %v5345 = vunpack.c.l.b16 %v5313
  %v5346 = vunpack.c.l.b16 %v5314
  %v5347 = vunpack.c.l.b16 %v5315
  %v5348 = vunpack.c.l.b16 %v5316
  %v5349 = vunpack.c.l.b16 %v5317
  %v5350 = vpack.c.b16 %v5335, %v5334
  %v5351 = vpack.c.b16 %v5337, %v5336
  %v5352 = vpack.c.b16 %v5339, %v5338
  %v5353 = vpack.c.b16 %v5341, %v5340
  %v5354 = vpack.c.b16 %v5343, %v5342
  %v5355 = vpack.c.b16 %v5345, %v5344
  %v5356 = vpack.c.b16 %v5347, %v5346
  %v5357 = vpack.c.b16 %v5349, %v5348
  %5366 = vmatprep.subr.bf16.mxu0 0
  %5367 = vmatpush1.bf16.msra.mxu0 %v5357
  %5368 = vmatprep.subr.bf16.mxu0 0
  %5369 = vmatpush1.bf16.msra.mxu0 %v5356
  %5370 = vmatprep.subr.bf16.mxu0 0
  %5371 = vmatpush1.bf16.msra.mxu0 %v5355
  %5372 = vmatprep.subr.bf16.mxu0 0
  %5373 = vmatpush1.bf16.msra.mxu0 %v5354
  %5374 = vmatprep.subr.bf16.mxu0 0
  %5375 = vmatpush1.bf16.msra.mxu0 %v5353
  %5376 = vmatprep.subr.bf16.mxu0 0
  %5377 = vmatpush1.bf16.msra.mxu0 %v5352
  %5378 = vmatprep.subr.bf16.mxu0 0
  %5379 = vmatpush1.bf16.msra.mxu0 %v5351
  %5380 = vmatprep.subr.bf16.mxu0 0
  %5381 = vmatpush1.bf16.msra.mxu0 %v5350
  %5382 = vmatprep.subr.bf16.mxu0 0
  %5383 = vmatpush2.bf16.msra.mxu0 0
  %5384 = vmatprep.subr.bf16.mxu0 0
  %5385 = vmatpush2.bf16.msra.mxu0 0
  %5386 = vmatprep.subr.bf16.mxu0 0
  %5387 = vmatpush2.bf16.msra.mxu0 0
  %5388 = vmatprep.subr.bf16.mxu0 0
  %5389 = vmatpush2.bf16.msra.mxu0 0
  %5390 = vmatprep.subr.bf16.mxu0 0
  %5391 = vmatpush2.bf16.msra.mxu0 0
  %5392 = vmatprep.subr.bf16.mxu0 0
  %5393 = vmatpush2.bf16.msra.mxu0 0
  %5394 = vmatprep.subr.bf16.mxu0 0
  %5395 = vmatpush2.bf16.msra.mxu0 0
  %5396 = vmatprep.subr.bf16.mxu0 0
  %5397 = vmatpush2.bf16.msra.mxu0 0
  %5398 = vmatprep.mubr.bf16.mxu0 0
  %5399 = vmatmul.mubr.bf16.gmra.mxu0 %v5296
  %v5400 = vpop.f32.mrf.mxu0
  %v5401 = vadd.f32 0.0, %v5400
  %v5402 = vpop.f32.mrf.mxu0
  %v5403 = vpop.f32.mrf.mxu0
  %v5404 = vadd.f32 0.0, %v5403
  %v5405 = vpop.f32.mrf.mxu0
  %5406 = vmatprep.mubr.bf16.mxu0 0
  %5407 = vmatmul.mubr.bf16.gmra.mxu0 %v5297
  %v5408 = vpop.f32.mrf.mxu0
  %v5409 = vadd.f32 0.0, %v5408
  %v5410 = vpop.f32.mrf.mxu0
  %v5411 = vpop.f32.mrf.mxu0
  %v5412 = vadd.f32 0.0, %v5411
  %v5413 = vpop.f32.mrf.mxu0
  %5414 = vmatprep.mubr.bf16.mxu0 0
  %5415 = vmatmul.mubr.bf16.gmra.mxu0 %v5298
  %v5416 = vpop.f32.mrf.mxu0
  %v5417 = vadd.f32 0.0, %v5416
  %v5418 = vpop.f32.mrf.mxu0
  %v5419 = vpop.f32.mrf.mxu0
  %v5420 = vadd.f32 0.0, %v5419
  %v5421 = vpop.f32.mrf.mxu0
  %5422 = vmatprep.mubr.bf16.mxu0 0
  %5423 = vmatmul.mubr.bf16.gmra.mxu0 %v5299
  %v5424 = vpop.f32.mrf.mxu0
  %v5425 = vadd.f32 0.0, %v5424
  %v5426 = vpop.f32.mrf.mxu0
  %v5427 = vpop.f32.mrf.mxu0
  %v5428 = vadd.f32 0.0, %v5427
  %v5429 = vpop.f32.mrf.mxu0
  %5430 = vmatprep.mubr.bf16.mxu0 0
  %5431 = vmatmul.mubr.bf16.gmra.mxu0 %v5300
  %v5432 = vpop.f32.mrf.mxu0
  %v5433 = vadd.f32 0.0, %v5432
  %v5434 = vpop.f32.mrf.mxu0
  %v5435 = vpop.f32.mrf.mxu0
  %v5436 = vadd.f32 0.0, %v5435
  %v5437 = vpop.f32.mrf.mxu0
  %5438 = vmatprep.mubr.bf16.mxu0 0
  %5439 = vmatmul.mubr.bf16.gmra.mxu0 %v5301
  %v5440 = vpop.f32.mrf.mxu0
  %v5441 = vadd.f32 0.0, %v5440
  %v5442 = vpop.f32.mrf.mxu0
  %v5443 = vpop.f32.mrf.mxu0
  %v5444 = vadd.f32 0.0, %v5443
  %v5445 = vpop.f32.mrf.mxu0
  %5446 = vdwg.mxu0
  %v5447 = vpack.c.bf16 %v5404, %v5401
  %v5448 = vpack.c.bf16 %v5412, %v5409
  %v5449 = vpack.c.bf16 %v5420, %v5417
  %v5450 = vpack.c.bf16 %v5428, %v5425
  %v5451 = vpack.c.bf16 %v5436, %v5433
  %v5452 = vpack.c.bf16 %v5444, %v5441
  %v5453 = vld [vmem:[%s91] sm:$0xf]
  %v5454 = vld [vmem:[%s91 + $0x4] sm:$0xf]
  %v5455 = vld [vmem:[%s91 + $0x8] sm:$0xf]
  %v5456 = vld [vmem:[%s91 + $0xc] sm:$0xf]
  %v5457 = vld [vmem:[%s91 + $0x10] sm:$0xf]
  %v5458 = vld [vmem:[%s91 + $0x14] sm:$0xf]
  %v5459 = vld [vmem:[%s91 + $0x18] sm:$0xf]
  %v5460 = vld [vmem:[%s91 + $0x1c] sm:$0xf]
  %v5461 = vld [vmem:[%s91 + $0x20] sm:$0xf]
  %v5462 = vld [vmem:[%s91 + $0x24] sm:$0xf]
  %v5463 = vld [vmem:[%s91 + $0x28] sm:$0xf]
  %v5464 = vld [vmem:[%s91 + $0x2c] sm:$0xf]
  %v5465 = vld [vmem:[%s91 + $0x30] sm:$0xf]
  %v5466 = vld [vmem:[%s91 + $0x34] sm:$0xf]
  %v5467 = vld [vmem:[%s91 + $0x38] sm:$0xf]
  %v5468 = vld [vmem:[%s91 + $0x3c] sm:$0xf]
  %v5469 = vld [vmem:[%s93] sm:$0xff]
  %v5470 = vld [vmem:[%s93 + $0x8] sm:$0xff]
  %v5471 = vld [vmem:[%s93 + $0x10] sm:$0xff]
  %v5472 = vld [vmem:[%s93 + $0x18] sm:$0xff]
  %v5473 = vld [vmem:[%s93 + $0x20] sm:$0xff]
  %v5474 = vld [vmem:[%s93 + $0x28] sm:$0xff]
  %v5475 = vld [vmem:[%s93 + $0x30] sm:$0xff]
  %v5476 = vld [vmem:[%s93 + $0x38] sm:$0xff]
  %v5477 = vld [vmem:[%s93 + $0x40] sm:$0xff]
  %v5478 = vld [vmem:[%s93 + $0x48] sm:$0xff]
  %v5479 = vld [vmem:[%s93 + $0x50] sm:$0xff]
  %v5480 = vld [vmem:[%s93 + $0x58] sm:$0xff]
  %v5481 = vld [vmem:[%s93 + $0x60] sm:$0xff]
  %v5482 = vld [vmem:[%s93 + $0x68] sm:$0xff]
  %v5483 = vld [vmem:[%s93 + $0x70] sm:$0xff]
  %v5484 = vld [vmem:[%s93 + $0x78] sm:$0xff]
  %5486 = vset.pattern.permute.xlu0 0
  %5487 = vperm.xlu0 %5486, %v5469
  %v5488 = vpop.permute.xlu0 %5487
  %5491 = vset.pattern.permute.xlu0 0
  %5492 = vperm.xlu0 %5491, %v5470
  %v5493 = vpop.permute.xlu0 %5492
  %5496 = vset.pattern.permute.xlu0 0
  %5497 = vperm.xlu0 %5496, %v5471
  %v5498 = vpop.permute.xlu0 %5497
  %5501 = vset.pattern.permute.xlu0 0
  %5502 = vperm.xlu0 %5501, %v5472
  %v5503 = vpop.permute.xlu0 %5502
  %5506 = vset.pattern.permute.xlu0 0
  %5507 = vperm.xlu0 %5506, %v5473
  %v5508 = vpop.permute.xlu0 %5507
  %5511 = vset.pattern.permute.xlu0 0
  %5512 = vperm.xlu0 %5511, %v5474
  %v5513 = vpop.permute.xlu0 %5512
  %5516 = vset.pattern.permute.xlu0 0
  %5517 = vperm.xlu0 %5516, %v5475
  %v5518 = vpop.permute.xlu0 %5517
  %5521 = vset.pattern.permute.xlu0 0
  %5522 = vperm.xlu0 %5521, %v5476
  %v5523 = vpop.permute.xlu0 %5522
  %5526 = vset.pattern.permute.xlu0 0
  %5527 = vperm.xlu0 %5526, %v5477
  %v5528 = vpop.permute.xlu0 %5527
  %5531 = vset.pattern.permute.xlu0 0
  %5532 = vperm.xlu0 %5531, %v5478
  %v5533 = vpop.permute.xlu0 %5532
  %5536 = vset.pattern.permute.xlu0 0
  %5537 = vperm.xlu0 %5536, %v5479
  %v5538 = vpop.permute.xlu0 %5537
  %5541 = vset.pattern.permute.xlu0 0
  %5542 = vperm.xlu0 %5541, %v5480
  %v5543 = vpop.permute.xlu0 %5542
  %5546 = vset.pattern.permute.xlu0 0
  %5547 = vperm.xlu0 %5546, %v5481
  %v5548 = vpop.permute.xlu0 %5547
  %5551 = vset.pattern.permute.xlu0 0
  %5552 = vperm.xlu0 %5551, %v5482
  %v5553 = vpop.permute.xlu0 %5552
  %5556 = vset.pattern.permute.xlu0 0
  %5557 = vperm.xlu0 %5556, %v5483
  %v5558 = vpop.permute.xlu0 %5557
  %5561 = vset.pattern.permute.xlu0 0
  %5562 = vperm.xlu0 %5561, %v5484
  %v5563 = vpop.permute.xlu0 %5562
  %v5581 = vunpack.c.l.b16 %v5453
  %v5582 = vunpack.c.l.b16 %v5454
  %v5583 = vunpack.c.l.b16 %v5455
  %v5584 = vunpack.c.l.b16 %v5456
  %v5585 = vunpack.c.l.b16 %v5457
  %v5586 = vunpack.c.l.b16 %v5458
  %v5587 = vunpack.c.l.b16 %v5459
  %v5588 = vunpack.c.l.b16 %v5460
  %v5589 = vunpack.c.l.b16 %v5461
  %v5590 = vunpack.c.l.b16 %v5462
  %v5591 = vunpack.c.l.b16 %v5463
  %v5592 = vunpack.c.l.b16 %v5464
  %v5593 = vunpack.c.l.b16 %v5465
  %v5594 = vunpack.c.l.b16 %v5466
  %v5595 = vunpack.c.l.b16 %v5467
  %v5596 = vunpack.c.l.b16 %v5468
  %v5597 = vpack.c.b16 %v5582, %v5581
  %v5598 = vpack.c.b16 %v5584, %v5583
  %v5599 = vpack.c.b16 %v5586, %v5585
  %v5600 = vpack.c.b16 %v5588, %v5587
  %v5601 = vpack.c.b16 %v5590, %v5589
  %v5602 = vpack.c.b16 %v5592, %v5591
  %v5603 = vpack.c.b16 %v5594, %v5593
  %v5604 = vpack.c.b16 %v5596, %v5595
  %v5606 = vsel %vm4741, %v5597, 0
  %v5609 = vsel %vm4741, %v5598, 0
  %v5612 = vsel %vm4741, %v5599, 0
  %v5615 = vsel %vm4741, %v5600, 0
  %v5618 = vsel %vm4741, %v5601, 0
  %v5621 = vsel %vm4741, %v5602, 0
  %v5624 = vsel %vm4741, %v5603, 0
  %v5627 = vsel %vm4741, %v5604, 0
  %5629 = vmatprep.subr.bf16.mxu0 0
  %5630 = vmatpush1.bf16.msra.mxu0 0
  %5631 = vmatprep.subr.bf16.mxu0 0
  %5632 = vmatpush1.bf16.msra.mxu0 0
  %5633 = vmatprep.subr.bf16.mxu0 0
  %5634 = vmatpush1.bf16.msra.mxu0 %v5452
  %5635 = vmatprep.subr.bf16.mxu0 0
  %5636 = vmatpush1.bf16.msra.mxu0 %v5451
  %5637 = vmatprep.subr.bf16.mxu0 0
  %5638 = vmatpush1.bf16.msra.mxu0 %v5450
  %5639 = vmatprep.subr.bf16.mxu0 0
  %5640 = vmatpush1.bf16.msra.mxu0 %v5449
  %5641 = vmatprep.subr.bf16.mxu0 0
  %5642 = vmatpush1.bf16.msra.mxu0 %v5448
  %5643 = vmatprep.subr.bf16.mxu0 0
  %5644 = vmatpush1.bf16.msra.mxu0 %v5447
  %5645 = vmatprep.subr.bf16.mxu0 0
  %5646 = vmatpush2.bf16.msra.mxu0 0
  %5647 = vmatprep.subr.bf16.mxu0 0
  %5648 = vmatpush2.bf16.msra.mxu0 0
  %5649 = vmatprep.subr.bf16.mxu0 0
  %5650 = vmatpush2.bf16.msra.mxu0 0
  %5651 = vmatprep.subr.bf16.mxu0 0
  %5652 = vmatpush2.bf16.msra.mxu0 0
  %5653 = vmatprep.subr.bf16.mxu0 0
  %5654 = vmatpush2.bf16.msra.mxu0 0
  %5655 = vmatprep.subr.bf16.mxu0 0
  %5656 = vmatpush2.bf16.msra.mxu0 0
  %5657 = vmatprep.subr.bf16.mxu0 0
  %5658 = vmatpush2.bf16.msra.mxu0 0
  %5659 = vmatprep.subr.bf16.mxu0 0
  %5660 = vmatpush2.bf16.msra.mxu0 0
  %5661 = vmatprep.mubr.bf16.mxu0 0
  %5662 = vmatmul.mubr.bf16.gmra.mxu0 %v5606
  %v5663 = vpop.f32.mrf.mxu0
  %v5664 = vadd.f32 %v5488, %v5663
  %v5665 = vpop.f32.mrf.mxu0
  %v5666 = vpop.f32.mrf.mxu0
  %v5667 = vadd.f32 %v5493, %v5666
  %v5668 = vpop.f32.mrf.mxu0
  %5669 = vmatprep.mubr.bf16.mxu0 0
  %5670 = vmatmul.mubr.bf16.gmra.mxu0 %v5609
  %v5671 = vpop.f32.mrf.mxu0
  %v5672 = vadd.f32 %v5498, %v5671
  %v5673 = vpop.f32.mrf.mxu0
  %v5674 = vpop.f32.mrf.mxu0
  %v5675 = vadd.f32 %v5503, %v5674
  %v5676 = vpop.f32.mrf.mxu0
  %5677 = vmatprep.mubr.bf16.mxu0 0
  %5678 = vmatmul.mubr.bf16.gmra.mxu0 %v5612
  %v5679 = vpop.f32.mrf.mxu0
  %v5680 = vadd.f32 %v5508, %v5679
  %v5681 = vpop.f32.mrf.mxu0
  %v5682 = vpop.f32.mrf.mxu0
  %v5683 = vadd.f32 %v5513, %v5682
  %v5684 = vpop.f32.mrf.mxu0
  %5685 = vmatprep.mubr.bf16.mxu0 0
  %5686 = vmatmul.mubr.bf16.gmra.mxu0 %v5615
  %v5687 = vpop.f32.mrf.mxu0
  %v5688 = vadd.f32 %v5518, %v5687
  %v5689 = vpop.f32.mrf.mxu0
  %v5690 = vpop.f32.mrf.mxu0
  %v5691 = vadd.f32 %v5523, %v5690
  %v5692 = vpop.f32.mrf.mxu0
  %5693 = vmatprep.mubr.bf16.mxu0 0
  %5694 = vmatmul.mubr.bf16.gmra.mxu0 %v5618
  %v5695 = vpop.f32.mrf.mxu0
  %v5696 = vadd.f32 %v5528, %v5695
  %v5697 = vpop.f32.mrf.mxu0
  %v5698 = vpop.f32.mrf.mxu0
  %v5699 = vadd.f32 %v5533, %v5698
  %v5700 = vpop.f32.mrf.mxu0
  %5701 = vmatprep.mubr.bf16.mxu0 0
  %5702 = vmatmul.mubr.bf16.gmra.mxu0 %v5621
  %v5703 = vpop.f32.mrf.mxu0
  %v5704 = vadd.f32 %v5538, %v5703
  %v5705 = vpop.f32.mrf.mxu0
  %v5706 = vpop.f32.mrf.mxu0
  %v5707 = vadd.f32 %v5543, %v5706
  %v5708 = vpop.f32.mrf.mxu0
  %5709 = vmatprep.mubr.bf16.mxu0 0
  %5710 = vmatmul.mubr.bf16.gmra.mxu0 %v5624
  %v5711 = vpop.f32.mrf.mxu0
  %v5712 = vadd.f32 %v5548, %v5711
  %v5713 = vpop.f32.mrf.mxu0
  %v5714 = vpop.f32.mrf.mxu0
  %v5715 = vadd.f32 %v5553, %v5714
  %v5716 = vpop.f32.mrf.mxu0
  %5717 = vmatprep.mubr.bf16.mxu0 0
  %5718 = vmatmul.mubr.bf16.gmra.mxu0 %v5627
  %v5719 = vpop.f32.mrf.mxu0
  %v5720 = vadd.f32 %v5558, %v5719
  %v5721 = vpop.f32.mrf.mxu0
  %v5722 = vpop.f32.mrf.mxu0
  %v5723 = vadd.f32 %v5563, %v5722
  %v5724 = vpop.f32.mrf.mxu0
  %5725 = vdwg.mxu0
  %5726 = vst.msk [vmem:[%s95] sm:$0xff] %vm481, %v5664
  %5727 = vst.msk [vmem:[%s95 + $0x8] sm:$0xff] %vm481, %v5667
  %5728 = vst.msk [vmem:[%s95 + $0x10] sm:$0xff] %vm481, %v5672
  %5729 = vst.msk [vmem:[%s95 + $0x18] sm:$0xff] %vm481, %v5675
  %5730 = vst.msk [vmem:[%s95 + $0x20] sm:$0xff] %vm481, %v5680
  %5731 = vst.msk [vmem:[%s95 + $0x28] sm:$0xff] %vm481, %v5683
  %5732 = vst.msk [vmem:[%s95 + $0x30] sm:$0xff] %vm481, %v5688
  %5733 = vst.msk [vmem:[%s95 + $0x38] sm:$0xff] %vm481, %v5691
  %5734 = vst.msk [vmem:[%s95 + $0x40] sm:$0xff] %vm481, %v5696
  %5735 = vst.msk [vmem:[%s95 + $0x48] sm:$0xff] %vm481, %v5699
  %5736 = vst.msk [vmem:[%s95 + $0x50] sm:$0xff] %vm481, %v5704
  %5737 = vst.msk [vmem:[%s95 + $0x58] sm:$0xff] %vm481, %v5707
  %5738 = vst.msk [vmem:[%s95 + $0x60] sm:$0xff] %vm481, %v5712
  %5739 = vst.msk [vmem:[%s95 + $0x68] sm:$0xff] %vm481, %v5715
  %5740 = vst.msk [vmem:[%s95 + $0x70] sm:$0xff] %vm481, %v5720
  %5741 = vst.msk [vmem:[%s95 + $0x78] sm:$0xff] %vm481, %v5723
  // Predicated region
  $region190: #{context_encoder_forward.1} parent=0 // pred_check
    _
  $region191: #{context_encoder_forward.1} parent=0 // pred_check_branch
    %5743 = sbr.rel (0) target = $region193
  $region192: #{context_encoder_forward.1} parent=0 // pred_region
    _
  $region193: #{context_encoder_forward.1} parent=0 // pred_fallthru
    _
  // Predicated region
  $region194: #{context_encoder_forward.1} parent=0 // pred_check
    _
  $region195: #{context_encoder_forward.1} parent=0 // pred_check_branch
    %5745 = sbr.rel (0) target = $region197
  $region196: #{context_encoder_forward.1} parent=0 // pred_region
    _
  $region197: #{context_encoder_forward.1} parent=0 // pred_fallthru
    _

</llo_original>
